<compile_context>
chip_gen: v5e
topology: v5e:2x2
jax: 0.10.0
libtpu: 0.0.40
codegen_flags: <defaults>
</compile_context>

<pallas_src>
import functools

import jax
import jax.numpy as jnp
from jax.experimental import pallas as pl
from jax.experimental.pallas import tpu as pltpu

KH = KW = 5
CIN = 3
COUT = 32
DROP_P = 0.5


def conv_dropout_kernel(seed_ref, x_ref, w_ref, b_ref, o_ref, p_ref):
    # seed_ref: (1,)              SMEM int32
    # x_ref:    (N, H, W, CIN)    VMEM f32
    # w_ref:    (KH*KW*CIN, COUT) VMEM f32   (k ordered as kh*KW*CIN + kw*CIN + c)
    # b_ref:    (COUT, 1)         VMEM f32
    # o_ref:    (N, COUT, OH*OW)  VMEM f32
    # p_ref:    (N*OH*OW, KH*KW*CIN) VMEM f32 scratch (im2col patch matrix)
    n_img, h, w_dim, cin = x_ref.shape
    _, cout, ohw = o_ref.shape
    oh = h - KH + 1
    ow = w_dim - KW + 1
    m_total = n_img * oh * ow

    # ---- im2col: 25 shifted windows -> (M, 75) patch matrix in VMEM scratch ----
    for kh in range(KH):
        for kw in range(KW):
            t = kh * KW + kw
            win = x_ref[:, kh:kh + oh, kw:kw + ow, :]            # (N, OH, OW, CIN)
            p_ref[:, t * cin:(t + 1) * cin] = win.reshape(m_total, cin)

    # ---- one MXU matmul for the whole batch, f32 accumulation ----
    acc = jnp.dot(p_ref[...], w_ref[...],
                  preferred_element_type=jnp.float32)            # (M, COUT)
    acc_t = acc.T + b_ref[...]                                   # (COUT, M)  lane-dense

    # ---- dropout p=0.5 (training): stateless hash of (seed, linear index) ----
    row = jax.lax.broadcasted_iota(jnp.int32, (cout, m_total), 0)
    col = jax.lax.broadcasted_iota(jnp.int32, (cout, m_total), 1)
    z = (row * m_total + col).astype(jnp.uint32)
    z = z ^ (seed_ref[0].astype(jnp.uint32) * jnp.uint32(0x9E3779B1))
    z = z ^ (z >> jnp.uint32(16))
    z = z * jnp.uint32(0x7FEB352D)
    z = z ^ (z >> jnp.uint32(15))
    z = z * jnp.uint32(0x846CA68B)
    z = z ^ (z >> jnp.uint32(16))
    keep = (z >> jnp.uint32(31)) == jnp.uint32(0)                # P(keep) = 0.5
    scale = 1.0 / (1.0 - DROP_P)
    dropped = jnp.where(keep, acc_t * scale, 0.0)                # (COUT, M)

    # ---- store one lane-dense (COUT, OH*OW) slab per image ----
    for n in range(n_img):
        o_ref[n] = dropped[:, n * ohw:(n + 1) * ohw].astype(o_ref.dtype)


@jax.jit
def conv2d_dropout(x_nchw, w_oihw, bias, seed):
    n, cin, h, wdim = x_nchw.shape
    oh, ow = h - KH + 1, wdim - KW + 1

    # Activation: NHWC for cheap shifted-window im2col in the kernel (tiny one-time op).
    x = jnp.transpose(x_nchw, (0, 2, 3, 1))                      # (N, H, W, CIN)
    # Weights: (COUT, CIN, KH, KW) -> (KH*KW*CIN, COUT), matching patch column order.
    w2d = jnp.transpose(w_oihw, (2, 3, 1, 0)).reshape(KH * KW * CIN, COUT)
    b2d = bias.reshape(COUT, 1)

    out = pl.pallas_call(
        conv_dropout_kernel,
        out_shape=jax.ShapeDtypeStruct((n, COUT, oh * ow), jnp.float32),
        in_specs=[
            pl.BlockSpec(memory_space=pltpu.MemorySpace.SMEM),   # seed
            pl.BlockSpec(memory_space=pltpu.MemorySpace.VMEM),   # x
            pl.BlockSpec(memory_space=pltpu.MemorySpace.VMEM),   # w2d
            pl.BlockSpec(memory_space=pltpu.MemorySpace.VMEM),   # bias
        ],
        out_specs=pl.BlockSpec(memory_space=pltpu.MemorySpace.VMEM),
        scratch_shapes=[pltpu.VMEM((n * oh * ow, KH * KW * CIN), jnp.float32)],
    )(seed, x, w2d, b2d)

    # Free row-major view: (N, COUT, OH*OW) -> (N, COUT, OH, OW); no transpose pass.
    return out.reshape(n, COUT, oh, ow)


if __name__ == "__main__":
    key = jax.random.PRNGKey(0)
    kx, kwt, kb = jax.random.split(key, 3)

    # Shapes implied by the module: Conv2d(3, 32, 5) -> x is (N=2, C=3, H=16, W=16).
    x = jax.random.normal(kx, (2, CIN, 16, 16), dtype=jnp.float32)

    fan_in = CIN * KH * KW
    bound = 1.0 / (fan_in ** 0.5)
    w = jax.random.uniform(kwt, (COUT, CIN, KH, KW), jnp.float32, -bound, bound)
    b = jax.random.uniform(kb, (COUT,), jnp.float32, -bound, bound)
    seed = jnp.array([1234], dtype=jnp.int32)

    out = conv2d_dropout(x, w, b, seed)
    out = jax.block_until_ready(out)

    assert out.shape == (2, COUT, 12, 12), out.shape
    assert bool(jnp.all(jnp.isfinite(out)))

    # Sanity check: every element is either 0 (dropped) or 2 * conv(x) (kept & scaled).
    ref = jax.lax.conv_general_dilated(
        x, w, window_strides=(1, 1), padding="VALID",
        dimension_numbers=("NCHW", "OIHW", "NCHW")) + b.reshape(1, COUT, 1, 1)
    ok = jnp.isclose(out, 2.0 * ref, rtol=1e-4, atol=1e-4) | (out == 0.0)
    assert bool(jnp.all(ok))
    frac_zero = float(jnp.mean(out == 0.0))
    assert 0.35 < frac_zero < 0.65, frac_zero

    # TODO(synk): dropout mask uses a stateless hash, so it will not bit-match PyTorch's RNG
    # (expected for training-mode dropout); keep-probability and 1/(1-p) scaling are exact.
    print("KERNEL_OK")
</pallas_src>

<mosaic_0001>
module attributes {stable_mosaic.version = 11 : i64} {
  func.func @conv_dropout_kernel(%arg0: memref<1xi32, #tpu.memory_space<smem>>, %arg1: memref<2x16x16x3xf32, #tpu.memory_space<vmem>>, %arg2: memref<75x32xf32, #tpu.memory_space<vmem>>, %arg3: memref<32x1xf32, #tpu.memory_space<vmem>>, %arg4: memref<2x32x144xf32, #tpu.memory_space<vmem>>, %arg5: memref<288x75xf32, #tpu.memory_space<vmem>>) attributes {dimension_semantics = [], scalar_prefetch = 0 : i64, scratch_operands = 1 : i64, tpu.core_type = #tpu.core_type<tc>} {
    %c0 = arith.constant 0 : index
    %c0_0 = arith.constant 0 : index
    %c0_1 = arith.constant 0 : index
    %c0_2 = arith.constant 0 : index
    %0 = vector.load %arg1[%c0, %c0_0, %c0_1, %c0_2] : memref<2x16x16x3xf32, #tpu.memory_space<vmem>>, vector<2x12x12x3xf32>
    %1 = vector.shape_cast %0 : vector<2x12x12x3xf32> to vector<288x3xf32>
    %c0_3 = arith.constant 0 : index
    %c0_4 = arith.constant 0 : index
    %2 = vector.load %arg5[%c0_3, %c0_4] : memref<288x75xf32, #tpu.memory_space<vmem>>, vector<288x3xf32>
    tpu.vector_store %arg5[%c0_3, %c0_4], %1 {strides = array<i32>} : memref<288x75xf32, #tpu.memory_space<vmem>>, vector<288x3xf32>,
    %c0_5 = arith.constant 0 : index
    %c0_6 = arith.constant 0 : index
    %c1 = arith.constant 1 : index
    %c0_7 = arith.constant 0 : index
    %3 = vector.load %arg1[%c0_5, %c0_6, %c1, %c0_7] : memref<2x16x16x3xf32, #tpu.memory_space<vmem>>, vector<2x12x12x3xf32>
    %4 = vector.shape_cast %3 : vector<2x12x12x3xf32> to vector<288x3xf32>
    %c0_8 = arith.constant 0 : index
    %c3 = arith.constant 3 : index
    %5 = vector.load %arg5[%c0_8, %c3] : memref<288x75xf32, #tpu.memory_space<vmem>>, vector<288x3xf32>
    tpu.vector_store %arg5[%c0_8, %c3], %4 {strides = array<i32>} : memref<288x75xf32, #tpu.memory_space<vmem>>, vector<288x3xf32>,
    %c0_9 = arith.constant 0 : index
    %c0_10 = arith.constant 0 : index
    %c2 = arith.constant 2 : index
    %c0_11 = arith.constant 0 : index
    %6 = vector.load %arg1[%c0_9, %c0_10, %c2, %c0_11] : memref<2x16x16x3xf32, #tpu.memory_space<vmem>>, vector<2x12x12x3xf32>
    %7 = vector.shape_cast %6 : vector<2x12x12x3xf32> to vector<288x3xf32>
    %c0_12 = arith.constant 0 : index
    %c6 = arith.constant 6 : index
    %8 = vector.load %arg5[%c0_12, %c6] : memref<288x75xf32, #tpu.memory_space<vmem>>, vector<288x3xf32>
    tpu.vector_store %arg5[%c0_12, %c6], %7 {strides = array<i32>} : memref<288x75xf32, #tpu.memory_space<vmem>>, vector<288x3xf32>,
    %c0_13 = arith.constant 0 : index
    %c0_14 = arith.constant 0 : index
    %c3_15 = arith.constant 3 : index
    %c0_16 = arith.constant 0 : index
    %9 = vector.load %arg1[%c0_13, %c0_14, %c3_15, %c0_16] : memref<2x16x16x3xf32, #tpu.memory_space<vmem>>, vector<2x12x12x3xf32>
    %10 = vector.shape_cast %9 : vector<2x12x12x3xf32> to vector<288x3xf32>
    %c0_17 = arith.constant 0 : index
    %c9 = arith.constant 9 : index
    %11 = vector.load %arg5[%c0_17, %c9] : memref<288x75xf32, #tpu.memory_space<vmem>>, vector<288x3xf32>
    tpu.vector_store %arg5[%c0_17, %c9], %10 {strides = array<i32>} : memref<288x75xf32, #tpu.memory_space<vmem>>, vector<288x3xf32>,
    %c0_18 = arith.constant 0 : index
    %c0_19 = arith.constant 0 : index
    %c4 = arith.constant 4 : index
    %c0_20 = arith.constant 0 : index
    %12 = vector.load %arg1[%c0_18, %c0_19, %c4, %c0_20] : memref<2x16x16x3xf32, #tpu.memory_space<vmem>>, vector<2x12x12x3xf32>
    %13 = vector.shape_cast %12 : vector<2x12x12x3xf32> to vector<288x3xf32>
    %c0_21 = arith.constant 0 : index
    %c12 = arith.constant 12 : index
    %14 = vector.load %arg5[%c0_21, %c12] : memref<288x75xf32, #tpu.memory_space<vmem>>, vector<288x3xf32>
    tpu.vector_store %arg5[%c0_21, %c12], %13 {strides = array<i32>} : memref<288x75xf32, #tpu.memory_space<vmem>>, vector<288x3xf32>,
    %c0_22 = arith.constant 0 : index
    %c1_23 = arith.constant 1 : index
    %c0_24 = arith.constant 0 : index
    %c0_25 = arith.constant 0 : index
    %15 = vector.load %arg1[%c0_22, %c1_23, %c0_24, %c0_25] : memref<2x16x16x3xf32, #tpu.memory_space<vmem>>, vector<2x12x12x3xf32>
    %16 = vector.shape_cast %15 : vector<2x12x12x3xf32> to vector<288x3xf32>
    %c0_26 = arith.constant 0 : index
    %c15 = arith.constant 15 : index
    %17 = vector.load %arg5[%c0_26, %c15] : memref<288x75xf32, #tpu.memory_space<vmem>>, vector<288x3xf32>
    tpu.vector_store %arg5[%c0_26, %c15], %16 {strides = array<i32>} : memref<288x75xf32, #tpu.memory_space<vmem>>, vector<288x3xf32>,
    %c0_27 = arith.constant 0 : index
    %c1_28 = arith.constant 1 : index
    %c1_29 = arith.constant 1 : index
    %c0_30 = arith.constant 0 : index
    %18 = vector.load %arg1[%c0_27, %c1_28, %c1_29, %c0_30] : memref<2x16x16x3xf32, #tpu.memory_space<vmem>>, vector<2x12x12x3xf32>
    %19 = vector.shape_cast %18 : vector<2x12x12x3xf32> to vector<288x3xf32>
    %c0_31 = arith.constant 0 : index
    %c18 = arith.constant 18 : index
    %20 = vector.load %arg5[%c0_31, %c18] : memref<288x75xf32, #tpu.memory_space<vmem>>, vector<288x3xf32>
    tpu.vector_store %arg5[%c0_31, %c18], %19 {strides = array<i32>} : memref<288x75xf32, #tpu.memory_space<vmem>>, vector<288x3xf32>,
    %c0_32 = arith.constant 0 : index
    %c1_33 = arith.constant 1 : index
    %c2_34 = arith.constant 2 : index
    %c0_35 = arith.constant 0 : index
    %21 = vector.load %arg1[%c0_32, %c1_33, %c2_34, %c0_35] : memref<2x16x16x3xf32, #tpu.memory_space<vmem>>, vector<2x12x12x3xf32>
    %22 = vector.shape_cast %21 : vector<2x12x12x3xf32> to vector<288x3xf32>
    %c0_36 = arith.constant 0 : index
    %c21 = arith.constant 21 : index
    %23 = vector.load %arg5[%c0_36, %c21] : memref<288x75xf32, #tpu.memory_space<vmem>>, vector<288x3xf32>
    tpu.vector_store %arg5[%c0_36, %c21], %22 {strides = array<i32>} : memref<288x75xf32, #tpu.memory_space<vmem>>, vector<288x3xf32>,
    %c0_37 = arith.constant 0 : index
    %c1_38 = arith.constant 1 : index
    %c3_39 = arith.constant 3 : index
    %c0_40 = arith.constant 0 : index
    %24 = vector.load %arg1[%c0_37, %c1_38, %c3_39, %c0_40] : memref<2x16x16x3xf32, #tpu.memory_space<vmem>>, vector<2x12x12x3xf32>
    %25 = vector.shape_cast %24 : vector<2x12x12x3xf32> to vector<288x3xf32>
    %c0_41 = arith.constant 0 : index
    %c24 = arith.constant 24 : index
    %26 = vector.load %arg5[%c0_41, %c24] : memref<288x75xf32, #tpu.memory_space<vmem>>, vector<288x3xf32>
    tpu.vector_store %arg5[%c0_41, %c24], %25 {strides = array<i32>} : memref<288x75xf32, #tpu.memory_space<vmem>>, vector<288x3xf32>,
    %c0_42 = arith.constant 0 : index
    %c1_43 = arith.constant 1 : index
    %c4_44 = arith.constant 4 : index
    %c0_45 = arith.constant 0 : index
    %27 = vector.load %arg1[%c0_42, %c1_43, %c4_44, %c0_45] : memref<2x16x16x3xf32, #tpu.memory_space<vmem>>, vector<2x12x12x3xf32>
    %28 = vector.shape_cast %27 : vector<2x12x12x3xf32> to vector<288x3xf32>
    %c0_46 = arith.constant 0 : index
    %c27 = arith.constant 27 : index
    %29 = vector.load %arg5[%c0_46, %c27] : memref<288x75xf32, #tpu.memory_space<vmem>>, vector<288x3xf32>
    tpu.vector_store %arg5[%c0_46, %c27], %28 {strides = array<i32>} : memref<288x75xf32, #tpu.memory_space<vmem>>, vector<288x3xf32>,
    %c0_47 = arith.constant 0 : index
    %c2_48 = arith.constant 2 : index
    %c0_49 = arith.constant 0 : index
    %c0_50 = arith.constant 0 : index
    %30 = vector.load %arg1[%c0_47, %c2_48, %c0_49, %c0_50] : memref<2x16x16x3xf32, #tpu.memory_space<vmem>>, vector<2x12x12x3xf32>
    %31 = vector.shape_cast %30 : vector<2x12x12x3xf32> to vector<288x3xf32>
    %c0_51 = arith.constant 0 : index
    %c30 = arith.constant 30 : index
    %32 = vector.load %arg5[%c0_51, %c30] : memref<288x75xf32, #tpu.memory_space<vmem>>, vector<288x3xf32>
    tpu.vector_store %arg5[%c0_51, %c30], %31 {strides = array<i32>} : memref<288x75xf32, #tpu.memory_space<vmem>>, vector<288x3xf32>,
    %c0_52 = arith.constant 0 : index
    %c2_53 = arith.constant 2 : index
    %c1_54 = arith.constant 1 : index
    %c0_55 = arith.constant 0 : index
    %33 = vector.load %arg1[%c0_52, %c2_53, %c1_54, %c0_55] : memref<2x16x16x3xf32, #tpu.memory_space<vmem>>, vector<2x12x12x3xf32>
    %34 = vector.shape_cast %33 : vector<2x12x12x3xf32> to vector<288x3xf32>
    %c0_56 = arith.constant 0 : index
    %c33 = arith.constant 33 : index
    %35 = vector.load %arg5[%c0_56, %c33] : memref<288x75xf32, #tpu.memory_space<vmem>>, vector<288x3xf32>
    tpu.vector_store %arg5[%c0_56, %c33], %34 {strides = array<i32>} : memref<288x75xf32, #tpu.memory_space<vmem>>, vector<288x3xf32>,
    %c0_57 = arith.constant 0 : index
    %c2_58 = arith.constant 2 : index
    %c2_59 = arith.constant 2 : index
    %c0_60 = arith.constant 0 : index
    %36 = vector.load %arg1[%c0_57, %c2_58, %c2_59, %c0_60] : memref<2x16x16x3xf32, #tpu.memory_space<vmem>>, vector<2x12x12x3xf32>
    %37 = vector.shape_cast %36 : vector<2x12x12x3xf32> to vector<288x3xf32>
    %c0_61 = arith.constant 0 : index
    %c36 = arith.constant 36 : index
    %38 = vector.load %arg5[%c0_61, %c36] : memref<288x75xf32, #tpu.memory_space<vmem>>, vector<288x3xf32>
    tpu.vector_store %arg5[%c0_61, %c36], %37 {strides = array<i32>} : memref<288x75xf32, #tpu.memory_space<vmem>>, vector<288x3xf32>,
    %c0_62 = arith.constant 0 : index
    %c2_63 = arith.constant 2 : index
    %c3_64 = arith.constant 3 : index
    %c0_65 = arith.constant 0 : index
    %39 = vector.load %arg1[%c0_62, %c2_63, %c3_64, %c0_65] : memref<2x16x16x3xf32, #tpu.memory_space<vmem>>, vector<2x12x12x3xf32>
    %40 = vector.shape_cast %39 : vector<2x12x12x3xf32> to vector<288x3xf32>
    %c0_66 = arith.constant 0 : index
    %c39 = arith.constant 39 : index
    %41 = vector.load %arg5[%c0_66, %c39] : memref<288x75xf32, #tpu.memory_space<vmem>>, vector<288x3xf32>
    tpu.vector_store %arg5[%c0_66, %c39], %40 {strides = array<i32>} : memref<288x75xf32, #tpu.memory_space<vmem>>, vector<288x3xf32>,
    %c0_67 = arith.constant 0 : index
    %c2_68 = arith.constant 2 : index
    %c4_69 = arith.constant 4 : index
    %c0_70 = arith.constant 0 : index
    %42 = vector.load %arg1[%c0_67, %c2_68, %c4_69, %c0_70] : memref<2x16x16x3xf32, #tpu.memory_space<vmem>>, vector<2x12x12x3xf32>
    %43 = vector.shape_cast %42 : vector<2x12x12x3xf32> to vector<288x3xf32>
    %c0_71 = arith.constant 0 : index
    %c42 = arith.constant 42 : index
    %44 = vector.load %arg5[%c0_71, %c42] : memref<288x75xf32, #tpu.memory_space<vmem>>, vector<288x3xf32>
    tpu.vector_store %arg5[%c0_71, %c42], %43 {strides = array<i32>} : memref<288x75xf32, #tpu.memory_space<vmem>>, vector<288x3xf32>,
    %c0_72 = arith.constant 0 : index
    %c3_73 = arith.constant 3 : index
    %c0_74 = arith.constant 0 : index
    %c0_75 = arith.constant 0 : index
    %45 = vector.load %arg1[%c0_72, %c3_73, %c0_74, %c0_75] : memref<2x16x16x3xf32, #tpu.memory_space<vmem>>, vector<2x12x12x3xf32>
    %46 = vector.shape_cast %45 : vector<2x12x12x3xf32> to vector<288x3xf32>
    %c0_76 = arith.constant 0 : index
    %c45 = arith.constant 45 : index
    %47 = vector.load %arg5[%c0_76, %c45] : memref<288x75xf32, #tpu.memory_space<vmem>>, vector<288x3xf32>
    tpu.vector_store %arg5[%c0_76, %c45], %46 {strides = array<i32>} : memref<288x75xf32, #tpu.memory_space<vmem>>, vector<288x3xf32>,
    %c0_77 = arith.constant 0 : index
    %c3_78 = arith.constant 3 : index
    %c1_79 = arith.constant 1 : index
    %c0_80 = arith.constant 0 : index
    %48 = vector.load %arg1[%c0_77, %c3_78, %c1_79, %c0_80] : memref<2x16x16x3xf32, #tpu.memory_space<vmem>>, vector<2x12x12x3xf32>
    %49 = vector.shape_cast %48 : vector<2x12x12x3xf32> to vector<288x3xf32>
    %c0_81 = arith.constant 0 : index
    %c48 = arith.constant 48 : index
    %50 = vector.load %arg5[%c0_81, %c48] : memref<288x75xf32, #tpu.memory_space<vmem>>, vector<288x3xf32>
    tpu.vector_store %arg5[%c0_81, %c48], %49 {strides = array<i32>} : memref<288x75xf32, #tpu.memory_space<vmem>>, vector<288x3xf32>,
    %c0_82 = arith.constant 0 : index
    %c3_83 = arith.constant 3 : index
    %c2_84 = arith.constant 2 : index
    %c0_85 = arith.constant 0 : index
    %51 = vector.load %arg1[%c0_82, %c3_83, %c2_84, %c0_85] : memref<2x16x16x3xf32, #tpu.memory_space<vmem>>, vector<2x12x12x3xf32>
    %52 = vector.shape_cast %51 : vector<2x12x12x3xf32> to vector<288x3xf32>
    %c0_86 = arith.constant 0 : index
    %c51 = arith.constant 51 : index
    %53 = vector.load %arg5[%c0_86, %c51] : memref<288x75xf32, #tpu.memory_space<vmem>>, vector<288x3xf32>
    tpu.vector_store %arg5[%c0_86, %c51], %52 {strides = array<i32>} : memref<288x75xf32, #tpu.memory_space<vmem>>, vector<288x3xf32>,
    %c0_87 = arith.constant 0 : index
    %c3_88 = arith.constant 3 : index
    %c3_89 = arith.constant 3 : index
    %c0_90 = arith.constant 0 : index
    %54 = vector.load %arg1[%c0_87, %c3_88, %c3_89, %c0_90] : memref<2x16x16x3xf32, #tpu.memory_space<vmem>>, vector<2x12x12x3xf32>
    %55 = vector.shape_cast %54 : vector<2x12x12x3xf32> to vector<288x3xf32>
    %c0_91 = arith.constant 0 : index
    %c54 = arith.constant 54 : index
    %56 = vector.load %arg5[%c0_91, %c54] : memref<288x75xf32, #tpu.memory_space<vmem>>, vector<288x3xf32>
    tpu.vector_store %arg5[%c0_91, %c54], %55 {strides = array<i32>} : memref<288x75xf32, #tpu.memory_space<vmem>>, vector<288x3xf32>,
    %c0_92 = arith.constant 0 : index
    %c3_93 = arith.constant 3 : index
    %c4_94 = arith.constant 4 : index
    %c0_95 = arith.constant 0 : index
    %57 = vector.load %arg1[%c0_92, %c3_93, %c4_94, %c0_95] : memref<2x16x16x3xf32, #tpu.memory_space<vmem>>, vector<2x12x12x3xf32>
    %58 = vector.shape_cast %57 : vector<2x12x12x3xf32> to vector<288x3xf32>
    %c0_96 = arith.constant 0 : index
    %c57 = arith.constant 57 : index
    %59 = vector.load %arg5[%c0_96, %c57] : memref<288x75xf32, #tpu.memory_space<vmem>>, vector<288x3xf32>
    tpu.vector_store %arg5[%c0_96, %c57], %58 {strides = array<i32>} : memref<288x75xf32, #tpu.memory_space<vmem>>, vector<288x3xf32>,
    %c0_97 = arith.constant 0 : index
    %c4_98 = arith.constant 4 : index
    %c0_99 = arith.constant 0 : index
    %c0_100 = arith.constant 0 : index
    %60 = vector.load %arg1[%c0_97, %c4_98, %c0_99, %c0_100] : memref<2x16x16x3xf32, #tpu.memory_space<vmem>>, vector<2x12x12x3xf32>
    %61 = vector.shape_cast %60 : vector<2x12x12x3xf32> to vector<288x3xf32>
    %c0_101 = arith.constant 0 : index
    %c60 = arith.constant 60 : index
    %62 = vector.load %arg5[%c0_101, %c60] : memref<288x75xf32, #tpu.memory_space<vmem>>, vector<288x3xf32>
    tpu.vector_store %arg5[%c0_101, %c60], %61 {strides = array<i32>} : memref<288x75xf32, #tpu.memory_space<vmem>>, vector<288x3xf32>,
    %c0_102 = arith.constant 0 : index
    %c4_103 = arith.constant 4 : index
    %c1_104 = arith.constant 1 : index
    %c0_105 = arith.constant 0 : index
    %63 = vector.load %arg1[%c0_102, %c4_103, %c1_104, %c0_105] : memref<2x16x16x3xf32, #tpu.memory_space<vmem>>, vector<2x12x12x3xf32>
    %64 = vector.shape_cast %63 : vector<2x12x12x3xf32> to vector<288x3xf32>
    %c0_106 = arith.constant 0 : index
    %c63 = arith.constant 63 : index
    %65 = vector.load %arg5[%c0_106, %c63] : memref<288x75xf32, #tpu.memory_space<vmem>>, vector<288x3xf32>
    tpu.vector_store %arg5[%c0_106, %c63], %64 {strides = array<i32>} : memref<288x75xf32, #tpu.memory_space<vmem>>, vector<288x3xf32>,
    %c0_107 = arith.constant 0 : index
    %c4_108 = arith.constant 4 : index
    %c2_109 = arith.constant 2 : index
    %c0_110 = arith.constant 0 : index
    %66 = vector.load %arg1[%c0_107, %c4_108, %c2_109, %c0_110] : memref<2x16x16x3xf32, #tpu.memory_space<vmem>>, vector<2x12x12x3xf32>
    %67 = vector.shape_cast %66 : vector<2x12x12x3xf32> to vector<288x3xf32>
    %c0_111 = arith.constant 0 : index
    %c66 = arith.constant 66 : index
    %68 = vector.load %arg5[%c0_111, %c66] : memref<288x75xf32, #tpu.memory_space<vmem>>, vector<288x3xf32>
    tpu.vector_store %arg5[%c0_111, %c66], %67 {strides = array<i32>} : memref<288x75xf32, #tpu.memory_space<vmem>>, vector<288x3xf32>,
    %c0_112 = arith.constant 0 : index
    %c4_113 = arith.constant 4 : index
    %c3_114 = arith.constant 3 : index
    %c0_115 = arith.constant 0 : index
    %69 = vector.load %arg1[%c0_112, %c4_113, %c3_114, %c0_115] : memref<2x16x16x3xf32, #tpu.memory_space<vmem>>, vector<2x12x12x3xf32>
    %70 = vector.shape_cast %69 : vector<2x12x12x3xf32> to vector<288x3xf32>
    %c0_116 = arith.constant 0 : index
    %c69 = arith.constant 69 : index
    %71 = vector.load %arg5[%c0_116, %c69] : memref<288x75xf32, #tpu.memory_space<vmem>>, vector<288x3xf32>
    tpu.vector_store %arg5[%c0_116, %c69], %70 {strides = array<i32>} : memref<288x75xf32, #tpu.memory_space<vmem>>, vector<288x3xf32>,
    %c0_117 = arith.constant 0 : index
    %c4_118 = arith.constant 4 : index
    %c4_119 = arith.constant 4 : index
    %c0_120 = arith.constant 0 : index
    %72 = vector.load %arg1[%c0_117, %c4_118, %c4_119, %c0_120] : memref<2x16x16x3xf32, #tpu.memory_space<vmem>>, vector<2x12x12x3xf32>
    %73 = vector.shape_cast %72 : vector<2x12x12x3xf32> to vector<288x3xf32>
    %c0_121 = arith.constant 0 : index
    %c72 = arith.constant 72 : index
    %74 = vector.load %arg5[%c0_121, %c72] : memref<288x75xf32, #tpu.memory_space<vmem>>, vector<288x3xf32>
    tpu.vector_store %arg5[%c0_121, %c72], %73 {strides = array<i32>} : memref<288x75xf32, #tpu.memory_space<vmem>>, vector<288x3xf32>,
    %c0_122 = arith.constant 0 : index
    %c0_123 = arith.constant 0 : index
    %75 = vector.load %arg5[%c0_122, %c0_123] : memref<288x75xf32, #tpu.memory_space<vmem>>, vector<288x75xf32>
    %c0_124 = arith.constant 0 : index
    %c0_125 = arith.constant 0 : index
    %76 = vector.load %arg2[%c0_124, %c0_125] : memref<75x32xf32, #tpu.memory_space<vmem>>, vector<75x32xf32>
    %cst = arith.constant dense<0.000000e+00> : vector<288x32xf32>
    %77 = tpu.matmul %75, %76, %cst {dimension_numbers = #tpu.dot_dimension_numbers<[1], [0], [0], [1], [0, 0, 1, 1], [], []>} : vector<288x75xf32>, vector<75x32xf32>, vector<288x32xf32> -> vector<288x32xf32>
    %78 = tpu.transpose %77, [1, 0] : vector<288x32xf32> -> vector<32x288xf32>
    %c0_126 = arith.constant 0 : index
    %c0_127 = arith.constant 0 : index
    %79 = vector.load %arg3[%c0_126, %c0_127] : memref<32x1xf32, #tpu.memory_space<vmem>>, vector<32x1xf32>
    %80 = vector.broadcast %79 : vector<32x1xf32> to vector<32x288xf32>
    %81 = arith.addf %78, %80 : vector<32x288xf32>
    %82 = tpu.iota {dimensions = array<i32: 0>} : vector<32x288xi32>
    %83 = tpu.iota {dimensions = array<i32: 1>} : vector<32x288xi32>
    %c288_i32 = arith.constant 288 : i32
    %84 = vector.broadcast %c288_i32 : i32 to vector<32x288xi32>
    %85 = arith.muli %82, %84 : vector<32x288xi32>
    %86 = arith.addi %85, %83 : vector<32x288xi32>
    %c0_128 = arith.constant 0 : index
    %87 = memref.load %arg0[%c0_128] : memref<1xi32, #tpu.memory_space<smem>>
    %c-1640531535_i32 = arith.constant -1640531535 : i32
    %88 = arith.muli %87, %c-1640531535_i32 : i32
    %89 = vector.broadcast %88 : i32 to vector<32x288xi32>
    %90 = arith.xori %86, %89 : vector<32x288xi32>
    %c16_i32 = arith.constant 16 : i32
    %91 = vector.broadcast %c16_i32 : i32 to vector<32x288xi32>
    %92 = arith.shrui %90, %91 : vector<32x288xi32>
    %93 = arith.xori %90, %92 : vector<32x288xi32>
    %c2146121005_i32 = arith.constant 2146121005 : i32
    %94 = vector.broadcast %c2146121005_i32 : i32 to vector<32x288xi32>
    %95 = arith.muli %93, %94 : vector<32x288xi32>
    %c15_i32 = arith.constant 15 : i32
    %96 = vector.broadcast %c15_i32 : i32 to vector<32x288xi32>
    %97 = arith.shrui %95, %96 : vector<32x288xi32>
    %98 = arith.xori %95, %97 : vector<32x288xi32>
    %c-2073254261_i32 = arith.constant -2073254261 : i32
    %99 = vector.broadcast %c-2073254261_i32 : i32 to vector<32x288xi32>
    %100 = arith.muli %98, %99 : vector<32x288xi32>
    %c16_i32_129 = arith.constant 16 : i32
    %101 = vector.broadcast %c16_i32_129 : i32 to vector<32x288xi32>
    %102 = arith.shrui %100, %101 : vector<32x288xi32>
    %103 = arith.xori %100, %102 : vector<32x288xi32>
    %c31_i32 = arith.constant 31 : i32
    %104 = vector.broadcast %c31_i32 : i32 to vector<32x288xi32>
    %105 = arith.shrui %103, %104 : vector<32x288xi32>
    %c0_i32 = arith.constant 0 : i32
    %106 = vector.broadcast %c0_i32 : i32 to vector<32x288xi32>
    %107 = arith.cmpi eq, %105, %106 : vector<32x288xi32>
    %cst_130 = arith.constant 2.000000e+00 : f32
    %108 = vector.broadcast %cst_130 : f32 to vector<32x288xf32>
    %109 = arith.mulf %81, %108 : vector<32x288xf32>
    %cst_131 = arith.constant 0.000000e+00 : f32
    %110 = vector.broadcast %cst_131 : f32 to vector<32x288xf32>
    %111 = arith.select %107, %109, %110 : vector<32x288xi1>, vector<32x288xf32>
    %112 = vector.extract_strided_slice %111 {offsets = [0, 0], sizes = [32, 144], strides = [1, 1]} : vector<32x288xf32> to vector<32x144xf32>
    %c0_132 = arith.constant 0 : index
    %c0_133 = arith.constant 0 : index
    %c0_134 = arith.constant 0 : index
    %113 = vector.load %arg4[%c0_132, %c0_133, %c0_134] : memref<2x32x144xf32, #tpu.memory_space<vmem>>, vector<1x32x144xf32>
    %114 = vector.shape_cast %113 : vector<1x32x144xf32> to vector<32x144xf32>
    %115 = vector.shape_cast %112 : vector<32x144xf32> to vector<1x32x144xf32>
    tpu.vector_store %arg4[%c0_132, %c0_133, %c0_134], %115 {strides = array<i32>} : memref<2x32x144xf32, #tpu.memory_space<vmem>>, vector<1x32x144xf32>,
    %116 = vector.extract_strided_slice %111 {offsets = [0, 144], sizes = [32, 144], strides = [1, 1]} : vector<32x288xf32> to vector<32x144xf32>
    %c1_135 = arith.constant 1 : index
    %c0_136 = arith.constant 0 : index
    %c0_137 = arith.constant 0 : index
    %117 = vector.load %arg4[%c1_135, %c0_136, %c0_137] : memref<2x32x144xf32, #tpu.memory_space<vmem>>, vector<1x32x144xf32>
    %118 = vector.shape_cast %117 : vector<1x32x144xf32> to vector<32x144xf32>
    %119 = vector.shape_cast %116 : vector<32x144xf32> to vector<1x32x144xf32>
    tpu.vector_store %arg4[%c1_135, %c0_136, %c0_137], %119 {strides = array<i32>} : memref<2x32x144xf32, #tpu.memory_space<vmem>>, vector<1x32x144xf32>,
    return
  }
}

</mosaic_0001>

<llo_original>
// kernel: conv2d_dropout.1
$region0: #{conv2d_dropout.1}
  #allocation0 [shape = 'u32[]', space=smem, size = 0x4, offset = 0x4, fixed_abs, tag = 'smem constant byte address 0x4 - core index']
  #allocation1 [shape = 'u32[72,128]{1,0:T(1,128)}', space=vmem, size = 0x9000, scoped, tag = 'internal scratch']
  #allocation2 [shape = 'f32[288,75]{1,0:T(8,128)}', space=vmem, size = 0x24000, scoped, tag = 'scratch operand']
  #allocation3 [shape = 's32[1]{0:T(128)S(6)}', space=smem, size = 0x200, scoped, tag = 'scoped memory for conv2d_dropout.1']
  %s0 = inlined_call_operand.<no memory space> [shape: s32[1], index: 0, kind: input, shape index: {}]
  %s1 = inlined_call_operand.vmem [shape: f32[2,16,16,3], index: 1, kind: input, shape index: {}]
  %s2 = inlined_call_operand.vmem [shape: f32[75,32], index: 2, kind: input, shape index: {}]
  %s3 = inlined_call_operand.vmem [shape: f32[32,1], index: 3, kind: input, shape index: {}]
  %s4 = inlined_call_operand.vmem [shape: f32[2,32,144], index: 4, kind: output, shape index: {}]
  %s5 = sld [smem:[#allocation0]]
  $region26: #{conv2d_dropout.1} parent=0
    _
  %s7 = ssub.s32 1, %s5
  %s8 = scalar_select 0, %s7, %s5
  %9 = sst [smem:[#allocation3]] %s0
  // Predicated region
  $region2: #{conv2d_dropout.1} parent=0 // pred_check
    _
  $region3: #{conv2d_dropout.1} parent=0 // pred_check_branch
    %11 = sbr.rel (0) target = $region5
  $region4: #{conv2d_dropout.1} parent=0 // pred_region
    _
  $region5: #{conv2d_dropout.1} parent=0 // pred_fallthru
    _
  // Predicated region
  $region6: #{conv2d_dropout.1} parent=0 // pred_check
    _
  $region7: #{conv2d_dropout.1} parent=0 // pred_check_branch
    %13 = sbr.rel (0) target = $region9
  $region8: #{conv2d_dropout.1} parent=0 // pred_region
    _
  $region9: #{conv2d_dropout.1} parent=0 // pred_fallthru
    _
  // Predicated region
  $region10: #{conv2d_dropout.1} parent=0 // pred_check
    _
  $region11: #{conv2d_dropout.1} parent=0 // pred_check_branch
    %15 = sbr.rel (0) target = $region13
  $region12: #{conv2d_dropout.1} parent=0 // pred_region
    _
  $region13: #{conv2d_dropout.1} parent=0 // pred_fallthru
    _
  // Predicated region
  $region14: #{conv2d_dropout.1} parent=0 // pred_check
    _
  $region15: #{conv2d_dropout.1} parent=0 // pred_check_branch
    %17 = sbr.rel (0) target = $region17
  $region16: #{conv2d_dropout.1} parent=0 // pred_region
    _
  $region17: #{conv2d_dropout.1} parent=0 // pred_fallthru
    _
  %v18 = vld [vmem:[%s1] sm:$0xff]
  %v19 = vld [vmem:[%s1 + $0x8] sm:$0xf]
  %v20 = vld [vmem:[%s1 + $0x10] sm:$0xff]
  %v21 = vld [vmem:[%s1 + $0x18] sm:$0xf]
  %v22 = vld [vmem:[%s1 + $0x20] sm:$0xff]
  %v23 = vld [vmem:[%s1 + $0x28] sm:$0xf]
  %v24 = vld [vmem:[%s1 + $0x30] sm:$0xff]
  %v25 = vld [vmem:[%s1 + $0x38] sm:$0xf]
  %v26 = vld [vmem:[%s1 + $0x40] sm:$0xff]
  %v27 = vld [vmem:[%s1 + $0x48] sm:$0xf]
  %v28 = vld [vmem:[%s1 + $0x50] sm:$0xff]
  %v29 = vld [vmem:[%s1 + $0x58] sm:$0xf]
  %v30 = vld [vmem:[%s1 + $0x60] sm:$0xff]
  %v31 = vld [vmem:[%s1 + $0x68] sm:$0xf]
  %v32 = vld [vmem:[%s1 + $0x70] sm:$0xff]
  %v33 = vld [vmem:[%s1 + $0x78] sm:$0xf]
  %v34 = vld [vmem:[%s1 + $0x80] sm:$0xff]
  %v35 = vld [vmem:[%s1 + $0x88] sm:$0xf]
  %v36 = vld [vmem:[%s1 + $0x90] sm:$0xff]
  %v37 = vld [vmem:[%s1 + $0x98] sm:$0xf]
  %v38 = vld [vmem:[%s1 + $0xa0] sm:$0xff]
  %v39 = vld [vmem:[%s1 + $0xa8] sm:$0xf]
  %v40 = vld [vmem:[%s1 + $0xb0] sm:$0xff]
  %v41 = vld [vmem:[%s1 + $0xb8] sm:$0xf]
  %v42 = vld [vmem:[%s1 + $0x100] sm:$0xff]
  %v43 = vld [vmem:[%s1 + $0x108] sm:$0xf]
  %v44 = vld [vmem:[%s1 + $0x110] sm:$0xff]
  %v45 = vld [vmem:[%s1 + $0x118] sm:$0xf]
  %v46 = vld [vmem:[%s1 + $0x120] sm:$0xff]
  %v47 = vld [vmem:[%s1 + $0x128] sm:$0xf]
  %v48 = vld [vmem:[%s1 + $0x130] sm:$0xff]
  %v49 = vld [vmem:[%s1 + $0x138] sm:$0xf]
  %v50 = vld [vmem:[%s1 + $0x140] sm:$0xff]
  %v51 = vld [vmem:[%s1 + $0x148] sm:$0xf]
  %v52 = vld [vmem:[%s1 + $0x150] sm:$0xff]
  %v53 = vld [vmem:[%s1 + $0x158] sm:$0xf]
  %v54 = vld [vmem:[%s1 + $0x160] sm:$0xff]
  %v55 = vld [vmem:[%s1 + $0x168] sm:$0xf]
  %v56 = vld [vmem:[%s1 + $0x170] sm:$0xff]
  %v57 = vld [vmem:[%s1 + $0x178] sm:$0xf]
  %v58 = vld [vmem:[%s1 + $0x180] sm:$0xff]
  %v59 = vld [vmem:[%s1 + $0x188] sm:$0xf]
  %v60 = vld [vmem:[%s1 + $0x190] sm:$0xff]
  %v61 = vld [vmem:[%s1 + $0x198] sm:$0xf]
  %v62 = vld [vmem:[%s1 + $0x1a0] sm:$0xff]
  %v63 = vld [vmem:[%s1 + $0x1a8] sm:$0xf]
  %v64 = vld [vmem:[%s1 + $0x1b0] sm:$0xff]
  %v65 = vld [vmem:[%s1 + $0x1b8] sm:$0xf]
  %v114 = vrot.slane %v18, 4
  %v115 = vrot.slane %v20, 4
  %v116 = vrot.slane %v22, 4
  %v117 = vrot.slane %v24, 4
  %v118 = vrot.slane %v26, 4
  %v119 = vrot.slane %v28, 4
  %v120 = vrot.slane %v30, 4
  %v121 = vrot.slane %v32, 4
  %v122 = vrot.slane %v34, 4
  %v123 = vrot.slane %v36, 4
  %v124 = vrot.slane %v38, 4
  %v125 = vrot.slane %v40, 4
  %v126 = vrot.slane %v42, 4
  %v127 = vrot.slane %v44, 4
  %v128 = vrot.slane %v46, 4
  %v129 = vrot.slane %v48, 4
  %v130 = vrot.slane %v50, 4
  %v131 = vrot.slane %v52, 4
  %v132 = vrot.slane %v54, 4
  %v133 = vrot.slane %v56, 4
  %v134 = vrot.slane %v58, 4
  %v135 = vrot.slane %v60, 4
  %v136 = vrot.slane %v62, 4
  %v137 = vrot.slane %v64, 4
  %138 = vst [vmem:[#allocation1] ss:$2 sm:$0xff] %v18
  %s139 = scalar_lea.vmem [#allocation1], 1
  %140 = vst [vmem:[%s139] ss:$2 sm:$0xff] %v114
  %s141 = scalar_lea.vmem [#allocation1], 16
  %142 = vst [vmem:[%s141] ss:$2 sm:$0xff] %v19
  %s143 = scalar_lea.vmem [#allocation1], 17
  %144 = vst [vmem:[%s143] ss:$2 sm:$0xff] %v20
  %s145 = scalar_lea.vmem [#allocation1], 32
  %146 = vst [vmem:[%s145] ss:$2 sm:$0xff] %v115
  %s147 = scalar_lea.vmem [#allocation1], 33
  %148 = vst [vmem:[%s147] ss:$2 sm:$0xff] %v21
  %s149 = scalar_lea.vmem [#allocation1], 48
  %150 = vst [vmem:[%s149] ss:$2 sm:$0xff] %v22
  %s151 = scalar_lea.vmem [#allocation1], 49
  %152 = vst [vmem:[%s151] ss:$2 sm:$0xff] %v116
  %v153 = vld.sshfl [vmem:[#allocation1] sm:$0xff pattern:$0x75316420]
  %v154 = vld.sshfl [vmem:[#allocation1 + $0x10] sm:$0xff pattern:$0x75316420]
  %v155 = vld.sshfl [vmem:[#allocation1 + $0x20] sm:$0xff pattern:$0x75316420]
  %v156 = vld.sshfl [vmem:[#allocation1 + $0x30] sm:$0xff pattern:$0x75316420]
  %157 = vst [vmem:[#allocation1] ss:$2 sm:$0xff] %v23
  %158 = vst [vmem:[%s139] ss:$2 sm:$0xff] %v24
  %159 = vst [vmem:[%s141] ss:$2 sm:$0xff] %v117
  %160 = vst [vmem:[%s143] ss:$2 sm:$0xff] %v25
  %161 = vst [vmem:[%s145] ss:$2 sm:$0xff] %v26
  %162 = vst [vmem:[%s147] ss:$2 sm:$0xff] %v118
  %163 = vst [vmem:[%s149] ss:$2 sm:$0xff] %v27
  %164 = vst [vmem:[%s151] ss:$2 sm:$0xff] %v28
  %v165 = vld.sshfl [vmem:[#allocation1] sm:$0xff pattern:$0x75316420]
  %v166 = vld.sshfl [vmem:[#allocation1 + $0x10] sm:$0xff pattern:$0x75316420]
  %v167 = vld.sshfl [vmem:[#allocation1 + $0x20] sm:$0xff pattern:$0x75316420]
  %v168 = vld.sshfl [vmem:[#allocation1 + $0x30] sm:$0xff pattern:$0x75316420]
  %169 = vst [vmem:[#allocation1] ss:$2 sm:$0xff] %v119
  %170 = vst [vmem:[%s139] ss:$2 sm:$0xff] %v29
  %171 = vst [vmem:[%s141] ss:$2 sm:$0xff] %v30
  %172 = vst [vmem:[%s143] ss:$2 sm:$0xff] %v120
  %173 = vst [vmem:[%s145] ss:$2 sm:$0xff] %v31
  %174 = vst [vmem:[%s147] ss:$2 sm:$0xff] %v32
  %175 = vst [vmem:[%s149] ss:$2 sm:$0xff] %v121
  %176 = vst [vmem:[%s151] ss:$2 sm:$0xff] %v33
  %v177 = vld.sshfl [vmem:[#allocation1] sm:$0xff pattern:$0x75316420]
  %v178 = vld.sshfl [vmem:[#allocation1 + $0x10] sm:$0xff pattern:$0x75316420]
  %v179 = vld.sshfl [vmem:[#allocation1 + $0x20] sm:$0xff pattern:$0x75316420]
  %v180 = vld.sshfl [vmem:[#allocation1 + $0x30] sm:$0xff pattern:$0x75316420]
  %181 = vst [vmem:[#allocation1] ss:$2 sm:$0xff] %v34
  %182 = vst [vmem:[%s139] ss:$2 sm:$0xff] %v122
  %183 = vst [vmem:[%s141] ss:$2 sm:$0xff] %v35
  %184 = vst [vmem:[%s143] ss:$2 sm:$0xff] %v36
  %185 = vst [vmem:[%s145] ss:$2 sm:$0xff] %v123
  %186 = vst [vmem:[%s147] ss:$2 sm:$0xff] %v37
  %187 = vst [vmem:[%s149] ss:$2 sm:$0xff] %v38
  %188 = vst [vmem:[%s151] ss:$2 sm:$0xff] %v124
  %v189 = vld.sshfl [vmem:[#allocation1] sm:$0xff pattern:$0x75316420]
  %v190 = vld.sshfl [vmem:[#allocation1 + $0x10] sm:$0xff pattern:$0x75316420]
  %v191 = vld.sshfl [vmem:[#allocation1 + $0x20] sm:$0xff pattern:$0x75316420]
  %v192 = vld.sshfl [vmem:[#allocation1 + $0x30] sm:$0xff pattern:$0x75316420]
  %193 = vst [vmem:[#allocation1] ss:$2 sm:$0xff] %v39
  %194 = vst [vmem:[%s139] ss:$2 sm:$0xff] %v40
  %195 = vst [vmem:[%s141] ss:$2 sm:$0xff] %v125
  %196 = vst [vmem:[%s143] ss:$2 sm:$0xff] %v41
  %197 = vst [vmem:[%s145] ss:$2 sm:$0xff] %v42
  %198 = vst [vmem:[%s147] ss:$2 sm:$0xff] %v126
  %199 = vst [vmem:[%s149] ss:$2 sm:$0xff] %v43
  %200 = vst [vmem:[%s151] ss:$2 sm:$0xff] %v44
  %v201 = vld.sshfl [vmem:[#allocation1] sm:$0xff pattern:$0x75316420]
  %v202 = vld.sshfl [vmem:[#allocation1 + $0x10] sm:$0xff pattern:$0x75316420]
  %v203 = vld.sshfl [vmem:[#allocation1 + $0x20] sm:$0xff pattern:$0x75316420]
  %v204 = vld.sshfl [vmem:[#allocation1 + $0x30] sm:$0xff pattern:$0x75316420]
  %205 = vst [vmem:[#allocation1] ss:$2 sm:$0xff] %v127
  %206 = vst [vmem:[%s139] ss:$2 sm:$0xff] %v45
  %207 = vst [vmem:[%s141] ss:$2 sm:$0xff] %v46
  %208 = vst [vmem:[%s143] ss:$2 sm:$0xff] %v128
  %209 = vst [vmem:[%s145] ss:$2 sm:$0xff] %v47
  %210 = vst [vmem:[%s147] ss:$2 sm:$0xff] %v48
  %211 = vst [vmem:[%s149] ss:$2 sm:$0xff] %v129
  %212 = vst [vmem:[%s151] ss:$2 sm:$0xff] %v49
  %v213 = vld.sshfl [vmem:[#allocation1] sm:$0xff pattern:$0x75316420]
  %v214 = vld.sshfl [vmem:[#allocation1 + $0x10] sm:$0xff pattern:$0x75316420]
  %v215 = vld.sshfl [vmem:[#allocation1 + $0x20] sm:$0xff pattern:$0x75316420]
  %v216 = vld.sshfl [vmem:[#allocation1 + $0x30] sm:$0xff pattern:$0x75316420]
  %217 = vst [vmem:[#allocation1] ss:$2 sm:$0xff] %v50
  %218 = vst [vmem:[%s139] ss:$2 sm:$0xff] %v130
  %219 = vst [vmem:[%s141] ss:$2 sm:$0xff] %v51
  %220 = vst [vmem:[%s143] ss:$2 sm:$0xff] %v52
  %221 = vst [vmem:[%s145] ss:$2 sm:$0xff] %v131
  %222 = vst [vmem:[%s147] ss:$2 sm:$0xff] %v53
  %223 = vst [vmem:[%s149] ss:$2 sm:$0xff] %v54
  %224 = vst [vmem:[%s151] ss:$2 sm:$0xff] %v132
  %v225 = vld.sshfl [vmem:[#allocation1] sm:$0xff pattern:$0x75316420]
  %v226 = vld.sshfl [vmem:[#allocation1 + $0x10] sm:$0xff pattern:$0x75316420]
  %v227 = vld.sshfl [vmem:[#allocation1 + $0x20] sm:$0xff pattern:$0x75316420]
  %v228 = vld.sshfl [vmem:[#allocation1 + $0x30] sm:$0xff pattern:$0x75316420]
  %229 = vst [vmem:[#allocation1] ss:$2 sm:$0xff] %v55
  %230 = vst [vmem:[%s139] ss:$2 sm:$0xff] %v56
  %231 = vst [vmem:[%s141] ss:$2 sm:$0xff] %v133
  %232 = vst [vmem:[%s143] ss:$2 sm:$0xff] %v57
  %233 = vst [vmem:[%s145] ss:$2 sm:$0xff] %v58
  %234 = vst [vmem:[%s147] ss:$2 sm:$0xff] %v134
  %235 = vst [vmem:[%s149] ss:$2 sm:$0xff] %v59
  %236 = vst [vmem:[%s151] ss:$2 sm:$0xff] %v60
  %v237 = vld.sshfl [vmem:[#allocation1] sm:$0xff pattern:$0x75316420]
  %v238 = vld.sshfl [vmem:[#allocation1 + $0x10] sm:$0xff pattern:$0x75316420]
  %v239 = vld.sshfl [vmem:[#allocation1 + $0x20] sm:$0xff pattern:$0x75316420]
  %v240 = vld.sshfl [vmem:[#allocation1 + $0x30] sm:$0xff pattern:$0x75316420]
  %241 = vst [vmem:[#allocation1] ss:$2 sm:$0xff] %v135
  %242 = vst [vmem:[%s139] ss:$2 sm:$0xff] %v61
  %243 = vst [vmem:[%s141] ss:$2 sm:$0xff] %v62
  %244 = vst [vmem:[%s143] ss:$2 sm:$0xff] %v136
  %245 = vst [vmem:[%s145] ss:$2 sm:$0xff] %v63
  %246 = vst [vmem:[%s147] ss:$2 sm:$0xff] %v64
  %247 = vst [vmem:[%s149] ss:$2 sm:$0xff] %v137
  %248 = vst [vmem:[%s151] ss:$2 sm:$0xff] %v65
  %v249 = vld.sshfl [vmem:[#allocation1] sm:$0xff pattern:$0x75316420]
  %v250 = vld.sshfl [vmem:[#allocation1 + $0x10] sm:$0xff pattern:$0x75316420]
  %v251 = vld.sshfl [vmem:[#allocation1 + $0x20] sm:$0xff pattern:$0x75316420]
  %v252 = vld.sshfl [vmem:[#allocation1 + $0x30] sm:$0xff pattern:$0x75316420]
  %vm289 = vcmask 23552
  %290 = vst.msk [vmem:[#allocation2] sm:$0xff] %vm289, %v153
  %291 = vst.msk [vmem:[#allocation2 + $0x8] sm:$0xff] %vm289, %v154
  %292 = vst.msk [vmem:[#allocation2 + $0x10] sm:$0xff] %vm289, %v155
  %293 = vst.msk [vmem:[#allocation2 + $0x18] sm:$0xff] %vm289, %v156
  %294 = vst.msk [vmem:[#allocation2 + $0x20] sm:$0xff] %vm289, %v165
  %295 = vst.msk [vmem:[#allocation2 + $0x28] sm:$0xff] %vm289, %v166
  %296 = vst.msk [vmem:[#allocation2 + $0x30] sm:$0xff] %vm289, %v167
  %297 = vst.msk [vmem:[#allocation2 + $0x38] sm:$0xff] %vm289, %v168
  %298 = vst.msk [vmem:[#allocation2 + $0x40] sm:$0xff] %vm289, %v177
  %299 = vst.msk [vmem:[#allocation2 + $0x48] sm:$0xff] %vm289, %v178
  %300 = vst.msk [vmem:[#allocation2 + $0x50] sm:$0xff] %vm289, %v179
  %301 = vst.msk [vmem:[#allocation2 + $0x58] sm:$0xff] %vm289, %v180
  %302 = vst.msk [vmem:[#allocation2 + $0x60] sm:$0xff] %vm289, %v189
  %303 = vst.msk [vmem:[#allocation2 + $0x68] sm:$0xff] %vm289, %v190
  %304 = vst.msk [vmem:[#allocation2 + $0x70] sm:$0xff] %vm289, %v191
  %305 = vst.msk [vmem:[#allocation2 + $0x78] sm:$0xff] %vm289, %v192
  %306 = vst.msk [vmem:[#allocation2 + $0x80] sm:$0xff] %vm289, %v201
  %307 = vst.msk [vmem:[#allocation2 + $0x88] sm:$0xff] %vm289, %v202
  %308 = vst.msk [vmem:[#allocation2 + $0x90] sm:$0xff] %vm289, %v203
  %309 = vst.msk [vmem:[#allocation2 + $0x98] sm:$0xff] %vm289, %v204
  %310 = vst.msk [vmem:[#allocation2 + $0xa0] sm:$0xff] %vm289, %v213
  %311 = vst.msk [vmem:[#allocation2 + $0xa8] sm:$0xff] %vm289, %v214
  %312 = vst.msk [vmem:[#allocation2 + $0xb0] sm:$0xff] %vm289, %v215
  %313 = vst.msk [vmem:[#allocation2 + $0xb8] sm:$0xff] %vm289, %v216
  %314 = vst.msk [vmem:[#allocation2 + $0xc0] sm:$0xff] %vm289, %v225
  %315 = vst.msk [vmem:[#allocation2 + $0xc8] sm:$0xff] %vm289, %v226
  %316 = vst.msk [vmem:[#allocation2 + $0xd0] sm:$0xff] %vm289, %v227
  %317 = vst.msk [vmem:[#allocation2 + $0xd8] sm:$0xff] %vm289, %v228
  %318 = vst.msk [vmem:[#allocation2 + $0xe0] sm:$0xff] %vm289, %v237
  %319 = vst.msk [vmem:[#allocation2 + $0xe8] sm:$0xff] %vm289, %v238
  %320 = vst.msk [vmem:[#allocation2 + $0xf0] sm:$0xff] %vm289, %v239
  %321 = vst.msk [vmem:[#allocation2 + $0xf8] sm:$0xff] %vm289, %v240
  %322 = vst.msk [vmem:[#allocation2 + $0x100] sm:$0xff] %vm289, %v249
  %323 = vst.msk [vmem:[#allocation2 + $0x108] sm:$0xff] %vm289, %v250
  %324 = vst.msk [vmem:[#allocation2 + $0x110] sm:$0xff] %vm289, %v251
  %325 = vst.msk [vmem:[#allocation2 + $0x118] sm:$0xff] %vm289, %v252
  %v326 = vld [vmem:[%s1 + $0x1] sm:$0xff]
  %v327 = vld [vmem:[%s1 + $0x9] sm:$0xf]
  %v328 = vld [vmem:[%s1 + $0x11] sm:$0xff]
  %v329 = vld [vmem:[%s1 + $0x19] sm:$0xf]
  %v330 = vld [vmem:[%s1 + $0x21] sm:$0xff]
  %v331 = vld [vmem:[%s1 + $0x29] sm:$0xf]
  %v332 = vld [vmem:[%s1 + $0x31] sm:$0xff]
  %v333 = vld [vmem:[%s1 + $0x39] sm:$0xf]
  %v334 = vld [vmem:[%s1 + $0x41] sm:$0xff]
  %v335 = vld [vmem:[%s1 + $0x49] sm:$0xf]
  %v336 = vld [vmem:[%s1 + $0x51] sm:$0xff]
  %v337 = vld [vmem:[%s1 + $0x59] sm:$0xf]
  %v338 = vld [vmem:[%s1 + $0x61] sm:$0xff]
  %v339 = vld [vmem:[%s1 + $0x69] sm:$0xf]
  %v340 = vld [vmem:[%s1 + $0x71] sm:$0xff]
  %v341 = vld [vmem:[%s1 + $0x79] sm:$0xf]
  %v342 = vld [vmem:[%s1 + $0x81] sm:$0xff]
  %v343 = vld [vmem:[%s1 + $0x89] sm:$0xf]
  %v344 = vld [vmem:[%s1 + $0x91] sm:$0xff]
  %v345 = vld [vmem:[%s1 + $0x99] sm:$0xf]
  %v346 = vld [vmem:[%s1 + $0xa1] sm:$0xff]
  %v347 = vld [vmem:[%s1 + $0xa9] sm:$0xf]
  %v348 = vld [vmem:[%s1 + $0xb1] sm:$0xff]
  %v349 = vld [vmem:[%s1 + $0xb9] sm:$0xf]
  %v350 = vld [vmem:[%s1 + $0x101] sm:$0xff]
  %v351 = vld [vmem:[%s1 + $0x109] sm:$0xf]
  %v352 = vld [vmem:[%s1 + $0x111] sm:$0xff]
  %v353 = vld [vmem:[%s1 + $0x119] sm:$0xf]
  %v354 = vld [vmem:[%s1 + $0x121] sm:$0xff]
  %v355 = vld [vmem:[%s1 + $0x129] sm:$0xf]
  %v356 = vld [vmem:[%s1 + $0x131] sm:$0xff]
  %v357 = vld [vmem:[%s1 + $0x139] sm:$0xf]
  %v358 = vld [vmem:[%s1 + $0x141] sm:$0xff]
  %v359 = vld [vmem:[%s1 + $0x149] sm:$0xf]
  %v360 = vld [vmem:[%s1 + $0x151] sm:$0xff]
  %v361 = vld [vmem:[%s1 + $0x159] sm:$0xf]
  %v362 = vld [vmem:[%s1 + $0x161] sm:$0xff]
  %v363 = vld [vmem:[%s1 + $0x169] sm:$0xf]
  %v364 = vld [vmem:[%s1 + $0x171] sm:$0xff]
  %v365 = vld [vmem:[%s1 + $0x179] sm:$0xf]
  %v366 = vld [vmem:[%s1 + $0x181] sm:$0xff]
  %v367 = vld [vmem:[%s1 + $0x189] sm:$0xf]
  %v368 = vld [vmem:[%s1 + $0x191] sm:$0xff]
  %v369 = vld [vmem:[%s1 + $0x199] sm:$0xf]
  %v370 = vld [vmem:[%s1 + $0x1a1] sm:$0xff]
  %v371 = vld [vmem:[%s1 + $0x1a9] sm:$0xf]
  %v372 = vld [vmem:[%s1 + $0x1b1] sm:$0xff]
  %v373 = vld [vmem:[%s1 + $0x1b9] sm:$0xf]
  %v422 = vrot.slane %v326, 4
  %v423 = vrot.slane %v328, 4
  %v424 = vrot.slane %v330, 4
  %v425 = vrot.slane %v332, 4
  %v426 = vrot.slane %v334, 4
  %v427 = vrot.slane %v336, 4
  %v428 = vrot.slane %v338, 4
  %v429 = vrot.slane %v340, 4
  %v430 = vrot.slane %v342, 4
  %v431 = vrot.slane %v344, 4
  %v432 = vrot.slane %v346, 4
  %v433 = vrot.slane %v348, 4
  %v434 = vrot.slane %v350, 4
  %v435 = vrot.slane %v352, 4
  %v436 = vrot.slane %v354, 4
  %v437 = vrot.slane %v356, 4
  %v438 = vrot.slane %v358, 4
  %v439 = vrot.slane %v360, 4
  %v440 = vrot.slane %v362, 4
  %v441 = vrot.slane %v364, 4
  %v442 = vrot.slane %v366, 4
  %v443 = vrot.slane %v368, 4
  %v444 = vrot.slane %v370, 4
  %v445 = vrot.slane %v372, 4
  %446 = vst [vmem:[#allocation1] ss:$2 sm:$0xff] %v326
  %s447 = scalar_lea.vmem [#allocation1], 1
  %448 = vst [vmem:[%s447] ss:$2 sm:$0xff] %v422
  %s449 = scalar_lea.vmem [#allocation1], 16
  %450 = vst [vmem:[%s449] ss:$2 sm:$0xff] %v327
  %s451 = scalar_lea.vmem [#allocation1], 17
  %452 = vst [vmem:[%s451] ss:$2 sm:$0xff] %v328
  %s453 = scalar_lea.vmem [#allocation1], 32
  %454 = vst [vmem:[%s453] ss:$2 sm:$0xff] %v423
  %s455 = scalar_lea.vmem [#allocation1], 33
  %456 = vst [vmem:[%s455] ss:$2 sm:$0xff] %v329
  %s457 = scalar_lea.vmem [#allocation1], 48
  %458 = vst [vmem:[%s457] ss:$2 sm:$0xff] %v330
  %s459 = scalar_lea.vmem [#allocation1], 49
  %460 = vst [vmem:[%s459] ss:$2 sm:$0xff] %v424
  %v461 = vld.sshfl [vmem:[#allocation1] sm:$0xff pattern:$0x75316420]
  %v462 = vld.sshfl [vmem:[#allocation1 + $0x10] sm:$0xff pattern:$0x75316420]
  %v463 = vld.sshfl [vmem:[#allocation1 + $0x20] sm:$0xff pattern:$0x75316420]
  %v464 = vld.sshfl [vmem:[#allocation1 + $0x30] sm:$0xff pattern:$0x75316420]
  %465 = vst [vmem:[#allocation1] ss:$2 sm:$0xff] %v331
  %466 = vst [vmem:[%s447] ss:$2 sm:$0xff] %v332
  %467 = vst [vmem:[%s449] ss:$2 sm:$0xff] %v425
  %468 = vst [vmem:[%s451] ss:$2 sm:$0xff] %v333
  %469 = vst [vmem:[%s453] ss:$2 sm:$0xff] %v334
  %470 = vst [vmem:[%s455] ss:$2 sm:$0xff] %v426
  %471 = vst [vmem:[%s457] ss:$2 sm:$0xff] %v335
  %472 = vst [vmem:[%s459] ss:$2 sm:$0xff] %v336
  %v473 = vld.sshfl [vmem:[#allocation1] sm:$0xff pattern:$0x75316420]
  %v474 = vld.sshfl [vmem:[#allocation1 + $0x10] sm:$0xff pattern:$0x75316420]
  %v475 = vld.sshfl [vmem:[#allocation1 + $0x20] sm:$0xff pattern:$0x75316420]
  %v476 = vld.sshfl [vmem:[#allocation1 + $0x30] sm:$0xff pattern:$0x75316420]
  %477 = vst [vmem:[#allocation1] ss:$2 sm:$0xff] %v427
  %478 = vst [vmem:[%s447] ss:$2 sm:$0xff] %v337
  %479 = vst [vmem:[%s449] ss:$2 sm:$0xff] %v338
  %480 = vst [vmem:[%s451] ss:$2 sm:$0xff] %v428
  %481 = vst [vmem:[%s453] ss:$2 sm:$0xff] %v339
  %482 = vst [vmem:[%s455] ss:$2 sm:$0xff] %v340
  %483 = vst [vmem:[%s457] ss:$2 sm:$0xff] %v429
  %484 = vst [vmem:[%s459] ss:$2 sm:$0xff] %v341
  %v485 = vld.sshfl [vmem:[#allocation1] sm:$0xff pattern:$0x75316420]
  %v486 = vld.sshfl [vmem:[#allocation1 + $0x10] sm:$0xff pattern:$0x75316420]
  %v487 = vld.sshfl [vmem:[#allocation1 + $0x20] sm:$0xff pattern:$0x75316420]
  %v488 = vld.sshfl [vmem:[#allocation1 + $0x30] sm:$0xff pattern:$0x75316420]
  %489 = vst [vmem:[#allocation1] ss:$2 sm:$0xff] %v342
  %490 = vst [vmem:[%s447] ss:$2 sm:$0xff] %v430
  %491 = vst [vmem:[%s449] ss:$2 sm:$0xff] %v343
  %492 = vst [vmem:[%s451] ss:$2 sm:$0xff] %v344
  %493 = vst [vmem:[%s453] ss:$2 sm:$0xff] %v431
  %494 = vst [vmem:[%s455] ss:$2 sm:$0xff] %v345
  %495 = vst [vmem:[%s457] ss:$2 sm:$0xff] %v346
  %496 = vst [vmem:[%s459] ss:$2 sm:$0xff] %v432
  %v497 = vld.sshfl [vmem:[#allocation1] sm:$0xff pattern:$0x75316420]
  %v498 = vld.sshfl [vmem:[#allocation1 + $0x10] sm:$0xff pattern:$0x75316420]
  %v499 = vld.sshfl [vmem:[#allocation1 + $0x20] sm:$0xff pattern:$0x75316420]
  %v500 = vld.sshfl [vmem:[#allocation1 + $0x30] sm:$0xff pattern:$0x75316420]
  %501 = vst [vmem:[#allocation1] ss:$2 sm:$0xff] %v347
  %502 = vst [vmem:[%s447] ss:$2 sm:$0xff] %v348
  %503 = vst [vmem:[%s449] ss:$2 sm:$0xff] %v433
  %504 = vst [vmem:[%s451] ss:$2 sm:$0xff] %v349
  %505 = vst [vmem:[%s453] ss:$2 sm:$0xff] %v350
  %506 = vst [vmem:[%s455] ss:$2 sm:$0xff] %v434
  %507 = vst [vmem:[%s457] ss:$2 sm:$0xff] %v351
  %508 = vst [vmem:[%s459] ss:$2 sm:$0xff] %v352
  %v509 = vld.sshfl [vmem:[#allocation1] sm:$0xff pattern:$0x75316420]
  %v510 = vld.sshfl [vmem:[#allocation1 + $0x10] sm:$0xff pattern:$0x75316420]
  %v511 = vld.sshfl [vmem:[#allocation1 + $0x20] sm:$0xff pattern:$0x75316420]
  %v512 = vld.sshfl [vmem:[#allocation1 + $0x30] sm:$0xff pattern:$0x75316420]
  %513 = vst [vmem:[#allocation1] ss:$2 sm:$0xff] %v435
  %514 = vst [vmem:[%s447] ss:$2 sm:$0xff] %v353
  %515 = vst [vmem:[%s449] ss:$2 sm:$0xff] %v354
  %516 = vst [vmem:[%s451] ss:$2 sm:$0xff] %v436
  %517 = vst [vmem:[%s453] ss:$2 sm:$0xff] %v355
  %518 = vst [vmem:[%s455] ss:$2 sm:$0xff] %v356
  %519 = vst [vmem:[%s457] ss:$2 sm:$0xff] %v437
  %520 = vst [vmem:[%s459] ss:$2 sm:$0xff] %v357
  %v521 = vld.sshfl [vmem:[#allocation1] sm:$0xff pattern:$0x75316420]
  %v522 = vld.sshfl [vmem:[#allocation1 + $0x10] sm:$0xff pattern:$0x75316420]
  %v523 = vld.sshfl [vmem:[#allocation1 + $0x20] sm:$0xff pattern:$0x75316420]
  %v524 = vld.sshfl [vmem:[#allocation1 + $0x30] sm:$0xff pattern:$0x75316420]
  %525 = vst [vmem:[#allocation1] ss:$2 sm:$0xff] %v358
  %526 = vst [vmem:[%s447] ss:$2 sm:$0xff] %v438
  %527 = vst [vmem:[%s449] ss:$2 sm:$0xff] %v359
  %528 = vst [vmem:[%s451] ss:$2 sm:$0xff] %v360
  %529 = vst [vmem:[%s453] ss:$2 sm:$0xff] %v439
  %530 = vst [vmem:[%s455] ss:$2 sm:$0xff] %v361
  %531 = vst [vmem:[%s457] ss:$2 sm:$0xff] %v362
  %532 = vst [vmem:[%s459] ss:$2 sm:$0xff] %v440
  %v533 = vld.sshfl [vmem:[#allocation1] sm:$0xff pattern:$0x75316420]
  %v534 = vld.sshfl [vmem:[#allocation1 + $0x10] sm:$0xff pattern:$0x75316420]
  %v535 = vld.sshfl [vmem:[#allocation1 + $0x20] sm:$0xff pattern:$0x75316420]
  %v536 = vld.sshfl [vmem:[#allocation1 + $0x30] sm:$0xff pattern:$0x75316420]
  %537 = vst [vmem:[#allocation1] ss:$2 sm:$0xff] %v363
  %538 = vst [vmem:[%s447] ss:$2 sm:$0xff] %v364
  %539 = vst [vmem:[%s449] ss:$2 sm:$0xff] %v441
  %540 = vst [vmem:[%s451] ss:$2 sm:$0xff] %v365
  %541 = vst [vmem:[%s453] ss:$2 sm:$0xff] %v366
  %542 = vst [vmem:[%s455] ss:$2 sm:$0xff] %v442
  %543 = vst [vmem:[%s457] ss:$2 sm:$0xff] %v367
  %544 = vst [vmem:[%s459] ss:$2 sm:$0xff] %v368
  %v545 = vld.sshfl [vmem:[#allocation1] sm:$0xff pattern:$0x75316420]
  %v546 = vld.sshfl [vmem:[#allocation1 + $0x10] sm:$0xff pattern:$0x75316420]
  %v547 = vld.sshfl [vmem:[#allocation1 + $0x20] sm:$0xff pattern:$0x75316420]
  %v548 = vld.sshfl [vmem:[#allocation1 + $0x30] sm:$0xff pattern:$0x75316420]
  %549 = vst [vmem:[#allocation1] ss:$2 sm:$0xff] %v443
  %550 = vst [vmem:[%s447] ss:$2 sm:$0xff] %v369
  %551 = vst [vmem:[%s449] ss:$2 sm:$0xff] %v370
  %552 = vst [vmem:[%s451] ss:$2 sm:$0xff] %v444
  %553 = vst [vmem:[%s453] ss:$2 sm:$0xff] %v371
  %554 = vst [vmem:[%s455] ss:$2 sm:$0xff] %v372
  %555 = vst [vmem:[%s457] ss:$2 sm:$0xff] %v445
  %556 = vst [vmem:[%s459] ss:$2 sm:$0xff] %v373
  %v557 = vld.sshfl [vmem:[#allocation1] sm:$0xff pattern:$0x75316420]
  %v558 = vld.sshfl [vmem:[#allocation1 + $0x10] sm:$0xff pattern:$0x75316420]
  %v559 = vld.sshfl [vmem:[#allocation1 + $0x20] sm:$0xff pattern:$0x75316420]
  %v560 = vld.sshfl [vmem:[#allocation1 + $0x30] sm:$0xff pattern:$0x75316420]
  %561 = vrot.lane.b32.xlu0 %v461, 3
  %v562 = vpop.permute.xlu0 %561
  %563 = vrot.lane.b32.xlu0 %v462, 3
  %v564 = vpop.permute.xlu0 %563
  %565 = vrot.lane.b32.xlu0 %v463, 3
  %v566 = vpop.permute.xlu0 %565
  %567 = vrot.lane.b32.xlu0 %v464, 3
  %v568 = vpop.permute.xlu0 %567
  %569 = vrot.lane.b32.xlu0 %v473, 3
  %v570 = vpop.permute.xlu0 %569
  %571 = vrot.lane.b32.xlu0 %v474, 3
  %v572 = vpop.permute.xlu0 %571
  %573 = vrot.lane.b32.xlu0 %v475, 3
  %v574 = vpop.permute.xlu0 %573
  %575 = vrot.lane.b32.xlu0 %v476, 3
  %v576 = vpop.permute.xlu0 %575
  %577 = vrot.lane.b32.xlu0 %v485, 3
  %v578 = vpop.permute.xlu0 %577
  %579 = vrot.lane.b32.xlu0 %v486, 3
  %v580 = vpop.permute.xlu0 %579
  %581 = vrot.lane.b32.xlu0 %v487, 3
  %v582 = vpop.permute.xlu0 %581
  %583 = vrot.lane.b32.xlu0 %v488, 3
  %v584 = vpop.permute.xlu0 %583
  %585 = vrot.lane.b32.xlu0 %v497, 3
  %v586 = vpop.permute.xlu0 %585
  %587 = vrot.lane.b32.xlu0 %v498, 3
  %v588 = vpop.permute.xlu0 %587
  %589 = vrot.lane.b32.xlu0 %v499, 3
  %v590 = vpop.permute.xlu0 %589
  %591 = vrot.lane.b32.xlu0 %v500, 3
  %v592 = vpop.permute.xlu0 %591
  %593 = vrot.lane.b32.xlu0 %v509, 3
  %v594 = vpop.permute.xlu0 %593
  %595 = vrot.lane.b32.xlu0 %v510, 3
  %v596 = vpop.permute.xlu0 %595
  %597 = vrot.lane.b32.xlu0 %v511, 3
  %v598 = vpop.permute.xlu0 %597
  %599 = vrot.lane.b32.xlu0 %v512, 3
  %v600 = vpop.permute.xlu0 %599
  %601 = vrot.lane.b32.xlu0 %v521, 3
  %v602 = vpop.permute.xlu0 %601
  %603 = vrot.lane.b32.xlu0 %v522, 3
  %v604 = vpop.permute.xlu0 %603
  %605 = vrot.lane.b32.xlu0 %v523, 3
  %v606 = vpop.permute.xlu0 %605
  %607 = vrot.lane.b32.xlu0 %v524, 3
  %v608 = vpop.permute.xlu0 %607
  %609 = vrot.lane.b32.xlu0 %v533, 3
  %v610 = vpop.permute.xlu0 %609
  %611 = vrot.lane.b32.xlu0 %v534, 3
  %v612 = vpop.permute.xlu0 %611
  %613 = vrot.lane.b32.xlu0 %v535, 3
  %v614 = vpop.permute.xlu0 %613
  %615 = vrot.lane.b32.xlu0 %v536, 3
  %v616 = vpop.permute.xlu0 %615
  %617 = vrot.lane.b32.xlu0 %v545, 3
  %v618 = vpop.permute.xlu0 %617
  %619 = vrot.lane.b32.xlu0 %v546, 3
  %v620 = vpop.permute.xlu0 %619
  %621 = vrot.lane.b32.xlu0 %v547, 3
  %v622 = vpop.permute.xlu0 %621
  %623 = vrot.lane.b32.xlu0 %v548, 3
  %v624 = vpop.permute.xlu0 %623
  %625 = vrot.lane.b32.xlu0 %v557, 3
  %v626 = vpop.permute.xlu0 %625
  %627 = vrot.lane.b32.xlu0 %v558, 3
  %v628 = vpop.permute.xlu0 %627
  %629 = vrot.lane.b32.xlu0 %v559, 3
  %v630 = vpop.permute.xlu0 %629
  %631 = vrot.lane.b32.xlu0 %v560, 3
  %v632 = vpop.permute.xlu0 %631
  %vm669 = vcmask 48152
  %670 = vst.msk [vmem:[#allocation2] sm:$0xff] %vm669, %v562
  %671 = vst.msk [vmem:[#allocation2 + $0x8] sm:$0xff] %vm669, %v564
  %672 = vst.msk [vmem:[#allocation2 + $0x10] sm:$0xff] %vm669, %v566
  %673 = vst.msk [vmem:[#allocation2 + $0x18] sm:$0xff] %vm669, %v568
  %674 = vst.msk [vmem:[#allocation2 + $0x20] sm:$0xff] %vm669, %v570
  %675 = vst.msk [vmem:[#allocation2 + $0x28] sm:$0xff] %vm669, %v572
  %676 = vst.msk [vmem:[#allocation2 + $0x30] sm:$0xff] %vm669, %v574
  %677 = vst.msk [vmem:[#allocation2 + $0x38] sm:$0xff] %vm669, %v576
  %678 = vst.msk [vmem:[#allocation2 + $0x40] sm:$0xff] %vm669, %v578
  %679 = vst.msk [vmem:[#allocation2 + $0x48] sm:$0xff] %vm669, %v580
  %680 = vst.msk [vmem:[#allocation2 + $0x50] sm:$0xff] %vm669, %v582
  %681 = vst.msk [vmem:[#allocation2 + $0x58] sm:$0xff] %vm669, %v584
  %682 = vst.msk [vmem:[#allocation2 + $0x60] sm:$0xff] %vm669, %v586
  %683 = vst.msk [vmem:[#allocation2 + $0x68] sm:$0xff] %vm669, %v588
  %684 = vst.msk [vmem:[#allocation2 + $0x70] sm:$0xff] %vm669, %v590
  %685 = vst.msk [vmem:[#allocation2 + $0x78] sm:$0xff] %vm669, %v592
  %686 = vst.msk [vmem:[#allocation2 + $0x80] sm:$0xff] %vm669, %v594
  %687 = vst.msk [vmem:[#allocation2 + $0x88] sm:$0xff] %vm669, %v596
  %688 = vst.msk [vmem:[#allocation2 + $0x90] sm:$0xff] %vm669, %v598
  %689 = vst.msk [vmem:[#allocation2 + $0x98] sm:$0xff] %vm669, %v600
  %690 = vst.msk [vmem:[#allocation2 + $0xa0] sm:$0xff] %vm669, %v602
  %691 = vst.msk [vmem:[#allocation2 + $0xa8] sm:$0xff] %vm669, %v604
  %692 = vst.msk [vmem:[#allocation2 + $0xb0] sm:$0xff] %vm669, %v606
  %693 = vst.msk [vmem:[#allocation2 + $0xb8] sm:$0xff] %vm669, %v608
  %694 = vst.msk [vmem:[#allocation2 + $0xc0] sm:$0xff] %vm669, %v610
  %695 = vst.msk [vmem:[#allocation2 + $0xc8] sm:$0xff] %vm669, %v612
  %696 = vst.msk [vmem:[#allocation2 + $0xd0] sm:$0xff] %vm669, %v614
  %697 = vst.msk [vmem:[#allocation2 + $0xd8] sm:$0xff] %vm669, %v616
  %698 = vst.msk [vmem:[#allocation2 + $0xe0] sm:$0xff] %vm669, %v618
  %699 = vst.msk [vmem:[#allocation2 + $0xe8] sm:$0xff] %vm669, %v620
  %700 = vst.msk [vmem:[#allocation2 + $0xf0] sm:$0xff] %vm669, %v622
  %701 = vst.msk [vmem:[#allocation2 + $0xf8] sm:$0xff] %vm669, %v624
  %702 = vst.msk [vmem:[#allocation2 + $0x100] sm:$0xff] %vm669, %v626
  %703 = vst.msk [vmem:[#allocation2 + $0x108] sm:$0xff] %vm669, %v628
  %704 = vst.msk [vmem:[#allocation2 + $0x110] sm:$0xff] %vm669, %v630
  %705 = vst.msk [vmem:[#allocation2 + $0x118] sm:$0xff] %vm669, %v632
  %v706 = vld [vmem:[%s1 + $0x2] sm:$0xff]
  %v707 = vld [vmem:[%s1 + $0xa] sm:$0xf]
  %v708 = vld [vmem:[%s1 + $0x12] sm:$0xff]
  %v709 = vld [vmem:[%s1 + $0x1a] sm:$0xf]
  %v710 = vld [vmem:[%s1 + $0x22] sm:$0xff]
  %v711 = vld [vmem:[%s1 + $0x2a] sm:$0xf]
  %v712 = vld [vmem:[%s1 + $0x32] sm:$0xff]
  %v713 = vld [vmem:[%s1 + $0x3a] sm:$0xf]
  %v714 = vld [vmem:[%s1 + $0x42] sm:$0xff]
  %v715 = vld [vmem:[%s1 + $0x4a] sm:$0xf]
  %v716 = vld [vmem:[%s1 + $0x52] sm:$0xff]
  %v717 = vld [vmem:[%s1 + $0x5a] sm:$0xf]
  %v718 = vld [vmem:[%s1 + $0x62] sm:$0xff]
  %v719 = vld [vmem:[%s1 + $0x6a] sm:$0xf]
  %v720 = vld [vmem:[%s1 + $0x72] sm:$0xff]
  %v721 = vld [vmem:[%s1 + $0x7a] sm:$0xf]
  %v722 = vld [vmem:[%s1 + $0x82] sm:$0xff]
  %v723 = vld [vmem:[%s1 + $0x8a] sm:$0xf]
  %v724 = vld [vmem:[%s1 + $0x92] sm:$0xff]
  %v725 = vld [vmem:[%s1 + $0x9a] sm:$0xf]
  %v726 = vld [vmem:[%s1 + $0xa2] sm:$0xff]
  %v727 = vld [vmem:[%s1 + $0xaa] sm:$0xf]
  %v728 = vld [vmem:[%s1 + $0xb2] sm:$0xff]
  %v729 = vld [vmem:[%s1 + $0xba] sm:$0xf]
  %v730 = vld [vmem:[%s1 + $0x102] sm:$0xff]
  %v731 = vld [vmem:[%s1 + $0x10a] sm:$0xf]
  %v732 = vld [vmem:[%s1 + $0x112] sm:$0xff]
  %v733 = vld [vmem:[%s1 + $0x11a] sm:$0xf]
  %v734 = vld [vmem:[%s1 + $0x122] sm:$0xff]
  %v735 = vld [vmem:[%s1 + $0x12a] sm:$0xf]
  %v736 = vld [vmem:[%s1 + $0x132] sm:$0xff]
  %v737 = vld [vmem:[%s1 + $0x13a] sm:$0xf]
  %v738 = vld [vmem:[%s1 + $0x142] sm:$0xff]
  %v739 = vld [vmem:[%s1 + $0x14a] sm:$0xf]
  %v740 = vld [vmem:[%s1 + $0x152] sm:$0xff]
  %v741 = vld [vmem:[%s1 + $0x15a] sm:$0xf]
  %v742 = vld [vmem:[%s1 + $0x162] sm:$0xff]
  %v743 = vld [vmem:[%s1 + $0x16a] sm:$0xf]
  %v744 = vld [vmem:[%s1 + $0x172] sm:$0xff]
  %v745 = vld [vmem:[%s1 + $0x17a] sm:$0xf]
  %v746 = vld [vmem:[%s1 + $0x182] sm:$0xff]
  %v747 = vld [vmem:[%s1 + $0x18a] sm:$0xf]
  %v748 = vld [vmem:[%s1 + $0x192] sm:$0xff]
  %v749 = vld [vmem:[%s1 + $0x19a] sm:$0xf]
  %v750 = vld [vmem:[%s1 + $0x1a2] sm:$0xff]
  %v751 = vld [vmem:[%s1 + $0x1aa] sm:$0xf]
  %v752 = vld [vmem:[%s1 + $0x1b2] sm:$0xff]
  %v753 = vld [vmem:[%s1 + $0x1ba] sm:$0xf]
  %v802 = vrot.slane %v706, 4
  %v803 = vrot.slane %v708, 4
  %v804 = vrot.slane %v710, 4
  %v805 = vrot.slane %v712, 4
  %v806 = vrot.slane %v714, 4
  %v807 = vrot.slane %v716, 4
  %v808 = vrot.slane %v718, 4
  %v809 = vrot.slane %v720, 4
  %v810 = vrot.slane %v722, 4
  %v811 = vrot.slane %v724, 4
  %v812 = vrot.slane %v726, 4
  %v813 = vrot.slane %v728, 4
  %v814 = vrot.slane %v730, 4
  %v815 = vrot.slane %v732, 4
  %v816 = vrot.slane %v734, 4
  %v817 = vrot.slane %v736, 4
  %v818 = vrot.slane %v738, 4
  %v819 = vrot.slane %v740, 4
  %v820 = vrot.slane %v742, 4
  %v821 = vrot.slane %v744, 4
  %v822 = vrot.slane %v746, 4
  %v823 = vrot.slane %v748, 4
  %v824 = vrot.slane %v750, 4
  %v825 = vrot.slane %v752, 4
  %826 = vst [vmem:[#allocation1] ss:$2 sm:$0xff] %v706
  %s827 = scalar_lea.vmem [#allocation1], 1
  %828 = vst [vmem:[%s827] ss:$2 sm:$0xff] %v802
  %s829 = scalar_lea.vmem [#allocation1], 16
  %830 = vst [vmem:[%s829] ss:$2 sm:$0xff] %v707
  %s831 = scalar_lea.vmem [#allocation1], 17
  %832 = vst [vmem:[%s831] ss:$2 sm:$0xff] %v708
  %s833 = scalar_lea.vmem [#allocation1], 32
  %834 = vst [vmem:[%s833] ss:$2 sm:$0xff] %v803
  %s835 = scalar_lea.vmem [#allocation1], 33
  %836 = vst [vmem:[%s835] ss:$2 sm:$0xff] %v709
  %s837 = scalar_lea.vmem [#allocation1], 48
  %838 = vst [vmem:[%s837] ss:$2 sm:$0xff] %v710
  %s839 = scalar_lea.vmem [#allocation1], 49
  %840 = vst [vmem:[%s839] ss:$2 sm:$0xff] %v804
  %v841 = vld.sshfl [vmem:[#allocation1] sm:$0xff pattern:$0x75316420]
  %v842 = vld.sshfl [vmem:[#allocation1 + $0x10] sm:$0xff pattern:$0x75316420]
  %v843 = vld.sshfl [vmem:[#allocation1 + $0x20] sm:$0xff pattern:$0x75316420]
  %v844 = vld.sshfl [vmem:[#allocation1 + $0x30] sm:$0xff pattern:$0x75316420]
  %845 = vst [vmem:[#allocation1] ss:$2 sm:$0xff] %v711
  %846 = vst [vmem:[%s827] ss:$2 sm:$0xff] %v712
  %847 = vst [vmem:[%s829] ss:$2 sm:$0xff] %v805
  %848 = vst [vmem:[%s831] ss:$2 sm:$0xff] %v713
  %849 = vst [vmem:[%s833] ss:$2 sm:$0xff] %v714
  %850 = vst [vmem:[%s835] ss:$2 sm:$0xff] %v806
  %851 = vst [vmem:[%s837] ss:$2 sm:$0xff] %v715
  %852 = vst [vmem:[%s839] ss:$2 sm:$0xff] %v716
  %v853 = vld.sshfl [vmem:[#allocation1] sm:$0xff pattern:$0x75316420]
  %v854 = vld.sshfl [vmem:[#allocation1 + $0x10] sm:$0xff pattern:$0x75316420]
  %v855 = vld.sshfl [vmem:[#allocation1 + $0x20] sm:$0xff pattern:$0x75316420]
  %v856 = vld.sshfl [vmem:[#allocation1 + $0x30] sm:$0xff pattern:$0x75316420]
  %857 = vst [vmem:[#allocation1] ss:$2 sm:$0xff] %v807
  %858 = vst [vmem:[%s827] ss:$2 sm:$0xff] %v717
  %859 = vst [vmem:[%s829] ss:$2 sm:$0xff] %v718
  %860 = vst [vmem:[%s831] ss:$2 sm:$0xff] %v808
  %861 = vst [vmem:[%s833] ss:$2 sm:$0xff] %v719
  %862 = vst [vmem:[%s835] ss:$2 sm:$0xff] %v720
  %863 = vst [vmem:[%s837] ss:$2 sm:$0xff] %v809
  %864 = vst [vmem:[%s839] ss:$2 sm:$0xff] %v721
  %v865 = vld.sshfl [vmem:[#allocation1] sm:$0xff pattern:$0x75316420]
  %v866 = vld.sshfl [vmem:[#allocation1 + $0x10] sm:$0xff pattern:$0x75316420]
  %v867 = vld.sshfl [vmem:[#allocation1 + $0x20] sm:$0xff pattern:$0x75316420]
  %v868 = vld.sshfl [vmem:[#allocation1 + $0x30] sm:$0xff pattern:$0x75316420]
  %869 = vst [vmem:[#allocation1] ss:$2 sm:$0xff] %v722
  %870 = vst [vmem:[%s827] ss:$2 sm:$0xff] %v810
  %871 = vst [vmem:[%s829] ss:$2 sm:$0xff] %v723
  %872 = vst [vmem:[%s831] ss:$2 sm:$0xff] %v724
  %873 = vst [vmem:[%s833] ss:$2 sm:$0xff] %v811
  %874 = vst [vmem:[%s835] ss:$2 sm:$0xff] %v725
  %875 = vst [vmem:[%s837] ss:$2 sm:$0xff] %v726
  %876 = vst [vmem:[%s839] ss:$2 sm:$0xff] %v812
  %v877 = vld.sshfl [vmem:[#allocation1] sm:$0xff pattern:$0x75316420]
  %v878 = vld.sshfl [vmem:[#allocation1 + $0x10] sm:$0xff pattern:$0x75316420]
  %v879 = vld.sshfl [vmem:[#allocation1 + $0x20] sm:$0xff pattern:$0x75316420]
  %v880 = vld.sshfl [vmem:[#allocation1 + $0x30] sm:$0xff pattern:$0x75316420]
  %881 = vst [vmem:[#allocation1] ss:$2 sm:$0xff] %v727
  %882 = vst [vmem:[%s827] ss:$2 sm:$0xff] %v728
  %883 = vst [vmem:[%s829] ss:$2 sm:$0xff] %v813
  %884 = vst [vmem:[%s831] ss:$2 sm:$0xff] %v729
  %885 = vst [vmem:[%s833] ss:$2 sm:$0xff] %v730
  %886 = vst [vmem:[%s835] ss:$2 sm:$0xff] %v814
  %887 = vst [vmem:[%s837] ss:$2 sm:$0xff] %v731
  %888 = vst [vmem:[%s839] ss:$2 sm:$0xff] %v732
  %v889 = vld.sshfl [vmem:[#allocation1] sm:$0xff pattern:$0x75316420]
  %v890 = vld.sshfl [vmem:[#allocation1 + $0x10] sm:$0xff pattern:$0x75316420]
  %v891 = vld.sshfl [vmem:[#allocation1 + $0x20] sm:$0xff pattern:$0x75316420]
  %v892 = vld.sshfl [vmem:[#allocation1 + $0x30] sm:$0xff pattern:$0x75316420]
  %893 = vst [vmem:[#allocation1] ss:$2 sm:$0xff] %v815
  %894 = vst [vmem:[%s827] ss:$2 sm:$0xff] %v733
  %895 = vst [vmem:[%s829] ss:$2 sm:$0xff] %v734
  %896 = vst [vmem:[%s831] ss:$2 sm:$0xff] %v816
  %897 = vst [vmem:[%s833] ss:$2 sm:$0xff] %v735
  %898 = vst [vmem:[%s835] ss:$2 sm:$0xff] %v736
  %899 = vst [vmem:[%s837] ss:$2 sm:$0xff] %v817
  %900 = vst [vmem:[%s839] ss:$2 sm:$0xff] %v737
  %v901 = vld.sshfl [vmem:[#allocation1] sm:$0xff pattern:$0x75316420]
  %v902 = vld.sshfl [vmem:[#allocation1 + $0x10] sm:$0xff pattern:$0x75316420]
  %v903 = vld.sshfl [vmem:[#allocation1 + $0x20] sm:$0xff pattern:$0x75316420]
  %v904 = vld.sshfl [vmem:[#allocation1 + $0x30] sm:$0xff pattern:$0x75316420]
  %905 = vst [vmem:[#allocation1] ss:$2 sm:$0xff] %v738
  %906 = vst [vmem:[%s827] ss:$2 sm:$0xff] %v818
  %907 = vst [vmem:[%s829] ss:$2 sm:$0xff] %v739
  %908 = vst [vmem:[%s831] ss:$2 sm:$0xff] %v740
  %909 = vst [vmem:[%s833] ss:$2 sm:$0xff] %v819
  %910 = vst [vmem:[%s835] ss:$2 sm:$0xff] %v741
  %911 = vst [vmem:[%s837] ss:$2 sm:$0xff] %v742
  %912 = vst [vmem:[%s839] ss:$2 sm:$0xff] %v820
  %v913 = vld.sshfl [vmem:[#allocation1] sm:$0xff pattern:$0x75316420]
  %v914 = vld.sshfl [vmem:[#allocation1 + $0x10] sm:$0xff pattern:$0x75316420]
  %v915 = vld.sshfl [vmem:[#allocation1 + $0x20] sm:$0xff pattern:$0x75316420]
  %v916 = vld.sshfl [vmem:[#allocation1 + $0x30] sm:$0xff pattern:$0x75316420]
  %917 = vst [vmem:[#allocation1] ss:$2 sm:$0xff] %v743
  %918 = vst [vmem:[%s827] ss:$2 sm:$0xff] %v744
  %919 = vst [vmem:[%s829] ss:$2 sm:$0xff] %v821
  %920 = vst [vmem:[%s831] ss:$2 sm:$0xff] %v745
  %921 = vst [vmem:[%s833] ss:$2 sm:$0xff] %v746
  %922 = vst [vmem:[%s835] ss:$2 sm:$0xff] %v822
  %923 = vst [vmem:[%s837] ss:$2 sm:$0xff] %v747
  %924 = vst [vmem:[%s839] ss:$2 sm:$0xff] %v748
  %v925 = vld.sshfl [vmem:[#allocation1] sm:$0xff pattern:$0x75316420]
  %v926 = vld.sshfl [vmem:[#allocation1 + $0x10] sm:$0xff pattern:$0x75316420]
  %v927 = vld.sshfl [vmem:[#allocation1 + $0x20] sm:$0xff pattern:$0x75316420]
  %v928 = vld.sshfl [vmem:[#allocation1 + $0x30] sm:$0xff pattern:$0x75316420]
  %929 = vst [vmem:[#allocation1] ss:$2 sm:$0xff] %v823
  %930 = vst [vmem:[%s827] ss:$2 sm:$0xff] %v749
  %931 = vst [vmem:[%s829] ss:$2 sm:$0xff] %v750
  %932 = vst [vmem:[%s831] ss:$2 sm:$0xff] %v824
  %933 = vst [vmem:[%s833] ss:$2 sm:$0xff] %v751
  %934 = vst [vmem:[%s835] ss:$2 sm:$0xff] %v752
  %935 = vst [vmem:[%s837] ss:$2 sm:$0xff] %v825
  %936 = vst [vmem:[%s839] ss:$2 sm:$0xff] %v753
  %v937 = vld.sshfl [vmem:[#allocation1] sm:$0xff pattern:$0x75316420]
  %v938 = vld.sshfl [vmem:[#allocation1 + $0x10] sm:$0xff pattern:$0x75316420]
  %v939 = vld.sshfl [vmem:[#allocation1 + $0x20] sm:$0xff pattern:$0x75316420]
  %v940 = vld.sshfl [vmem:[#allocation1 + $0x30] sm:$0xff pattern:$0x75316420]
  %941 = vrot.lane.b32.xlu0 %v841, 6
  %v942 = vpop.permute.xlu0 %941
  %943 = vrot.lane.b32.xlu0 %v842, 6
  %v944 = vpop.permute.xlu0 %943
  %945 = vrot.lane.b32.xlu0 %v843, 6
  %v946 = vpop.permute.xlu0 %945
  %947 = vrot.lane.b32.xlu0 %v844, 6
  %v948 = vpop.permute.xlu0 %947
  %949 = vrot.lane.b32.xlu0 %v853, 6
  %v950 = vpop.permute.xlu0 %949
  %951 = vrot.lane.b32.xlu0 %v854, 6
  %v952 = vpop.permute.xlu0 %951
  %953 = vrot.lane.b32.xlu0 %v855, 6
  %v954 = vpop.permute.xlu0 %953
  %955 = vrot.lane.b32.xlu0 %v856, 6
  %v956 = vpop.permute.xlu0 %955
  %957 = vrot.lane.b32.xlu0 %v865, 6
  %v958 = vpop.permute.xlu0 %957
  %959 = vrot.lane.b32.xlu0 %v866, 6
  %v960 = vpop.permute.xlu0 %959
  %961 = vrot.lane.b32.xlu0 %v867, 6
  %v962 = vpop.permute.xlu0 %961
  %963 = vrot.lane.b32.xlu0 %v868, 6
  %v964 = vpop.permute.xlu0 %963
  %965 = vrot.lane.b32.xlu0 %v877, 6
  %v966 = vpop.permute.xlu0 %965
  %967 = vrot.lane.b32.xlu0 %v878, 6
  %v968 = vpop.permute.xlu0 %967
  %969 = vrot.lane.b32.xlu0 %v879, 6
  %v970 = vpop.permute.xlu0 %969
  %971 = vrot.lane.b32.xlu0 %v880, 6
  %v972 = vpop.permute.xlu0 %971
  %973 = vrot.lane.b32.xlu0 %v889, 6
  %v974 = vpop.permute.xlu0 %973
  %975 = vrot.lane.b32.xlu0 %v890, 6
  %v976 = vpop.permute.xlu0 %975
  %977 = vrot.lane.b32.xlu0 %v891, 6
  %v978 = vpop.permute.xlu0 %977
  %979 = vrot.lane.b32.xlu0 %v892, 6
  %v980 = vpop.permute.xlu0 %979
  %981 = vrot.lane.b32.xlu0 %v901, 6
  %v982 = vpop.permute.xlu0 %981
  %983 = vrot.lane.b32.xlu0 %v902, 6
  %v984 = vpop.permute.xlu0 %983
  %985 = vrot.lane.b32.xlu0 %v903, 6
  %v986 = vpop.permute.xlu0 %985
  %987 = vrot.lane.b32.xlu0 %v904, 6
  %v988 = vpop.permute.xlu0 %987
  %989 = vrot.lane.b32.xlu0 %v913, 6
  %v990 = vpop.permute.xlu0 %989
  %991 = vrot.lane.b32.xlu0 %v914, 6
  %v992 = vpop.permute.xlu0 %991
  %993 = vrot.lane.b32.xlu0 %v915, 6
  %v994 = vpop.permute.xlu0 %993
  %995 = vrot.lane.b32.xlu0 %v916, 6
  %v996 = vpop.permute.xlu0 %995
  %997 = vrot.lane.b32.xlu0 %v925, 6
  %v998 = vpop.permute.xlu0 %997
  %999 = vrot.lane.b32.xlu0 %v926, 6
  %v1000 = vpop.permute.xlu0 %999
  %1001 = vrot.lane.b32.xlu0 %v927, 6
  %v1002 = vpop.permute.xlu0 %1001
  %1003 = vrot.lane.b32.xlu0 %v928, 6
  %v1004 = vpop.permute.xlu0 %1003
  %1005 = vrot.lane.b32.xlu0 %v937, 6
  %v1006 = vpop.permute.xlu0 %1005
  %1007 = vrot.lane.b32.xlu0 %v938, 6
  %v1008 = vpop.permute.xlu0 %1007
  %1009 = vrot.lane.b32.xlu0 %v939, 6
  %v1010 = vpop.permute.xlu0 %1009
  %1011 = vrot.lane.b32.xlu0 %v940, 6
  %v1012 = vpop.permute.xlu0 %1011
  %vm1049 = vcmask 72752
  %1050 = vst.msk [vmem:[#allocation2] sm:$0xff] %vm1049, %v942
  %1051 = vst.msk [vmem:[#allocation2 + $0x8] sm:$0xff] %vm1049, %v944
  %1052 = vst.msk [vmem:[#allocation2 + $0x10] sm:$0xff] %vm1049, %v946
  %1053 = vst.msk [vmem:[#allocation2 + $0x18] sm:$0xff] %vm1049, %v948
  %1054 = vst.msk [vmem:[#allocation2 + $0x20] sm:$0xff] %vm1049, %v950
  %1055 = vst.msk [vmem:[#allocation2 + $0x28] sm:$0xff] %vm1049, %v952
  %1056 = vst.msk [vmem:[#allocation2 + $0x30] sm:$0xff] %vm1049, %v954
  %1057 = vst.msk [vmem:[#allocation2 + $0x38] sm:$0xff] %vm1049, %v956
  %1058 = vst.msk [vmem:[#allocation2 + $0x40] sm:$0xff] %vm1049, %v958
  %1059 = vst.msk [vmem:[#allocation2 + $0x48] sm:$0xff] %vm1049, %v960
  %1060 = vst.msk [vmem:[#allocation2 + $0x50] sm:$0xff] %vm1049, %v962
  %1061 = vst.msk [vmem:[#allocation2 + $0x58] sm:$0xff] %vm1049, %v964
  %1062 = vst.msk [vmem:[#allocation2 + $0x60] sm:$0xff] %vm1049, %v966
  %1063 = vst.msk [vmem:[#allocation2 + $0x68] sm:$0xff] %vm1049, %v968
  %1064 = vst.msk [vmem:[#allocation2 + $0x70] sm:$0xff] %vm1049, %v970
  %1065 = vst.msk [vmem:[#allocation2 + $0x78] sm:$0xff] %vm1049, %v972
  %1066 = vst.msk [vmem:[#allocation2 + $0x80] sm:$0xff] %vm1049, %v974
  %1067 = vst.msk [vmem:[#allocation2 + $0x88] sm:$0xff] %vm1049, %v976
  %1068 = vst.msk [vmem:[#allocation2 + $0x90] sm:$0xff] %vm1049, %v978
  %1069 = vst.msk [vmem:[#allocation2 + $0x98] sm:$0xff] %vm1049, %v980
  %1070 = vst.msk [vmem:[#allocation2 + $0xa0] sm:$0xff] %vm1049, %v982
  %1071 = vst.msk [vmem:[#allocation2 + $0xa8] sm:$0xff] %vm1049, %v984
  %1072 = vst.msk [vmem:[#allocation2 + $0xb0] sm:$0xff] %vm1049, %v986
  %1073 = vst.msk [vmem:[#allocation2 + $0xb8] sm:$0xff] %vm1049, %v988
  %1074 = vst.msk [vmem:[#allocation2 + $0xc0] sm:$0xff] %vm1049, %v990
  %1075 = vst.msk [vmem:[#allocation2 + $0xc8] sm:$0xff] %vm1049, %v992
  %1076 = vst.msk [vmem:[#allocation2 + $0xd0] sm:$0xff] %vm1049, %v994
  %1077 = vst.msk [vmem:[#allocation2 + $0xd8] sm:$0xff] %vm1049, %v996
  %1078 = vst.msk [vmem:[#allocation2 + $0xe0] sm:$0xff] %vm1049, %v998
  %1079 = vst.msk [vmem:[#allocation2 + $0xe8] sm:$0xff] %vm1049, %v1000
  %1080 = vst.msk [vmem:[#allocation2 + $0xf0] sm:$0xff] %vm1049, %v1002
  %1081 = vst.msk [vmem:[#allocation2 + $0xf8] sm:$0xff] %vm1049, %v1004
  %1082 = vst.msk [vmem:[#allocation2 + $0x100] sm:$0xff] %vm1049, %v1006
  %1083 = vst.msk [vmem:[#allocation2 + $0x108] sm:$0xff] %vm1049, %v1008
  %1084 = vst.msk [vmem:[#allocation2 + $0x110] sm:$0xff] %vm1049, %v1010
  %1085 = vst.msk [vmem:[#allocation2 + $0x118] sm:$0xff] %vm1049, %v1012
  %v1086 = vld [vmem:[%s1 + $0x3] sm:$0xff]
  %v1087 = vld [vmem:[%s1 + $0xb] sm:$0xf]
  %v1088 = vld [vmem:[%s1 + $0x13] sm:$0xff]
  %v1089 = vld [vmem:[%s1 + $0x1b] sm:$0xf]
  %v1090 = vld [vmem:[%s1 + $0x23] sm:$0xff]
  %v1091 = vld [vmem:[%s1 + $0x2b] sm:$0xf]
  %v1092 = vld [vmem:[%s1 + $0x33] sm:$0xff]
  %v1093 = vld [vmem:[%s1 + $0x3b] sm:$0xf]
  %v1094 = vld [vmem:[%s1 + $0x43] sm:$0xff]
  %v1095 = vld [vmem:[%s1 + $0x4b] sm:$0xf]
  %v1096 = vld [vmem:[%s1 + $0x53] sm:$0xff]
  %v1097 = vld [vmem:[%s1 + $0x5b] sm:$0xf]
  %v1098 = vld [vmem:[%s1 + $0x63] sm:$0xff]
  %v1099 = vld [vmem:[%s1 + $0x6b] sm:$0xf]
  %v1100 = vld [vmem:[%s1 + $0x73] sm:$0xff]
  %v1101 = vld [vmem:[%s1 + $0x7b] sm:$0xf]
  %v1102 = vld [vmem:[%s1 + $0x83] sm:$0xff]
  %v1103 = vld [vmem:[%s1 + $0x8b] sm:$0xf]
  %v1104 = vld [vmem:[%s1 + $0x93] sm:$0xff]
  %v1105 = vld [vmem:[%s1 + $0x9b] sm:$0xf]
  %v1106 = vld [vmem:[%s1 + $0xa3] sm:$0xff]
  %v1107 = vld [vmem:[%s1 + $0xab] sm:$0xf]
  %v1108 = vld [vmem:[%s1 + $0xb3] sm:$0xff]
  %v1109 = vld [vmem:[%s1 + $0xbb] sm:$0xf]
  %v1110 = vld [vmem:[%s1 + $0x103] sm:$0xff]
  %v1111 = vld [vmem:[%s1 + $0x10b] sm:$0xf]
  %v1112 = vld [vmem:[%s1 + $0x113] sm:$0xff]
  %v1113 = vld [vmem:[%s1 + $0x11b] sm:$0xf]
  %v1114 = vld [vmem:[%s1 + $0x123] sm:$0xff]
  %v1115 = vld [vmem:[%s1 + $0x12b] sm:$0xf]
  %v1116 = vld [vmem:[%s1 + $0x133] sm:$0xff]
  %v1117 = vld [vmem:[%s1 + $0x13b] sm:$0xf]
  %v1118 = vld [vmem:[%s1 + $0x143] sm:$0xff]
  %v1119 = vld [vmem:[%s1 + $0x14b] sm:$0xf]
  %v1120 = vld [vmem:[%s1 + $0x153] sm:$0xff]
  %v1121 = vld [vmem:[%s1 + $0x15b] sm:$0xf]
  %v1122 = vld [vmem:[%s1 + $0x163] sm:$0xff]
  %v1123 = vld [vmem:[%s1 + $0x16b] sm:$0xf]
  %v1124 = vld [vmem:[%s1 + $0x173] sm:$0xff]
  %v1125 = vld [vmem:[%s1 + $0x17b] sm:$0xf]
  %v1126 = vld [vmem:[%s1 + $0x183] sm:$0xff]
  %v1127 = vld [vmem:[%s1 + $0x18b] sm:$0xf]
  %v1128 = vld [vmem:[%s1 + $0x193] sm:$0xff]
  %v1129 = vld [vmem:[%s1 + $0x19b] sm:$0xf]
  %v1130 = vld [vmem:[%s1 + $0x1a3] sm:$0xff]
  %v1131 = vld [vmem:[%s1 + $0x1ab] sm:$0xf]
  %v1132 = vld [vmem:[%s1 + $0x1b3] sm:$0xff]
  %v1133 = vld [vmem:[%s1 + $0x1bb] sm:$0xf]
  %v1182 = vrot.slane %v1086, 4
  %v1183 = vrot.slane %v1088, 4
  %v1184 = vrot.slane %v1090, 4
  %v1185 = vrot.slane %v1092, 4
  %v1186 = vrot.slane %v1094, 4
  %v1187 = vrot.slane %v1096, 4
  %v1188 = vrot.slane %v1098, 4
  %v1189 = vrot.slane %v1100, 4
  %v1190 = vrot.slane %v1102, 4
  %v1191 = vrot.slane %v1104, 4
  %v1192 = vrot.slane %v1106, 4
  %v1193 = vrot.slane %v1108, 4
  %v1194 = vrot.slane %v1110, 4
  %v1195 = vrot.slane %v1112, 4
  %v1196 = vrot.slane %v1114, 4
  %v1197 = vrot.slane %v1116, 4
  %v1198 = vrot.slane %v1118, 4
  %v1199 = vrot.slane %v1120, 4
  %v1200 = vrot.slane %v1122, 4
  %v1201 = vrot.slane %v1124, 4
  %v1202 = vrot.slane %v1126, 4
  %v1203 = vrot.slane %v1128, 4
  %v1204 = vrot.slane %v1130, 4
  %v1205 = vrot.slane %v1132, 4
  %1206 = vst [vmem:[#allocation1] ss:$2 sm:$0xff] %v1086
  %s1207 = scalar_lea.vmem [#allocation1], 1
  %1208 = vst [vmem:[%s1207] ss:$2 sm:$0xff] %v1182
  %s1209 = scalar_lea.vmem [#allocation1], 16
  %1210 = vst [vmem:[%s1209] ss:$2 sm:$0xff] %v1087
  %s1211 = scalar_lea.vmem [#allocation1], 17
  %1212 = vst [vmem:[%s1211] ss:$2 sm:$0xff] %v1088
  %s1213 = scalar_lea.vmem [#allocation1], 32
  %1214 = vst [vmem:[%s1213] ss:$2 sm:$0xff] %v1183
  %s1215 = scalar_lea.vmem [#allocation1], 33
  %1216 = vst [vmem:[%s1215] ss:$2 sm:$0xff] %v1089
  %s1217 = scalar_lea.vmem [#allocation1], 48
  %1218 = vst [vmem:[%s1217] ss:$2 sm:$0xff] %v1090
  %s1219 = scalar_lea.vmem [#allocation1], 49
  %1220 = vst [vmem:[%s1219] ss:$2 sm:$0xff] %v1184
  %v1221 = vld.sshfl [vmem:[#allocation1] sm:$0xff pattern:$0x75316420]
  %v1222 = vld.sshfl [vmem:[#allocation1 + $0x10] sm:$0xff pattern:$0x75316420]
  %v1223 = vld.sshfl [vmem:[#allocation1 + $0x20] sm:$0xff pattern:$0x75316420]
  %v1224 = vld.sshfl [vmem:[#allocation1 + $0x30] sm:$0xff pattern:$0x75316420]
  %1225 = vst [vmem:[#allocation1] ss:$2 sm:$0xff] %v1091
  %1226 = vst [vmem:[%s1207] ss:$2 sm:$0xff] %v1092
  %1227 = vst [vmem:[%s1209] ss:$2 sm:$0xff] %v1185
  %1228 = vst [vmem:[%s1211] ss:$2 sm:$0xff] %v1093
  %1229 = vst [vmem:[%s1213] ss:$2 sm:$0xff] %v1094
  %1230 = vst [vmem:[%s1215] ss:$2 sm:$0xff] %v1186
  %1231 = vst [vmem:[%s1217] ss:$2 sm:$0xff] %v1095
  %1232 = vst [vmem:[%s1219] ss:$2 sm:$0xff] %v1096
  %v1233 = vld.sshfl [vmem:[#allocation1] sm:$0xff pattern:$0x75316420]
  %v1234 = vld.sshfl [vmem:[#allocation1 + $0x10] sm:$0xff pattern:$0x75316420]
  %v1235 = vld.sshfl [vmem:[#allocation1 + $0x20] sm:$0xff pattern:$0x75316420]
  %v1236 = vld.sshfl [vmem:[#allocation1 + $0x30] sm:$0xff pattern:$0x75316420]
  %1237 = vst [vmem:[#allocation1] ss:$2 sm:$0xff] %v1187
  %1238 = vst [vmem:[%s1207] ss:$2 sm:$0xff] %v1097
  %1239 = vst [vmem:[%s1209] ss:$2 sm:$0xff] %v1098
  %1240 = vst [vmem:[%s1211] ss:$2 sm:$0xff] %v1188
  %1241 = vst [vmem:[%s1213] ss:$2 sm:$0xff] %v1099
  %1242 = vst [vmem:[%s1215] ss:$2 sm:$0xff] %v1100
  %1243 = vst [vmem:[%s1217] ss:$2 sm:$0xff] %v1189
  %1244 = vst [vmem:[%s1219] ss:$2 sm:$0xff] %v1101
  %v1245 = vld.sshfl [vmem:[#allocation1] sm:$0xff pattern:$0x75316420]
  %v1246 = vld.sshfl [vmem:[#allocation1 + $0x10] sm:$0xff pattern:$0x75316420]
  %v1247 = vld.sshfl [vmem:[#allocation1 + $0x20] sm:$0xff pattern:$0x75316420]
  %v1248 = vld.sshfl [vmem:[#allocation1 + $0x30] sm:$0xff pattern:$0x75316420]
  %1249 = vst [vmem:[#allocation1] ss:$2 sm:$0xff] %v1102
  %1250 = vst [vmem:[%s1207] ss:$2 sm:$0xff] %v1190
  %1251 = vst [vmem:[%s1209] ss:$2 sm:$0xff] %v1103
  %1252 = vst [vmem:[%s1211] ss:$2 sm:$0xff] %v1104
  %1253 = vst [vmem:[%s1213] ss:$2 sm:$0xff] %v1191
  %1254 = vst [vmem:[%s1215] ss:$2 sm:$0xff] %v1105
  %1255 = vst [vmem:[%s1217] ss:$2 sm:$0xff] %v1106
  %1256 = vst [vmem:[%s1219] ss:$2 sm:$0xff] %v1192
  %v1257 = vld.sshfl [vmem:[#allocation1] sm:$0xff pattern:$0x75316420]
  %v1258 = vld.sshfl [vmem:[#allocation1 + $0x10] sm:$0xff pattern:$0x75316420]
  %v1259 = vld.sshfl [vmem:[#allocation1 + $0x20] sm:$0xff pattern:$0x75316420]
  %v1260 = vld.sshfl [vmem:[#allocation1 + $0x30] sm:$0xff pattern:$0x75316420]
  %1261 = vst [vmem:[#allocation1] ss:$2 sm:$0xff] %v1107
  %1262 = vst [vmem:[%s1207] ss:$2 sm:$0xff] %v1108
  %1263 = vst [vmem:[%s1209] ss:$2 sm:$0xff] %v1193
  %1264 = vst [vmem:[%s1211] ss:$2 sm:$0xff] %v1109
  %1265 = vst [vmem:[%s1213] ss:$2 sm:$0xff] %v1110
  %1266 = vst [vmem:[%s1215] ss:$2 sm:$0xff] %v1194
  %1267 = vst [vmem:[%s1217] ss:$2 sm:$0xff] %v1111
  %1268 = vst [vmem:[%s1219] ss:$2 sm:$0xff] %v1112
  %v1269 = vld.sshfl [vmem:[#allocation1] sm:$0xff pattern:$0x75316420]
  %v1270 = vld.sshfl [vmem:[#allocation1 + $0x10] sm:$0xff pattern:$0x75316420]
  %v1271 = vld.sshfl [vmem:[#allocation1 + $0x20] sm:$0xff pattern:$0x75316420]
  %v1272 = vld.sshfl [vmem:[#allocation1 + $0x30] sm:$0xff pattern:$0x75316420]
  %1273 = vst [vmem:[#allocation1] ss:$2 sm:$0xff] %v1195
  %1274 = vst [vmem:[%s1207] ss:$2 sm:$0xff] %v1113
  %1275 = vst [vmem:[%s1209] ss:$2 sm:$0xff] %v1114
  %1276 = vst [vmem:[%s1211] ss:$2 sm:$0xff] %v1196
  %1277 = vst [vmem:[%s1213] ss:$2 sm:$0xff] %v1115
  %1278 = vst [vmem:[%s1215] ss:$2 sm:$0xff] %v1116
  %1279 = vst [vmem:[%s1217] ss:$2 sm:$0xff] %v1197
  %1280 = vst [vmem:[%s1219] ss:$2 sm:$0xff] %v1117
  %v1281 = vld.sshfl [vmem:[#allocation1] sm:$0xff pattern:$0x75316420]
  %v1282 = vld.sshfl [vmem:[#allocation1 + $0x10] sm:$0xff pattern:$0x75316420]
  %v1283 = vld.sshfl [vmem:[#allocation1 + $0x20] sm:$0xff pattern:$0x75316420]
  %v1284 = vld.sshfl [vmem:[#allocation1 + $0x30] sm:$0xff pattern:$0x75316420]
  %1285 = vst [vmem:[#allocation1] ss:$2 sm:$0xff] %v1118
  %1286 = vst [vmem:[%s1207] ss:$2 sm:$0xff] %v1198
  %1287 = vst [vmem:[%s1209] ss:$2 sm:$0xff] %v1119
  %1288 = vst [vmem:[%s1211] ss:$2 sm:$0xff] %v1120
  %1289 = vst [vmem:[%s1213] ss:$2 sm:$0xff] %v1199
  %1290 = vst [vmem:[%s1215] ss:$2 sm:$0xff] %v1121
  %1291 = vst [vmem:[%s1217] ss:$2 sm:$0xff] %v1122
  %1292 = vst [vmem:[%s1219] ss:$2 sm:$0xff] %v1200
  %v1293 = vld.sshfl [vmem:[#allocation1] sm:$0xff pattern:$0x75316420]
  %v1294 = vld.sshfl [vmem:[#allocation1 + $0x10] sm:$0xff pattern:$0x75316420]
  %v1295 = vld.sshfl [vmem:[#allocation1 + $0x20] sm:$0xff pattern:$0x75316420]
  %v1296 = vld.sshfl [vmem:[#allocation1 + $0x30] sm:$0xff pattern:$0x75316420]
  %1297 = vst [vmem:[#allocation1] ss:$2 sm:$0xff] %v1123
  %1298 = vst [vmem:[%s1207] ss:$2 sm:$0xff] %v1124
  %1299 = vst [vmem:[%s1209] ss:$2 sm:$0xff] %v1201
  %1300 = vst [vmem:[%s1211] ss:$2 sm:$0xff] %v1125
  %1301 = vst [vmem:[%s1213] ss:$2 sm:$0xff] %v1126
  %1302 = vst [vmem:[%s1215] ss:$2 sm:$0xff] %v1202
  %1303 = vst [vmem:[%s1217] ss:$2 sm:$0xff] %v1127
  %1304 = vst [vmem:[%s1219] ss:$2 sm:$0xff] %v1128
  %v1305 = vld.sshfl [vmem:[#allocation1] sm:$0xff pattern:$0x75316420]
  %v1306 = vld.sshfl [vmem:[#allocation1 + $0x10] sm:$0xff pattern:$0x75316420]
  %v1307 = vld.sshfl [vmem:[#allocation1 + $0x20] sm:$0xff pattern:$0x75316420]
  %v1308 = vld.sshfl [vmem:[#allocation1 + $0x30] sm:$0xff pattern:$0x75316420]
  %1309 = vst [vmem:[#allocation1] ss:$2 sm:$0xff] %v1203
  %1310 = vst [vmem:[%s1207] ss:$2 sm:$0xff] %v1129
  %1311 = vst [vmem:[%s1209] ss:$2 sm:$0xff] %v1130
  %1312 = vst [vmem:[%s1211] ss:$2 sm:$0xff] %v1204
  %1313 = vst [vmem:[%s1213] ss:$2 sm:$0xff] %v1131
  %1314 = vst [vmem:[%s1215] ss:$2 sm:$0xff] %v1132
  %1315 = vst [vmem:[%s1217] ss:$2 sm:$0xff] %v1205
  %1316 = vst [vmem:[%s1219] ss:$2 sm:$0xff] %v1133
  %v1317 = vld.sshfl [vmem:[#allocation1] sm:$0xff pattern:$0x75316420]
  %v1318 = vld.sshfl [vmem:[#allocation1 + $0x10] sm:$0xff pattern:$0x75316420]
  %v1319 = vld.sshfl [vmem:[#allocation1 + $0x20] sm:$0xff pattern:$0x75316420]
  %v1320 = vld.sshfl [vmem:[#allocation1 + $0x30] sm:$0xff pattern:$0x75316420]
  %1321 = vrot.lane.b32.xlu0 %v1221, 9
  %v1322 = vpop.permute.xlu0 %1321
  %1323 = vrot.lane.b32.xlu0 %v1222, 9
  %v1324 = vpop.permute.xlu0 %1323
  %1325 = vrot.lane.b32.xlu0 %v1223, 9
  %v1326 = vpop.permute.xlu0 %1325
  %1327 = vrot.lane.b32.xlu0 %v1224, 9
  %v1328 = vpop.permute.xlu0 %1327
  %1329 = vrot.lane.b32.xlu0 %v1233, 9
  %v1330 = vpop.permute.xlu0 %1329
  %1331 = vrot.lane.b32.xlu0 %v1234, 9
  %v1332 = vpop.permute.xlu0 %1331
  %1333 = vrot.lane.b32.xlu0 %v1235, 9
  %v1334 = vpop.permute.xlu0 %1333
  %1335 = vrot.lane.b32.xlu0 %v1236, 9
  %v1336 = vpop.permute.xlu0 %1335
  %1337 = vrot.lane.b32.xlu0 %v1245, 9
  %v1338 = vpop.permute.xlu0 %1337
  %1339 = vrot.lane.b32.xlu0 %v1246, 9
  %v1340 = vpop.permute.xlu0 %1339
  %1341 = vrot.lane.b32.xlu0 %v1247, 9
  %v1342 = vpop.permute.xlu0 %1341
  %1343 = vrot.lane.b32.xlu0 %v1248, 9
  %v1344 = vpop.permute.xlu0 %1343
  %1345 = vrot.lane.b32.xlu0 %v1257, 9
  %v1346 = vpop.permute.xlu0 %1345
  %1347 = vrot.lane.b32.xlu0 %v1258, 9
  %v1348 = vpop.permute.xlu0 %1347
  %1349 = vrot.lane.b32.xlu0 %v1259, 9
  %v1350 = vpop.permute.xlu0 %1349
  %1351 = vrot.lane.b32.xlu0 %v1260, 9
  %v1352 = vpop.permute.xlu0 %1351
  %1353 = vrot.lane.b32.xlu0 %v1269, 9
  %v1354 = vpop.permute.xlu0 %1353
  %1355 = vrot.lane.b32.xlu0 %v1270, 9
  %v1356 = vpop.permute.xlu0 %1355
  %1357 = vrot.lane.b32.xlu0 %v1271, 9
  %v1358 = vpop.permute.xlu0 %1357
  %1359 = vrot.lane.b32.xlu0 %v1272, 9
  %v1360 = vpop.permute.xlu0 %1359
  %1361 = vrot.lane.b32.xlu0 %v1281, 9
  %v1362 = vpop.permute.xlu0 %1361
  %1363 = vrot.lane.b32.xlu0 %v1282, 9
  %v1364 = vpop.permute.xlu0 %1363
  %1365 = vrot.lane.b32.xlu0 %v1283, 9
  %v1366 = vpop.permute.xlu0 %1365
  %1367 = vrot.lane.b32.xlu0 %v1284, 9
  %v1368 = vpop.permute.xlu0 %1367
  %1369 = vrot.lane.b32.xlu0 %v1293, 9
  %v1370 = vpop.permute.xlu0 %1369
  %1371 = vrot.lane.b32.xlu0 %v1294, 9
  %v1372 = vpop.permute.xlu0 %1371
  %1373 = vrot.lane.b32.xlu0 %v1295, 9
  %v1374 = vpop.permute.xlu0 %1373
  %1375 = vrot.lane.b32.xlu0 %v1296, 9
  %v1376 = vpop.permute.xlu0 %1375
  %1377 = vrot.lane.b32.xlu0 %v1305, 9
  %v1378 = vpop.permute.xlu0 %1377
  %1379 = vrot.lane.b32.xlu0 %v1306, 9
  %v1380 = vpop.permute.xlu0 %1379
  %1381 = vrot.lane.b32.xlu0 %v1307, 9
  %v1382 = vpop.permute.xlu0 %1381
  %1383 = vrot.lane.b32.xlu0 %v1308, 9
  %v1384 = vpop.permute.xlu0 %1383
  %1385 = vrot.lane.b32.xlu0 %v1317, 9
  %v1386 = vpop.permute.xlu0 %1385
  %1387 = vrot.lane.b32.xlu0 %v1318, 9
  %v1388 = vpop.permute.xlu0 %1387
  %1389 = vrot.lane.b32.xlu0 %v1319, 9
  %v1390 = vpop.permute.xlu0 %1389
  %1391 = vrot.lane.b32.xlu0 %v1320, 9
  %v1392 = vpop.permute.xlu0 %1391
  %vm1429 = vcmask 97352
  %1430 = vst.msk [vmem:[#allocation2] sm:$0xff] %vm1429, %v1322
  %1431 = vst.msk [vmem:[#allocation2 + $0x8] sm:$0xff] %vm1429, %v1324
  %1432 = vst.msk [vmem:[#allocation2 + $0x10] sm:$0xff] %vm1429, %v1326
  %1433 = vst.msk [vmem:[#allocation2 + $0x18] sm:$0xff] %vm1429, %v1328
  %1434 = vst.msk [vmem:[#allocation2 + $0x20] sm:$0xff] %vm1429, %v1330
  %1435 = vst.msk [vmem:[#allocation2 + $0x28] sm:$0xff] %vm1429, %v1332
  %1436 = vst.msk [vmem:[#allocation2 + $0x30] sm:$0xff] %vm1429, %v1334
  %1437 = vst.msk [vmem:[#allocation2 + $0x38] sm:$0xff] %vm1429, %v1336
  %1438 = vst.msk [vmem:[#allocation2 + $0x40] sm:$0xff] %vm1429, %v1338
  %1439 = vst.msk [vmem:[#allocation2 + $0x48] sm:$0xff] %vm1429, %v1340
  %1440 = vst.msk [vmem:[#allocation2 + $0x50] sm:$0xff] %vm1429, %v1342
  %1441 = vst.msk [vmem:[#allocation2 + $0x58] sm:$0xff] %vm1429, %v1344
  %1442 = vst.msk [vmem:[#allocation2 + $0x60] sm:$0xff] %vm1429, %v1346
  %1443 = vst.msk [vmem:[#allocation2 + $0x68] sm:$0xff] %vm1429, %v1348
  %1444 = vst.msk [vmem:[#allocation2 + $0x70] sm:$0xff] %vm1429, %v1350
  %1445 = vst.msk [vmem:[#allocation2 + $0x78] sm:$0xff] %vm1429, %v1352
  %1446 = vst.msk [vmem:[#allocation2 + $0x80] sm:$0xff] %vm1429, %v1354
  %1447 = vst.msk [vmem:[#allocation2 + $0x88] sm:$0xff] %vm1429, %v1356
  %1448 = vst.msk [vmem:[#allocation2 + $0x90] sm:$0xff] %vm1429, %v1358
  %1449 = vst.msk [vmem:[#allocation2 + $0x98] sm:$0xff] %vm1429, %v1360
  %1450 = vst.msk [vmem:[#allocation2 + $0xa0] sm:$0xff] %vm1429, %v1362
  %1451 = vst.msk [vmem:[#allocation2 + $0xa8] sm:$0xff] %vm1429, %v1364
  %1452 = vst.msk [vmem:[#allocation2 + $0xb0] sm:$0xff] %vm1429, %v1366
  %1453 = vst.msk [vmem:[#allocation2 + $0xb8] sm:$0xff] %vm1429, %v1368
  %1454 = vst.msk [vmem:[#allocation2 + $0xc0] sm:$0xff] %vm1429, %v1370
  %1455 = vst.msk [vmem:[#allocation2 + $0xc8] sm:$0xff] %vm1429, %v1372
  %1456 = vst.msk [vmem:[#allocation2 + $0xd0] sm:$0xff] %vm1429, %v1374
  %1457 = vst.msk [vmem:[#allocation2 + $0xd8] sm:$0xff] %vm1429, %v1376
  %1458 = vst.msk [vmem:[#allocation2 + $0xe0] sm:$0xff] %vm1429, %v1378
  %1459 = vst.msk [vmem:[#allocation2 + $0xe8] sm:$0xff] %vm1429, %v1380
  %1460 = vst.msk [vmem:[#allocation2 + $0xf0] sm:$0xff] %vm1429, %v1382
  %1461 = vst.msk [vmem:[#allocation2 + $0xf8] sm:$0xff] %vm1429, %v1384
  %1462 = vst.msk [vmem:[#allocation2 + $0x100] sm:$0xff] %vm1429, %v1386
  %1463 = vst.msk [vmem:[#allocation2 + $0x108] sm:$0xff] %vm1429, %v1388
  %1464 = vst.msk [vmem:[#allocation2 + $0x110] sm:$0xff] %vm1429, %v1390
  %1465 = vst.msk [vmem:[#allocation2 + $0x118] sm:$0xff] %vm1429, %v1392
  %v1466 = vld [vmem:[%s1 + $0x4] sm:$0xff]
  %v1467 = vld [vmem:[%s1 + $0xc] sm:$0xf]
  %v1468 = vld [vmem:[%s1 + $0x14] sm:$0xff]
  %v1469 = vld [vmem:[%s1 + $0x1c] sm:$0xf]
  %v1470 = vld [vmem:[%s1 + $0x24] sm:$0xff]
  %v1471 = vld [vmem:[%s1 + $0x2c] sm:$0xf]
  %v1472 = vld [vmem:[%s1 + $0x34] sm:$0xff]
  %v1473 = vld [vmem:[%s1 + $0x3c] sm:$0xf]
  %v1474 = vld [vmem:[%s1 + $0x44] sm:$0xff]
  %v1475 = vld [vmem:[%s1 + $0x4c] sm:$0xf]
  %v1476 = vld [vmem:[%s1 + $0x54] sm:$0xff]
  %v1477 = vld [vmem:[%s1 + $0x5c] sm:$0xf]
  %v1478 = vld [vmem:[%s1 + $0x64] sm:$0xff]
  %v1479 = vld [vmem:[%s1 + $0x6c] sm:$0xf]
  %v1480 = vld [vmem:[%s1 + $0x74] sm:$0xff]
  %v1481 = vld [vmem:[%s1 + $0x7c] sm:$0xf]
  %v1482 = vld [vmem:[%s1 + $0x84] sm:$0xff]
  %v1483 = vld [vmem:[%s1 + $0x8c] sm:$0xf]
  %v1484 = vld [vmem:[%s1 + $0x94] sm:$0xff]
  %v1485 = vld [vmem:[%s1 + $0x9c] sm:$0xf]
  %v1486 = vld [vmem:[%s1 + $0xa4] sm:$0xff]
  %v1487 = vld [vmem:[%s1 + $0xac] sm:$0xf]
  %v1488 = vld [vmem:[%s1 + $0xb4] sm:$0xff]
  %v1489 = vld [vmem:[%s1 + $0xbc] sm:$0xf]
  %v1490 = vld [vmem:[%s1 + $0x104] sm:$0xff]
  %v1491 = vld [vmem:[%s1 + $0x10c] sm:$0xf]
  %v1492 = vld [vmem:[%s1 + $0x114] sm:$0xff]
  %v1493 = vld [vmem:[%s1 + $0x11c] sm:$0xf]
  %v1494 = vld [vmem:[%s1 + $0x124] sm:$0xff]
  %v1495 = vld [vmem:[%s1 + $0x12c] sm:$0xf]
  %v1496 = vld [vmem:[%s1 + $0x134] sm:$0xff]
  %v1497 = vld [vmem:[%s1 + $0x13c] sm:$0xf]
  %v1498 = vld [vmem:[%s1 + $0x144] sm:$0xff]
  %v1499 = vld [vmem:[%s1 + $0x14c] sm:$0xf]
  %v1500 = vld [vmem:[%s1 + $0x154] sm:$0xff]
  %v1501 = vld [vmem:[%s1 + $0x15c] sm:$0xf]
  %v1502 = vld [vmem:[%s1 + $0x164] sm:$0xff]
  %v1503 = vld [vmem:[%s1 + $0x16c] sm:$0xf]
  %v1504 = vld [vmem:[%s1 + $0x174] sm:$0xff]
  %v1505 = vld [vmem:[%s1 + $0x17c] sm:$0xf]
  %v1506 = vld [vmem:[%s1 + $0x184] sm:$0xff]
  %v1507 = vld [vmem:[%s1 + $0x18c] sm:$0xf]
  %v1508 = vld [vmem:[%s1 + $0x194] sm:$0xff]
  %v1509 = vld [vmem:[%s1 + $0x19c] sm:$0xf]
  %v1510 = vld [vmem:[%s1 + $0x1a4] sm:$0xff]
  %v1511 = vld [vmem:[%s1 + $0x1ac] sm:$0xf]
  %v1512 = vld [vmem:[%s1 + $0x1b4] sm:$0xff]
  %v1513 = vld [vmem:[%s1 + $0x1bc] sm:$0xf]
  %v1562 = vrot.slane %v1466, 4
  %v1563 = vrot.slane %v1468, 4
  %v1564 = vrot.slane %v1470, 4
  %v1565 = vrot.slane %v1472, 4
  %v1566 = vrot.slane %v1474, 4
  %v1567 = vrot.slane %v1476, 4
  %v1568 = vrot.slane %v1478, 4
  %v1569 = vrot.slane %v1480, 4
  %v1570 = vrot.slane %v1482, 4
  %v1571 = vrot.slane %v1484, 4
  %v1572 = vrot.slane %v1486, 4
  %v1573 = vrot.slane %v1488, 4
  %v1574 = vrot.slane %v1490, 4
  %v1575 = vrot.slane %v1492, 4
  %v1576 = vrot.slane %v1494, 4
  %v1577 = vrot.slane %v1496, 4
  %v1578 = vrot.slane %v1498, 4
  %v1579 = vrot.slane %v1500, 4
  %v1580 = vrot.slane %v1502, 4
  %v1581 = vrot.slane %v1504, 4
  %v1582 = vrot.slane %v1506, 4
  %v1583 = vrot.slane %v1508, 4
  %v1584 = vrot.slane %v1510, 4
  %v1585 = vrot.slane %v1512, 4
  %1586 = vst [vmem:[#allocation1] ss:$2 sm:$0xff] %v1466
  %s1587 = scalar_lea.vmem [#allocation1], 1
  %1588 = vst [vmem:[%s1587] ss:$2 sm:$0xff] %v1562
  %s1589 = scalar_lea.vmem [#allocation1], 16
  %1590 = vst [vmem:[%s1589] ss:$2 sm:$0xff] %v1467
  %s1591 = scalar_lea.vmem [#allocation1], 17
  %1592 = vst [vmem:[%s1591] ss:$2 sm:$0xff] %v1468
  %s1593 = scalar_lea.vmem [#allocation1], 32
  %1594 = vst [vmem:[%s1593] ss:$2 sm:$0xff] %v1563
  %s1595 = scalar_lea.vmem [#allocation1], 33
  %1596 = vst [vmem:[%s1595] ss:$2 sm:$0xff] %v1469
  %s1597 = scalar_lea.vmem [#allocation1], 48
  %1598 = vst [vmem:[%s1597] ss:$2 sm:$0xff] %v1470
  %s1599 = scalar_lea.vmem [#allocation1], 49
  %1600 = vst [vmem:[%s1599] ss:$2 sm:$0xff] %v1564
  %v1601 = vld.sshfl [vmem:[#allocation1] sm:$0xff pattern:$0x75316420]
  %v1602 = vld.sshfl [vmem:[#allocation1 + $0x10] sm:$0xff pattern:$0x75316420]
  %v1603 = vld.sshfl [vmem:[#allocation1 + $0x20] sm:$0xff pattern:$0x75316420]
  %v1604 = vld.sshfl [vmem:[#allocation1 + $0x30] sm:$0xff pattern:$0x75316420]
  %1605 = vst [vmem:[#allocation1] ss:$2 sm:$0xff] %v1471
  %1606 = vst [vmem:[%s1587] ss:$2 sm:$0xff] %v1472
  %1607 = vst [vmem:[%s1589] ss:$2 sm:$0xff] %v1565
  %1608 = vst [vmem:[%s1591] ss:$2 sm:$0xff] %v1473
  %1609 = vst [vmem:[%s1593] ss:$2 sm:$0xff] %v1474
  %1610 = vst [vmem:[%s1595] ss:$2 sm:$0xff] %v1566
  %1611 = vst [vmem:[%s1597] ss:$2 sm:$0xff] %v1475
  %1612 = vst [vmem:[%s1599] ss:$2 sm:$0xff] %v1476
  %v1613 = vld.sshfl [vmem:[#allocation1] sm:$0xff pattern:$0x75316420]
  %v1614 = vld.sshfl [vmem:[#allocation1 + $0x10] sm:$0xff pattern:$0x75316420]
  %v1615 = vld.sshfl [vmem:[#allocation1 + $0x20] sm:$0xff pattern:$0x75316420]
  %v1616 = vld.sshfl [vmem:[#allocation1 + $0x30] sm:$0xff pattern:$0x75316420]
  %1617 = vst [vmem:[#allocation1] ss:$2 sm:$0xff] %v1567
  %1618 = vst [vmem:[%s1587] ss:$2 sm:$0xff] %v1477
  %1619 = vst [vmem:[%s1589] ss:$2 sm:$0xff] %v1478
  %1620 = vst [vmem:[%s1591] ss:$2 sm:$0xff] %v1568
  %1621 = vst [vmem:[%s1593] ss:$2 sm:$0xff] %v1479
  %1622 = vst [vmem:[%s1595] ss:$2 sm:$0xff] %v1480
  %1623 = vst [vmem:[%s1597] ss:$2 sm:$0xff] %v1569
  %1624 = vst [vmem:[%s1599] ss:$2 sm:$0xff] %v1481
  %v1625 = vld.sshfl [vmem:[#allocation1] sm:$0xff pattern:$0x75316420]
  %v1626 = vld.sshfl [vmem:[#allocation1 + $0x10] sm:$0xff pattern:$0x75316420]
  %v1627 = vld.sshfl [vmem:[#allocation1 + $0x20] sm:$0xff pattern:$0x75316420]
  %v1628 = vld.sshfl [vmem:[#allocation1 + $0x30] sm:$0xff pattern:$0x75316420]
  %1629 = vst [vmem:[#allocation1] ss:$2 sm:$0xff] %v1482
  %1630 = vst [vmem:[%s1587] ss:$2 sm:$0xff] %v1570
  %1631 = vst [vmem:[%s1589] ss:$2 sm:$0xff] %v1483
  %1632 = vst [vmem:[%s1591] ss:$2 sm:$0xff] %v1484
  %1633 = vst [vmem:[%s1593] ss:$2 sm:$0xff] %v1571
  %1634 = vst [vmem:[%s1595] ss:$2 sm:$0xff] %v1485
  %1635 = vst [vmem:[%s1597] ss:$2 sm:$0xff] %v1486
  %1636 = vst [vmem:[%s1599] ss:$2 sm:$0xff] %v1572
  %v1637 = vld.sshfl [vmem:[#allocation1] sm:$0xff pattern:$0x75316420]
  %v1638 = vld.sshfl [vmem:[#allocation1 + $0x10] sm:$0xff pattern:$0x75316420]
  %v1639 = vld.sshfl [vmem:[#allocation1 + $0x20] sm:$0xff pattern:$0x75316420]
  %v1640 = vld.sshfl [vmem:[#allocation1 + $0x30] sm:$0xff pattern:$0x75316420]
  %1641 = vst [vmem:[#allocation1] ss:$2 sm:$0xff] %v1487
  %1642 = vst [vmem:[%s1587] ss:$2 sm:$0xff] %v1488
  %1643 = vst [vmem:[%s1589] ss:$2 sm:$0xff] %v1573
  %1644 = vst [vmem:[%s1591] ss:$2 sm:$0xff] %v1489
  %1645 = vst [vmem:[%s1593] ss:$2 sm:$0xff] %v1490
  %1646 = vst [vmem:[%s1595] ss:$2 sm:$0xff] %v1574
  %1647 = vst [vmem:[%s1597] ss:$2 sm:$0xff] %v1491
  %1648 = vst [vmem:[%s1599] ss:$2 sm:$0xff] %v1492
  %v1649 = vld.sshfl [vmem:[#allocation1] sm:$0xff pattern:$0x75316420]
  %v1650 = vld.sshfl [vmem:[#allocation1 + $0x10] sm:$0xff pattern:$0x75316420]
  %v1651 = vld.sshfl [vmem:[#allocation1 + $0x20] sm:$0xff pattern:$0x75316420]
  %v1652 = vld.sshfl [vmem:[#allocation1 + $0x30] sm:$0xff pattern:$0x75316420]
  %1653 = vst [vmem:[#allocation1] ss:$2 sm:$0xff] %v1575
  %1654 = vst [vmem:[%s1587] ss:$2 sm:$0xff] %v1493
  %1655 = vst [vmem:[%s1589] ss:$2 sm:$0xff] %v1494
  %1656 = vst [vmem:[%s1591] ss:$2 sm:$0xff] %v1576
  %1657 = vst [vmem:[%s1593] ss:$2 sm:$0xff] %v1495
  %1658 = vst [vmem:[%s1595] ss:$2 sm:$0xff] %v1496
  %1659 = vst [vmem:[%s1597] ss:$2 sm:$0xff] %v1577
  %1660 = vst [vmem:[%s1599] ss:$2 sm:$0xff] %v1497
  %v1661 = vld.sshfl [vmem:[#allocation1] sm:$0xff pattern:$0x75316420]
  %v1662 = vld.sshfl [vmem:[#allocation1 + $0x10] sm:$0xff pattern:$0x75316420]
  %v1663 = vld.sshfl [vmem:[#allocation1 + $0x20] sm:$0xff pattern:$0x75316420]
  %v1664 = vld.sshfl [vmem:[#allocation1 + $0x30] sm:$0xff pattern:$0x75316420]
  %1665 = vst [vmem:[#allocation1] ss:$2 sm:$0xff] %v1498
  %1666 = vst [vmem:[%s1587] ss:$2 sm:$0xff] %v1578
  %1667 = vst [vmem:[%s1589] ss:$2 sm:$0xff] %v1499
  %1668 = vst [vmem:[%s1591] ss:$2 sm:$0xff] %v1500
  %1669 = vst [vmem:[%s1593] ss:$2 sm:$0xff] %v1579
  %1670 = vst [vmem:[%s1595] ss:$2 sm:$0xff] %v1501
  %1671 = vst [vmem:[%s1597] ss:$2 sm:$0xff] %v1502
  %1672 = vst [vmem:[%s1599] ss:$2 sm:$0xff] %v1580
  %v1673 = vld.sshfl [vmem:[#allocation1] sm:$0xff pattern:$0x75316420]
  %v1674 = vld.sshfl [vmem:[#allocation1 + $0x10] sm:$0xff pattern:$0x75316420]
  %v1675 = vld.sshfl [vmem:[#allocation1 + $0x20] sm:$0xff pattern:$0x75316420]
  %v1676 = vld.sshfl [vmem:[#allocation1 + $0x30] sm:$0xff pattern:$0x75316420]
  %1677 = vst [vmem:[#allocation1] ss:$2 sm:$0xff] %v1503
  %1678 = vst [vmem:[%s1587] ss:$2 sm:$0xff] %v1504
  %1679 = vst [vmem:[%s1589] ss:$2 sm:$0xff] %v1581
  %1680 = vst [vmem:[%s1591] ss:$2 sm:$0xff] %v1505
  %1681 = vst [vmem:[%s1593] ss:$2 sm:$0xff] %v1506
  %1682 = vst [vmem:[%s1595] ss:$2 sm:$0xff] %v1582
  %1683 = vst [vmem:[%s1597] ss:$2 sm:$0xff] %v1507
  %1684 = vst [vmem:[%s1599] ss:$2 sm:$0xff] %v1508
  %v1685 = vld.sshfl [vmem:[#allocation1] sm:$0xff pattern:$0x75316420]
  %v1686 = vld.sshfl [vmem:[#allocation1 + $0x10] sm:$0xff pattern:$0x75316420]
  %v1687 = vld.sshfl [vmem:[#allocation1 + $0x20] sm:$0xff pattern:$0x75316420]
  %v1688 = vld.sshfl [vmem:[#allocation1 + $0x30] sm:$0xff pattern:$0x75316420]
  %1689 = vst [vmem:[#allocation1] ss:$2 sm:$0xff] %v1583
  %1690 = vst [vmem:[%s1587] ss:$2 sm:$0xff] %v1509
  %1691 = vst [vmem:[%s1589] ss:$2 sm:$0xff] %v1510
  %1692 = vst [vmem:[%s1591] ss:$2 sm:$0xff] %v1584
  %1693 = vst [vmem:[%s1593] ss:$2 sm:$0xff] %v1511
  %1694 = vst [vmem:[%s1595] ss:$2 sm:$0xff] %v1512
  %1695 = vst [vmem:[%s1597] ss:$2 sm:$0xff] %v1585
  %1696 = vst [vmem:[%s1599] ss:$2 sm:$0xff] %v1513
  %v1697 = vld.sshfl [vmem:[#allocation1] sm:$0xff pattern:$0x75316420]
  %v1698 = vld.sshfl [vmem:[#allocation1 + $0x10] sm:$0xff pattern:$0x75316420]
  %v1699 = vld.sshfl [vmem:[#allocation1 + $0x20] sm:$0xff pattern:$0x75316420]
  %v1700 = vld.sshfl [vmem:[#allocation1 + $0x30] sm:$0xff pattern:$0x75316420]
  %1701 = vrot.lane.b32.xlu0 %v1601, 12
  %v1702 = vpop.permute.xlu0 %1701
  %1703 = vrot.lane.b32.xlu0 %v1602, 12
  %v1704 = vpop.permute.xlu0 %1703
  %1705 = vrot.lane.b32.xlu0 %v1603, 12
  %v1706 = vpop.permute.xlu0 %1705
  %1707 = vrot.lane.b32.xlu0 %v1604, 12
  %v1708 = vpop.permute.xlu0 %1707
  %1709 = vrot.lane.b32.xlu0 %v1613, 12
  %v1710 = vpop.permute.xlu0 %1709
  %1711 = vrot.lane.b32.xlu0 %v1614, 12
  %v1712 = vpop.permute.xlu0 %1711
  %1713 = vrot.lane.b32.xlu0 %v1615, 12
  %v1714 = vpop.permute.xlu0 %1713
  %1715 = vrot.lane.b32.xlu0 %v1616, 12
  %v1716 = vpop.permute.xlu0 %1715
  %1717 = vrot.lane.b32.xlu0 %v1625, 12
  %v1718 = vpop.permute.xlu0 %1717
  %1719 = vrot.lane.b32.xlu0 %v1626, 12
  %v1720 = vpop.permute.xlu0 %1719
  %1721 = vrot.lane.b32.xlu0 %v1627, 12
  %v1722 = vpop.permute.xlu0 %1721
  %1723 = vrot.lane.b32.xlu0 %v1628, 12
  %v1724 = vpop.permute.xlu0 %1723
  %1725 = vrot.lane.b32.xlu0 %v1637, 12
  %v1726 = vpop.permute.xlu0 %1725
  %1727 = vrot.lane.b32.xlu0 %v1638, 12
  %v1728 = vpop.permute.xlu0 %1727
  %1729 = vrot.lane.b32.xlu0 %v1639, 12
  %v1730 = vpop.permute.xlu0 %1729
  %1731 = vrot.lane.b32.xlu0 %v1640, 12
  %v1732 = vpop.permute.xlu0 %1731
  %1733 = vrot.lane.b32.xlu0 %v1649, 12
  %v1734 = vpop.permute.xlu0 %1733
  %1735 = vrot.lane.b32.xlu0 %v1650, 12
  %v1736 = vpop.permute.xlu0 %1735
  %1737 = vrot.lane.b32.xlu0 %v1651, 12
  %v1738 = vpop.permute.xlu0 %1737
  %1739 = vrot.lane.b32.xlu0 %v1652, 12
  %v1740 = vpop.permute.xlu0 %1739
  %1741 = vrot.lane.b32.xlu0 %v1661, 12
  %v1742 = vpop.permute.xlu0 %1741
  %1743 = vrot.lane.b32.xlu0 %v1662, 12
  %v1744 = vpop.permute.xlu0 %1743
  %1745 = vrot.lane.b32.xlu0 %v1663, 12
  %v1746 = vpop.permute.xlu0 %1745
  %1747 = vrot.lane.b32.xlu0 %v1664, 12
  %v1748 = vpop.permute.xlu0 %1747
  %1749 = vrot.lane.b32.xlu0 %v1673, 12
  %v1750 = vpop.permute.xlu0 %1749
  %1751 = vrot.lane.b32.xlu0 %v1674, 12
  %v1752 = vpop.permute.xlu0 %1751
  %1753 = vrot.lane.b32.xlu0 %v1675, 12
  %v1754 = vpop.permute.xlu0 %1753
  %1755 = vrot.lane.b32.xlu0 %v1676, 12
  %v1756 = vpop.permute.xlu0 %1755
  %1757 = vrot.lane.b32.xlu0 %v1685, 12
  %v1758 = vpop.permute.xlu0 %1757
  %1759 = vrot.lane.b32.xlu0 %v1686, 12
  %v1760 = vpop.permute.xlu0 %1759
  %1761 = vrot.lane.b32.xlu0 %v1687, 12
  %v1762 = vpop.permute.xlu0 %1761
  %1763 = vrot.lane.b32.xlu0 %v1688, 12
  %v1764 = vpop.permute.xlu0 %1763
  %1765 = vrot.lane.b32.xlu0 %v1697, 12
  %v1766 = vpop.permute.xlu0 %1765
  %1767 = vrot.lane.b32.xlu0 %v1698, 12
  %v1768 = vpop.permute.xlu0 %1767
  %1769 = vrot.lane.b32.xlu0 %v1699, 12
  %v1770 = vpop.permute.xlu0 %1769
  %1771 = vrot.lane.b32.xlu0 %v1700, 12
  %v1772 = vpop.permute.xlu0 %1771
  %vm1809 = vcmask 121952
  %1810 = vst.msk [vmem:[#allocation2] sm:$0xff] %vm1809, %v1702
  %1811 = vst.msk [vmem:[#allocation2 + $0x8] sm:$0xff] %vm1809, %v1704
  %1812 = vst.msk [vmem:[#allocation2 + $0x10] sm:$0xff] %vm1809, %v1706
  %1813 = vst.msk [vmem:[#allocation2 + $0x18] sm:$0xff] %vm1809, %v1708
  %1814 = vst.msk [vmem:[#allocation2 + $0x20] sm:$0xff] %vm1809, %v1710
  %1815 = vst.msk [vmem:[#allocation2 + $0x28] sm:$0xff] %vm1809, %v1712
  %1816 = vst.msk [vmem:[#allocation2 + $0x30] sm:$0xff] %vm1809, %v1714
  %1817 = vst.msk [vmem:[#allocation2 + $0x38] sm:$0xff] %vm1809, %v1716
  %1818 = vst.msk [vmem:[#allocation2 + $0x40] sm:$0xff] %vm1809, %v1718
  %1819 = vst.msk [vmem:[#allocation2 + $0x48] sm:$0xff] %vm1809, %v1720
  %1820 = vst.msk [vmem:[#allocation2 + $0x50] sm:$0xff] %vm1809, %v1722
  %1821 = vst.msk [vmem:[#allocation2 + $0x58] sm:$0xff] %vm1809, %v1724
  %1822 = vst.msk [vmem:[#allocation2 + $0x60] sm:$0xff] %vm1809, %v1726
  %1823 = vst.msk [vmem:[#allocation2 + $0x68] sm:$0xff] %vm1809, %v1728
  %1824 = vst.msk [vmem:[#allocation2 + $0x70] sm:$0xff] %vm1809, %v1730
  %1825 = vst.msk [vmem:[#allocation2 + $0x78] sm:$0xff] %vm1809, %v1732
  %1826 = vst.msk [vmem:[#allocation2 + $0x80] sm:$0xff] %vm1809, %v1734
  %1827 = vst.msk [vmem:[#allocation2 + $0x88] sm:$0xff] %vm1809, %v1736
  %1828 = vst.msk [vmem:[#allocation2 + $0x90] sm:$0xff] %vm1809, %v1738
  %1829 = vst.msk [vmem:[#allocation2 + $0x98] sm:$0xff] %vm1809, %v1740
  %1830 = vst.msk [vmem:[#allocation2 + $0xa0] sm:$0xff] %vm1809, %v1742
  %1831 = vst.msk [vmem:[#allocation2 + $0xa8] sm:$0xff] %vm1809, %v1744
  %1832 = vst.msk [vmem:[#allocation2 + $0xb0] sm:$0xff] %vm1809, %v1746
  %1833 = vst.msk [vmem:[#allocation2 + $0xb8] sm:$0xff] %vm1809, %v1748
  %1834 = vst.msk [vmem:[#allocation2 + $0xc0] sm:$0xff] %vm1809, %v1750
  %1835 = vst.msk [vmem:[#allocation2 + $0xc8] sm:$0xff] %vm1809, %v1752
  %1836 = vst.msk [vmem:[#allocation2 + $0xd0] sm:$0xff] %vm1809, %v1754
  %1837 = vst.msk [vmem:[#allocation2 + $0xd8] sm:$0xff] %vm1809, %v1756
  %1838 = vst.msk [vmem:[#allocation2 + $0xe0] sm:$0xff] %vm1809, %v1758
  %1839 = vst.msk [vmem:[#allocation2 + $0xe8] sm:$0xff] %vm1809, %v1760
  %1840 = vst.msk [vmem:[#allocation2 + $0xf0] sm:$0xff] %vm1809, %v1762
  %1841 = vst.msk [vmem:[#allocation2 + $0xf8] sm:$0xff] %vm1809, %v1764
  %1842 = vst.msk [vmem:[#allocation2 + $0x100] sm:$0xff] %vm1809, %v1766
  %1843 = vst.msk [vmem:[#allocation2 + $0x108] sm:$0xff] %vm1809, %v1768
  %1844 = vst.msk [vmem:[#allocation2 + $0x110] sm:$0xff] %vm1809, %v1770
  %1845 = vst.msk [vmem:[#allocation2 + $0x118] sm:$0xff] %vm1809, %v1772
  %s1846 = scalar_lea.vmem %s1, 16
  %v1847 = vld [vmem:[%s1846] sm:$0xff]
  %v1848 = vld [vmem:[%s1846 + $0x8] sm:$0xf]
  %v1849 = vld [vmem:[%s1846 + $0x10] sm:$0xff]
  %v1850 = vld [vmem:[%s1846 + $0x18] sm:$0xf]
  %v1851 = vld [vmem:[%s1846 + $0x20] sm:$0xff]
  %v1852 = vld [vmem:[%s1846 + $0x28] sm:$0xf]
  %v1853 = vld [vmem:[%s1846 + $0x30] sm:$0xff]
  %v1854 = vld [vmem:[%s1846 + $0x38] sm:$0xf]
  %v1855 = vld [vmem:[%s1846 + $0x40] sm:$0xff]
  %v1856 = vld [vmem:[%s1846 + $0x48] sm:$0xf]
  %v1857 = vld [vmem:[%s1846 + $0x50] sm:$0xff]
  %v1858 = vld [vmem:[%s1846 + $0x58] sm:$0xf]
  %v1859 = vld [vmem:[%s1846 + $0x60] sm:$0xff]
  %v1860 = vld [vmem:[%s1846 + $0x68] sm:$0xf]
  %v1861 = vld [vmem:[%s1846 + $0x70] sm:$0xff]
  %v1862 = vld [vmem:[%s1846 + $0x78] sm:$0xf]
  %v1863 = vld [vmem:[%s1846 + $0x80] sm:$0xff]
  %v1864 = vld [vmem:[%s1846 + $0x88] sm:$0xf]
  %v1865 = vld [vmem:[%s1846 + $0x90] sm:$0xff]
  %v1866 = vld [vmem:[%s1846 + $0x98] sm:$0xf]
  %v1867 = vld [vmem:[%s1846 + $0xa0] sm:$0xff]
  %v1868 = vld [vmem:[%s1846 + $0xa8] sm:$0xf]
  %v1869 = vld [vmem:[%s1846 + $0xb0] sm:$0xff]
  %v1870 = vld [vmem:[%s1846 + $0xb8] sm:$0xf]
  %v1871 = vld [vmem:[%s1846 + $0x100] sm:$0xff]
  %v1872 = vld [vmem:[%s1846 + $0x108] sm:$0xf]
  %v1873 = vld [vmem:[%s1846 + $0x110] sm:$0xff]
  %v1874 = vld [vmem:[%s1846 + $0x118] sm:$0xf]
  %v1875 = vld [vmem:[%s1846 + $0x120] sm:$0xff]
  %v1876 = vld [vmem:[%s1846 + $0x128] sm:$0xf]
  %v1877 = vld [vmem:[%s1846 + $0x130] sm:$0xff]
  %v1878 = vld [vmem:[%s1846 + $0x138] sm:$0xf]
  %v1879 = vld [vmem:[%s1846 + $0x140] sm:$0xff]
  %v1880 = vld [vmem:[%s1846 + $0x148] sm:$0xf]
  %v1881 = vld [vmem:[%s1846 + $0x150] sm:$0xff]
  %v1882 = vld [vmem:[%s1846 + $0x158] sm:$0xf]
  %v1883 = vld [vmem:[%s1846 + $0x160] sm:$0xff]
  %v1884 = vld [vmem:[%s1846 + $0x168] sm:$0xf]
  %v1885 = vld [vmem:[%s1846 + $0x170] sm:$0xff]
  %v1886 = vld [vmem:[%s1846 + $0x178] sm:$0xf]
  %v1887 = vld [vmem:[%s1846 + $0x180] sm:$0xff]
  %v1888 = vld [vmem:[%s1846 + $0x188] sm:$0xf]
  %v1889 = vld [vmem:[%s1846 + $0x190] sm:$0xff]
  %v1890 = vld [vmem:[%s1846 + $0x198] sm:$0xf]
  %v1891 = vld [vmem:[%s1846 + $0x1a0] sm:$0xff]
  %v1892 = vld [vmem:[%s1846 + $0x1a8] sm:$0xf]
  %v1893 = vld [vmem:[%s1846 + $0x1b0] sm:$0xff]
  %v1894 = vld [vmem:[%s1846 + $0x1b8] sm:$0xf]
  %v1943 = vrot.slane %v1847, 4
  %v1944 = vrot.slane %v1849, 4
  %v1945 = vrot.slane %v1851, 4
  %v1946 = vrot.slane %v1853, 4
  %v1947 = vrot.slane %v1855, 4
  %v1948 = vrot.slane %v1857, 4
  %v1949 = vrot.slane %v1859, 4
  %v1950 = vrot.slane %v1861, 4
  %v1951 = vrot.slane %v1863, 4
  %v1952 = vrot.slane %v1865, 4
  %v1953 = vrot.slane %v1867, 4
  %v1954 = vrot.slane %v1869, 4
  %v1955 = vrot.slane %v1871, 4
  %v1956 = vrot.slane %v1873, 4
  %v1957 = vrot.slane %v1875, 4
  %v1958 = vrot.slane %v1877, 4
  %v1959 = vrot.slane %v1879, 4
  %v1960 = vrot.slane %v1881, 4
  %v1961 = vrot.slane %v1883, 4
  %v1962 = vrot.slane %v1885, 4
  %v1963 = vrot.slane %v1887, 4
  %v1964 = vrot.slane %v1889, 4
  %v1965 = vrot.slane %v1891, 4
  %v1966 = vrot.slane %v1893, 4
  %1967 = vst [vmem:[#allocation1] ss:$2 sm:$0xff] %v1847
  %s1968 = scalar_lea.vmem [#allocation1], 1
  %1969 = vst [vmem:[%s1968] ss:$2 sm:$0xff] %v1943
  %s1970 = scalar_lea.vmem [#allocation1], 16
  %1971 = vst [vmem:[%s1970] ss:$2 sm:$0xff] %v1848
  %s1972 = scalar_lea.vmem [#allocation1], 17
  %1973 = vst [vmem:[%s1972] ss:$2 sm:$0xff] %v1849
  %s1974 = scalar_lea.vmem [#allocation1], 32
  %1975 = vst [vmem:[%s1974] ss:$2 sm:$0xff] %v1944
  %s1976 = scalar_lea.vmem [#allocation1], 33
  %1977 = vst [vmem:[%s1976] ss:$2 sm:$0xff] %v1850
  %s1978 = scalar_lea.vmem [#allocation1], 48
  %1979 = vst [vmem:[%s1978] ss:$2 sm:$0xff] %v1851
  %s1980 = scalar_lea.vmem [#allocation1], 49
  %1981 = vst [vmem:[%s1980] ss:$2 sm:$0xff] %v1945
  %v1982 = vld.sshfl [vmem:[#allocation1] sm:$0xff pattern:$0x75316420]
  %v1983 = vld.sshfl [vmem:[#allocation1 + $0x10] sm:$0xff pattern:$0x75316420]
  %v1984 = vld.sshfl [vmem:[#allocation1 + $0x20] sm:$0xff pattern:$0x75316420]
  %v1985 = vld.sshfl [vmem:[#allocation1 + $0x30] sm:$0xff pattern:$0x75316420]
  %1986 = vst [vmem:[#allocation1] ss:$2 sm:$0xff] %v1852
  %1987 = vst [vmem:[%s1968] ss:$2 sm:$0xff] %v1853
  %1988 = vst [vmem:[%s1970] ss:$2 sm:$0xff] %v1946
  %1989 = vst [vmem:[%s1972] ss:$2 sm:$0xff] %v1854
  %1990 = vst [vmem:[%s1974] ss:$2 sm:$0xff] %v1855
  %1991 = vst [vmem:[%s1976] ss:$2 sm:$0xff] %v1947
  %1992 = vst [vmem:[%s1978] ss:$2 sm:$0xff] %v1856
  %1993 = vst [vmem:[%s1980] ss:$2 sm:$0xff] %v1857
  %v1994 = vld.sshfl [vmem:[#allocation1] sm:$0xff pattern:$0x75316420]
  %v1995 = vld.sshfl [vmem:[#allocation1 + $0x10] sm:$0xff pattern:$0x75316420]
  %v1996 = vld.sshfl [vmem:[#allocation1 + $0x20] sm:$0xff pattern:$0x75316420]
  %v1997 = vld.sshfl [vmem:[#allocation1 + $0x30] sm:$0xff pattern:$0x75316420]
  %1998 = vst [vmem:[#allocation1] ss:$2 sm:$0xff] %v1948
  %1999 = vst [vmem:[%s1968] ss:$2 sm:$0xff] %v1858
  %2000 = vst [vmem:[%s1970] ss:$2 sm:$0xff] %v1859
  %2001 = vst [vmem:[%s1972] ss:$2 sm:$0xff] %v1949
  %2002 = vst [vmem:[%s1974] ss:$2 sm:$0xff] %v1860
  %2003 = vst [vmem:[%s1976] ss:$2 sm:$0xff] %v1861
  %2004 = vst [vmem:[%s1978] ss:$2 sm:$0xff] %v1950
  %2005 = vst [vmem:[%s1980] ss:$2 sm:$0xff] %v1862
  %v2006 = vld.sshfl [vmem:[#allocation1] sm:$0xff pattern:$0x75316420]
  %v2007 = vld.sshfl [vmem:[#allocation1 + $0x10] sm:$0xff pattern:$0x75316420]
  %v2008 = vld.sshfl [vmem:[#allocation1 + $0x20] sm:$0xff pattern:$0x75316420]
  %v2009 = vld.sshfl [vmem:[#allocation1 + $0x30] sm:$0xff pattern:$0x75316420]
  %2010 = vst [vmem:[#allocation1] ss:$2 sm:$0xff] %v1863
  %2011 = vst [vmem:[%s1968] ss:$2 sm:$0xff] %v1951
  %2012 = vst [vmem:[%s1970] ss:$2 sm:$0xff] %v1864
  %2013 = vst [vmem:[%s1972] ss:$2 sm:$0xff] %v1865
  %2014 = vst [vmem:[%s1974] ss:$2 sm:$0xff] %v1952
  %2015 = vst [vmem:[%s1976] ss:$2 sm:$0xff] %v1866
  %2016 = vst [vmem:[%s1978] ss:$2 sm:$0xff] %v1867
  %2017 = vst [vmem:[%s1980] ss:$2 sm:$0xff] %v1953
  %v2018 = vld.sshfl [vmem:[#allocation1] sm:$0xff pattern:$0x75316420]
  %v2019 = vld.sshfl [vmem:[#allocation1 + $0x10] sm:$0xff pattern:$0x75316420]
  %v2020 = vld.sshfl [vmem:[#allocation1 + $0x20] sm:$0xff pattern:$0x75316420]
  %v2021 = vld.sshfl [vmem:[#allocation1 + $0x30] sm:$0xff pattern:$0x75316420]
  %2022 = vst [vmem:[#allocation1] ss:$2 sm:$0xff] %v1868
  %2023 = vst [vmem:[%s1968] ss:$2 sm:$0xff] %v1869
  %2024 = vst [vmem:[%s1970] ss:$2 sm:$0xff] %v1954
  %2025 = vst [vmem:[%s1972] ss:$2 sm:$0xff] %v1870
  %2026 = vst [vmem:[%s1974] ss:$2 sm:$0xff] %v1871
  %2027 = vst [vmem:[%s1976] ss:$2 sm:$0xff] %v1955
  %2028 = vst [vmem:[%s1978] ss:$2 sm:$0xff] %v1872
  %2029 = vst [vmem:[%s1980] ss:$2 sm:$0xff] %v1873
  %v2030 = vld.sshfl [vmem:[#allocation1] sm:$0xff pattern:$0x75316420]
  %v2031 = vld.sshfl [vmem:[#allocation1 + $0x10] sm:$0xff pattern:$0x75316420]
  %v2032 = vld.sshfl [vmem:[#allocation1 + $0x20] sm:$0xff pattern:$0x75316420]
  %v2033 = vld.sshfl [vmem:[#allocation1 + $0x30] sm:$0xff pattern:$0x75316420]
  %2034 = vst [vmem:[#allocation1] ss:$2 sm:$0xff] %v1956
  %2035 = vst [vmem:[%s1968] ss:$2 sm:$0xff] %v1874
  %2036 = vst [vmem:[%s1970] ss:$2 sm:$0xff] %v1875
  %2037 = vst [vmem:[%s1972] ss:$2 sm:$0xff] %v1957
  %2038 = vst [vmem:[%s1974] ss:$2 sm:$0xff] %v1876
  %2039 = vst [vmem:[%s1976] ss:$2 sm:$0xff] %v1877
  %2040 = vst [vmem:[%s1978] ss:$2 sm:$0xff] %v1958
  %2041 = vst [vmem:[%s1980] ss:$2 sm:$0xff] %v1878
  %v2042 = vld.sshfl [vmem:[#allocation1] sm:$0xff pattern:$0x75316420]
  %v2043 = vld.sshfl [vmem:[#allocation1 + $0x10] sm:$0xff pattern:$0x75316420]
  %v2044 = vld.sshfl [vmem:[#allocation1 + $0x20] sm:$0xff pattern:$0x75316420]
  %v2045 = vld.sshfl [vmem:[#allocation1 + $0x30] sm:$0xff pattern:$0x75316420]
  %2046 = vst [vmem:[#allocation1] ss:$2 sm:$0xff] %v1879
  %2047 = vst [vmem:[%s1968] ss:$2 sm:$0xff] %v1959
  %2048 = vst [vmem:[%s1970] ss:$2 sm:$0xff] %v1880
  %2049 = vst [vmem:[%s1972] ss:$2 sm:$0xff] %v1881
  %2050 = vst [vmem:[%s1974] ss:$2 sm:$0xff] %v1960
  %2051 = vst [vmem:[%s1976] ss:$2 sm:$0xff] %v1882
  %2052 = vst [vmem:[%s1978] ss:$2 sm:$0xff] %v1883
  %2053 = vst [vmem:[%s1980] ss:$2 sm:$0xff] %v1961
  %v2054 = vld.sshfl [vmem:[#allocation1] sm:$0xff pattern:$0x75316420]
  %v2055 = vld.sshfl [vmem:[#allocation1 + $0x10] sm:$0xff pattern:$0x75316420]
  %v2056 = vld.sshfl [vmem:[#allocation1 + $0x20] sm:$0xff pattern:$0x75316420]
  %v2057 = vld.sshfl [vmem:[#allocation1 + $0x30] sm:$0xff pattern:$0x75316420]
  %2058 = vst [vmem:[#allocation1] ss:$2 sm:$0xff] %v1884
  %2059 = vst [vmem:[%s1968] ss:$2 sm:$0xff] %v1885
  %2060 = vst [vmem:[%s1970] ss:$2 sm:$0xff] %v1962
  %2061 = vst [vmem:[%s1972] ss:$2 sm:$0xff] %v1886
  %2062 = vst [vmem:[%s1974] ss:$2 sm:$0xff] %v1887
  %2063 = vst [vmem:[%s1976] ss:$2 sm:$0xff] %v1963
  %2064 = vst [vmem:[%s1978] ss:$2 sm:$0xff] %v1888
  %2065 = vst [vmem:[%s1980] ss:$2 sm:$0xff] %v1889
  %v2066 = vld.sshfl [vmem:[#allocation1] sm:$0xff pattern:$0x75316420]
  %v2067 = vld.sshfl [vmem:[#allocation1 + $0x10] sm:$0xff pattern:$0x75316420]
  %v2068 = vld.sshfl [vmem:[#allocation1 + $0x20] sm:$0xff pattern:$0x75316420]
  %v2069 = vld.sshfl [vmem:[#allocation1 + $0x30] sm:$0xff pattern:$0x75316420]
  %2070 = vst [vmem:[#allocation1] ss:$2 sm:$0xff] %v1964
  %2071 = vst [vmem:[%s1968] ss:$2 sm:$0xff] %v1890
  %2072 = vst [vmem:[%s1970] ss:$2 sm:$0xff] %v1891
  %2073 = vst [vmem:[%s1972] ss:$2 sm:$0xff] %v1965
  %2074 = vst [vmem:[%s1974] ss:$2 sm:$0xff] %v1892
  %2075 = vst [vmem:[%s1976] ss:$2 sm:$0xff] %v1893
  %2076 = vst [vmem:[%s1978] ss:$2 sm:$0xff] %v1966
  %2077 = vst [vmem:[%s1980] ss:$2 sm:$0xff] %v1894
  %v2078 = vld.sshfl [vmem:[#allocation1] sm:$0xff pattern:$0x75316420]
  %v2079 = vld.sshfl [vmem:[#allocation1 + $0x10] sm:$0xff pattern:$0x75316420]
  %v2080 = vld.sshfl [vmem:[#allocation1 + $0x20] sm:$0xff pattern:$0x75316420]
  %v2081 = vld.sshfl [vmem:[#allocation1 + $0x30] sm:$0xff pattern:$0x75316420]
  %2082 = vrot.lane.b32.xlu0 %v1982, 15
  %v2083 = vpop.permute.xlu0 %2082
  %2084 = vrot.lane.b32.xlu0 %v1983, 15
  %v2085 = vpop.permute.xlu0 %2084
  %2086 = vrot.lane.b32.xlu0 %v1984, 15
  %v2087 = vpop.permute.xlu0 %2086
  %2088 = vrot.lane.b32.xlu0 %v1985, 15
  %v2089 = vpop.permute.xlu0 %2088
  %2090 = vrot.lane.b32.xlu0 %v1994, 15
  %v2091 = vpop.permute.xlu0 %2090
  %2092 = vrot.lane.b32.xlu0 %v1995, 15
  %v2093 = vpop.permute.xlu0 %2092
  %2094 = vrot.lane.b32.xlu0 %v1996, 15
  %v2095 = vpop.permute.xlu0 %2094
  %2096 = vrot.lane.b32.xlu0 %v1997, 15
  %v2097 = vpop.permute.xlu0 %2096
  %2098 = vrot.lane.b32.xlu0 %v2006, 15
  %v2099 = vpop.permute.xlu0 %2098
  %2100 = vrot.lane.b32.xlu0 %v2007, 15
  %v2101 = vpop.permute.xlu0 %2100
  %2102 = vrot.lane.b32.xlu0 %v2008, 15
  %v2103 = vpop.permute.xlu0 %2102
  %2104 = vrot.lane.b32.xlu0 %v2009, 15
  %v2105 = vpop.permute.xlu0 %2104
  %2106 = vrot.lane.b32.xlu0 %v2018, 15
  %v2107 = vpop.permute.xlu0 %2106
  %2108 = vrot.lane.b32.xlu0 %v2019, 15
  %v2109 = vpop.permute.xlu0 %2108
  %2110 = vrot.lane.b32.xlu0 %v2020, 15
  %v2111 = vpop.permute.xlu0 %2110
  %2112 = vrot.lane.b32.xlu0 %v2021, 15
  %v2113 = vpop.permute.xlu0 %2112
  %2114 = vrot.lane.b32.xlu0 %v2030, 15
  %v2115 = vpop.permute.xlu0 %2114
  %2116 = vrot.lane.b32.xlu0 %v2031, 15
  %v2117 = vpop.permute.xlu0 %2116
  %2118 = vrot.lane.b32.xlu0 %v2032, 15
  %v2119 = vpop.permute.xlu0 %2118
  %2120 = vrot.lane.b32.xlu0 %v2033, 15
  %v2121 = vpop.permute.xlu0 %2120
  %2122 = vrot.lane.b32.xlu0 %v2042, 15
  %v2123 = vpop.permute.xlu0 %2122
  %2124 = vrot.lane.b32.xlu0 %v2043, 15
  %v2125 = vpop.permute.xlu0 %2124
  %2126 = vrot.lane.b32.xlu0 %v2044, 15
  %v2127 = vpop.permute.xlu0 %2126
  %2128 = vrot.lane.b32.xlu0 %v2045, 15
  %v2129 = vpop.permute.xlu0 %2128
  %2130 = vrot.lane.b32.xlu0 %v2054, 15
  %v2131 = vpop.permute.xlu0 %2130
  %2132 = vrot.lane.b32.xlu0 %v2055, 15
  %v2133 = vpop.permute.xlu0 %2132
  %2134 = vrot.lane.b32.xlu0 %v2056, 15
  %v2135 = vpop.permute.xlu0 %2134
  %2136 = vrot.lane.b32.xlu0 %v2057, 15
  %v2137 = vpop.permute.xlu0 %2136
  %2138 = vrot.lane.b32.xlu0 %v2066, 15
  %v2139 = vpop.permute.xlu0 %2138
  %2140 = vrot.lane.b32.xlu0 %v2067, 15
  %v2141 = vpop.permute.xlu0 %2140
  %2142 = vrot.lane.b32.xlu0 %v2068, 15
  %v2143 = vpop.permute.xlu0 %2142
  %2144 = vrot.lane.b32.xlu0 %v2069, 15
  %v2145 = vpop.permute.xlu0 %2144
  %2146 = vrot.lane.b32.xlu0 %v2078, 15
  %v2147 = vpop.permute.xlu0 %2146
  %2148 = vrot.lane.b32.xlu0 %v2079, 15
  %v2149 = vpop.permute.xlu0 %2148
  %2150 = vrot.lane.b32.xlu0 %v2080, 15
  %v2151 = vpop.permute.xlu0 %2150
  %2152 = vrot.lane.b32.xlu0 %v2081, 15
  %v2153 = vpop.permute.xlu0 %2152
  %vm2190 = vcmask 146552
  %2191 = vst.msk [vmem:[#allocation2] sm:$0xff] %vm2190, %v2083
  %2192 = vst.msk [vmem:[#allocation2 + $0x8] sm:$0xff] %vm2190, %v2085
  %2193 = vst.msk [vmem:[#allocation2 + $0x10] sm:$0xff] %vm2190, %v2087
  %2194 = vst.msk [vmem:[#allocation2 + $0x18] sm:$0xff] %vm2190, %v2089
  %2195 = vst.msk [vmem:[#allocation2 + $0x20] sm:$0xff] %vm2190, %v2091
  %2196 = vst.msk [vmem:[#allocation2 + $0x28] sm:$0xff] %vm2190, %v2093
  %2197 = vst.msk [vmem:[#allocation2 + $0x30] sm:$0xff] %vm2190, %v2095
  %2198 = vst.msk [vmem:[#allocation2 + $0x38] sm:$0xff] %vm2190, %v2097
  %2199 = vst.msk [vmem:[#allocation2 + $0x40] sm:$0xff] %vm2190, %v2099
  %2200 = vst.msk [vmem:[#allocation2 + $0x48] sm:$0xff] %vm2190, %v2101
  %2201 = vst.msk [vmem:[#allocation2 + $0x50] sm:$0xff] %vm2190, %v2103
  %2202 = vst.msk [vmem:[#allocation2 + $0x58] sm:$0xff] %vm2190, %v2105
  %2203 = vst.msk [vmem:[#allocation2 + $0x60] sm:$0xff] %vm2190, %v2107
  %2204 = vst.msk [vmem:[#allocation2 + $0x68] sm:$0xff] %vm2190, %v2109
  %2205 = vst.msk [vmem:[#allocation2 + $0x70] sm:$0xff] %vm2190, %v2111
  %2206 = vst.msk [vmem:[#allocation2 + $0x78] sm:$0xff] %vm2190, %v2113
  %2207 = vst.msk [vmem:[#allocation2 + $0x80] sm:$0xff] %vm2190, %v2115
  %2208 = vst.msk [vmem:[#allocation2 + $0x88] sm:$0xff] %vm2190, %v2117
  %2209 = vst.msk [vmem:[#allocation2 + $0x90] sm:$0xff] %vm2190, %v2119
  %2210 = vst.msk [vmem:[#allocation2 + $0x98] sm:$0xff] %vm2190, %v2121
  %2211 = vst.msk [vmem:[#allocation2 + $0xa0] sm:$0xff] %vm2190, %v2123
  %2212 = vst.msk [vmem:[#allocation2 + $0xa8] sm:$0xff] %vm2190, %v2125
  %2213 = vst.msk [vmem:[#allocation2 + $0xb0] sm:$0xff] %vm2190, %v2127
  %2214 = vst.msk [vmem:[#allocation2 + $0xb8] sm:$0xff] %vm2190, %v2129
  %2215 = vst.msk [vmem:[#allocation2 + $0xc0] sm:$0xff] %vm2190, %v2131
  %2216 = vst.msk [vmem:[#allocation2 + $0xc8] sm:$0xff] %vm2190, %v2133
  %2217 = vst.msk [vmem:[#allocation2 + $0xd0] sm:$0xff] %vm2190, %v2135
  %2218 = vst.msk [vmem:[#allocation2 + $0xd8] sm:$0xff] %vm2190, %v2137
  %2219 = vst.msk [vmem:[#allocation2 + $0xe0] sm:$0xff] %vm2190, %v2139
  %2220 = vst.msk [vmem:[#allocation2 + $0xe8] sm:$0xff] %vm2190, %v2141
  %2221 = vst.msk [vmem:[#allocation2 + $0xf0] sm:$0xff] %vm2190, %v2143
  %2222 = vst.msk [vmem:[#allocation2 + $0xf8] sm:$0xff] %vm2190, %v2145
  %2223 = vst.msk [vmem:[#allocation2 + $0x100] sm:$0xff] %vm2190, %v2147
  %2224 = vst.msk [vmem:[#allocation2 + $0x108] sm:$0xff] %vm2190, %v2149
  %2225 = vst.msk [vmem:[#allocation2 + $0x110] sm:$0xff] %vm2190, %v2151
  %2226 = vst.msk [vmem:[#allocation2 + $0x118] sm:$0xff] %vm2190, %v2153
  %v2227 = vld [vmem:[%s1846 + $0x1] sm:$0xff]
  %v2228 = vld [vmem:[%s1846 + $0x9] sm:$0xf]
  %v2229 = vld [vmem:[%s1846 + $0x11] sm:$0xff]
  %v2230 = vld [vmem:[%s1846 + $0x19] sm:$0xf]
  %v2231 = vld [vmem:[%s1846 + $0x21] sm:$0xff]
  %v2232 = vld [vmem:[%s1846 + $0x29] sm:$0xf]
  %v2233 = vld [vmem:[%s1846 + $0x31] sm:$0xff]
  %v2234 = vld [vmem:[%s1846 + $0x39] sm:$0xf]
  %v2235 = vld [vmem:[%s1846 + $0x41] sm:$0xff]
  %v2236 = vld [vmem:[%s1846 + $0x49] sm:$0xf]
  %v2237 = vld [vmem:[%s1846 + $0x51] sm:$0xff]
  %v2238 = vld [vmem:[%s1846 + $0x59] sm:$0xf]
  %v2239 = vld [vmem:[%s1846 + $0x61] sm:$0xff]
  %v2240 = vld [vmem:[%s1846 + $0x69] sm:$0xf]
  %v2241 = vld [vmem:[%s1846 + $0x71] sm:$0xff]
  %v2242 = vld [vmem:[%s1846 + $0x79] sm:$0xf]
  %v2243 = vld [vmem:[%s1846 + $0x81] sm:$0xff]
  %v2244 = vld [vmem:[%s1846 + $0x89] sm:$0xf]
  %v2245 = vld [vmem:[%s1846 + $0x91] sm:$0xff]
  %v2246 = vld [vmem:[%s1846 + $0x99] sm:$0xf]
  %v2247 = vld [vmem:[%s1846 + $0xa1] sm:$0xff]
  %v2248 = vld [vmem:[%s1846 + $0xa9] sm:$0xf]
  %v2249 = vld [vmem:[%s1846 + $0xb1] sm:$0xff]
  %v2250 = vld [vmem:[%s1846 + $0xb9] sm:$0xf]
  %v2251 = vld [vmem:[%s1846 + $0x101] sm:$0xff]
  %v2252 = vld [vmem:[%s1846 + $0x109] sm:$0xf]
  %v2253 = vld [vmem:[%s1846 + $0x111] sm:$0xff]
  %v2254 = vld [vmem:[%s1846 + $0x119] sm:$0xf]
  %v2255 = vld [vmem:[%s1846 + $0x121] sm:$0xff]
  %v2256 = vld [vmem:[%s1846 + $0x129] sm:$0xf]
  %v2257 = vld [vmem:[%s1846 + $0x131] sm:$0xff]
  %v2258 = vld [vmem:[%s1846 + $0x139] sm:$0xf]
  %v2259 = vld [vmem:[%s1846 + $0x141] sm:$0xff]
  %v2260 = vld [vmem:[%s1846 + $0x149] sm:$0xf]
  %v2261 = vld [vmem:[%s1846 + $0x151] sm:$0xff]
  %v2262 = vld [vmem:[%s1846 + $0x159] sm:$0xf]
  %v2263 = vld [vmem:[%s1846 + $0x161] sm:$0xff]
  %v2264 = vld [vmem:[%s1846 + $0x169] sm:$0xf]
  %v2265 = vld [vmem:[%s1846 + $0x171] sm:$0xff]
  %v2266 = vld [vmem:[%s1846 + $0x179] sm:$0xf]
  %v2267 = vld [vmem:[%s1846 + $0x181] sm:$0xff]
  %v2268 = vld [vmem:[%s1846 + $0x189] sm:$0xf]
  %v2269 = vld [vmem:[%s1846 + $0x191] sm:$0xff]
  %v2270 = vld [vmem:[%s1846 + $0x199] sm:$0xf]
  %v2271 = vld [vmem:[%s1846 + $0x1a1] sm:$0xff]
  %v2272 = vld [vmem:[%s1846 + $0x1a9] sm:$0xf]
  %v2273 = vld [vmem:[%s1846 + $0x1b1] sm:$0xff]
  %v2274 = vld [vmem:[%s1846 + $0x1b9] sm:$0xf]
  %v2323 = vrot.slane %v2227, 4
  %v2324 = vrot.slane %v2229, 4
  %v2325 = vrot.slane %v2231, 4
  %v2326 = vrot.slane %v2233, 4
  %v2327 = vrot.slane %v2235, 4
  %v2328 = vrot.slane %v2237, 4
  %v2329 = vrot.slane %v2239, 4
  %v2330 = vrot.slane %v2241, 4
  %v2331 = vrot.slane %v2243, 4
  %v2332 = vrot.slane %v2245, 4
  %v2333 = vrot.slane %v2247, 4
  %v2334 = vrot.slane %v2249, 4
  %v2335 = vrot.slane %v2251, 4
  %v2336 = vrot.slane %v2253, 4
  %v2337 = vrot.slane %v2255, 4
  %v2338 = vrot.slane %v2257, 4
  %v2339 = vrot.slane %v2259, 4
  %v2340 = vrot.slane %v2261, 4
  %v2341 = vrot.slane %v2263, 4
  %v2342 = vrot.slane %v2265, 4
  %v2343 = vrot.slane %v2267, 4
  %v2344 = vrot.slane %v2269, 4
  %v2345 = vrot.slane %v2271, 4
  %v2346 = vrot.slane %v2273, 4
  %2347 = vst [vmem:[#allocation1] ss:$2 sm:$0xff] %v2227
  %s2348 = scalar_lea.vmem [#allocation1], 1
  %2349 = vst [vmem:[%s2348] ss:$2 sm:$0xff] %v2323
  %s2350 = scalar_lea.vmem [#allocation1], 16
  %2351 = vst [vmem:[%s2350] ss:$2 sm:$0xff] %v2228
  %s2352 = scalar_lea.vmem [#allocation1], 17
  %2353 = vst [vmem:[%s2352] ss:$2 sm:$0xff] %v2229
  %s2354 = scalar_lea.vmem [#allocation1], 32
  %2355 = vst [vmem:[%s2354] ss:$2 sm:$0xff] %v2324
  %s2356 = scalar_lea.vmem [#allocation1], 33
  %2357 = vst [vmem:[%s2356] ss:$2 sm:$0xff] %v2230
  %s2358 = scalar_lea.vmem [#allocation1], 48
  %2359 = vst [vmem:[%s2358] ss:$2 sm:$0xff] %v2231
  %s2360 = scalar_lea.vmem [#allocation1], 49
  %2361 = vst [vmem:[%s2360] ss:$2 sm:$0xff] %v2325
  %v2362 = vld.sshfl [vmem:[#allocation1] sm:$0xff pattern:$0x75316420]
  %v2363 = vld.sshfl [vmem:[#allocation1 + $0x10] sm:$0xff pattern:$0x75316420]
  %v2364 = vld.sshfl [vmem:[#allocation1 + $0x20] sm:$0xff pattern:$0x75316420]
  %v2365 = vld.sshfl [vmem:[#allocation1 + $0x30] sm:$0xff pattern:$0x75316420]
  %2366 = vst [vmem:[#allocation1] ss:$2 sm:$0xff] %v2232
  %2367 = vst [vmem:[%s2348] ss:$2 sm:$0xff] %v2233
  %2368 = vst [vmem:[%s2350] ss:$2 sm:$0xff] %v2326
  %2369 = vst [vmem:[%s2352] ss:$2 sm:$0xff] %v2234
  %2370 = vst [vmem:[%s2354] ss:$2 sm:$0xff] %v2235
  %2371 = vst [vmem:[%s2356] ss:$2 sm:$0xff] %v2327
  %2372 = vst [vmem:[%s2358] ss:$2 sm:$0xff] %v2236
  %2373 = vst [vmem:[%s2360] ss:$2 sm:$0xff] %v2237
  %v2374 = vld.sshfl [vmem:[#allocation1] sm:$0xff pattern:$0x75316420]
  %v2375 = vld.sshfl [vmem:[#allocation1 + $0x10] sm:$0xff pattern:$0x75316420]
  %v2376 = vld.sshfl [vmem:[#allocation1 + $0x20] sm:$0xff pattern:$0x75316420]
  %v2377 = vld.sshfl [vmem:[#allocation1 + $0x30] sm:$0xff pattern:$0x75316420]
  %2378 = vst [vmem:[#allocation1] ss:$2 sm:$0xff] %v2328
  %2379 = vst [vmem:[%s2348] ss:$2 sm:$0xff] %v2238
  %2380 = vst [vmem:[%s2350] ss:$2 sm:$0xff] %v2239
  %2381 = vst [vmem:[%s2352] ss:$2 sm:$0xff] %v2329
  %2382 = vst [vmem:[%s2354] ss:$2 sm:$0xff] %v2240
  %2383 = vst [vmem:[%s2356] ss:$2 sm:$0xff] %v2241
  %2384 = vst [vmem:[%s2358] ss:$2 sm:$0xff] %v2330
  %2385 = vst [vmem:[%s2360] ss:$2 sm:$0xff] %v2242
  %v2386 = vld.sshfl [vmem:[#allocation1] sm:$0xff pattern:$0x75316420]
  %v2387 = vld.sshfl [vmem:[#allocation1 + $0x10] sm:$0xff pattern:$0x75316420]
  %v2388 = vld.sshfl [vmem:[#allocation1 + $0x20] sm:$0xff pattern:$0x75316420]
  %v2389 = vld.sshfl [vmem:[#allocation1 + $0x30] sm:$0xff pattern:$0x75316420]
  %2390 = vst [vmem:[#allocation1] ss:$2 sm:$0xff] %v2243
  %2391 = vst [vmem:[%s2348] ss:$2 sm:$0xff] %v2331
  %2392 = vst [vmem:[%s2350] ss:$2 sm:$0xff] %v2244
  %2393 = vst [vmem:[%s2352] ss:$2 sm:$0xff] %v2245
  %2394 = vst [vmem:[%s2354] ss:$2 sm:$0xff] %v2332
  %2395 = vst [vmem:[%s2356] ss:$2 sm:$0xff] %v2246
  %2396 = vst [vmem:[%s2358] ss:$2 sm:$0xff] %v2247
  %2397 = vst [vmem:[%s2360] ss:$2 sm:$0xff] %v2333
  %v2398 = vld.sshfl [vmem:[#allocation1] sm:$0xff pattern:$0x75316420]
  %v2399 = vld.sshfl [vmem:[#allocation1 + $0x10] sm:$0xff pattern:$0x75316420]
  %v2400 = vld.sshfl [vmem:[#allocation1 + $0x20] sm:$0xff pattern:$0x75316420]
  %v2401 = vld.sshfl [vmem:[#allocation1 + $0x30] sm:$0xff pattern:$0x75316420]
  %2402 = vst [vmem:[#allocation1] ss:$2 sm:$0xff] %v2248
  %2403 = vst [vmem:[%s2348] ss:$2 sm:$0xff] %v2249
  %2404 = vst [vmem:[%s2350] ss:$2 sm:$0xff] %v2334
  %2405 = vst [vmem:[%s2352] ss:$2 sm:$0xff] %v2250
  %2406 = vst [vmem:[%s2354] ss:$2 sm:$0xff] %v2251
  %2407 = vst [vmem:[%s2356] ss:$2 sm:$0xff] %v2335
  %2408 = vst [vmem:[%s2358] ss:$2 sm:$0xff] %v2252
  %2409 = vst [vmem:[%s2360] ss:$2 sm:$0xff] %v2253
  %v2410 = vld.sshfl [vmem:[#allocation1] sm:$0xff pattern:$0x75316420]
  %v2411 = vld.sshfl [vmem:[#allocation1 + $0x10] sm:$0xff pattern:$0x75316420]
  %v2412 = vld.sshfl [vmem:[#allocation1 + $0x20] sm:$0xff pattern:$0x75316420]
  %v2413 = vld.sshfl [vmem:[#allocation1 + $0x30] sm:$0xff pattern:$0x75316420]
  %2414 = vst [vmem:[#allocation1] ss:$2 sm:$0xff] %v2336
  %2415 = vst [vmem:[%s2348] ss:$2 sm:$0xff] %v2254
  %2416 = vst [vmem:[%s2350] ss:$2 sm:$0xff] %v2255
  %2417 = vst [vmem:[%s2352] ss:$2 sm:$0xff] %v2337
  %2418 = vst [vmem:[%s2354] ss:$2 sm:$0xff] %v2256
  %2419 = vst [vmem:[%s2356] ss:$2 sm:$0xff] %v2257
  %2420 = vst [vmem:[%s2358] ss:$2 sm:$0xff] %v2338
  %2421 = vst [vmem:[%s2360] ss:$2 sm:$0xff] %v2258
  %v2422 = vld.sshfl [vmem:[#allocation1] sm:$0xff pattern:$0x75316420]
  %v2423 = vld.sshfl [vmem:[#allocation1 + $0x10] sm:$0xff pattern:$0x75316420]
  %v2424 = vld.sshfl [vmem:[#allocation1 + $0x20] sm:$0xff pattern:$0x75316420]
  %v2425 = vld.sshfl [vmem:[#allocation1 + $0x30] sm:$0xff pattern:$0x75316420]
  %2426 = vst [vmem:[#allocation1] ss:$2 sm:$0xff] %v2259
  %2427 = vst [vmem:[%s2348] ss:$2 sm:$0xff] %v2339
  %2428 = vst [vmem:[%s2350] ss:$2 sm:$0xff] %v2260
  %2429 = vst [vmem:[%s2352] ss:$2 sm:$0xff] %v2261
  %2430 = vst [vmem:[%s2354] ss:$2 sm:$0xff] %v2340
  %2431 = vst [vmem:[%s2356] ss:$2 sm:$0xff] %v2262
  %2432 = vst [vmem:[%s2358] ss:$2 sm:$0xff] %v2263
  %2433 = vst [vmem:[%s2360] ss:$2 sm:$0xff] %v2341
  %v2434 = vld.sshfl [vmem:[#allocation1] sm:$0xff pattern:$0x75316420]
  %v2435 = vld.sshfl [vmem:[#allocation1 + $0x10] sm:$0xff pattern:$0x75316420]
  %v2436 = vld.sshfl [vmem:[#allocation1 + $0x20] sm:$0xff pattern:$0x75316420]
  %v2437 = vld.sshfl [vmem:[#allocation1 + $0x30] sm:$0xff pattern:$0x75316420]
  %2438 = vst [vmem:[#allocation1] ss:$2 sm:$0xff] %v2264
  %2439 = vst [vmem:[%s2348] ss:$2 sm:$0xff] %v2265
  %2440 = vst [vmem:[%s2350] ss:$2 sm:$0xff] %v2342
  %2441 = vst [vmem:[%s2352] ss:$2 sm:$0xff] %v2266
  %2442 = vst [vmem:[%s2354] ss:$2 sm:$0xff] %v2267
  %2443 = vst [vmem:[%s2356] ss:$2 sm:$0xff] %v2343
  %2444 = vst [vmem:[%s2358] ss:$2 sm:$0xff] %v2268
  %2445 = vst [vmem:[%s2360] ss:$2 sm:$0xff] %v2269
  %v2446 = vld.sshfl [vmem:[#allocation1] sm:$0xff pattern:$0x75316420]
  %v2447 = vld.sshfl [vmem:[#allocation1 + $0x10] sm:$0xff pattern:$0x75316420]
  %v2448 = vld.sshfl [vmem:[#allocation1 + $0x20] sm:$0xff pattern:$0x75316420]
  %v2449 = vld.sshfl [vmem:[#allocation1 + $0x30] sm:$0xff pattern:$0x75316420]
  %2450 = vst [vmem:[#allocation1] ss:$2 sm:$0xff] %v2344
  %2451 = vst [vmem:[%s2348] ss:$2 sm:$0xff] %v2270
  %2452 = vst [vmem:[%s2350] ss:$2 sm:$0xff] %v2271
  %2453 = vst [vmem:[%s2352] ss:$2 sm:$0xff] %v2345
  %2454 = vst [vmem:[%s2354] ss:$2 sm:$0xff] %v2272
  %2455 = vst [vmem:[%s2356] ss:$2 sm:$0xff] %v2273
  %2456 = vst [vmem:[%s2358] ss:$2 sm:$0xff] %v2346
  %2457 = vst [vmem:[%s2360] ss:$2 sm:$0xff] %v2274
  %v2458 = vld.sshfl [vmem:[#allocation1] sm:$0xff pattern:$0x75316420]
  %v2459 = vld.sshfl [vmem:[#allocation1 + $0x10] sm:$0xff pattern:$0x75316420]
  %v2460 = vld.sshfl [vmem:[#allocation1 + $0x20] sm:$0xff pattern:$0x75316420]
  %v2461 = vld.sshfl [vmem:[#allocation1 + $0x30] sm:$0xff pattern:$0x75316420]
  %2462 = vrot.lane.b32.xlu0 %v2362, 18
  %v2463 = vpop.permute.xlu0 %2462
  %2464 = vrot.lane.b32.xlu0 %v2363, 18
  %v2465 = vpop.permute.xlu0 %2464
  %2466 = vrot.lane.b32.xlu0 %v2364, 18
  %v2467 = vpop.permute.xlu0 %2466
  %2468 = vrot.lane.b32.xlu0 %v2365, 18
  %v2469 = vpop.permute.xlu0 %2468
  %2470 = vrot.lane.b32.xlu0 %v2374, 18
  %v2471 = vpop.permute.xlu0 %2470
  %2472 = vrot.lane.b32.xlu0 %v2375, 18
  %v2473 = vpop.permute.xlu0 %2472
  %2474 = vrot.lane.b32.xlu0 %v2376, 18
  %v2475 = vpop.permute.xlu0 %2474
  %2476 = vrot.lane.b32.xlu0 %v2377, 18
  %v2477 = vpop.permute.xlu0 %2476
  %2478 = vrot.lane.b32.xlu0 %v2386, 18
  %v2479 = vpop.permute.xlu0 %2478
  %2480 = vrot.lane.b32.xlu0 %v2387, 18
  %v2481 = vpop.permute.xlu0 %2480
  %2482 = vrot.lane.b32.xlu0 %v2388, 18
  %v2483 = vpop.permute.xlu0 %2482
  %2484 = vrot.lane.b32.xlu0 %v2389, 18
  %v2485 = vpop.permute.xlu0 %2484
  %2486 = vrot.lane.b32.xlu0 %v2398, 18
  %v2487 = vpop.permute.xlu0 %2486
  %2488 = vrot.lane.b32.xlu0 %v2399, 18
  %v2489 = vpop.permute.xlu0 %2488
  %2490 = vrot.lane.b32.xlu0 %v2400, 18
  %v2491 = vpop.permute.xlu0 %2490
  %2492 = vrot.lane.b32.xlu0 %v2401, 18
  %v2493 = vpop.permute.xlu0 %2492
  %2494 = vrot.lane.b32.xlu0 %v2410, 18
  %v2495 = vpop.permute.xlu0 %2494
  %2496 = vrot.lane.b32.xlu0 %v2411, 18
  %v2497 = vpop.permute.xlu0 %2496
  %2498 = vrot.lane.b32.xlu0 %v2412, 18
  %v2499 = vpop.permute.xlu0 %2498
  %2500 = vrot.lane.b32.xlu0 %v2413, 18
  %v2501 = vpop.permute.xlu0 %2500
  %2502 = vrot.lane.b32.xlu0 %v2422, 18
  %v2503 = vpop.permute.xlu0 %2502
  %2504 = vrot.lane.b32.xlu0 %v2423, 18
  %v2505 = vpop.permute.xlu0 %2504
  %2506 = vrot.lane.b32.xlu0 %v2424, 18
  %v2507 = vpop.permute.xlu0 %2506
  %2508 = vrot.lane.b32.xlu0 %v2425, 18
  %v2509 = vpop.permute.xlu0 %2508
  %2510 = vrot.lane.b32.xlu0 %v2434, 18
  %v2511 = vpop.permute.xlu0 %2510
  %2512 = vrot.lane.b32.xlu0 %v2435, 18
  %v2513 = vpop.permute.xlu0 %2512
  %2514 = vrot.lane.b32.xlu0 %v2436, 18
  %v2515 = vpop.permute.xlu0 %2514
  %2516 = vrot.lane.b32.xlu0 %v2437, 18
  %v2517 = vpop.permute.xlu0 %2516
  %2518 = vrot.lane.b32.xlu0 %v2446, 18
  %v2519 = vpop.permute.xlu0 %2518
  %2520 = vrot.lane.b32.xlu0 %v2447, 18
  %v2521 = vpop.permute.xlu0 %2520
  %2522 = vrot.lane.b32.xlu0 %v2448, 18
  %v2523 = vpop.permute.xlu0 %2522
  %2524 = vrot.lane.b32.xlu0 %v2449, 18
  %v2525 = vpop.permute.xlu0 %2524
  %2526 = vrot.lane.b32.xlu0 %v2458, 18
  %v2527 = vpop.permute.xlu0 %2526
  %2528 = vrot.lane.b32.xlu0 %v2459, 18
  %v2529 = vpop.permute.xlu0 %2528
  %2530 = vrot.lane.b32.xlu0 %v2460, 18
  %v2531 = vpop.permute.xlu0 %2530
  %2532 = vrot.lane.b32.xlu0 %v2461, 18
  %v2533 = vpop.permute.xlu0 %2532
  %vm2570 = vcmask 171152
  %2571 = vst.msk [vmem:[#allocation2] sm:$0xff] %vm2570, %v2463
  %2572 = vst.msk [vmem:[#allocation2 + $0x8] sm:$0xff] %vm2570, %v2465
  %2573 = vst.msk [vmem:[#allocation2 + $0x10] sm:$0xff] %vm2570, %v2467
  %2574 = vst.msk [vmem:[#allocation2 + $0x18] sm:$0xff] %vm2570, %v2469
  %2575 = vst.msk [vmem:[#allocation2 + $0x20] sm:$0xff] %vm2570, %v2471
  %2576 = vst.msk [vmem:[#allocation2 + $0x28] sm:$0xff] %vm2570, %v2473
  %2577 = vst.msk [vmem:[#allocation2 + $0x30] sm:$0xff] %vm2570, %v2475
  %2578 = vst.msk [vmem:[#allocation2 + $0x38] sm:$0xff] %vm2570, %v2477
  %2579 = vst.msk [vmem:[#allocation2 + $0x40] sm:$0xff] %vm2570, %v2479
  %2580 = vst.msk [vmem:[#allocation2 + $0x48] sm:$0xff] %vm2570, %v2481
  %2581 = vst.msk [vmem:[#allocation2 + $0x50] sm:$0xff] %vm2570, %v2483
  %2582 = vst.msk [vmem:[#allocation2 + $0x58] sm:$0xff] %vm2570, %v2485
  %2583 = vst.msk [vmem:[#allocation2 + $0x60] sm:$0xff] %vm2570, %v2487
  %2584 = vst.msk [vmem:[#allocation2 + $0x68] sm:$0xff] %vm2570, %v2489
  %2585 = vst.msk [vmem:[#allocation2 + $0x70] sm:$0xff] %vm2570, %v2491
  %2586 = vst.msk [vmem:[#allocation2 + $0x78] sm:$0xff] %vm2570, %v2493
  %2587 = vst.msk [vmem:[#allocation2 + $0x80] sm:$0xff] %vm2570, %v2495
  %2588 = vst.msk [vmem:[#allocation2 + $0x88] sm:$0xff] %vm2570, %v2497
  %2589 = vst.msk [vmem:[#allocation2 + $0x90] sm:$0xff] %vm2570, %v2499
  %2590 = vst.msk [vmem:[#allocation2 + $0x98] sm:$0xff] %vm2570, %v2501
  %2591 = vst.msk [vmem:[#allocation2 + $0xa0] sm:$0xff] %vm2570, %v2503
  %2592 = vst.msk [vmem:[#allocation2 + $0xa8] sm:$0xff] %vm2570, %v2505
  %2593 = vst.msk [vmem:[#allocation2 + $0xb0] sm:$0xff] %vm2570, %v2507
  %2594 = vst.msk [vmem:[#allocation2 + $0xb8] sm:$0xff] %vm2570, %v2509
  %2595 = vst.msk [vmem:[#allocation2 + $0xc0] sm:$0xff] %vm2570, %v2511
  %2596 = vst.msk [vmem:[#allocation2 + $0xc8] sm:$0xff] %vm2570, %v2513
  %2597 = vst.msk [vmem:[#allocation2 + $0xd0] sm:$0xff] %vm2570, %v2515
  %2598 = vst.msk [vmem:[#allocation2 + $0xd8] sm:$0xff] %vm2570, %v2517
  %2599 = vst.msk [vmem:[#allocation2 + $0xe0] sm:$0xff] %vm2570, %v2519
  %2600 = vst.msk [vmem:[#allocation2 + $0xe8] sm:$0xff] %vm2570, %v2521
  %2601 = vst.msk [vmem:[#allocation2 + $0xf0] sm:$0xff] %vm2570, %v2523
  %2602 = vst.msk [vmem:[#allocation2 + $0xf8] sm:$0xff] %vm2570, %v2525
  %2603 = vst.msk [vmem:[#allocation2 + $0x100] sm:$0xff] %vm2570, %v2527
  %2604 = vst.msk [vmem:[#allocation2 + $0x108] sm:$0xff] %vm2570, %v2529
  %2605 = vst.msk [vmem:[#allocation2 + $0x110] sm:$0xff] %vm2570, %v2531
  %2606 = vst.msk [vmem:[#allocation2 + $0x118] sm:$0xff] %vm2570, %v2533
  %v2607 = vld [vmem:[%s1846 + $0x2] sm:$0xff]
  %v2608 = vld [vmem:[%s1846 + $0xa] sm:$0xf]
  %v2609 = vld [vmem:[%s1846 + $0x12] sm:$0xff]
  %v2610 = vld [vmem:[%s1846 + $0x1a] sm:$0xf]
  %v2611 = vld [vmem:[%s1846 + $0x22] sm:$0xff]
  %v2612 = vld [vmem:[%s1846 + $0x2a] sm:$0xf]
  %v2613 = vld [vmem:[%s1846 + $0x32] sm:$0xff]
  %v2614 = vld [vmem:[%s1846 + $0x3a] sm:$0xf]
  %v2615 = vld [vmem:[%s1846 + $0x42] sm:$0xff]
  %v2616 = vld [vmem:[%s1846 + $0x4a] sm:$0xf]
  %v2617 = vld [vmem:[%s1846 + $0x52] sm:$0xff]
  %v2618 = vld [vmem:[%s1846 + $0x5a] sm:$0xf]
  %v2619 = vld [vmem:[%s1846 + $0x62] sm:$0xff]
  %v2620 = vld [vmem:[%s1846 + $0x6a] sm:$0xf]
  %v2621 = vld [vmem:[%s1846 + $0x72] sm:$0xff]
  %v2622 = vld [vmem:[%s1846 + $0x7a] sm:$0xf]
  %v2623 = vld [vmem:[%s1846 + $0x82] sm:$0xff]
  %v2624 = vld [vmem:[%s1846 + $0x8a] sm:$0xf]
  %v2625 = vld [vmem:[%s1846 + $0x92] sm:$0xff]
  %v2626 = vld [vmem:[%s1846 + $0x9a] sm:$0xf]
  %v2627 = vld [vmem:[%s1846 + $0xa2] sm:$0xff]
  %v2628 = vld [vmem:[%s1846 + $0xaa] sm:$0xf]
  %v2629 = vld [vmem:[%s1846 + $0xb2] sm:$0xff]
  %v2630 = vld [vmem:[%s1846 + $0xba] sm:$0xf]
  %v2631 = vld [vmem:[%s1846 + $0x102] sm:$0xff]
  %v2632 = vld [vmem:[%s1846 + $0x10a] sm:$0xf]
  %v2633 = vld [vmem:[%s1846 + $0x112] sm:$0xff]
  %v2634 = vld [vmem:[%s1846 + $0x11a] sm:$0xf]
  %v2635 = vld [vmem:[%s1846 + $0x122] sm:$0xff]
  %v2636 = vld [vmem:[%s1846 + $0x12a] sm:$0xf]
  %v2637 = vld [vmem:[%s1846 + $0x132] sm:$0xff]
  %v2638 = vld [vmem:[%s1846 + $0x13a] sm:$0xf]
  %v2639 = vld [vmem:[%s1846 + $0x142] sm:$0xff]
  %v2640 = vld [vmem:[%s1846 + $0x14a] sm:$0xf]
  %v2641 = vld [vmem:[%s1846 + $0x152] sm:$0xff]
  %v2642 = vld [vmem:[%s1846 + $0x15a] sm:$0xf]
  %v2643 = vld [vmem:[%s1846 + $0x162] sm:$0xff]
  %v2644 = vld [vmem:[%s1846 + $0x16a] sm:$0xf]
  %v2645 = vld [vmem:[%s1846 + $0x172] sm:$0xff]
  %v2646 = vld [vmem:[%s1846 + $0x17a] sm:$0xf]
  %v2647 = vld [vmem:[%s1846 + $0x182] sm:$0xff]
  %v2648 = vld [vmem:[%s1846 + $0x18a] sm:$0xf]
  %v2649 = vld [vmem:[%s1846 + $0x192] sm:$0xff]
  %v2650 = vld [vmem:[%s1846 + $0x19a] sm:$0xf]
  %v2651 = vld [vmem:[%s1846 + $0x1a2] sm:$0xff]
  %v2652 = vld [vmem:[%s1846 + $0x1aa] sm:$0xf]
  %v2653 = vld [vmem:[%s1846 + $0x1b2] sm:$0xff]
  %v2654 = vld [vmem:[%s1846 + $0x1ba] sm:$0xf]
  %v2703 = vrot.slane %v2607, 4
  %v2704 = vrot.slane %v2609, 4
  %v2705 = vrot.slane %v2611, 4
  %v2706 = vrot.slane %v2613, 4
  %v2707 = vrot.slane %v2615, 4
  %v2708 = vrot.slane %v2617, 4
  %v2709 = vrot.slane %v2619, 4
  %v2710 = vrot.slane %v2621, 4
  %v2711 = vrot.slane %v2623, 4
  %v2712 = vrot.slane %v2625, 4
  %v2713 = vrot.slane %v2627, 4
  %v2714 = vrot.slane %v2629, 4
  %v2715 = vrot.slane %v2631, 4
  %v2716 = vrot.slane %v2633, 4
  %v2717 = vrot.slane %v2635, 4
  %v2718 = vrot.slane %v2637, 4
  %v2719 = vrot.slane %v2639, 4
  %v2720 = vrot.slane %v2641, 4
  %v2721 = vrot.slane %v2643, 4
  %v2722 = vrot.slane %v2645, 4
  %v2723 = vrot.slane %v2647, 4
  %v2724 = vrot.slane %v2649, 4
  %v2725 = vrot.slane %v2651, 4
  %v2726 = vrot.slane %v2653, 4
  %2727 = vst [vmem:[#allocation1] ss:$2 sm:$0xff] %v2607
  %s2728 = scalar_lea.vmem [#allocation1], 1
  %2729 = vst [vmem:[%s2728] ss:$2 sm:$0xff] %v2703
  %s2730 = scalar_lea.vmem [#allocation1], 16
  %2731 = vst [vmem:[%s2730] ss:$2 sm:$0xff] %v2608
  %s2732 = scalar_lea.vmem [#allocation1], 17
  %2733 = vst [vmem:[%s2732] ss:$2 sm:$0xff] %v2609
  %s2734 = scalar_lea.vmem [#allocation1], 32
  %2735 = vst [vmem:[%s2734] ss:$2 sm:$0xff] %v2704
  %s2736 = scalar_lea.vmem [#allocation1], 33
  %2737 = vst [vmem:[%s2736] ss:$2 sm:$0xff] %v2610
  %s2738 = scalar_lea.vmem [#allocation1], 48
  %2739 = vst [vmem:[%s2738] ss:$2 sm:$0xff] %v2611
  %s2740 = scalar_lea.vmem [#allocation1], 49
  %2741 = vst [vmem:[%s2740] ss:$2 sm:$0xff] %v2705
  %v2742 = vld.sshfl [vmem:[#allocation1] sm:$0xff pattern:$0x75316420]
  %v2743 = vld.sshfl [vmem:[#allocation1 + $0x10] sm:$0xff pattern:$0x75316420]
  %v2744 = vld.sshfl [vmem:[#allocation1 + $0x20] sm:$0xff pattern:$0x75316420]
  %v2745 = vld.sshfl [vmem:[#allocation1 + $0x30] sm:$0xff pattern:$0x75316420]
  %2746 = vst [vmem:[#allocation1] ss:$2 sm:$0xff] %v2612
  %2747 = vst [vmem:[%s2728] ss:$2 sm:$0xff] %v2613
  %2748 = vst [vmem:[%s2730] ss:$2 sm:$0xff] %v2706
  %2749 = vst [vmem:[%s2732] ss:$2 sm:$0xff] %v2614
  %2750 = vst [vmem:[%s2734] ss:$2 sm:$0xff] %v2615
  %2751 = vst [vmem:[%s2736] ss:$2 sm:$0xff] %v2707
  %2752 = vst [vmem:[%s2738] ss:$2 sm:$0xff] %v2616
  %2753 = vst [vmem:[%s2740] ss:$2 sm:$0xff] %v2617
  %v2754 = vld.sshfl [vmem:[#allocation1] sm:$0xff pattern:$0x75316420]
  %v2755 = vld.sshfl [vmem:[#allocation1 + $0x10] sm:$0xff pattern:$0x75316420]
  %v2756 = vld.sshfl [vmem:[#allocation1 + $0x20] sm:$0xff pattern:$0x75316420]
  %v2757 = vld.sshfl [vmem:[#allocation1 + $0x30] sm:$0xff pattern:$0x75316420]
  %2758 = vst [vmem:[#allocation1] ss:$2 sm:$0xff] %v2708
  %2759 = vst [vmem:[%s2728] ss:$2 sm:$0xff] %v2618
  %2760 = vst [vmem:[%s2730] ss:$2 sm:$0xff] %v2619
  %2761 = vst [vmem:[%s2732] ss:$2 sm:$0xff] %v2709
  %2762 = vst [vmem:[%s2734] ss:$2 sm:$0xff] %v2620
  %2763 = vst [vmem:[%s2736] ss:$2 sm:$0xff] %v2621
  %2764 = vst [vmem:[%s2738] ss:$2 sm:$0xff] %v2710
  %2765 = vst [vmem:[%s2740] ss:$2 sm:$0xff] %v2622
  %v2766 = vld.sshfl [vmem:[#allocation1] sm:$0xff pattern:$0x75316420]
  %v2767 = vld.sshfl [vmem:[#allocation1 + $0x10] sm:$0xff pattern:$0x75316420]
  %v2768 = vld.sshfl [vmem:[#allocation1 + $0x20] sm:$0xff pattern:$0x75316420]
  %v2769 = vld.sshfl [vmem:[#allocation1 + $0x30] sm:$0xff pattern:$0x75316420]
  %2770 = vst [vmem:[#allocation1] ss:$2 sm:$0xff] %v2623
  %2771 = vst [vmem:[%s2728] ss:$2 sm:$0xff] %v2711
  %2772 = vst [vmem:[%s2730] ss:$2 sm:$0xff] %v2624
  %2773 = vst [vmem:[%s2732] ss:$2 sm:$0xff] %v2625
  %2774 = vst [vmem:[%s2734] ss:$2 sm:$0xff] %v2712
  %2775 = vst [vmem:[%s2736] ss:$2 sm:$0xff] %v2626
  %2776 = vst [vmem:[%s2738] ss:$2 sm:$0xff] %v2627
  %2777 = vst [vmem:[%s2740] ss:$2 sm:$0xff] %v2713
  %v2778 = vld.sshfl [vmem:[#allocation1] sm:$0xff pattern:$0x75316420]
  %v2779 = vld.sshfl [vmem:[#allocation1 + $0x10] sm:$0xff pattern:$0x75316420]
  %v2780 = vld.sshfl [vmem:[#allocation1 + $0x20] sm:$0xff pattern:$0x75316420]
  %v2781 = vld.sshfl [vmem:[#allocation1 + $0x30] sm:$0xff pattern:$0x75316420]
  %2782 = vst [vmem:[#allocation1] ss:$2 sm:$0xff] %v2628
  %2783 = vst [vmem:[%s2728] ss:$2 sm:$0xff] %v2629
  %2784 = vst [vmem:[%s2730] ss:$2 sm:$0xff] %v2714
  %2785 = vst [vmem:[%s2732] ss:$2 sm:$0xff] %v2630
  %2786 = vst [vmem:[%s2734] ss:$2 sm:$0xff] %v2631
  %2787 = vst [vmem:[%s2736] ss:$2 sm:$0xff] %v2715
  %2788 = vst [vmem:[%s2738] ss:$2 sm:$0xff] %v2632
  %2789 = vst [vmem:[%s2740] ss:$2 sm:$0xff] %v2633
  %v2790 = vld.sshfl [vmem:[#allocation1] sm:$0xff pattern:$0x75316420]
  %v2791 = vld.sshfl [vmem:[#allocation1 + $0x10] sm:$0xff pattern:$0x75316420]
  %v2792 = vld.sshfl [vmem:[#allocation1 + $0x20] sm:$0xff pattern:$0x75316420]
  %v2793 = vld.sshfl [vmem:[#allocation1 + $0x30] sm:$0xff pattern:$0x75316420]
  %2794 = vst [vmem:[#allocation1] ss:$2 sm:$0xff] %v2716
  %2795 = vst [vmem:[%s2728] ss:$2 sm:$0xff] %v2634
  %2796 = vst [vmem:[%s2730] ss:$2 sm:$0xff] %v2635
  %2797 = vst [vmem:[%s2732] ss:$2 sm:$0xff] %v2717
  %2798 = vst [vmem:[%s2734] ss:$2 sm:$0xff] %v2636
  %2799 = vst [vmem:[%s2736] ss:$2 sm:$0xff] %v2637
  %2800 = vst [vmem:[%s2738] ss:$2 sm:$0xff] %v2718
  %2801 = vst [vmem:[%s2740] ss:$2 sm:$0xff] %v2638
  %v2802 = vld.sshfl [vmem:[#allocation1] sm:$0xff pattern:$0x75316420]
  %v2803 = vld.sshfl [vmem:[#allocation1 + $0x10] sm:$0xff pattern:$0x75316420]
  %v2804 = vld.sshfl [vmem:[#allocation1 + $0x20] sm:$0xff pattern:$0x75316420]
  %v2805 = vld.sshfl [vmem:[#allocation1 + $0x30] sm:$0xff pattern:$0x75316420]
  %2806 = vst [vmem:[#allocation1] ss:$2 sm:$0xff] %v2639
  %2807 = vst [vmem:[%s2728] ss:$2 sm:$0xff] %v2719
  %2808 = vst [vmem:[%s2730] ss:$2 sm:$0xff] %v2640
  %2809 = vst [vmem:[%s2732] ss:$2 sm:$0xff] %v2641
  %2810 = vst [vmem:[%s2734] ss:$2 sm:$0xff] %v2720
  %2811 = vst [vmem:[%s2736] ss:$2 sm:$0xff] %v2642
  %2812 = vst [vmem:[%s2738] ss:$2 sm:$0xff] %v2643
  %2813 = vst [vmem:[%s2740] ss:$2 sm:$0xff] %v2721
  %v2814 = vld.sshfl [vmem:[#allocation1] sm:$0xff pattern:$0x75316420]
  %v2815 = vld.sshfl [vmem:[#allocation1 + $0x10] sm:$0xff pattern:$0x75316420]
  %v2816 = vld.sshfl [vmem:[#allocation1 + $0x20] sm:$0xff pattern:$0x75316420]
  %v2817 = vld.sshfl [vmem:[#allocation1 + $0x30] sm:$0xff pattern:$0x75316420]
  %2818 = vst [vmem:[#allocation1] ss:$2 sm:$0xff] %v2644
  %2819 = vst [vmem:[%s2728] ss:$2 sm:$0xff] %v2645
  %2820 = vst [vmem:[%s2730] ss:$2 sm:$0xff] %v2722
  %2821 = vst [vmem:[%s2732] ss:$2 sm:$0xff] %v2646
  %2822 = vst [vmem:[%s2734] ss:$2 sm:$0xff] %v2647
  %2823 = vst [vmem:[%s2736] ss:$2 sm:$0xff] %v2723
  %2824 = vst [vmem:[%s2738] ss:$2 sm:$0xff] %v2648
  %2825 = vst [vmem:[%s2740] ss:$2 sm:$0xff] %v2649
  %v2826 = vld.sshfl [vmem:[#allocation1] sm:$0xff pattern:$0x75316420]
  %v2827 = vld.sshfl [vmem:[#allocation1 + $0x10] sm:$0xff pattern:$0x75316420]
  %v2828 = vld.sshfl [vmem:[#allocation1 + $0x20] sm:$0xff pattern:$0x75316420]
  %v2829 = vld.sshfl [vmem:[#allocation1 + $0x30] sm:$0xff pattern:$0x75316420]
  %2830 = vst [vmem:[#allocation1] ss:$2 sm:$0xff] %v2724
  %2831 = vst [vmem:[%s2728] ss:$2 sm:$0xff] %v2650
  %2832 = vst [vmem:[%s2730] ss:$2 sm:$0xff] %v2651
  %2833 = vst [vmem:[%s2732] ss:$2 sm:$0xff] %v2725
  %2834 = vst [vmem:[%s2734] ss:$2 sm:$0xff] %v2652
  %2835 = vst [vmem:[%s2736] ss:$2 sm:$0xff] %v2653
  %2836 = vst [vmem:[%s2738] ss:$2 sm:$0xff] %v2726
  %2837 = vst [vmem:[%s2740] ss:$2 sm:$0xff] %v2654
  %v2838 = vld.sshfl [vmem:[#allocation1] sm:$0xff pattern:$0x75316420]
  %v2839 = vld.sshfl [vmem:[#allocation1 + $0x10] sm:$0xff pattern:$0x75316420]
  %v2840 = vld.sshfl [vmem:[#allocation1 + $0x20] sm:$0xff pattern:$0x75316420]
  %v2841 = vld.sshfl [vmem:[#allocation1 + $0x30] sm:$0xff pattern:$0x75316420]
  %2842 = vrot.lane.b32.xlu0 %v2742, 21
  %v2843 = vpop.permute.xlu0 %2842
  %2844 = vrot.lane.b32.xlu0 %v2743, 21
  %v2845 = vpop.permute.xlu0 %2844
  %2846 = vrot.lane.b32.xlu0 %v2744, 21
  %v2847 = vpop.permute.xlu0 %2846
  %2848 = vrot.lane.b32.xlu0 %v2745, 21
  %v2849 = vpop.permute.xlu0 %2848
  %2850 = vrot.lane.b32.xlu0 %v2754, 21
  %v2851 = vpop.permute.xlu0 %2850
  %2852 = vrot.lane.b32.xlu0 %v2755, 21
  %v2853 = vpop.permute.xlu0 %2852
  %2854 = vrot.lane.b32.xlu0 %v2756, 21
  %v2855 = vpop.permute.xlu0 %2854
  %2856 = vrot.lane.b32.xlu0 %v2757, 21
  %v2857 = vpop.permute.xlu0 %2856
  %2858 = vrot.lane.b32.xlu0 %v2766, 21
  %v2859 = vpop.permute.xlu0 %2858
  %2860 = vrot.lane.b32.xlu0 %v2767, 21
  %v2861 = vpop.permute.xlu0 %2860
  %2862 = vrot.lane.b32.xlu0 %v2768, 21
  %v2863 = vpop.permute.xlu0 %2862
  %2864 = vrot.lane.b32.xlu0 %v2769, 21
  %v2865 = vpop.permute.xlu0 %2864
  %2866 = vrot.lane.b32.xlu0 %v2778, 21
  %v2867 = vpop.permute.xlu0 %2866
  %2868 = vrot.lane.b32.xlu0 %v2779, 21
  %v2869 = vpop.permute.xlu0 %2868
  %2870 = vrot.lane.b32.xlu0 %v2780, 21
  %v2871 = vpop.permute.xlu0 %2870
  %2872 = vrot.lane.b32.xlu0 %v2781, 21
  %v2873 = vpop.permute.xlu0 %2872
  %2874 = vrot.lane.b32.xlu0 %v2790, 21
  %v2875 = vpop.permute.xlu0 %2874
  %2876 = vrot.lane.b32.xlu0 %v2791, 21
  %v2877 = vpop.permute.xlu0 %2876
  %2878 = vrot.lane.b32.xlu0 %v2792, 21
  %v2879 = vpop.permute.xlu0 %2878
  %2880 = vrot.lane.b32.xlu0 %v2793, 21
  %v2881 = vpop.permute.xlu0 %2880
  %2882 = vrot.lane.b32.xlu0 %v2802, 21
  %v2883 = vpop.permute.xlu0 %2882
  %2884 = vrot.lane.b32.xlu0 %v2803, 21
  %v2885 = vpop.permute.xlu0 %2884
  %2886 = vrot.lane.b32.xlu0 %v2804, 21
  %v2887 = vpop.permute.xlu0 %2886
  %2888 = vrot.lane.b32.xlu0 %v2805, 21
  %v2889 = vpop.permute.xlu0 %2888
  %2890 = vrot.lane.b32.xlu0 %v2814, 21
  %v2891 = vpop.permute.xlu0 %2890
  %2892 = vrot.lane.b32.xlu0 %v2815, 21
  %v2893 = vpop.permute.xlu0 %2892
  %2894 = vrot.lane.b32.xlu0 %v2816, 21
  %v2895 = vpop.permute.xlu0 %2894
  %2896 = vrot.lane.b32.xlu0 %v2817, 21
  %v2897 = vpop.permute.xlu0 %2896
  %2898 = vrot.lane.b32.xlu0 %v2826, 21
  %v2899 = vpop.permute.xlu0 %2898
  %2900 = vrot.lane.b32.xlu0 %v2827, 21
  %v2901 = vpop.permute.xlu0 %2900
  %2902 = vrot.lane.b32.xlu0 %v2828, 21
  %v2903 = vpop.permute.xlu0 %2902
  %2904 = vrot.lane.b32.xlu0 %v2829, 21
  %v2905 = vpop.permute.xlu0 %2904
  %2906 = vrot.lane.b32.xlu0 %v2838, 21
  %v2907 = vpop.permute.xlu0 %2906
  %2908 = vrot.lane.b32.xlu0 %v2839, 21
  %v2909 = vpop.permute.xlu0 %2908
  %2910 = vrot.lane.b32.xlu0 %v2840, 21
  %v2911 = vpop.permute.xlu0 %2910
  %2912 = vrot.lane.b32.xlu0 %v2841, 21
  %v2913 = vpop.permute.xlu0 %2912
  %vm2950 = vcmask 195752
  %2951 = vst.msk [vmem:[#allocation2] sm:$0xff] %vm2950, %v2843
  %2952 = vst.msk [vmem:[#allocation2 + $0x8] sm:$0xff] %vm2950, %v2845
  %2953 = vst.msk [vmem:[#allocation2 + $0x10] sm:$0xff] %vm2950, %v2847
  %2954 = vst.msk [vmem:[#allocation2 + $0x18] sm:$0xff] %vm2950, %v2849
  %2955 = vst.msk [vmem:[#allocation2 + $0x20] sm:$0xff] %vm2950, %v2851
  %2956 = vst.msk [vmem:[#allocation2 + $0x28] sm:$0xff] %vm2950, %v2853
  %2957 = vst.msk [vmem:[#allocation2 + $0x30] sm:$0xff] %vm2950, %v2855
  %2958 = vst.msk [vmem:[#allocation2 + $0x38] sm:$0xff] %vm2950, %v2857
  %2959 = vst.msk [vmem:[#allocation2 + $0x40] sm:$0xff] %vm2950, %v2859
  %2960 = vst.msk [vmem:[#allocation2 + $0x48] sm:$0xff] %vm2950, %v2861
  %2961 = vst.msk [vmem:[#allocation2 + $0x50] sm:$0xff] %vm2950, %v2863
  %2962 = vst.msk [vmem:[#allocation2 + $0x58] sm:$0xff] %vm2950, %v2865
  %2963 = vst.msk [vmem:[#allocation2 + $0x60] sm:$0xff] %vm2950, %v2867
  %2964 = vst.msk [vmem:[#allocation2 + $0x68] sm:$0xff] %vm2950, %v2869
  %2965 = vst.msk [vmem:[#allocation2 + $0x70] sm:$0xff] %vm2950, %v2871
  %2966 = vst.msk [vmem:[#allocation2 + $0x78] sm:$0xff] %vm2950, %v2873
  %2967 = vst.msk [vmem:[#allocation2 + $0x80] sm:$0xff] %vm2950, %v2875
  %2968 = vst.msk [vmem:[#allocation2 + $0x88] sm:$0xff] %vm2950, %v2877
  %2969 = vst.msk [vmem:[#allocation2 + $0x90] sm:$0xff] %vm2950, %v2879
  %2970 = vst.msk [vmem:[#allocation2 + $0x98] sm:$0xff] %vm2950, %v2881
  %2971 = vst.msk [vmem:[#allocation2 + $0xa0] sm:$0xff] %vm2950, %v2883
  %2972 = vst.msk [vmem:[#allocation2 + $0xa8] sm:$0xff] %vm2950, %v2885
  %2973 = vst.msk [vmem:[#allocation2 + $0xb0] sm:$0xff] %vm2950, %v2887
  %2974 = vst.msk [vmem:[#allocation2 + $0xb8] sm:$0xff] %vm2950, %v2889
  %2975 = vst.msk [vmem:[#allocation2 + $0xc0] sm:$0xff] %vm2950, %v2891
  %2976 = vst.msk [vmem:[#allocation2 + $0xc8] sm:$0xff] %vm2950, %v2893
  %2977 = vst.msk [vmem:[#allocation2 + $0xd0] sm:$0xff] %vm2950, %v2895
  %2978 = vst.msk [vmem:[#allocation2 + $0xd8] sm:$0xff] %vm2950, %v2897
  %2979 = vst.msk [vmem:[#allocation2 + $0xe0] sm:$0xff] %vm2950, %v2899
  %2980 = vst.msk [vmem:[#allocation2 + $0xe8] sm:$0xff] %vm2950, %v2901
  %2981 = vst.msk [vmem:[#allocation2 + $0xf0] sm:$0xff] %vm2950, %v2903
  %2982 = vst.msk [vmem:[#allocation2 + $0xf8] sm:$0xff] %vm2950, %v2905
  %2983 = vst.msk [vmem:[#allocation2 + $0x100] sm:$0xff] %vm2950, %v2907
  %2984 = vst.msk [vmem:[#allocation2 + $0x108] sm:$0xff] %vm2950, %v2909
  %2985 = vst.msk [vmem:[#allocation2 + $0x110] sm:$0xff] %vm2950, %v2911
  %2986 = vst.msk [vmem:[#allocation2 + $0x118] sm:$0xff] %vm2950, %v2913
  %v2987 = vld [vmem:[%s1846 + $0x3] sm:$0xff]
  %v2988 = vld [vmem:[%s1846 + $0xb] sm:$0xf]
  %v2989 = vld [vmem:[%s1846 + $0x13] sm:$0xff]
  %v2990 = vld [vmem:[%s1846 + $0x1b] sm:$0xf]
  %v2991 = vld [vmem:[%s1846 + $0x23] sm:$0xff]
  %v2992 = vld [vmem:[%s1846 + $0x2b] sm:$0xf]
  %v2993 = vld [vmem:[%s1846 + $0x33] sm:$0xff]
  %v2994 = vld [vmem:[%s1846 + $0x3b] sm:$0xf]
  %v2995 = vld [vmem:[%s1846 + $0x43] sm:$0xff]
  %v2996 = vld [vmem:[%s1846 + $0x4b] sm:$0xf]
  %v2997 = vld [vmem:[%s1846 + $0x53] sm:$0xff]
  %v2998 = vld [vmem:[%s1846 + $0x5b] sm:$0xf]
  %v2999 = vld [vmem:[%s1846 + $0x63] sm:$0xff]
  %v3000 = vld [vmem:[%s1846 + $0x6b] sm:$0xf]
  %v3001 = vld [vmem:[%s1846 + $0x73] sm:$0xff]
  %v3002 = vld [vmem:[%s1846 + $0x7b] sm:$0xf]
  %v3003 = vld [vmem:[%s1846 + $0x83] sm:$0xff]
  %v3004 = vld [vmem:[%s1846 + $0x8b] sm:$0xf]
  %v3005 = vld [vmem:[%s1846 + $0x93] sm:$0xff]
  %v3006 = vld [vmem:[%s1846 + $0x9b] sm:$0xf]
  %v3007 = vld [vmem:[%s1846 + $0xa3] sm:$0xff]
  %v3008 = vld [vmem:[%s1846 + $0xab] sm:$0xf]
  %v3009 = vld [vmem:[%s1846 + $0xb3] sm:$0xff]
  %v3010 = vld [vmem:[%s1846 + $0xbb] sm:$0xf]
  %v3011 = vld [vmem:[%s1846 + $0x103] sm:$0xff]
  %v3012 = vld [vmem:[%s1846 + $0x10b] sm:$0xf]
  %v3013 = vld [vmem:[%s1846 + $0x113] sm:$0xff]
  %v3014 = vld [vmem:[%s1846 + $0x11b] sm:$0xf]
  %v3015 = vld [vmem:[%s1846 + $0x123] sm:$0xff]
  %v3016 = vld [vmem:[%s1846 + $0x12b] sm:$0xf]
  %v3017 = vld [vmem:[%s1846 + $0x133] sm:$0xff]
  %v3018 = vld [vmem:[%s1846 + $0x13b] sm:$0xf]
  %v3019 = vld [vmem:[%s1846 + $0x143] sm:$0xff]
  %v3020 = vld [vmem:[%s1846 + $0x14b] sm:$0xf]
  %v3021 = vld [vmem:[%s1846 + $0x153] sm:$0xff]
  %v3022 = vld [vmem:[%s1846 + $0x15b] sm:$0xf]
  %v3023 = vld [vmem:[%s1846 + $0x163] sm:$0xff]
  %v3024 = vld [vmem:[%s1846 + $0x16b] sm:$0xf]
  %v3025 = vld [vmem:[%s1846 + $0x173] sm:$0xff]
  %v3026 = vld [vmem:[%s1846 + $0x17b] sm:$0xf]
  %v3027 = vld [vmem:[%s1846 + $0x183] sm:$0xff]
  %v3028 = vld [vmem:[%s1846 + $0x18b] sm:$0xf]
  %v3029 = vld [vmem:[%s1846 + $0x193] sm:$0xff]
  %v3030 = vld [vmem:[%s1846 + $0x19b] sm:$0xf]
  %v3031 = vld [vmem:[%s1846 + $0x1a3] sm:$0xff]
  %v3032 = vld [vmem:[%s1846 + $0x1ab] sm:$0xf]
  %v3033 = vld [vmem:[%s1846 + $0x1b3] sm:$0xff]
  %v3034 = vld [vmem:[%s1846 + $0x1bb] sm:$0xf]
  %v3083 = vrot.slane %v2987, 4
  %v3084 = vrot.slane %v2989, 4
  %v3085 = vrot.slane %v2991, 4
  %v3086 = vrot.slane %v2993, 4
  %v3087 = vrot.slane %v2995, 4
  %v3088 = vrot.slane %v2997, 4
  %v3089 = vrot.slane %v2999, 4
  %v3090 = vrot.slane %v3001, 4
  %v3091 = vrot.slane %v3003, 4
  %v3092 = vrot.slane %v3005, 4
  %v3093 = vrot.slane %v3007, 4
  %v3094 = vrot.slane %v3009, 4
  %v3095 = vrot.slane %v3011, 4
  %v3096 = vrot.slane %v3013, 4
  %v3097 = vrot.slane %v3015, 4
  %v3098 = vrot.slane %v3017, 4
  %v3099 = vrot.slane %v3019, 4
  %v3100 = vrot.slane %v3021, 4
  %v3101 = vrot.slane %v3023, 4
  %v3102 = vrot.slane %v3025, 4
  %v3103 = vrot.slane %v3027, 4
  %v3104 = vrot.slane %v3029, 4
  %v3105 = vrot.slane %v3031, 4
  %v3106 = vrot.slane %v3033, 4
  %3107 = vst [vmem:[#allocation1] ss:$2 sm:$0xff] %v2987
  %s3108 = scalar_lea.vmem [#allocation1], 1
  %3109 = vst [vmem:[%s3108] ss:$2 sm:$0xff] %v3083
  %s3110 = scalar_lea.vmem [#allocation1], 16
  %3111 = vst [vmem:[%s3110] ss:$2 sm:$0xff] %v2988
  %s3112 = scalar_lea.vmem [#allocation1], 17
  %3113 = vst [vmem:[%s3112] ss:$2 sm:$0xff] %v2989
  %s3114 = scalar_lea.vmem [#allocation1], 32
  %3115 = vst [vmem:[%s3114] ss:$2 sm:$0xff] %v3084
  %s3116 = scalar_lea.vmem [#allocation1], 33
  %3117 = vst [vmem:[%s3116] ss:$2 sm:$0xff] %v2990
  %s3118 = scalar_lea.vmem [#allocation1], 48
  %3119 = vst [vmem:[%s3118] ss:$2 sm:$0xff] %v2991
  %s3120 = scalar_lea.vmem [#allocation1], 49
  %3121 = vst [vmem:[%s3120] ss:$2 sm:$0xff] %v3085
  %v3122 = vld.sshfl [vmem:[#allocation1] sm:$0xff pattern:$0x75316420]
  %v3123 = vld.sshfl [vmem:[#allocation1 + $0x10] sm:$0xff pattern:$0x75316420]
  %v3124 = vld.sshfl [vmem:[#allocation1 + $0x20] sm:$0xff pattern:$0x75316420]
  %v3125 = vld.sshfl [vmem:[#allocation1 + $0x30] sm:$0xff pattern:$0x75316420]
  %3126 = vst [vmem:[#allocation1] ss:$2 sm:$0xff] %v2992
  %3127 = vst [vmem:[%s3108] ss:$2 sm:$0xff] %v2993
  %3128 = vst [vmem:[%s3110] ss:$2 sm:$0xff] %v3086
  %3129 = vst [vmem:[%s3112] ss:$2 sm:$0xff] %v2994
  %3130 = vst [vmem:[%s3114] ss:$2 sm:$0xff] %v2995
  %3131 = vst [vmem:[%s3116] ss:$2 sm:$0xff] %v3087
  %3132 = vst [vmem:[%s3118] ss:$2 sm:$0xff] %v2996
  %3133 = vst [vmem:[%s3120] ss:$2 sm:$0xff] %v2997
  %v3134 = vld.sshfl [vmem:[#allocation1] sm:$0xff pattern:$0x75316420]
  %v3135 = vld.sshfl [vmem:[#allocation1 + $0x10] sm:$0xff pattern:$0x75316420]
  %v3136 = vld.sshfl [vmem:[#allocation1 + $0x20] sm:$0xff pattern:$0x75316420]
  %v3137 = vld.sshfl [vmem:[#allocation1 + $0x30] sm:$0xff pattern:$0x75316420]
  %3138 = vst [vmem:[#allocation1] ss:$2 sm:$0xff] %v3088
  %3139 = vst [vmem:[%s3108] ss:$2 sm:$0xff] %v2998
  %3140 = vst [vmem:[%s3110] ss:$2 sm:$0xff] %v2999
  %3141 = vst [vmem:[%s3112] ss:$2 sm:$0xff] %v3089
  %3142 = vst [vmem:[%s3114] ss:$2 sm:$0xff] %v3000
  %3143 = vst [vmem:[%s3116] ss:$2 sm:$0xff] %v3001
  %3144 = vst [vmem:[%s3118] ss:$2 sm:$0xff] %v3090
  %3145 = vst [vmem:[%s3120] ss:$2 sm:$0xff] %v3002
  %v3146 = vld.sshfl [vmem:[#allocation1] sm:$0xff pattern:$0x75316420]
  %v3147 = vld.sshfl [vmem:[#allocation1 + $0x10] sm:$0xff pattern:$0x75316420]
  %v3148 = vld.sshfl [vmem:[#allocation1 + $0x20] sm:$0xff pattern:$0x75316420]
  %v3149 = vld.sshfl [vmem:[#allocation1 + $0x30] sm:$0xff pattern:$0x75316420]
  %3150 = vst [vmem:[#allocation1] ss:$2 sm:$0xff] %v3003
  %3151 = vst [vmem:[%s3108] ss:$2 sm:$0xff] %v3091
  %3152 = vst [vmem:[%s3110] ss:$2 sm:$0xff] %v3004
  %3153 = vst [vmem:[%s3112] ss:$2 sm:$0xff] %v3005
  %3154 = vst [vmem:[%s3114] ss:$2 sm:$0xff] %v3092
  %3155 = vst [vmem:[%s3116] ss:$2 sm:$0xff] %v3006
  %3156 = vst [vmem:[%s3118] ss:$2 sm:$0xff] %v3007
  %3157 = vst [vmem:[%s3120] ss:$2 sm:$0xff] %v3093
  %v3158 = vld.sshfl [vmem:[#allocation1] sm:$0xff pattern:$0x75316420]
  %v3159 = vld.sshfl [vmem:[#allocation1 + $0x10] sm:$0xff pattern:$0x75316420]
  %v3160 = vld.sshfl [vmem:[#allocation1 + $0x20] sm:$0xff pattern:$0x75316420]
  %v3161 = vld.sshfl [vmem:[#allocation1 + $0x30] sm:$0xff pattern:$0x75316420]
  %3162 = vst [vmem:[#allocation1] ss:$2 sm:$0xff] %v3008
  %3163 = vst [vmem:[%s3108] ss:$2 sm:$0xff] %v3009
  %3164 = vst [vmem:[%s3110] ss:$2 sm:$0xff] %v3094
  %3165 = vst [vmem:[%s3112] ss:$2 sm:$0xff] %v3010
  %3166 = vst [vmem:[%s3114] ss:$2 sm:$0xff] %v3011
  %3167 = vst [vmem:[%s3116] ss:$2 sm:$0xff] %v3095
  %3168 = vst [vmem:[%s3118] ss:$2 sm:$0xff] %v3012
  %3169 = vst [vmem:[%s3120] ss:$2 sm:$0xff] %v3013
  %v3170 = vld.sshfl [vmem:[#allocation1] sm:$0xff pattern:$0x75316420]
  %v3171 = vld.sshfl [vmem:[#allocation1 + $0x10] sm:$0xff pattern:$0x75316420]
  %v3172 = vld.sshfl [vmem:[#allocation1 + $0x20] sm:$0xff pattern:$0x75316420]
  %v3173 = vld.sshfl [vmem:[#allocation1 + $0x30] sm:$0xff pattern:$0x75316420]
  %3174 = vst [vmem:[#allocation1] ss:$2 sm:$0xff] %v3096
  %3175 = vst [vmem:[%s3108] ss:$2 sm:$0xff] %v3014
  %3176 = vst [vmem:[%s3110] ss:$2 sm:$0xff] %v3015
  %3177 = vst [vmem:[%s3112] ss:$2 sm:$0xff] %v3097
  %3178 = vst [vmem:[%s3114] ss:$2 sm:$0xff] %v3016
  %3179 = vst [vmem:[%s3116] ss:$2 sm:$0xff] %v3017
  %3180 = vst [vmem:[%s3118] ss:$2 sm:$0xff] %v3098
  %3181 = vst [vmem:[%s3120] ss:$2 sm:$0xff] %v3018
  %v3182 = vld.sshfl [vmem:[#allocation1] sm:$0xff pattern:$0x75316420]
  %v3183 = vld.sshfl [vmem:[#allocation1 + $0x10] sm:$0xff pattern:$0x75316420]
  %v3184 = vld.sshfl [vmem:[#allocation1 + $0x20] sm:$0xff pattern:$0x75316420]
  %v3185 = vld.sshfl [vmem:[#allocation1 + $0x30] sm:$0xff pattern:$0x75316420]
  %3186 = vst [vmem:[#allocation1] ss:$2 sm:$0xff] %v3019
  %3187 = vst [vmem:[%s3108] ss:$2 sm:$0xff] %v3099
  %3188 = vst [vmem:[%s3110] ss:$2 sm:$0xff] %v3020
  %3189 = vst [vmem:[%s3112] ss:$2 sm:$0xff] %v3021
  %3190 = vst [vmem:[%s3114] ss:$2 sm:$0xff] %v3100
  %3191 = vst [vmem:[%s3116] ss:$2 sm:$0xff] %v3022
  %3192 = vst [vmem:[%s3118] ss:$2 sm:$0xff] %v3023
  %3193 = vst [vmem:[%s3120] ss:$2 sm:$0xff] %v3101
  %v3194 = vld.sshfl [vmem:[#allocation1] sm:$0xff pattern:$0x75316420]
  %v3195 = vld.sshfl [vmem:[#allocation1 + $0x10] sm:$0xff pattern:$0x75316420]
  %v3196 = vld.sshfl [vmem:[#allocation1 + $0x20] sm:$0xff pattern:$0x75316420]
  %v3197 = vld.sshfl [vmem:[#allocation1 + $0x30] sm:$0xff pattern:$0x75316420]
  %3198 = vst [vmem:[#allocation1] ss:$2 sm:$0xff] %v3024
  %3199 = vst [vmem:[%s3108] ss:$2 sm:$0xff] %v3025
  %3200 = vst [vmem:[%s3110] ss:$2 sm:$0xff] %v3102
  %3201 = vst [vmem:[%s3112] ss:$2 sm:$0xff] %v3026
  %3202 = vst [vmem:[%s3114] ss:$2 sm:$0xff] %v3027
  %3203 = vst [vmem:[%s3116] ss:$2 sm:$0xff] %v3103
  %3204 = vst [vmem:[%s3118] ss:$2 sm:$0xff] %v3028
  %3205 = vst [vmem:[%s3120] ss:$2 sm:$0xff] %v3029
  %v3206 = vld.sshfl [vmem:[#allocation1] sm:$0xff pattern:$0x75316420]
  %v3207 = vld.sshfl [vmem:[#allocation1 + $0x10] sm:$0xff pattern:$0x75316420]
  %v3208 = vld.sshfl [vmem:[#allocation1 + $0x20] sm:$0xff pattern:$0x75316420]
  %v3209 = vld.sshfl [vmem:[#allocation1 + $0x30] sm:$0xff pattern:$0x75316420]
  %3210 = vst [vmem:[#allocation1] ss:$2 sm:$0xff] %v3104
  %3211 = vst [vmem:[%s3108] ss:$2 sm:$0xff] %v3030
  %3212 = vst [vmem:[%s3110] ss:$2 sm:$0xff] %v3031
  %3213 = vst [vmem:[%s3112] ss:$2 sm:$0xff] %v3105
  %3214 = vst [vmem:[%s3114] ss:$2 sm:$0xff] %v3032
  %3215 = vst [vmem:[%s3116] ss:$2 sm:$0xff] %v3033
  %3216 = vst [vmem:[%s3118] ss:$2 sm:$0xff] %v3106
  %3217 = vst [vmem:[%s3120] ss:$2 sm:$0xff] %v3034
  %v3218 = vld.sshfl [vmem:[#allocation1] sm:$0xff pattern:$0x75316420]
  %v3219 = vld.sshfl [vmem:[#allocation1 + $0x10] sm:$0xff pattern:$0x75316420]
  %v3220 = vld.sshfl [vmem:[#allocation1 + $0x20] sm:$0xff pattern:$0x75316420]
  %v3221 = vld.sshfl [vmem:[#allocation1 + $0x30] sm:$0xff pattern:$0x75316420]
  %3222 = vrot.lane.b32.xlu0 %v3122, 24
  %v3223 = vpop.permute.xlu0 %3222
  %3224 = vrot.lane.b32.xlu0 %v3123, 24
  %v3225 = vpop.permute.xlu0 %3224
  %3226 = vrot.lane.b32.xlu0 %v3124, 24
  %v3227 = vpop.permute.xlu0 %3226
  %3228 = vrot.lane.b32.xlu0 %v3125, 24
  %v3229 = vpop.permute.xlu0 %3228
  %3230 = vrot.lane.b32.xlu0 %v3134, 24
  %v3231 = vpop.permute.xlu0 %3230
  %3232 = vrot.lane.b32.xlu0 %v3135, 24
  %v3233 = vpop.permute.xlu0 %3232
  %3234 = vrot.lane.b32.xlu0 %v3136, 24
  %v3235 = vpop.permute.xlu0 %3234
  %3236 = vrot.lane.b32.xlu0 %v3137, 24
  %v3237 = vpop.permute.xlu0 %3236
  %3238 = vrot.lane.b32.xlu0 %v3146, 24
  %v3239 = vpop.permute.xlu0 %3238
  %3240 = vrot.lane.b32.xlu0 %v3147, 24
  %v3241 = vpop.permute.xlu0 %3240
  %3242 = vrot.lane.b32.xlu0 %v3148, 24
  %v3243 = vpop.permute.xlu0 %3242
  %3244 = vrot.lane.b32.xlu0 %v3149, 24
  %v3245 = vpop.permute.xlu0 %3244
  %3246 = vrot.lane.b32.xlu0 %v3158, 24
  %v3247 = vpop.permute.xlu0 %3246
  %3248 = vrot.lane.b32.xlu0 %v3159, 24
  %v3249 = vpop.permute.xlu0 %3248
  %3250 = vrot.lane.b32.xlu0 %v3160, 24
  %v3251 = vpop.permute.xlu0 %3250
  %3252 = vrot.lane.b32.xlu0 %v3161, 24
  %v3253 = vpop.permute.xlu0 %3252
  %3254 = vrot.lane.b32.xlu0 %v3170, 24
  %v3255 = vpop.permute.xlu0 %3254
  %3256 = vrot.lane.b32.xlu0 %v3171, 24
  %v3257 = vpop.permute.xlu0 %3256
  %3258 = vrot.lane.b32.xlu0 %v3172, 24
  %v3259 = vpop.permute.xlu0 %3258
  %3260 = vrot.lane.b32.xlu0 %v3173, 24
  %v3261 = vpop.permute.xlu0 %3260
  %3262 = vrot.lane.b32.xlu0 %v3182, 24
  %v3263 = vpop.permute.xlu0 %3262
  %3264 = vrot.lane.b32.xlu0 %v3183, 24
  %v3265 = vpop.permute.xlu0 %3264
  %3266 = vrot.lane.b32.xlu0 %v3184, 24
  %v3267 = vpop.permute.xlu0 %3266
  %3268 = vrot.lane.b32.xlu0 %v3185, 24
  %v3269 = vpop.permute.xlu0 %3268
  %3270 = vrot.lane.b32.xlu0 %v3194, 24
  %v3271 = vpop.permute.xlu0 %3270
  %3272 = vrot.lane.b32.xlu0 %v3195, 24
  %v3273 = vpop.permute.xlu0 %3272
  %3274 = vrot.lane.b32.xlu0 %v3196, 24
  %v3275 = vpop.permute.xlu0 %3274
  %3276 = vrot.lane.b32.xlu0 %v3197, 24
  %v3277 = vpop.permute.xlu0 %3276
  %3278 = vrot.lane.b32.xlu0 %v3206, 24
  %v3279 = vpop.permute.xlu0 %3278
  %3280 = vrot.lane.b32.xlu0 %v3207, 24
  %v3281 = vpop.permute.xlu0 %3280
  %3282 = vrot.lane.b32.xlu0 %v3208, 24
  %v3283 = vpop.permute.xlu0 %3282
  %3284 = vrot.lane.b32.xlu0 %v3209, 24
  %v3285 = vpop.permute.xlu0 %3284
  %3286 = vrot.lane.b32.xlu0 %v3218, 24
  %v3287 = vpop.permute.xlu0 %3286
  %3288 = vrot.lane.b32.xlu0 %v3219, 24
  %v3289 = vpop.permute.xlu0 %3288
  %3290 = vrot.lane.b32.xlu0 %v3220, 24
  %v3291 = vpop.permute.xlu0 %3290
  %3292 = vrot.lane.b32.xlu0 %v3221, 24
  %v3293 = vpop.permute.xlu0 %3292
  %vm3330 = vcmask 220352
  %3331 = vst.msk [vmem:[#allocation2] sm:$0xff] %vm3330, %v3223
  %3332 = vst.msk [vmem:[#allocation2 + $0x8] sm:$0xff] %vm3330, %v3225
  %3333 = vst.msk [vmem:[#allocation2 + $0x10] sm:$0xff] %vm3330, %v3227
  %3334 = vst.msk [vmem:[#allocation2 + $0x18] sm:$0xff] %vm3330, %v3229
  %3335 = vst.msk [vmem:[#allocation2 + $0x20] sm:$0xff] %vm3330, %v3231
  %3336 = vst.msk [vmem:[#allocation2 + $0x28] sm:$0xff] %vm3330, %v3233
  %3337 = vst.msk [vmem:[#allocation2 + $0x30] sm:$0xff] %vm3330, %v3235
  %3338 = vst.msk [vmem:[#allocation2 + $0x38] sm:$0xff] %vm3330, %v3237
  %3339 = vst.msk [vmem:[#allocation2 + $0x40] sm:$0xff] %vm3330, %v3239
  %3340 = vst.msk [vmem:[#allocation2 + $0x48] sm:$0xff] %vm3330, %v3241
  %3341 = vst.msk [vmem:[#allocation2 + $0x50] sm:$0xff] %vm3330, %v3243
  %3342 = vst.msk [vmem:[#allocation2 + $0x58] sm:$0xff] %vm3330, %v3245
  %3343 = vst.msk [vmem:[#allocation2 + $0x60] sm:$0xff] %vm3330, %v3247
  %3344 = vst.msk [vmem:[#allocation2 + $0x68] sm:$0xff] %vm3330, %v3249
  %3345 = vst.msk [vmem:[#allocation2 + $0x70] sm:$0xff] %vm3330, %v3251
  %3346 = vst.msk [vmem:[#allocation2 + $0x78] sm:$0xff] %vm3330, %v3253
  %3347 = vst.msk [vmem:[#allocation2 + $0x80] sm:$0xff] %vm3330, %v3255
  %3348 = vst.msk [vmem:[#allocation2 + $0x88] sm:$0xff] %vm3330, %v3257
  %3349 = vst.msk [vmem:[#allocation2 + $0x90] sm:$0xff] %vm3330, %v3259
  %3350 = vst.msk [vmem:[#allocation2 + $0x98] sm:$0xff] %vm3330, %v3261
  %3351 = vst.msk [vmem:[#allocation2 + $0xa0] sm:$0xff] %vm3330, %v3263
  %3352 = vst.msk [vmem:[#allocation2 + $0xa8] sm:$0xff] %vm3330, %v3265
  %3353 = vst.msk [vmem:[#allocation2 + $0xb0] sm:$0xff] %vm3330, %v3267
  %3354 = vst.msk [vmem:[#allocation2 + $0xb8] sm:$0xff] %vm3330, %v3269
  %3355 = vst.msk [vmem:[#allocation2 + $0xc0] sm:$0xff] %vm3330, %v3271
  %3356 = vst.msk [vmem:[#allocation2 + $0xc8] sm:$0xff] %vm3330, %v3273
  %3357 = vst.msk [vmem:[#allocation2 + $0xd0] sm:$0xff] %vm3330, %v3275
  %3358 = vst.msk [vmem:[#allocation2 + $0xd8] sm:$0xff] %vm3330, %v3277
  %3359 = vst.msk [vmem:[#allocation2 + $0xe0] sm:$0xff] %vm3330, %v3279
  %3360 = vst.msk [vmem:[#allocation2 + $0xe8] sm:$0xff] %vm3330, %v3281
  %3361 = vst.msk [vmem:[#allocation2 + $0xf0] sm:$0xff] %vm3330, %v3283
  %3362 = vst.msk [vmem:[#allocation2 + $0xf8] sm:$0xff] %vm3330, %v3285
  %3363 = vst.msk [vmem:[#allocation2 + $0x100] sm:$0xff] %vm3330, %v3287
  %3364 = vst.msk [vmem:[#allocation2 + $0x108] sm:$0xff] %vm3330, %v3289
  %3365 = vst.msk [vmem:[#allocation2 + $0x110] sm:$0xff] %vm3330, %v3291
  %3366 = vst.msk [vmem:[#allocation2 + $0x118] sm:$0xff] %vm3330, %v3293
  %v3367 = vld [vmem:[%s1846 + $0x4] sm:$0xff]
  %v3368 = vld [vmem:[%s1846 + $0xc] sm:$0xf]
  %v3369 = vld [vmem:[%s1846 + $0x14] sm:$0xff]
  %v3370 = vld [vmem:[%s1846 + $0x1c] sm:$0xf]
  %v3371 = vld [vmem:[%s1846 + $0x24] sm:$0xff]
  %v3372 = vld [vmem:[%s1846 + $0x2c] sm:$0xf]
  %v3373 = vld [vmem:[%s1846 + $0x34] sm:$0xff]
  %v3374 = vld [vmem:[%s1846 + $0x3c] sm:$0xf]
  %v3375 = vld [vmem:[%s1846 + $0x44] sm:$0xff]
  %v3376 = vld [vmem:[%s1846 + $0x4c] sm:$0xf]
  %v3377 = vld [vmem:[%s1846 + $0x54] sm:$0xff]
  %v3378 = vld [vmem:[%s1846 + $0x5c] sm:$0xf]
  %v3379 = vld [vmem:[%s1846 + $0x64] sm:$0xff]
  %v3380 = vld [vmem:[%s1846 + $0x6c] sm:$0xf]
  %v3381 = vld [vmem:[%s1846 + $0x74] sm:$0xff]
  %v3382 = vld [vmem:[%s1846 + $0x7c] sm:$0xf]
  %v3383 = vld [vmem:[%s1846 + $0x84] sm:$0xff]
  %v3384 = vld [vmem:[%s1846 + $0x8c] sm:$0xf]
  %v3385 = vld [vmem:[%s1846 + $0x94] sm:$0xff]
  %v3386 = vld [vmem:[%s1846 + $0x9c] sm:$0xf]
  %v3387 = vld [vmem:[%s1846 + $0xa4] sm:$0xff]
  %v3388 = vld [vmem:[%s1846 + $0xac] sm:$0xf]
  %v3389 = vld [vmem:[%s1846 + $0xb4] sm:$0xff]
  %v3390 = vld [vmem:[%s1846 + $0xbc] sm:$0xf]
  %v3391 = vld [vmem:[%s1846 + $0x104] sm:$0xff]
  %v3392 = vld [vmem:[%s1846 + $0x10c] sm:$0xf]
  %v3393 = vld [vmem:[%s1846 + $0x114] sm:$0xff]
  %v3394 = vld [vmem:[%s1846 + $0x11c] sm:$0xf]
  %v3395 = vld [vmem:[%s1846 + $0x124] sm:$0xff]
  %v3396 = vld [vmem:[%s1846 + $0x12c] sm:$0xf]
  %v3397 = vld [vmem:[%s1846 + $0x134] sm:$0xff]
  %v3398 = vld [vmem:[%s1846 + $0x13c] sm:$0xf]
  %v3399 = vld [vmem:[%s1846 + $0x144] sm:$0xff]
  %v3400 = vld [vmem:[%s1846 + $0x14c] sm:$0xf]
  %v3401 = vld [vmem:[%s1846 + $0x154] sm:$0xff]
  %v3402 = vld [vmem:[%s1846 + $0x15c] sm:$0xf]
  %v3403 = vld [vmem:[%s1846 + $0x164] sm:$0xff]
  %v3404 = vld [vmem:[%s1846 + $0x16c] sm:$0xf]
  %v3405 = vld [vmem:[%s1846 + $0x174] sm:$0xff]
  %v3406 = vld [vmem:[%s1846 + $0x17c] sm:$0xf]
  %v3407 = vld [vmem:[%s1846 + $0x184] sm:$0xff]
  %v3408 = vld [vmem:[%s1846 + $0x18c] sm:$0xf]
  %v3409 = vld [vmem:[%s1846 + $0x194] sm:$0xff]
  %v3410 = vld [vmem:[%s1846 + $0x19c] sm:$0xf]
  %v3411 = vld [vmem:[%s1846 + $0x1a4] sm:$0xff]
  %v3412 = vld [vmem:[%s1846 + $0x1ac] sm:$0xf]
  %v3413 = vld [vmem:[%s1846 + $0x1b4] sm:$0xff]
  %v3414 = vld [vmem:[%s1846 + $0x1bc] sm:$0xf]
  %v3463 = vrot.slane %v3367, 4
  %v3464 = vrot.slane %v3369, 4
  %v3465 = vrot.slane %v3371, 4
  %v3466 = vrot.slane %v3373, 4
  %v3467 = vrot.slane %v3375, 4
  %v3468 = vrot.slane %v3377, 4
  %v3469 = vrot.slane %v3379, 4
  %v3470 = vrot.slane %v3381, 4
  %v3471 = vrot.slane %v3383, 4
  %v3472 = vrot.slane %v3385, 4
  %v3473 = vrot.slane %v3387, 4
  %v3474 = vrot.slane %v3389, 4
  %v3475 = vrot.slane %v3391, 4
  %v3476 = vrot.slane %v3393, 4
  %v3477 = vrot.slane %v3395, 4
  %v3478 = vrot.slane %v3397, 4
  %v3479 = vrot.slane %v3399, 4
  %v3480 = vrot.slane %v3401, 4
  %v3481 = vrot.slane %v3403, 4
  %v3482 = vrot.slane %v3405, 4
  %v3483 = vrot.slane %v3407, 4
  %v3484 = vrot.slane %v3409, 4
  %v3485 = vrot.slane %v3411, 4
  %v3486 = vrot.slane %v3413, 4
  %3487 = vst [vmem:[#allocation1] ss:$2 sm:$0xff] %v3367
  %s3488 = scalar_lea.vmem [#allocation1], 1
  %3489 = vst [vmem:[%s3488] ss:$2 sm:$0xff] %v3463
  %s3490 = scalar_lea.vmem [#allocation1], 16
  %3491 = vst [vmem:[%s3490] ss:$2 sm:$0xff] %v3368
  %s3492 = scalar_lea.vmem [#allocation1], 17
  %3493 = vst [vmem:[%s3492] ss:$2 sm:$0xff] %v3369
  %s3494 = scalar_lea.vmem [#allocation1], 32
  %3495 = vst [vmem:[%s3494] ss:$2 sm:$0xff] %v3464
  %s3496 = scalar_lea.vmem [#allocation1], 33
  %3497 = vst [vmem:[%s3496] ss:$2 sm:$0xff] %v3370
  %s3498 = scalar_lea.vmem [#allocation1], 48
  %3499 = vst [vmem:[%s3498] ss:$2 sm:$0xff] %v3371
  %s3500 = scalar_lea.vmem [#allocation1], 49
  %3501 = vst [vmem:[%s3500] ss:$2 sm:$0xff] %v3465
  %v3502 = vld.sshfl [vmem:[#allocation1] sm:$0xff pattern:$0x75316420]
  %v3503 = vld.sshfl [vmem:[#allocation1 + $0x10] sm:$0xff pattern:$0x75316420]
  %v3504 = vld.sshfl [vmem:[#allocation1 + $0x20] sm:$0xff pattern:$0x75316420]
  %v3505 = vld.sshfl [vmem:[#allocation1 + $0x30] sm:$0xff pattern:$0x75316420]
  %3506 = vst [vmem:[#allocation1] ss:$2 sm:$0xff] %v3372
  %3507 = vst [vmem:[%s3488] ss:$2 sm:$0xff] %v3373
  %3508 = vst [vmem:[%s3490] ss:$2 sm:$0xff] %v3466
  %3509 = vst [vmem:[%s3492] ss:$2 sm:$0xff] %v3374
  %3510 = vst [vmem:[%s3494] ss:$2 sm:$0xff] %v3375
  %3511 = vst [vmem:[%s3496] ss:$2 sm:$0xff] %v3467
  %3512 = vst [vmem:[%s3498] ss:$2 sm:$0xff] %v3376
  %3513 = vst [vmem:[%s3500] ss:$2 sm:$0xff] %v3377
  %v3514 = vld.sshfl [vmem:[#allocation1] sm:$0xff pattern:$0x75316420]
  %v3515 = vld.sshfl [vmem:[#allocation1 + $0x10] sm:$0xff pattern:$0x75316420]
  %v3516 = vld.sshfl [vmem:[#allocation1 + $0x20] sm:$0xff pattern:$0x75316420]
  %v3517 = vld.sshfl [vmem:[#allocation1 + $0x30] sm:$0xff pattern:$0x75316420]
  %3518 = vst [vmem:[#allocation1] ss:$2 sm:$0xff] %v3468
  %3519 = vst [vmem:[%s3488] ss:$2 sm:$0xff] %v3378
  %3520 = vst [vmem:[%s3490] ss:$2 sm:$0xff] %v3379
  %3521 = vst [vmem:[%s3492] ss:$2 sm:$0xff] %v3469
  %3522 = vst [vmem:[%s3494] ss:$2 sm:$0xff] %v3380
  %3523 = vst [vmem:[%s3496] ss:$2 sm:$0xff] %v3381
  %3524 = vst [vmem:[%s3498] ss:$2 sm:$0xff] %v3470
  %3525 = vst [vmem:[%s3500] ss:$2 sm:$0xff] %v3382
  %v3526 = vld.sshfl [vmem:[#allocation1] sm:$0xff pattern:$0x75316420]
  %v3527 = vld.sshfl [vmem:[#allocation1 + $0x10] sm:$0xff pattern:$0x75316420]
  %v3528 = vld.sshfl [vmem:[#allocation1 + $0x20] sm:$0xff pattern:$0x75316420]
  %v3529 = vld.sshfl [vmem:[#allocation1 + $0x30] sm:$0xff pattern:$0x75316420]
  %3530 = vst [vmem:[#allocation1] ss:$2 sm:$0xff] %v3383
  %3531 = vst [vmem:[%s3488] ss:$2 sm:$0xff] %v3471
  %3532 = vst [vmem:[%s3490] ss:$2 sm:$0xff] %v3384
  %3533 = vst [vmem:[%s3492] ss:$2 sm:$0xff] %v3385
  %3534 = vst [vmem:[%s3494] ss:$2 sm:$0xff] %v3472
  %3535 = vst [vmem:[%s3496] ss:$2 sm:$0xff] %v3386
  %3536 = vst [vmem:[%s3498] ss:$2 sm:$0xff] %v3387
  %3537 = vst [vmem:[%s3500] ss:$2 sm:$0xff] %v3473
  %v3538 = vld.sshfl [vmem:[#allocation1] sm:$0xff pattern:$0x75316420]
  %v3539 = vld.sshfl [vmem:[#allocation1 + $0x10] sm:$0xff pattern:$0x75316420]
  %v3540 = vld.sshfl [vmem:[#allocation1 + $0x20] sm:$0xff pattern:$0x75316420]
  %v3541 = vld.sshfl [vmem:[#allocation1 + $0x30] sm:$0xff pattern:$0x75316420]
  %3542 = vst [vmem:[#allocation1] ss:$2 sm:$0xff] %v3388
  %3543 = vst [vmem:[%s3488] ss:$2 sm:$0xff] %v3389
  %3544 = vst [vmem:[%s3490] ss:$2 sm:$0xff] %v3474
  %3545 = vst [vmem:[%s3492] ss:$2 sm:$0xff] %v3390
  %3546 = vst [vmem:[%s3494] ss:$2 sm:$0xff] %v3391
  %3547 = vst [vmem:[%s3496] ss:$2 sm:$0xff] %v3475
  %3548 = vst [vmem:[%s3498] ss:$2 sm:$0xff] %v3392
  %3549 = vst [vmem:[%s3500] ss:$2 sm:$0xff] %v3393
  %v3550 = vld.sshfl [vmem:[#allocation1] sm:$0xff pattern:$0x75316420]
  %v3551 = vld.sshfl [vmem:[#allocation1 + $0x10] sm:$0xff pattern:$0x75316420]
  %v3552 = vld.sshfl [vmem:[#allocation1 + $0x20] sm:$0xff pattern:$0x75316420]
  %v3553 = vld.sshfl [vmem:[#allocation1 + $0x30] sm:$0xff pattern:$0x75316420]
  %3554 = vst [vmem:[#allocation1] ss:$2 sm:$0xff] %v3476
  %3555 = vst [vmem:[%s3488] ss:$2 sm:$0xff] %v3394
  %3556 = vst [vmem:[%s3490] ss:$2 sm:$0xff] %v3395
  %3557 = vst [vmem:[%s3492] ss:$2 sm:$0xff] %v3477
  %3558 = vst [vmem:[%s3494] ss:$2 sm:$0xff] %v3396
  %3559 = vst [vmem:[%s3496] ss:$2 sm:$0xff] %v3397
  %3560 = vst [vmem:[%s3498] ss:$2 sm:$0xff] %v3478
  %3561 = vst [vmem:[%s3500] ss:$2 sm:$0xff] %v3398
  %v3562 = vld.sshfl [vmem:[#allocation1] sm:$0xff pattern:$0x75316420]
  %v3563 = vld.sshfl [vmem:[#allocation1 + $0x10] sm:$0xff pattern:$0x75316420]
  %v3564 = vld.sshfl [vmem:[#allocation1 + $0x20] sm:$0xff pattern:$0x75316420]
  %v3565 = vld.sshfl [vmem:[#allocation1 + $0x30] sm:$0xff pattern:$0x75316420]
  %3566 = vst [vmem:[#allocation1] ss:$2 sm:$0xff] %v3399
  %3567 = vst [vmem:[%s3488] ss:$2 sm:$0xff] %v3479
  %3568 = vst [vmem:[%s3490] ss:$2 sm:$0xff] %v3400
  %3569 = vst [vmem:[%s3492] ss:$2 sm:$0xff] %v3401
  %3570 = vst [vmem:[%s3494] ss:$2 sm:$0xff] %v3480
  %3571 = vst [vmem:[%s3496] ss:$2 sm:$0xff] %v3402
  %3572 = vst [vmem:[%s3498] ss:$2 sm:$0xff] %v3403
  %3573 = vst [vmem:[%s3500] ss:$2 sm:$0xff] %v3481
  %v3574 = vld.sshfl [vmem:[#allocation1] sm:$0xff pattern:$0x75316420]
  %v3575 = vld.sshfl [vmem:[#allocation1 + $0x10] sm:$0xff pattern:$0x75316420]
  %v3576 = vld.sshfl [vmem:[#allocation1 + $0x20] sm:$0xff pattern:$0x75316420]
  %v3577 = vld.sshfl [vmem:[#allocation1 + $0x30] sm:$0xff pattern:$0x75316420]
  %3578 = vst [vmem:[#allocation1] ss:$2 sm:$0xff] %v3404
  %3579 = vst [vmem:[%s3488] ss:$2 sm:$0xff] %v3405
  %3580 = vst [vmem:[%s3490] ss:$2 sm:$0xff] %v3482
  %3581 = vst [vmem:[%s3492] ss:$2 sm:$0xff] %v3406
  %3582 = vst [vmem:[%s3494] ss:$2 sm:$0xff] %v3407
  %3583 = vst [vmem:[%s3496] ss:$2 sm:$0xff] %v3483
  %3584 = vst [vmem:[%s3498] ss:$2 sm:$0xff] %v3408
  %3585 = vst [vmem:[%s3500] ss:$2 sm:$0xff] %v3409
  %v3586 = vld.sshfl [vmem:[#allocation1] sm:$0xff pattern:$0x75316420]
  %v3587 = vld.sshfl [vmem:[#allocation1 + $0x10] sm:$0xff pattern:$0x75316420]
  %v3588 = vld.sshfl [vmem:[#allocation1 + $0x20] sm:$0xff pattern:$0x75316420]
  %v3589 = vld.sshfl [vmem:[#allocation1 + $0x30] sm:$0xff pattern:$0x75316420]
  %3590 = vst [vmem:[#allocation1] ss:$2 sm:$0xff] %v3484
  %3591 = vst [vmem:[%s3488] ss:$2 sm:$0xff] %v3410
  %3592 = vst [vmem:[%s3490] ss:$2 sm:$0xff] %v3411
  %3593 = vst [vmem:[%s3492] ss:$2 sm:$0xff] %v3485
  %3594 = vst [vmem:[%s3494] ss:$2 sm:$0xff] %v3412
  %3595 = vst [vmem:[%s3496] ss:$2 sm:$0xff] %v3413
  %3596 = vst [vmem:[%s3498] ss:$2 sm:$0xff] %v3486
  %3597 = vst [vmem:[%s3500] ss:$2 sm:$0xff] %v3414
  %v3598 = vld.sshfl [vmem:[#allocation1] sm:$0xff pattern:$0x75316420]
  %v3599 = vld.sshfl [vmem:[#allocation1 + $0x10] sm:$0xff pattern:$0x75316420]
  %v3600 = vld.sshfl [vmem:[#allocation1 + $0x20] sm:$0xff pattern:$0x75316420]
  %v3601 = vld.sshfl [vmem:[#allocation1 + $0x30] sm:$0xff pattern:$0x75316420]
  %3602 = vrot.lane.b32.xlu0 %v3502, 27
  %v3603 = vpop.permute.xlu0 %3602
  %3604 = vrot.lane.b32.xlu0 %v3503, 27
  %v3605 = vpop.permute.xlu0 %3604
  %3606 = vrot.lane.b32.xlu0 %v3504, 27
  %v3607 = vpop.permute.xlu0 %3606
  %3608 = vrot.lane.b32.xlu0 %v3505, 27
  %v3609 = vpop.permute.xlu0 %3608
  %3610 = vrot.lane.b32.xlu0 %v3514, 27
  %v3611 = vpop.permute.xlu0 %3610
  %3612 = vrot.lane.b32.xlu0 %v3515, 27
  %v3613 = vpop.permute.xlu0 %3612
  %3614 = vrot.lane.b32.xlu0 %v3516, 27
  %v3615 = vpop.permute.xlu0 %3614
  %3616 = vrot.lane.b32.xlu0 %v3517, 27
  %v3617 = vpop.permute.xlu0 %3616
  %3618 = vrot.lane.b32.xlu0 %v3526, 27
  %v3619 = vpop.permute.xlu0 %3618
  %3620 = vrot.lane.b32.xlu0 %v3527, 27
  %v3621 = vpop.permute.xlu0 %3620
  %3622 = vrot.lane.b32.xlu0 %v3528, 27
  %v3623 = vpop.permute.xlu0 %3622
  %3624 = vrot.lane.b32.xlu0 %v3529, 27
  %v3625 = vpop.permute.xlu0 %3624
  %3626 = vrot.lane.b32.xlu0 %v3538, 27
  %v3627 = vpop.permute.xlu0 %3626
  %3628 = vrot.lane.b32.xlu0 %v3539, 27
  %v3629 = vpop.permute.xlu0 %3628
  %3630 = vrot.lane.b32.xlu0 %v3540, 27
  %v3631 = vpop.permute.xlu0 %3630
  %3632 = vrot.lane.b32.xlu0 %v3541, 27
  %v3633 = vpop.permute.xlu0 %3632
  %3634 = vrot.lane.b32.xlu0 %v3550, 27
  %v3635 = vpop.permute.xlu0 %3634
  %3636 = vrot.lane.b32.xlu0 %v3551, 27
  %v3637 = vpop.permute.xlu0 %3636
  %3638 = vrot.lane.b32.xlu0 %v3552, 27
  %v3639 = vpop.permute.xlu0 %3638
  %3640 = vrot.lane.b32.xlu0 %v3553, 27
  %v3641 = vpop.permute.xlu0 %3640
  %3642 = vrot.lane.b32.xlu0 %v3562, 27
  %v3643 = vpop.permute.xlu0 %3642
  %3644 = vrot.lane.b32.xlu0 %v3563, 27
  %v3645 = vpop.permute.xlu0 %3644
  %3646 = vrot.lane.b32.xlu0 %v3564, 27
  %v3647 = vpop.permute.xlu0 %3646
  %3648 = vrot.lane.b32.xlu0 %v3565, 27
  %v3649 = vpop.permute.xlu0 %3648
  %3650 = vrot.lane.b32.xlu0 %v3574, 27
  %v3651 = vpop.permute.xlu0 %3650
  %3652 = vrot.lane.b32.xlu0 %v3575, 27
  %v3653 = vpop.permute.xlu0 %3652
  %3654 = vrot.lane.b32.xlu0 %v3576, 27
  %v3655 = vpop.permute.xlu0 %3654
  %3656 = vrot.lane.b32.xlu0 %v3577, 27
  %v3657 = vpop.permute.xlu0 %3656
  %3658 = vrot.lane.b32.xlu0 %v3586, 27
  %v3659 = vpop.permute.xlu0 %3658
  %3660 = vrot.lane.b32.xlu0 %v3587, 27
  %v3661 = vpop.permute.xlu0 %3660
  %3662 = vrot.lane.b32.xlu0 %v3588, 27
  %v3663 = vpop.permute.xlu0 %3662
  %3664 = vrot.lane.b32.xlu0 %v3589, 27
  %v3665 = vpop.permute.xlu0 %3664
  %3666 = vrot.lane.b32.xlu0 %v3598, 27
  %v3667 = vpop.permute.xlu0 %3666
  %3668 = vrot.lane.b32.xlu0 %v3599, 27
  %v3669 = vpop.permute.xlu0 %3668
  %3670 = vrot.lane.b32.xlu0 %v3600, 27
  %v3671 = vpop.permute.xlu0 %3670
  %3672 = vrot.lane.b32.xlu0 %v3601, 27
  %v3673 = vpop.permute.xlu0 %3672
  %vm3710 = vcmask 244952
  %3711 = vst.msk [vmem:[#allocation2] sm:$0xff] %vm3710, %v3603
  %3712 = vst.msk [vmem:[#allocation2 + $0x8] sm:$0xff] %vm3710, %v3605
  %3713 = vst.msk [vmem:[#allocation2 + $0x10] sm:$0xff] %vm3710, %v3607
  %3714 = vst.msk [vmem:[#allocation2 + $0x18] sm:$0xff] %vm3710, %v3609
  %3715 = vst.msk [vmem:[#allocation2 + $0x20] sm:$0xff] %vm3710, %v3611
  %3716 = vst.msk [vmem:[#allocation2 + $0x28] sm:$0xff] %vm3710, %v3613
  %3717 = vst.msk [vmem:[#allocation2 + $0x30] sm:$0xff] %vm3710, %v3615
  %3718 = vst.msk [vmem:[#allocation2 + $0x38] sm:$0xff] %vm3710, %v3617
  %3719 = vst.msk [vmem:[#allocation2 + $0x40] sm:$0xff] %vm3710, %v3619
  %3720 = vst.msk [vmem:[#allocation2 + $0x48] sm:$0xff] %vm3710, %v3621
  %3721 = vst.msk [vmem:[#allocation2 + $0x50] sm:$0xff] %vm3710, %v3623
  %3722 = vst.msk [vmem:[#allocation2 + $0x58] sm:$0xff] %vm3710, %v3625
  %3723 = vst.msk [vmem:[#allocation2 + $0x60] sm:$0xff] %vm3710, %v3627
  %3724 = vst.msk [vmem:[#allocation2 + $0x68] sm:$0xff] %vm3710, %v3629
  %3725 = vst.msk [vmem:[#allocation2 + $0x70] sm:$0xff] %vm3710, %v3631
  %3726 = vst.msk [vmem:[#allocation2 + $0x78] sm:$0xff] %vm3710, %v3633
  %3727 = vst.msk [vmem:[#allocation2 + $0x80] sm:$0xff] %vm3710, %v3635
  %3728 = vst.msk [vmem:[#allocation2 + $0x88] sm:$0xff] %vm3710, %v3637
  %3729 = vst.msk [vmem:[#allocation2 + $0x90] sm:$0xff] %vm3710, %v3639
  %3730 = vst.msk [vmem:[#allocation2 + $0x98] sm:$0xff] %vm3710, %v3641
  %3731 = vst.msk [vmem:[#allocation2 + $0xa0] sm:$0xff] %vm3710, %v3643
  %3732 = vst.msk [vmem:[#allocation2 + $0xa8] sm:$0xff] %vm3710, %v3645
  %3733 = vst.msk [vmem:[#allocation2 + $0xb0] sm:$0xff] %vm3710, %v3647
  %3734 = vst.msk [vmem:[#allocation2 + $0xb8] sm:$0xff] %vm3710, %v3649
  %3735 = vst.msk [vmem:[#allocation2 + $0xc0] sm:$0xff] %vm3710, %v3651
  %3736 = vst.msk [vmem:[#allocation2 + $0xc8] sm:$0xff] %vm3710, %v3653
  %3737 = vst.msk [vmem:[#allocation2 + $0xd0] sm:$0xff] %vm3710, %v3655
  %3738 = vst.msk [vmem:[#allocation2 + $0xd8] sm:$0xff] %vm3710, %v3657
  %3739 = vst.msk [vmem:[#allocation2 + $0xe0] sm:$0xff] %vm3710, %v3659
  %3740 = vst.msk [vmem:[#allocation2 + $0xe8] sm:$0xff] %vm3710, %v3661
  %3741 = vst.msk [vmem:[#allocation2 + $0xf0] sm:$0xff] %vm3710, %v3663
  %3742 = vst.msk [vmem:[#allocation2 + $0xf8] sm:$0xff] %vm3710, %v3665
  %3743 = vst.msk [vmem:[#allocation2 + $0x100] sm:$0xff] %vm3710, %v3667
  %3744 = vst.msk [vmem:[#allocation2 + $0x108] sm:$0xff] %vm3710, %v3669
  %3745 = vst.msk [vmem:[#allocation2 + $0x110] sm:$0xff] %vm3710, %v3671
  %3746 = vst.msk [vmem:[#allocation2 + $0x118] sm:$0xff] %vm3710, %v3673
  %s3747 = scalar_lea.vmem %s1, 32
  %v3748 = vld [vmem:[%s3747] sm:$0xff]
  %v3749 = vld [vmem:[%s3747 + $0x8] sm:$0xf]
  %v3750 = vld [vmem:[%s3747 + $0x10] sm:$0xff]
  %v3751 = vld [vmem:[%s3747 + $0x18] sm:$0xf]
  %v3752 = vld [vmem:[%s3747 + $0x20] sm:$0xff]
  %v3753 = vld [vmem:[%s3747 + $0x28] sm:$0xf]
  %v3754 = vld [vmem:[%s3747 + $0x30] sm:$0xff]
  %v3755 = vld [vmem:[%s3747 + $0x38] sm:$0xf]
  %v3756 = vld [vmem:[%s3747 + $0x40] sm:$0xff]
  %v3757 = vld [vmem:[%s3747 + $0x48] sm:$0xf]
  %v3758 = vld [vmem:[%s3747 + $0x50] sm:$0xff]
  %v3759 = vld [vmem:[%s3747 + $0x58] sm:$0xf]
  %v3760 = vld [vmem:[%s3747 + $0x60] sm:$0xff]
  %v3761 = vld [vmem:[%s3747 + $0x68] sm:$0xf]
  %v3762 = vld [vmem:[%s3747 + $0x70] sm:$0xff]
  %v3763 = vld [vmem:[%s3747 + $0x78] sm:$0xf]
  %v3764 = vld [vmem:[%s3747 + $0x80] sm:$0xff]
  %v3765 = vld [vmem:[%s3747 + $0x88] sm:$0xf]
  %v3766 = vld [vmem:[%s3747 + $0x90] sm:$0xff]
  %v3767 = vld [vmem:[%s3747 + $0x98] sm:$0xf]
  %v3768 = vld [vmem:[%s3747 + $0xa0] sm:$0xff]
  %v3769 = vld [vmem:[%s3747 + $0xa8] sm:$0xf]
  %v3770 = vld [vmem:[%s3747 + $0xb0] sm:$0xff]
  %v3771 = vld [vmem:[%s3747 + $0xb8] sm:$0xf]
  %v3772 = vld [vmem:[%s3747 + $0x100] sm:$0xff]
  %v3773 = vld [vmem:[%s3747 + $0x108] sm:$0xf]
  %v3774 = vld [vmem:[%s3747 + $0x110] sm:$0xff]
  %v3775 = vld [vmem:[%s3747 + $0x118] sm:$0xf]
  %v3776 = vld [vmem:[%s3747 + $0x120] sm:$0xff]
  %v3777 = vld [vmem:[%s3747 + $0x128] sm:$0xf]
  %v3778 = vld [vmem:[%s3747 + $0x130] sm:$0xff]
  %v3779 = vld [vmem:[%s3747 + $0x138] sm:$0xf]
  %v3780 = vld [vmem:[%s3747 + $0x140] sm:$0xff]
  %v3781 = vld [vmem:[%s3747 + $0x148] sm:$0xf]
  %v3782 = vld [vmem:[%s3747 + $0x150] sm:$0xff]
  %v3783 = vld [vmem:[%s3747 + $0x158] sm:$0xf]
  %v3784 = vld [vmem:[%s3747 + $0x160] sm:$0xff]
  %v3785 = vld [vmem:[%s3747 + $0x168] sm:$0xf]
  %v3786 = vld [vmem:[%s3747 + $0x170] sm:$0xff]
  %v3787 = vld [vmem:[%s3747 + $0x178] sm:$0xf]
  %v3788 = vld [vmem:[%s3747 + $0x180] sm:$0xff]
  %v3789 = vld [vmem:[%s3747 + $0x188] sm:$0xf]
  %v3790 = vld [vmem:[%s3747 + $0x190] sm:$0xff]
  %v3791 = vld [vmem:[%s3747 + $0x198] sm:$0xf]
  %v3792 = vld [vmem:[%s3747 + $0x1a0] sm:$0xff]
  %v3793 = vld [vmem:[%s3747 + $0x1a8] sm:$0xf]
  %v3794 = vld [vmem:[%s3747 + $0x1b0] sm:$0xff]
  %v3795 = vld [vmem:[%s3747 + $0x1b8] sm:$0xf]
  %v3844 = vrot.slane %v3748, 4
  %v3845 = vrot.slane %v3750, 4
  %v3846 = vrot.slane %v3752, 4
  %v3847 = vrot.slane %v3754, 4
  %v3848 = vrot.slane %v3756, 4
  %v3849 = vrot.slane %v3758, 4
  %v3850 = vrot.slane %v3760, 4
  %v3851 = vrot.slane %v3762, 4
  %v3852 = vrot.slane %v3764, 4
  %v3853 = vrot.slane %v3766, 4
  %v3854 = vrot.slane %v3768, 4
  %v3855 = vrot.slane %v3770, 4
  %v3856 = vrot.slane %v3772, 4
  %v3857 = vrot.slane %v3774, 4
  %v3858 = vrot.slane %v3776, 4
  %v3859 = vrot.slane %v3778, 4
  %v3860 = vrot.slane %v3780, 4
  %v3861 = vrot.slane %v3782, 4
  %v3862 = vrot.slane %v3784, 4
  %v3863 = vrot.slane %v3786, 4
  %v3864 = vrot.slane %v3788, 4
  %v3865 = vrot.slane %v3790, 4
  %v3866 = vrot.slane %v3792, 4
  %v3867 = vrot.slane %v3794, 4
  %3868 = vst [vmem:[#allocation1] ss:$2 sm:$0xff] %v3748
  %s3869 = scalar_lea.vmem [#allocation1], 1
  %3870 = vst [vmem:[%s3869] ss:$2 sm:$0xff] %v3844
  %s3871 = scalar_lea.vmem [#allocation1], 16
  %3872 = vst [vmem:[%s3871] ss:$2 sm:$0xff] %v3749
  %s3873 = scalar_lea.vmem [#allocation1], 17
  %3874 = vst [vmem:[%s3873] ss:$2 sm:$0xff] %v3750
  %s3875 = scalar_lea.vmem [#allocation1], 32
  %3876 = vst [vmem:[%s3875] ss:$2 sm:$0xff] %v3845
  %s3877 = scalar_lea.vmem [#allocation1], 33
  %3878 = vst [vmem:[%s3877] ss:$2 sm:$0xff] %v3751
  %s3879 = scalar_lea.vmem [#allocation1], 48
  %3880 = vst [vmem:[%s3879] ss:$2 sm:$0xff] %v3752
  %s3881 = scalar_lea.vmem [#allocation1], 49
  %3882 = vst [vmem:[%s3881] ss:$2 sm:$0xff] %v3846
  %v3883 = vld.sshfl [vmem:[#allocation1] sm:$0xff pattern:$0x75316420]
  %v3884 = vld.sshfl [vmem:[#allocation1 + $0x10] sm:$0xff pattern:$0x75316420]
  %v3885 = vld.sshfl [vmem:[#allocation1 + $0x20] sm:$0xff pattern:$0x75316420]
  %v3886 = vld.sshfl [vmem:[#allocation1 + $0x30] sm:$0xff pattern:$0x75316420]
  %3887 = vst [vmem:[#allocation1] ss:$2 sm:$0xff] %v3753
  %3888 = vst [vmem:[%s3869] ss:$2 sm:$0xff] %v3754
  %3889 = vst [vmem:[%s3871] ss:$2 sm:$0xff] %v3847
  %3890 = vst [vmem:[%s3873] ss:$2 sm:$0xff] %v3755
  %3891 = vst [vmem:[%s3875] ss:$2 sm:$0xff] %v3756
  %3892 = vst [vmem:[%s3877] ss:$2 sm:$0xff] %v3848
  %3893 = vst [vmem:[%s3879] ss:$2 sm:$0xff] %v3757
  %3894 = vst [vmem:[%s3881] ss:$2 sm:$0xff] %v3758
  %v3895 = vld.sshfl [vmem:[#allocation1] sm:$0xff pattern:$0x75316420]
  %v3896 = vld.sshfl [vmem:[#allocation1 + $0x10] sm:$0xff pattern:$0x75316420]
  %v3897 = vld.sshfl [vmem:[#allocation1 + $0x20] sm:$0xff pattern:$0x75316420]
  %v3898 = vld.sshfl [vmem:[#allocation1 + $0x30] sm:$0xff pattern:$0x75316420]
  %3899 = vst [vmem:[#allocation1] ss:$2 sm:$0xff] %v3849
  %3900 = vst [vmem:[%s3869] ss:$2 sm:$0xff] %v3759
  %3901 = vst [vmem:[%s3871] ss:$2 sm:$0xff] %v3760
  %3902 = vst [vmem:[%s3873] ss:$2 sm:$0xff] %v3850
  %3903 = vst [vmem:[%s3875] ss:$2 sm:$0xff] %v3761
  %3904 = vst [vmem:[%s3877] ss:$2 sm:$0xff] %v3762
  %3905 = vst [vmem:[%s3879] ss:$2 sm:$0xff] %v3851
  %3906 = vst [vmem:[%s3881] ss:$2 sm:$0xff] %v3763
  %v3907 = vld.sshfl [vmem:[#allocation1] sm:$0xff pattern:$0x75316420]
  %v3908 = vld.sshfl [vmem:[#allocation1 + $0x10] sm:$0xff pattern:$0x75316420]
  %v3909 = vld.sshfl [vmem:[#allocation1 + $0x20] sm:$0xff pattern:$0x75316420]
  %v3910 = vld.sshfl [vmem:[#allocation1 + $0x30] sm:$0xff pattern:$0x75316420]
  %3911 = vst [vmem:[#allocation1] ss:$2 sm:$0xff] %v3764
  %3912 = vst [vmem:[%s3869] ss:$2 sm:$0xff] %v3852
  %3913 = vst [vmem:[%s3871] ss:$2 sm:$0xff] %v3765
  %3914 = vst [vmem:[%s3873] ss:$2 sm:$0xff] %v3766
  %3915 = vst [vmem:[%s3875] ss:$2 sm:$0xff] %v3853
  %3916 = vst [vmem:[%s3877] ss:$2 sm:$0xff] %v3767
  %3917 = vst [vmem:[%s3879] ss:$2 sm:$0xff] %v3768
  %3918 = vst [vmem:[%s3881] ss:$2 sm:$0xff] %v3854
  %v3919 = vld.sshfl [vmem:[#allocation1] sm:$0xff pattern:$0x75316420]
  %v3920 = vld.sshfl [vmem:[#allocation1 + $0x10] sm:$0xff pattern:$0x75316420]
  %v3921 = vld.sshfl [vmem:[#allocation1 + $0x20] sm:$0xff pattern:$0x75316420]
  %v3922 = vld.sshfl [vmem:[#allocation1 + $0x30] sm:$0xff pattern:$0x75316420]
  %3923 = vst [vmem:[#allocation1] ss:$2 sm:$0xff] %v3769
  %3924 = vst [vmem:[%s3869] ss:$2 sm:$0xff] %v3770
  %3925 = vst [vmem:[%s3871] ss:$2 sm:$0xff] %v3855
  %3926 = vst [vmem:[%s3873] ss:$2 sm:$0xff] %v3771
  %3927 = vst [vmem:[%s3875] ss:$2 sm:$0xff] %v3772
  %3928 = vst [vmem:[%s3877] ss:$2 sm:$0xff] %v3856
  %3929 = vst [vmem:[%s3879] ss:$2 sm:$0xff] %v3773
  %3930 = vst [vmem:[%s3881] ss:$2 sm:$0xff] %v3774
  %v3931 = vld.sshfl [vmem:[#allocation1] sm:$0xff pattern:$0x75316420]
  %v3932 = vld.sshfl [vmem:[#allocation1 + $0x10] sm:$0xff pattern:$0x75316420]
  %v3933 = vld.sshfl [vmem:[#allocation1 + $0x20] sm:$0xff pattern:$0x75316420]
  %v3934 = vld.sshfl [vmem:[#allocation1 + $0x30] sm:$0xff pattern:$0x75316420]
  %3935 = vst [vmem:[#allocation1] ss:$2 sm:$0xff] %v3857
  %3936 = vst [vmem:[%s3869] ss:$2 sm:$0xff] %v3775
  %3937 = vst [vmem:[%s3871] ss:$2 sm:$0xff] %v3776
  %3938 = vst [vmem:[%s3873] ss:$2 sm:$0xff] %v3858
  %3939 = vst [vmem:[%s3875] ss:$2 sm:$0xff] %v3777
  %3940 = vst [vmem:[%s3877] ss:$2 sm:$0xff] %v3778
  %3941 = vst [vmem:[%s3879] ss:$2 sm:$0xff] %v3859
  %3942 = vst [vmem:[%s3881] ss:$2 sm:$0xff] %v3779
  %v3943 = vld.sshfl [vmem:[#allocation1] sm:$0xff pattern:$0x75316420]
  %v3944 = vld.sshfl [vmem:[#allocation1 + $0x10] sm:$0xff pattern:$0x75316420]
  %v3945 = vld.sshfl [vmem:[#allocation1 + $0x20] sm:$0xff pattern:$0x75316420]
  %v3946 = vld.sshfl [vmem:[#allocation1 + $0x30] sm:$0xff pattern:$0x75316420]
  %3947 = vst [vmem:[#allocation1] ss:$2 sm:$0xff] %v3780
  %3948 = vst [vmem:[%s3869] ss:$2 sm:$0xff] %v3860
  %3949 = vst [vmem:[%s3871] ss:$2 sm:$0xff] %v3781
  %3950 = vst [vmem:[%s3873] ss:$2 sm:$0xff] %v3782
  %3951 = vst [vmem:[%s3875] ss:$2 sm:$0xff] %v3861
  %3952 = vst [vmem:[%s3877] ss:$2 sm:$0xff] %v3783
  %3953 = vst [vmem:[%s3879] ss:$2 sm:$0xff] %v3784
  %3954 = vst [vmem:[%s3881] ss:$2 sm:$0xff] %v3862
  %v3955 = vld.sshfl [vmem:[#allocation1] sm:$0xff pattern:$0x75316420]
  %v3956 = vld.sshfl [vmem:[#allocation1 + $0x10] sm:$0xff pattern:$0x75316420]
  %v3957 = vld.sshfl [vmem:[#allocation1 + $0x20] sm:$0xff pattern:$0x75316420]
  %v3958 = vld.sshfl [vmem:[#allocation1 + $0x30] sm:$0xff pattern:$0x75316420]
  %3959 = vst [vmem:[#allocation1] ss:$2 sm:$0xff] %v3785
  %3960 = vst [vmem:[%s3869] ss:$2 sm:$0xff] %v3786
  %3961 = vst [vmem:[%s3871] ss:$2 sm:$0xff] %v3863
  %3962 = vst [vmem:[%s3873] ss:$2 sm:$0xff] %v3787
  %3963 = vst [vmem:[%s3875] ss:$2 sm:$0xff] %v3788
  %3964 = vst [vmem:[%s3877] ss:$2 sm:$0xff] %v3864
  %3965 = vst [vmem:[%s3879] ss:$2 sm:$0xff] %v3789
  %3966 = vst [vmem:[%s3881] ss:$2 sm:$0xff] %v3790
  %v3967 = vld.sshfl [vmem:[#allocation1] sm:$0xff pattern:$0x75316420]
  %v3968 = vld.sshfl [vmem:[#allocation1 + $0x10] sm:$0xff pattern:$0x75316420]
  %v3969 = vld.sshfl [vmem:[#allocation1 + $0x20] sm:$0xff pattern:$0x75316420]
  %v3970 = vld.sshfl [vmem:[#allocation1 + $0x30] sm:$0xff pattern:$0x75316420]
  %3971 = vst [vmem:[#allocation1] ss:$2 sm:$0xff] %v3865
  %3972 = vst [vmem:[%s3869] ss:$2 sm:$0xff] %v3791
  %3973 = vst [vmem:[%s3871] ss:$2 sm:$0xff] %v3792
  %3974 = vst [vmem:[%s3873] ss:$2 sm:$0xff] %v3866
  %3975 = vst [vmem:[%s3875] ss:$2 sm:$0xff] %v3793
  %3976 = vst [vmem:[%s3877] ss:$2 sm:$0xff] %v3794
  %3977 = vst [vmem:[%s3879] ss:$2 sm:$0xff] %v3867
  %3978 = vst [vmem:[%s3881] ss:$2 sm:$0xff] %v3795
  %v3979 = vld.sshfl [vmem:[#allocation1] sm:$0xff pattern:$0x75316420]
  %v3980 = vld.sshfl [vmem:[#allocation1 + $0x10] sm:$0xff pattern:$0x75316420]
  %v3981 = vld.sshfl [vmem:[#allocation1 + $0x20] sm:$0xff pattern:$0x75316420]
  %v3982 = vld.sshfl [vmem:[#allocation1 + $0x30] sm:$0xff pattern:$0x75316420]
  %3983 = vrot.lane.b32.xlu0 %v3883, 30
  %v3984 = vpop.permute.xlu0 %3983
  %3985 = vrot.lane.b32.xlu0 %v3884, 30
  %v3986 = vpop.permute.xlu0 %3985
  %3987 = vrot.lane.b32.xlu0 %v3885, 30
  %v3988 = vpop.permute.xlu0 %3987
  %3989 = vrot.lane.b32.xlu0 %v3886, 30
  %v3990 = vpop.permute.xlu0 %3989
  %3991 = vrot.lane.b32.xlu0 %v3895, 30
  %v3992 = vpop.permute.xlu0 %3991
  %3993 = vrot.lane.b32.xlu0 %v3896, 30
  %v3994 = vpop.permute.xlu0 %3993
  %3995 = vrot.lane.b32.xlu0 %v3897, 30
  %v3996 = vpop.permute.xlu0 %3995
  %3997 = vrot.lane.b32.xlu0 %v3898, 30
  %v3998 = vpop.permute.xlu0 %3997
  %3999 = vrot.lane.b32.xlu0 %v3907, 30
  %v4000 = vpop.permute.xlu0 %3999
  %4001 = vrot.lane.b32.xlu0 %v3908, 30
  %v4002 = vpop.permute.xlu0 %4001
  %4003 = vrot.lane.b32.xlu0 %v3909, 30
  %v4004 = vpop.permute.xlu0 %4003
  %4005 = vrot.lane.b32.xlu0 %v3910, 30
  %v4006 = vpop.permute.xlu0 %4005
  %4007 = vrot.lane.b32.xlu0 %v3919, 30
  %v4008 = vpop.permute.xlu0 %4007
  %4009 = vrot.lane.b32.xlu0 %v3920, 30
  %v4010 = vpop.permute.xlu0 %4009
  %4011 = vrot.lane.b32.xlu0 %v3921, 30
  %v4012 = vpop.permute.xlu0 %4011
  %4013 = vrot.lane.b32.xlu0 %v3922, 30
  %v4014 = vpop.permute.xlu0 %4013
  %4015 = vrot.lane.b32.xlu0 %v3931, 30
  %v4016 = vpop.permute.xlu0 %4015
  %4017 = vrot.lane.b32.xlu0 %v3932, 30
  %v4018 = vpop.permute.xlu0 %4017
  %4019 = vrot.lane.b32.xlu0 %v3933, 30
  %v4020 = vpop.permute.xlu0 %4019
  %4021 = vrot.lane.b32.xlu0 %v3934, 30
  %v4022 = vpop.permute.xlu0 %4021
  %4023 = vrot.lane.b32.xlu0 %v3943, 30
  %v4024 = vpop.permute.xlu0 %4023
  %4025 = vrot.lane.b32.xlu0 %v3944, 30
  %v4026 = vpop.permute.xlu0 %4025
  %4027 = vrot.lane.b32.xlu0 %v3945, 30
  %v4028 = vpop.permute.xlu0 %4027
  %4029 = vrot.lane.b32.xlu0 %v3946, 30
  %v4030 = vpop.permute.xlu0 %4029
  %4031 = vrot.lane.b32.xlu0 %v3955, 30
  %v4032 = vpop.permute.xlu0 %4031
  %4033 = vrot.lane.b32.xlu0 %v3956, 30
  %v4034 = vpop.permute.xlu0 %4033
  %4035 = vrot.lane.b32.xlu0 %v3957, 30
  %v4036 = vpop.permute.xlu0 %4035
  %4037 = vrot.lane.b32.xlu0 %v3958, 30
  %v4038 = vpop.permute.xlu0 %4037
  %4039 = vrot.lane.b32.xlu0 %v3967, 30
  %v4040 = vpop.permute.xlu0 %4039
  %4041 = vrot.lane.b32.xlu0 %v3968, 30
  %v4042 = vpop.permute.xlu0 %4041
  %4043 = vrot.lane.b32.xlu0 %v3969, 30
  %v4044 = vpop.permute.xlu0 %4043
  %4045 = vrot.lane.b32.xlu0 %v3970, 30
  %v4046 = vpop.permute.xlu0 %4045
  %4047 = vrot.lane.b32.xlu0 %v3979, 30
  %v4048 = vpop.permute.xlu0 %4047
  %4049 = vrot.lane.b32.xlu0 %v3980, 30
  %v4050 = vpop.permute.xlu0 %4049
  %4051 = vrot.lane.b32.xlu0 %v3981, 30
  %v4052 = vpop.permute.xlu0 %4051
  %4053 = vrot.lane.b32.xlu0 %v3982, 30
  %v4054 = vpop.permute.xlu0 %4053
  %vm4091 = vcmask 269552
  %4092 = vst.msk [vmem:[#allocation2] sm:$0xff] %vm4091, %v3984
  %4093 = vst.msk [vmem:[#allocation2 + $0x8] sm:$0xff] %vm4091, %v3986
  %4094 = vst.msk [vmem:[#allocation2 + $0x10] sm:$0xff] %vm4091, %v3988
  %4095 = vst.msk [vmem:[#allocation2 + $0x18] sm:$0xff] %vm4091, %v3990
  %4096 = vst.msk [vmem:[#allocation2 + $0x20] sm:$0xff] %vm4091, %v3992
  %4097 = vst.msk [vmem:[#allocation2 + $0x28] sm:$0xff] %vm4091, %v3994
  %4098 = vst.msk [vmem:[#allocation2 + $0x30] sm:$0xff] %vm4091, %v3996
  %4099 = vst.msk [vmem:[#allocation2 + $0x38] sm:$0xff] %vm4091, %v3998
  %4100 = vst.msk [vmem:[#allocation2 + $0x40] sm:$0xff] %vm4091, %v4000
  %4101 = vst.msk [vmem:[#allocation2 + $0x48] sm:$0xff] %vm4091, %v4002
  %4102 = vst.msk [vmem:[#allocation2 + $0x50] sm:$0xff] %vm4091, %v4004
  %4103 = vst.msk [vmem:[#allocation2 + $0x58] sm:$0xff] %vm4091, %v4006
  %4104 = vst.msk [vmem:[#allocation2 + $0x60] sm:$0xff] %vm4091, %v4008
  %4105 = vst.msk [vmem:[#allocation2 + $0x68] sm:$0xff] %vm4091, %v4010
  %4106 = vst.msk [vmem:[#allocation2 + $0x70] sm:$0xff] %vm4091, %v4012
  %4107 = vst.msk [vmem:[#allocation2 + $0x78] sm:$0xff] %vm4091, %v4014
  %4108 = vst.msk [vmem:[#allocation2 + $0x80] sm:$0xff] %vm4091, %v4016
  %4109 = vst.msk [vmem:[#allocation2 + $0x88] sm:$0xff] %vm4091, %v4018
  %4110 = vst.msk [vmem:[#allocation2 + $0x90] sm:$0xff] %vm4091, %v4020
  %4111 = vst.msk [vmem:[#allocation2 + $0x98] sm:$0xff] %vm4091, %v4022
  %4112 = vst.msk [vmem:[#allocation2 + $0xa0] sm:$0xff] %vm4091, %v4024
  %4113 = vst.msk [vmem:[#allocation2 + $0xa8] sm:$0xff] %vm4091, %v4026
  %4114 = vst.msk [vmem:[#allocation2 + $0xb0] sm:$0xff] %vm4091, %v4028
  %4115 = vst.msk [vmem:[#allocation2 + $0xb8] sm:$0xff] %vm4091, %v4030
  %4116 = vst.msk [vmem:[#allocation2 + $0xc0] sm:$0xff] %vm4091, %v4032
  %4117 = vst.msk [vmem:[#allocation2 + $0xc8] sm:$0xff] %vm4091, %v4034
  %4118 = vst.msk [vmem:[#allocation2 + $0xd0] sm:$0xff] %vm4091, %v4036
  %4119 = vst.msk [vmem:[#allocation2 + $0xd8] sm:$0xff] %vm4091, %v4038
  %4120 = vst.msk [vmem:[#allocation2 + $0xe0] sm:$0xff] %vm4091, %v4040
  %4121 = vst.msk [vmem:[#allocation2 + $0xe8] sm:$0xff] %vm4091, %v4042
  %4122 = vst.msk [vmem:[#allocation2 + $0xf0] sm:$0xff] %vm4091, %v4044
  %4123 = vst.msk [vmem:[#allocation2 + $0xf8] sm:$0xff] %vm4091, %v4046
  %4124 = vst.msk [vmem:[#allocation2 + $0x100] sm:$0xff] %vm4091, %v4048
  %4125 = vst.msk [vmem:[#allocation2 + $0x108] sm:$0xff] %vm4091, %v4050
  %4126 = vst.msk [vmem:[#allocation2 + $0x110] sm:$0xff] %vm4091, %v4052
  %4127 = vst.msk [vmem:[#allocation2 + $0x118] sm:$0xff] %vm4091, %v4054
  %v4128 = vld [vmem:[%s3747 + $0x1] sm:$0xff]
  %v4129 = vld [vmem:[%s3747 + $0x9] sm:$0xf]
  %v4130 = vld [vmem:[%s3747 + $0x11] sm:$0xff]
  %v4131 = vld [vmem:[%s3747 + $0x19] sm:$0xf]
  %v4132 = vld [vmem:[%s3747 + $0x21] sm:$0xff]
  %v4133 = vld [vmem:[%s3747 + $0x29] sm:$0xf]
  %v4134 = vld [vmem:[%s3747 + $0x31] sm:$0xff]
  %v4135 = vld [vmem:[%s3747 + $0x39] sm:$0xf]
  %v4136 = vld [vmem:[%s3747 + $0x41] sm:$0xff]
  %v4137 = vld [vmem:[%s3747 + $0x49] sm:$0xf]
  %v4138 = vld [vmem:[%s3747 + $0x51] sm:$0xff]
  %v4139 = vld [vmem:[%s3747 + $0x59] sm:$0xf]
  %v4140 = vld [vmem:[%s3747 + $0x61] sm:$0xff]
  %v4141 = vld [vmem:[%s3747 + $0x69] sm:$0xf]
  %v4142 = vld [vmem:[%s3747 + $0x71] sm:$0xff]
  %v4143 = vld [vmem:[%s3747 + $0x79] sm:$0xf]
  %v4144 = vld [vmem:[%s3747 + $0x81] sm:$0xff]
  %v4145 = vld [vmem:[%s3747 + $0x89] sm:$0xf]
  %v4146 = vld [vmem:[%s3747 + $0x91] sm:$0xff]
  %v4147 = vld [vmem:[%s3747 + $0x99] sm:$0xf]
  %v4148 = vld [vmem:[%s3747 + $0xa1] sm:$0xff]
  %v4149 = vld [vmem:[%s3747 + $0xa9] sm:$0xf]
  %v4150 = vld [vmem:[%s3747 + $0xb1] sm:$0xff]
  %v4151 = vld [vmem:[%s3747 + $0xb9] sm:$0xf]
  %v4152 = vld [vmem:[%s3747 + $0x101] sm:$0xff]
  %v4153 = vld [vmem:[%s3747 + $0x109] sm:$0xf]
  %v4154 = vld [vmem:[%s3747 + $0x111] sm:$0xff]
  %v4155 = vld [vmem:[%s3747 + $0x119] sm:$0xf]
  %v4156 = vld [vmem:[%s3747 + $0x121] sm:$0xff]
  %v4157 = vld [vmem:[%s3747 + $0x129] sm:$0xf]
  %v4158 = vld [vmem:[%s3747 + $0x131] sm:$0xff]
  %v4159 = vld [vmem:[%s3747 + $0x139] sm:$0xf]
  %v4160 = vld [vmem:[%s3747 + $0x141] sm:$0xff]
  %v4161 = vld [vmem:[%s3747 + $0x149] sm:$0xf]
  %v4162 = vld [vmem:[%s3747 + $0x151] sm:$0xff]
  %v4163 = vld [vmem:[%s3747 + $0x159] sm:$0xf]
  %v4164 = vld [vmem:[%s3747 + $0x161] sm:$0xff]
  %v4165 = vld [vmem:[%s3747 + $0x169] sm:$0xf]
  %v4166 = vld [vmem:[%s3747 + $0x171] sm:$0xff]
  %v4167 = vld [vmem:[%s3747 + $0x179] sm:$0xf]
  %v4168 = vld [vmem:[%s3747 + $0x181] sm:$0xff]
  %v4169 = vld [vmem:[%s3747 + $0x189] sm:$0xf]
  %v4170 = vld [vmem:[%s3747 + $0x191] sm:$0xff]
  %v4171 = vld [vmem:[%s3747 + $0x199] sm:$0xf]
  %v4172 = vld [vmem:[%s3747 + $0x1a1] sm:$0xff]
  %v4173 = vld [vmem:[%s3747 + $0x1a9] sm:$0xf]
  %v4174 = vld [vmem:[%s3747 + $0x1b1] sm:$0xff]
  %v4175 = vld [vmem:[%s3747 + $0x1b9] sm:$0xf]
  %v4224 = vrot.slane %v4128, 4
  %v4225 = vrot.slane %v4130, 4
  %v4226 = vrot.slane %v4132, 4
  %v4227 = vrot.slane %v4134, 4
  %v4228 = vrot.slane %v4136, 4
  %v4229 = vrot.slane %v4138, 4
  %v4230 = vrot.slane %v4140, 4
  %v4231 = vrot.slane %v4142, 4
  %v4232 = vrot.slane %v4144, 4
  %v4233 = vrot.slane %v4146, 4
  %v4234 = vrot.slane %v4148, 4
  %v4235 = vrot.slane %v4150, 4
  %v4236 = vrot.slane %v4152, 4
  %v4237 = vrot.slane %v4154, 4
  %v4238 = vrot.slane %v4156, 4
  %v4239 = vrot.slane %v4158, 4
  %v4240 = vrot.slane %v4160, 4
  %v4241 = vrot.slane %v4162, 4
  %v4242 = vrot.slane %v4164, 4
  %v4243 = vrot.slane %v4166, 4
  %v4244 = vrot.slane %v4168, 4
  %v4245 = vrot.slane %v4170, 4
  %v4246 = vrot.slane %v4172, 4
  %v4247 = vrot.slane %v4174, 4
  %4248 = vst [vmem:[#allocation1] ss:$2 sm:$0xff] %v4128
  %s4249 = scalar_lea.vmem [#allocation1], 1
  %4250 = vst [vmem:[%s4249] ss:$2 sm:$0xff] %v4224
  %s4251 = scalar_lea.vmem [#allocation1], 16
  %4252 = vst [vmem:[%s4251] ss:$2 sm:$0xff] %v4129
  %s4253 = scalar_lea.vmem [#allocation1], 17
  %4254 = vst [vmem:[%s4253] ss:$2 sm:$0xff] %v4130
  %s4255 = scalar_lea.vmem [#allocation1], 32
  %4256 = vst [vmem:[%s4255] ss:$2 sm:$0xff] %v4225
  %s4257 = scalar_lea.vmem [#allocation1], 33
  %4258 = vst [vmem:[%s4257] ss:$2 sm:$0xff] %v4131
  %s4259 = scalar_lea.vmem [#allocation1], 48
  %4260 = vst [vmem:[%s4259] ss:$2 sm:$0xff] %v4132
  %s4261 = scalar_lea.vmem [#allocation1], 49
  %4262 = vst [vmem:[%s4261] ss:$2 sm:$0xff] %v4226
  %v4263 = vld.sshfl [vmem:[#allocation1] sm:$0xff pattern:$0x75316420]
  %v4264 = vld.sshfl [vmem:[#allocation1 + $0x10] sm:$0xff pattern:$0x75316420]
  %v4265 = vld.sshfl [vmem:[#allocation1 + $0x20] sm:$0xff pattern:$0x75316420]
  %v4266 = vld.sshfl [vmem:[#allocation1 + $0x30] sm:$0xff pattern:$0x75316420]
  %4267 = vst [vmem:[#allocation1] ss:$2 sm:$0xff] %v4133
  %4268 = vst [vmem:[%s4249] ss:$2 sm:$0xff] %v4134
  %4269 = vst [vmem:[%s4251] ss:$2 sm:$0xff] %v4227
  %4270 = vst [vmem:[%s4253] ss:$2 sm:$0xff] %v4135
  %4271 = vst [vmem:[%s4255] ss:$2 sm:$0xff] %v4136
  %4272 = vst [vmem:[%s4257] ss:$2 sm:$0xff] %v4228
  %4273 = vst [vmem:[%s4259] ss:$2 sm:$0xff] %v4137
  %4274 = vst [vmem:[%s4261] ss:$2 sm:$0xff] %v4138
  %v4275 = vld.sshfl [vmem:[#allocation1] sm:$0xff pattern:$0x75316420]
  %v4276 = vld.sshfl [vmem:[#allocation1 + $0x10] sm:$0xff pattern:$0x75316420]
  %v4277 = vld.sshfl [vmem:[#allocation1 + $0x20] sm:$0xff pattern:$0x75316420]
  %v4278 = vld.sshfl [vmem:[#allocation1 + $0x30] sm:$0xff pattern:$0x75316420]
  %4279 = vst [vmem:[#allocation1] ss:$2 sm:$0xff] %v4229
  %4280 = vst [vmem:[%s4249] ss:$2 sm:$0xff] %v4139
  %4281 = vst [vmem:[%s4251] ss:$2 sm:$0xff] %v4140
  %4282 = vst [vmem:[%s4253] ss:$2 sm:$0xff] %v4230
  %4283 = vst [vmem:[%s4255] ss:$2 sm:$0xff] %v4141
  %4284 = vst [vmem:[%s4257] ss:$2 sm:$0xff] %v4142
  %4285 = vst [vmem:[%s4259] ss:$2 sm:$0xff] %v4231
  %4286 = vst [vmem:[%s4261] ss:$2 sm:$0xff] %v4143
  %v4287 = vld.sshfl [vmem:[#allocation1] sm:$0xff pattern:$0x75316420]
  %v4288 = vld.sshfl [vmem:[#allocation1 + $0x10] sm:$0xff pattern:$0x75316420]
  %v4289 = vld.sshfl [vmem:[#allocation1 + $0x20] sm:$0xff pattern:$0x75316420]
  %v4290 = vld.sshfl [vmem:[#allocation1 + $0x30] sm:$0xff pattern:$0x75316420]
  %4291 = vst [vmem:[#allocation1] ss:$2 sm:$0xff] %v4144
  %4292 = vst [vmem:[%s4249] ss:$2 sm:$0xff] %v4232
  %4293 = vst [vmem:[%s4251] ss:$2 sm:$0xff] %v4145
  %4294 = vst [vmem:[%s4253] ss:$2 sm:$0xff] %v4146
  %4295 = vst [vmem:[%s4255] ss:$2 sm:$0xff] %v4233
  %4296 = vst [vmem:[%s4257] ss:$2 sm:$0xff] %v4147
  %4297 = vst [vmem:[%s4259] ss:$2 sm:$0xff] %v4148
  %4298 = vst [vmem:[%s4261] ss:$2 sm:$0xff] %v4234
  %v4299 = vld.sshfl [vmem:[#allocation1] sm:$0xff pattern:$0x75316420]
  %v4300 = vld.sshfl [vmem:[#allocation1 + $0x10] sm:$0xff pattern:$0x75316420]
  %v4301 = vld.sshfl [vmem:[#allocation1 + $0x20] sm:$0xff pattern:$0x75316420]
  %v4302 = vld.sshfl [vmem:[#allocation1 + $0x30] sm:$0xff pattern:$0x75316420]
  %4303 = vst [vmem:[#allocation1] ss:$2 sm:$0xff] %v4149
  %4304 = vst [vmem:[%s4249] ss:$2 sm:$0xff] %v4150
  %4305 = vst [vmem:[%s4251] ss:$2 sm:$0xff] %v4235
  %4306 = vst [vmem:[%s4253] ss:$2 sm:$0xff] %v4151
  %4307 = vst [vmem:[%s4255] ss:$2 sm:$0xff] %v4152
  %4308 = vst [vmem:[%s4257] ss:$2 sm:$0xff] %v4236
  %4309 = vst [vmem:[%s4259] ss:$2 sm:$0xff] %v4153
  %4310 = vst [vmem:[%s4261] ss:$2 sm:$0xff] %v4154
  %v4311 = vld.sshfl [vmem:[#allocation1] sm:$0xff pattern:$0x75316420]
  %v4312 = vld.sshfl [vmem:[#allocation1 + $0x10] sm:$0xff pattern:$0x75316420]
  %v4313 = vld.sshfl [vmem:[#allocation1 + $0x20] sm:$0xff pattern:$0x75316420]
  %v4314 = vld.sshfl [vmem:[#allocation1 + $0x30] sm:$0xff pattern:$0x75316420]
  %4315 = vst [vmem:[#allocation1] ss:$2 sm:$0xff] %v4237
  %4316 = vst [vmem:[%s4249] ss:$2 sm:$0xff] %v4155
  %4317 = vst [vmem:[%s4251] ss:$2 sm:$0xff] %v4156
  %4318 = vst [vmem:[%s4253] ss:$2 sm:$0xff] %v4238
  %4319 = vst [vmem:[%s4255] ss:$2 sm:$0xff] %v4157
  %4320 = vst [vmem:[%s4257] ss:$2 sm:$0xff] %v4158
  %4321 = vst [vmem:[%s4259] ss:$2 sm:$0xff] %v4239
  %4322 = vst [vmem:[%s4261] ss:$2 sm:$0xff] %v4159
  %v4323 = vld.sshfl [vmem:[#allocation1] sm:$0xff pattern:$0x75316420]
  %v4324 = vld.sshfl [vmem:[#allocation1 + $0x10] sm:$0xff pattern:$0x75316420]
  %v4325 = vld.sshfl [vmem:[#allocation1 + $0x20] sm:$0xff pattern:$0x75316420]
  %v4326 = vld.sshfl [vmem:[#allocation1 + $0x30] sm:$0xff pattern:$0x75316420]
  %4327 = vst [vmem:[#allocation1] ss:$2 sm:$0xff] %v4160
  %4328 = vst [vmem:[%s4249] ss:$2 sm:$0xff] %v4240
  %4329 = vst [vmem:[%s4251] ss:$2 sm:$0xff] %v4161
  %4330 = vst [vmem:[%s4253] ss:$2 sm:$0xff] %v4162
  %4331 = vst [vmem:[%s4255] ss:$2 sm:$0xff] %v4241
  %4332 = vst [vmem:[%s4257] ss:$2 sm:$0xff] %v4163
  %4333 = vst [vmem:[%s4259] ss:$2 sm:$0xff] %v4164
  %4334 = vst [vmem:[%s4261] ss:$2 sm:$0xff] %v4242
  %v4335 = vld.sshfl [vmem:[#allocation1] sm:$0xff pattern:$0x75316420]
  %v4336 = vld.sshfl [vmem:[#allocation1 + $0x10] sm:$0xff pattern:$0x75316420]
  %v4337 = vld.sshfl [vmem:[#allocation1 + $0x20] sm:$0xff pattern:$0x75316420]
  %v4338 = vld.sshfl [vmem:[#allocation1 + $0x30] sm:$0xff pattern:$0x75316420]
  %4339 = vst [vmem:[#allocation1] ss:$2 sm:$0xff] %v4165
  %4340 = vst [vmem:[%s4249] ss:$2 sm:$0xff] %v4166
  %4341 = vst [vmem:[%s4251] ss:$2 sm:$0xff] %v4243
  %4342 = vst [vmem:[%s4253] ss:$2 sm:$0xff] %v4167
  %4343 = vst [vmem:[%s4255] ss:$2 sm:$0xff] %v4168
  %4344 = vst [vmem:[%s4257] ss:$2 sm:$0xff] %v4244
  %4345 = vst [vmem:[%s4259] ss:$2 sm:$0xff] %v4169
  %4346 = vst [vmem:[%s4261] ss:$2 sm:$0xff] %v4170
  %v4347 = vld.sshfl [vmem:[#allocation1] sm:$0xff pattern:$0x75316420]
  %v4348 = vld.sshfl [vmem:[#allocation1 + $0x10] sm:$0xff pattern:$0x75316420]
  %v4349 = vld.sshfl [vmem:[#allocation1 + $0x20] sm:$0xff pattern:$0x75316420]
  %v4350 = vld.sshfl [vmem:[#allocation1 + $0x30] sm:$0xff pattern:$0x75316420]
  %4351 = vst [vmem:[#allocation1] ss:$2 sm:$0xff] %v4245
  %4352 = vst [vmem:[%s4249] ss:$2 sm:$0xff] %v4171
  %4353 = vst [vmem:[%s4251] ss:$2 sm:$0xff] %v4172
  %4354 = vst [vmem:[%s4253] ss:$2 sm:$0xff] %v4246
  %4355 = vst [vmem:[%s4255] ss:$2 sm:$0xff] %v4173
  %4356 = vst [vmem:[%s4257] ss:$2 sm:$0xff] %v4174
  %4357 = vst [vmem:[%s4259] ss:$2 sm:$0xff] %v4247
  %4358 = vst [vmem:[%s4261] ss:$2 sm:$0xff] %v4175
  %v4359 = vld.sshfl [vmem:[#allocation1] sm:$0xff pattern:$0x75316420]
  %v4360 = vld.sshfl [vmem:[#allocation1 + $0x10] sm:$0xff pattern:$0x75316420]
  %v4361 = vld.sshfl [vmem:[#allocation1 + $0x20] sm:$0xff pattern:$0x75316420]
  %v4362 = vld.sshfl [vmem:[#allocation1 + $0x30] sm:$0xff pattern:$0x75316420]
  %4363 = vrot.lane.b32.xlu0 %v4263, 33
  %v4364 = vpop.permute.xlu0 %4363
  %4365 = vrot.lane.b32.xlu0 %v4264, 33
  %v4366 = vpop.permute.xlu0 %4365
  %4367 = vrot.lane.b32.xlu0 %v4265, 33
  %v4368 = vpop.permute.xlu0 %4367
  %4369 = vrot.lane.b32.xlu0 %v4266, 33
  %v4370 = vpop.permute.xlu0 %4369
  %4371 = vrot.lane.b32.xlu0 %v4275, 33
  %v4372 = vpop.permute.xlu0 %4371
  %4373 = vrot.lane.b32.xlu0 %v4276, 33
  %v4374 = vpop.permute.xlu0 %4373
  %4375 = vrot.lane.b32.xlu0 %v4277, 33
  %v4376 = vpop.permute.xlu0 %4375
  %4377 = vrot.lane.b32.xlu0 %v4278, 33
  %v4378 = vpop.permute.xlu0 %4377
  %4379 = vrot.lane.b32.xlu0 %v4287, 33
  %v4380 = vpop.permute.xlu0 %4379
  %4381 = vrot.lane.b32.xlu0 %v4288, 33
  %v4382 = vpop.permute.xlu0 %4381
  %4383 = vrot.lane.b32.xlu0 %v4289, 33
  %v4384 = vpop.permute.xlu0 %4383
  %4385 = vrot.lane.b32.xlu0 %v4290, 33
  %v4386 = vpop.permute.xlu0 %4385
  %4387 = vrot.lane.b32.xlu0 %v4299, 33
  %v4388 = vpop.permute.xlu0 %4387
  %4389 = vrot.lane.b32.xlu0 %v4300, 33
  %v4390 = vpop.permute.xlu0 %4389
  %4391 = vrot.lane.b32.xlu0 %v4301, 33
  %v4392 = vpop.permute.xlu0 %4391
  %4393 = vrot.lane.b32.xlu0 %v4302, 33
  %v4394 = vpop.permute.xlu0 %4393
  %4395 = vrot.lane.b32.xlu0 %v4311, 33
  %v4396 = vpop.permute.xlu0 %4395
  %4397 = vrot.lane.b32.xlu0 %v4312, 33
  %v4398 = vpop.permute.xlu0 %4397
  %4399 = vrot.lane.b32.xlu0 %v4313, 33
  %v4400 = vpop.permute.xlu0 %4399
  %4401 = vrot.lane.b32.xlu0 %v4314, 33
  %v4402 = vpop.permute.xlu0 %4401
  %4403 = vrot.lane.b32.xlu0 %v4323, 33
  %v4404 = vpop.permute.xlu0 %4403
  %4405 = vrot.lane.b32.xlu0 %v4324, 33
  %v4406 = vpop.permute.xlu0 %4405
  %4407 = vrot.lane.b32.xlu0 %v4325, 33
  %v4408 = vpop.permute.xlu0 %4407
  %4409 = vrot.lane.b32.xlu0 %v4326, 33
  %v4410 = vpop.permute.xlu0 %4409
  %4411 = vrot.lane.b32.xlu0 %v4335, 33
  %v4412 = vpop.permute.xlu0 %4411
  %4413 = vrot.lane.b32.xlu0 %v4336, 33
  %v4414 = vpop.permute.xlu0 %4413
  %4415 = vrot.lane.b32.xlu0 %v4337, 33
  %v4416 = vpop.permute.xlu0 %4415
  %4417 = vrot.lane.b32.xlu0 %v4338, 33
  %v4418 = vpop.permute.xlu0 %4417
  %4419 = vrot.lane.b32.xlu0 %v4347, 33
  %v4420 = vpop.permute.xlu0 %4419
  %4421 = vrot.lane.b32.xlu0 %v4348, 33
  %v4422 = vpop.permute.xlu0 %4421
  %4423 = vrot.lane.b32.xlu0 %v4349, 33
  %v4424 = vpop.permute.xlu0 %4423
  %4425 = vrot.lane.b32.xlu0 %v4350, 33
  %v4426 = vpop.permute.xlu0 %4425
  %4427 = vrot.lane.b32.xlu0 %v4359, 33
  %v4428 = vpop.permute.xlu0 %4427
  %4429 = vrot.lane.b32.xlu0 %v4360, 33
  %v4430 = vpop.permute.xlu0 %4429
  %4431 = vrot.lane.b32.xlu0 %v4361, 33
  %v4432 = vpop.permute.xlu0 %4431
  %4433 = vrot.lane.b32.xlu0 %v4362, 33
  %v4434 = vpop.permute.xlu0 %4433
  %vm4471 = vcmask 294152
  %4472 = vst.msk [vmem:[#allocation2] sm:$0xff] %vm4471, %v4364
  %4473 = vst.msk [vmem:[#allocation2 + $0x8] sm:$0xff] %vm4471, %v4366
  %4474 = vst.msk [vmem:[#allocation2 + $0x10] sm:$0xff] %vm4471, %v4368
  %4475 = vst.msk [vmem:[#allocation2 + $0x18] sm:$0xff] %vm4471, %v4370
  %4476 = vst.msk [vmem:[#allocation2 + $0x20] sm:$0xff] %vm4471, %v4372
  %4477 = vst.msk [vmem:[#allocation2 + $0x28] sm:$0xff] %vm4471, %v4374
  %4478 = vst.msk [vmem:[#allocation2 + $0x30] sm:$0xff] %vm4471, %v4376
  %4479 = vst.msk [vmem:[#allocation2 + $0x38] sm:$0xff] %vm4471, %v4378
  %4480 = vst.msk [vmem:[#allocation2 + $0x40] sm:$0xff] %vm4471, %v4380
  %4481 = vst.msk [vmem:[#allocation2 + $0x48] sm:$0xff] %vm4471, %v4382
  %4482 = vst.msk [vmem:[#allocation2 + $0x50] sm:$0xff] %vm4471, %v4384
  %4483 = vst.msk [vmem:[#allocation2 + $0x58] sm:$0xff] %vm4471, %v4386
  %4484 = vst.msk [vmem:[#allocation2 + $0x60] sm:$0xff] %vm4471, %v4388
  %4485 = vst.msk [vmem:[#allocation2 + $0x68] sm:$0xff] %vm4471, %v4390
  %4486 = vst.msk [vmem:[#allocation2 + $0x70] sm:$0xff] %vm4471, %v4392
  %4487 = vst.msk [vmem:[#allocation2 + $0x78] sm:$0xff] %vm4471, %v4394
  %4488 = vst.msk [vmem:[#allocation2 + $0x80] sm:$0xff] %vm4471, %v4396
  %4489 = vst.msk [vmem:[#allocation2 + $0x88] sm:$0xff] %vm4471, %v4398
  %4490 = vst.msk [vmem:[#allocation2 + $0x90] sm:$0xff] %vm4471, %v4400
  %4491 = vst.msk [vmem:[#allocation2 + $0x98] sm:$0xff] %vm4471, %v4402
  %4492 = vst.msk [vmem:[#allocation2 + $0xa0] sm:$0xff] %vm4471, %v4404
  %4493 = vst.msk [vmem:[#allocation2 + $0xa8] sm:$0xff] %vm4471, %v4406
  %4494 = vst.msk [vmem:[#allocation2 + $0xb0] sm:$0xff] %vm4471, %v4408
  %4495 = vst.msk [vmem:[#allocation2 + $0xb8] sm:$0xff] %vm4471, %v4410
  %4496 = vst.msk [vmem:[#allocation2 + $0xc0] sm:$0xff] %vm4471, %v4412
  %4497 = vst.msk [vmem:[#allocation2 + $0xc8] sm:$0xff] %vm4471, %v4414
  %4498 = vst.msk [vmem:[#allocation2 + $0xd0] sm:$0xff] %vm4471, %v4416
  %4499 = vst.msk [vmem:[#allocation2 + $0xd8] sm:$0xff] %vm4471, %v4418
  %4500 = vst.msk [vmem:[#allocation2 + $0xe0] sm:$0xff] %vm4471, %v4420
  %4501 = vst.msk [vmem:[#allocation2 + $0xe8] sm:$0xff] %vm4471, %v4422
  %4502 = vst.msk [vmem:[#allocation2 + $0xf0] sm:$0xff] %vm4471, %v4424
  %4503 = vst.msk [vmem:[#allocation2 + $0xf8] sm:$0xff] %vm4471, %v4426
  %4504 = vst.msk [vmem:[#allocation2 + $0x100] sm:$0xff] %vm4471, %v4428
  %4505 = vst.msk [vmem:[#allocation2 + $0x108] sm:$0xff] %vm4471, %v4430
  %4506 = vst.msk [vmem:[#allocation2 + $0x110] sm:$0xff] %vm4471, %v4432
  %4507 = vst.msk [vmem:[#allocation2 + $0x118] sm:$0xff] %vm4471, %v4434
  %v4508 = vld [vmem:[%s3747 + $0x2] sm:$0xff]
  %v4509 = vld [vmem:[%s3747 + $0xa] sm:$0xf]
  %v4510 = vld [vmem:[%s3747 + $0x12] sm:$0xff]
  %v4511 = vld [vmem:[%s3747 + $0x1a] sm:$0xf]
  %v4512 = vld [vmem:[%s3747 + $0x22] sm:$0xff]
  %v4513 = vld [vmem:[%s3747 + $0x2a] sm:$0xf]
  %v4514 = vld [vmem:[%s3747 + $0x32] sm:$0xff]
  %v4515 = vld [vmem:[%s3747 + $0x3a] sm:$0xf]
  %v4516 = vld [vmem:[%s3747 + $0x42] sm:$0xff]
  %v4517 = vld [vmem:[%s3747 + $0x4a] sm:$0xf]
  %v4518 = vld [vmem:[%s3747 + $0x52] sm:$0xff]
  %v4519 = vld [vmem:[%s3747 + $0x5a] sm:$0xf]
  %v4520 = vld [vmem:[%s3747 + $0x62] sm:$0xff]
  %v4521 = vld [vmem:[%s3747 + $0x6a] sm:$0xf]
  %v4522 = vld [vmem:[%s3747 + $0x72] sm:$0xff]
  %v4523 = vld [vmem:[%s3747 + $0x7a] sm:$0xf]
  %v4524 = vld [vmem:[%s3747 + $0x82] sm:$0xff]
  %v4525 = vld [vmem:[%s3747 + $0x8a] sm:$0xf]
  %v4526 = vld [vmem:[%s3747 + $0x92] sm:$0xff]
  %v4527 = vld [vmem:[%s3747 + $0x9a] sm:$0xf]
  %v4528 = vld [vmem:[%s3747 + $0xa2] sm:$0xff]
  %v4529 = vld [vmem:[%s3747 + $0xaa] sm:$0xf]
  %v4530 = vld [vmem:[%s3747 + $0xb2] sm:$0xff]
  %v4531 = vld [vmem:[%s3747 + $0xba] sm:$0xf]
  %v4532 = vld [vmem:[%s3747 + $0x102] sm:$0xff]
  %v4533 = vld [vmem:[%s3747 + $0x10a] sm:$0xf]
  %v4534 = vld [vmem:[%s3747 + $0x112] sm:$0xff]
  %v4535 = vld [vmem:[%s3747 + $0x11a] sm:$0xf]
  %v4536 = vld [vmem:[%s3747 + $0x122] sm:$0xff]
  %v4537 = vld [vmem:[%s3747 + $0x12a] sm:$0xf]
  %v4538 = vld [vmem:[%s3747 + $0x132] sm:$0xff]
  %v4539 = vld [vmem:[%s3747 + $0x13a] sm:$0xf]
  %v4540 = vld [vmem:[%s3747 + $0x142] sm:$0xff]
  %v4541 = vld [vmem:[%s3747 + $0x14a] sm:$0xf]
  %v4542 = vld [vmem:[%s3747 + $0x152] sm:$0xff]
  %v4543 = vld [vmem:[%s3747 + $0x15a] sm:$0xf]
  %v4544 = vld [vmem:[%s3747 + $0x162] sm:$0xff]
  %v4545 = vld [vmem:[%s3747 + $0x16a] sm:$0xf]
  %v4546 = vld [vmem:[%s3747 + $0x172] sm:$0xff]
  %v4547 = vld [vmem:[%s3747 + $0x17a] sm:$0xf]
  %v4548 = vld [vmem:[%s3747 + $0x182] sm:$0xff]
  %v4549 = vld [vmem:[%s3747 + $0x18a] sm:$0xf]
  %v4550 = vld [vmem:[%s3747 + $0x192] sm:$0xff]
  %v4551 = vld [vmem:[%s3747 + $0x19a] sm:$0xf]
  %v4552 = vld [vmem:[%s3747 + $0x1a2] sm:$0xff]
  %v4553 = vld [vmem:[%s3747 + $0x1aa] sm:$0xf]
  %v4554 = vld [vmem:[%s3747 + $0x1b2] sm:$0xff]
  %v4555 = vld [vmem:[%s3747 + $0x1ba] sm:$0xf]
  %v4604 = vrot.slane %v4508, 4
  %v4605 = vrot.slane %v4510, 4
  %v4606 = vrot.slane %v4512, 4
  %v4607 = vrot.slane %v4514, 4
  %v4608 = vrot.slane %v4516, 4
  %v4609 = vrot.slane %v4518, 4
  %v4610 = vrot.slane %v4520, 4
  %v4611 = vrot.slane %v4522, 4
  %v4612 = vrot.slane %v4524, 4
  %v4613 = vrot.slane %v4526, 4
  %v4614 = vrot.slane %v4528, 4
  %v4615 = vrot.slane %v4530, 4
  %v4616 = vrot.slane %v4532, 4
  %v4617 = vrot.slane %v4534, 4
  %v4618 = vrot.slane %v4536, 4
  %v4619 = vrot.slane %v4538, 4
  %v4620 = vrot.slane %v4540, 4
  %v4621 = vrot.slane %v4542, 4
  %v4622 = vrot.slane %v4544, 4
  %v4623 = vrot.slane %v4546, 4
  %v4624 = vrot.slane %v4548, 4
  %v4625 = vrot.slane %v4550, 4
  %v4626 = vrot.slane %v4552, 4
  %v4627 = vrot.slane %v4554, 4
  %4628 = vst [vmem:[#allocation1] ss:$2 sm:$0xff] %v4508
  %s4629 = scalar_lea.vmem [#allocation1], 1
  %4630 = vst [vmem:[%s4629] ss:$2 sm:$0xff] %v4604
  %s4631 = scalar_lea.vmem [#allocation1], 16
  %4632 = vst [vmem:[%s4631] ss:$2 sm:$0xff] %v4509
  %s4633 = scalar_lea.vmem [#allocation1], 17
  %4634 = vst [vmem:[%s4633] ss:$2 sm:$0xff] %v4510
  %s4635 = scalar_lea.vmem [#allocation1], 32
  %4636 = vst [vmem:[%s4635] ss:$2 sm:$0xff] %v4605
  %s4637 = scalar_lea.vmem [#allocation1], 33
  %4638 = vst [vmem:[%s4637] ss:$2 sm:$0xff] %v4511
  %s4639 = scalar_lea.vmem [#allocation1], 48
  %4640 = vst [vmem:[%s4639] ss:$2 sm:$0xff] %v4512
  %s4641 = scalar_lea.vmem [#allocation1], 49
  %4642 = vst [vmem:[%s4641] ss:$2 sm:$0xff] %v4606
  %v4643 = vld.sshfl [vmem:[#allocation1] sm:$0xff pattern:$0x75316420]
  %v4644 = vld.sshfl [vmem:[#allocation1 + $0x10] sm:$0xff pattern:$0x75316420]
  %v4645 = vld.sshfl [vmem:[#allocation1 + $0x20] sm:$0xff pattern:$0x75316420]
  %v4646 = vld.sshfl [vmem:[#allocation1 + $0x30] sm:$0xff pattern:$0x75316420]
  %4647 = vst [vmem:[#allocation1] ss:$2 sm:$0xff] %v4513
  %4648 = vst [vmem:[%s4629] ss:$2 sm:$0xff] %v4514
  %4649 = vst [vmem:[%s4631] ss:$2 sm:$0xff] %v4607
  %4650 = vst [vmem:[%s4633] ss:$2 sm:$0xff] %v4515
  %4651 = vst [vmem:[%s4635] ss:$2 sm:$0xff] %v4516
  %4652 = vst [vmem:[%s4637] ss:$2 sm:$0xff] %v4608
  %4653 = vst [vmem:[%s4639] ss:$2 sm:$0xff] %v4517
  %4654 = vst [vmem:[%s4641] ss:$2 sm:$0xff] %v4518
  %v4655 = vld.sshfl [vmem:[#allocation1] sm:$0xff pattern:$0x75316420]
  %v4656 = vld.sshfl [vmem:[#allocation1 + $0x10] sm:$0xff pattern:$0x75316420]
  %v4657 = vld.sshfl [vmem:[#allocation1 + $0x20] sm:$0xff pattern:$0x75316420]
  %v4658 = vld.sshfl [vmem:[#allocation1 + $0x30] sm:$0xff pattern:$0x75316420]
  %4659 = vst [vmem:[#allocation1] ss:$2 sm:$0xff] %v4609
  %4660 = vst [vmem:[%s4629] ss:$2 sm:$0xff] %v4519
  %4661 = vst [vmem:[%s4631] ss:$2 sm:$0xff] %v4520
  %4662 = vst [vmem:[%s4633] ss:$2 sm:$0xff] %v4610
  %4663 = vst [vmem:[%s4635] ss:$2 sm:$0xff] %v4521
  %4664 = vst [vmem:[%s4637] ss:$2 sm:$0xff] %v4522
  %4665 = vst [vmem:[%s4639] ss:$2 sm:$0xff] %v4611
  %4666 = vst [vmem:[%s4641] ss:$2 sm:$0xff] %v4523
  %v4667 = vld.sshfl [vmem:[#allocation1] sm:$0xff pattern:$0x75316420]
  %v4668 = vld.sshfl [vmem:[#allocation1 + $0x10] sm:$0xff pattern:$0x75316420]
  %v4669 = vld.sshfl [vmem:[#allocation1 + $0x20] sm:$0xff pattern:$0x75316420]
  %v4670 = vld.sshfl [vmem:[#allocation1 + $0x30] sm:$0xff pattern:$0x75316420]
  %4671 = vst [vmem:[#allocation1] ss:$2 sm:$0xff] %v4524
  %4672 = vst [vmem:[%s4629] ss:$2 sm:$0xff] %v4612
  %4673 = vst [vmem:[%s4631] ss:$2 sm:$0xff] %v4525
  %4674 = vst [vmem:[%s4633] ss:$2 sm:$0xff] %v4526
  %4675 = vst [vmem:[%s4635] ss:$2 sm:$0xff] %v4613
  %4676 = vst [vmem:[%s4637] ss:$2 sm:$0xff] %v4527
  %4677 = vst [vmem:[%s4639] ss:$2 sm:$0xff] %v4528
  %4678 = vst [vmem:[%s4641] ss:$2 sm:$0xff] %v4614
  %v4679 = vld.sshfl [vmem:[#allocation1] sm:$0xff pattern:$0x75316420]
  %v4680 = vld.sshfl [vmem:[#allocation1 + $0x10] sm:$0xff pattern:$0x75316420]
  %v4681 = vld.sshfl [vmem:[#allocation1 + $0x20] sm:$0xff pattern:$0x75316420]
  %v4682 = vld.sshfl [vmem:[#allocation1 + $0x30] sm:$0xff pattern:$0x75316420]
  %4683 = vst [vmem:[#allocation1] ss:$2 sm:$0xff] %v4529
  %4684 = vst [vmem:[%s4629] ss:$2 sm:$0xff] %v4530
  %4685 = vst [vmem:[%s4631] ss:$2 sm:$0xff] %v4615
  %4686 = vst [vmem:[%s4633] ss:$2 sm:$0xff] %v4531
  %4687 = vst [vmem:[%s4635] ss:$2 sm:$0xff] %v4532
  %4688 = vst [vmem:[%s4637] ss:$2 sm:$0xff] %v4616
  %4689 = vst [vmem:[%s4639] ss:$2 sm:$0xff] %v4533
  %4690 = vst [vmem:[%s4641] ss:$2 sm:$0xff] %v4534
  %v4691 = vld.sshfl [vmem:[#allocation1] sm:$0xff pattern:$0x75316420]
  %v4692 = vld.sshfl [vmem:[#allocation1 + $0x10] sm:$0xff pattern:$0x75316420]
  %v4693 = vld.sshfl [vmem:[#allocation1 + $0x20] sm:$0xff pattern:$0x75316420]
  %v4694 = vld.sshfl [vmem:[#allocation1 + $0x30] sm:$0xff pattern:$0x75316420]
  %4695 = vst [vmem:[#allocation1] ss:$2 sm:$0xff] %v4617
  %4696 = vst [vmem:[%s4629] ss:$2 sm:$0xff] %v4535
  %4697 = vst [vmem:[%s4631] ss:$2 sm:$0xff] %v4536
  %4698 = vst [vmem:[%s4633] ss:$2 sm:$0xff] %v4618
  %4699 = vst [vmem:[%s4635] ss:$2 sm:$0xff] %v4537
  %4700 = vst [vmem:[%s4637] ss:$2 sm:$0xff] %v4538
  %4701 = vst [vmem:[%s4639] ss:$2 sm:$0xff] %v4619
  %4702 = vst [vmem:[%s4641] ss:$2 sm:$0xff] %v4539
  %v4703 = vld.sshfl [vmem:[#allocation1] sm:$0xff pattern:$0x75316420]
  %v4704 = vld.sshfl [vmem:[#allocation1 + $0x10] sm:$0xff pattern:$0x75316420]
  %v4705 = vld.sshfl [vmem:[#allocation1 + $0x20] sm:$0xff pattern:$0x75316420]
  %v4706 = vld.sshfl [vmem:[#allocation1 + $0x30] sm:$0xff pattern:$0x75316420]
  %4707 = vst [vmem:[#allocation1] ss:$2 sm:$0xff] %v4540
  %4708 = vst [vmem:[%s4629] ss:$2 sm:$0xff] %v4620
  %4709 = vst [vmem:[%s4631] ss:$2 sm:$0xff] %v4541
  %4710 = vst [vmem:[%s4633] ss:$2 sm:$0xff] %v4542
  %4711 = vst [vmem:[%s4635] ss:$2 sm:$0xff] %v4621
  %4712 = vst [vmem:[%s4637] ss:$2 sm:$0xff] %v4543
  %4713 = vst [vmem:[%s4639] ss:$2 sm:$0xff] %v4544
  %4714 = vst [vmem:[%s4641] ss:$2 sm:$0xff] %v4622
  %v4715 = vld.sshfl [vmem:[#allocation1] sm:$0xff pattern:$0x75316420]
  %v4716 = vld.sshfl [vmem:[#allocation1 + $0x10] sm:$0xff pattern:$0x75316420]
  %v4717 = vld.sshfl [vmem:[#allocation1 + $0x20] sm:$0xff pattern:$0x75316420]
  %v4718 = vld.sshfl [vmem:[#allocation1 + $0x30] sm:$0xff pattern:$0x75316420]
  %4719 = vst [vmem:[#allocation1] ss:$2 sm:$0xff] %v4545
  %4720 = vst [vmem:[%s4629] ss:$2 sm:$0xff] %v4546
  %4721 = vst [vmem:[%s4631] ss:$2 sm:$0xff] %v4623
  %4722 = vst [vmem:[%s4633] ss:$2 sm:$0xff] %v4547
  %4723 = vst [vmem:[%s4635] ss:$2 sm:$0xff] %v4548
  %4724 = vst [vmem:[%s4637] ss:$2 sm:$0xff] %v4624
  %4725 = vst [vmem:[%s4639] ss:$2 sm:$0xff] %v4549
  %4726 = vst [vmem:[%s4641] ss:$2 sm:$0xff] %v4550
  %v4727 = vld.sshfl [vmem:[#allocation1] sm:$0xff pattern:$0x75316420]
  %v4728 = vld.sshfl [vmem:[#allocation1 + $0x10] sm:$0xff pattern:$0x75316420]
  %v4729 = vld.sshfl [vmem:[#allocation1 + $0x20] sm:$0xff pattern:$0x75316420]
  %v4730 = vld.sshfl [vmem:[#allocation1 + $0x30] sm:$0xff pattern:$0x75316420]
  %4731 = vst [vmem:[#allocation1] ss:$2 sm:$0xff] %v4625
  %4732 = vst [vmem:[%s4629] ss:$2 sm:$0xff] %v4551
  %4733 = vst [vmem:[%s4631] ss:$2 sm:$0xff] %v4552
  %4734 = vst [vmem:[%s4633] ss:$2 sm:$0xff] %v4626
  %4735 = vst [vmem:[%s4635] ss:$2 sm:$0xff] %v4553
  %4736 = vst [vmem:[%s4637] ss:$2 sm:$0xff] %v4554
  %4737 = vst [vmem:[%s4639] ss:$2 sm:$0xff] %v4627
  %4738 = vst [vmem:[%s4641] ss:$2 sm:$0xff] %v4555
  %v4739 = vld.sshfl [vmem:[#allocation1] sm:$0xff pattern:$0x75316420]
  %v4740 = vld.sshfl [vmem:[#allocation1 + $0x10] sm:$0xff pattern:$0x75316420]
  %v4741 = vld.sshfl [vmem:[#allocation1 + $0x20] sm:$0xff pattern:$0x75316420]
  %v4742 = vld.sshfl [vmem:[#allocation1 + $0x30] sm:$0xff pattern:$0x75316420]
  %4743 = vrot.lane.b32.xlu0 %v4643, 36
  %v4744 = vpop.permute.xlu0 %4743
  %4745 = vrot.lane.b32.xlu0 %v4644, 36
  %v4746 = vpop.permute.xlu0 %4745
  %4747 = vrot.lane.b32.xlu0 %v4645, 36
  %v4748 = vpop.permute.xlu0 %4747
  %4749 = vrot.lane.b32.xlu0 %v4646, 36
  %v4750 = vpop.permute.xlu0 %4749
  %4751 = vrot.lane.b32.xlu0 %v4655, 36
  %v4752 = vpop.permute.xlu0 %4751
  %4753 = vrot.lane.b32.xlu0 %v4656, 36
  %v4754 = vpop.permute.xlu0 %4753
  %4755 = vrot.lane.b32.xlu0 %v4657, 36
  %v4756 = vpop.permute.xlu0 %4755
  %4757 = vrot.lane.b32.xlu0 %v4658, 36
  %v4758 = vpop.permute.xlu0 %4757
  %4759 = vrot.lane.b32.xlu0 %v4667, 36
  %v4760 = vpop.permute.xlu0 %4759
  %4761 = vrot.lane.b32.xlu0 %v4668, 36
  %v4762 = vpop.permute.xlu0 %4761
  %4763 = vrot.lane.b32.xlu0 %v4669, 36
  %v4764 = vpop.permute.xlu0 %4763
  %4765 = vrot.lane.b32.xlu0 %v4670, 36
  %v4766 = vpop.permute.xlu0 %4765
  %4767 = vrot.lane.b32.xlu0 %v4679, 36
  %v4768 = vpop.permute.xlu0 %4767
  %4769 = vrot.lane.b32.xlu0 %v4680, 36
  %v4770 = vpop.permute.xlu0 %4769
  %4771 = vrot.lane.b32.xlu0 %v4681, 36
  %v4772 = vpop.permute.xlu0 %4771
  %4773 = vrot.lane.b32.xlu0 %v4682, 36
  %v4774 = vpop.permute.xlu0 %4773
  %4775 = vrot.lane.b32.xlu0 %v4691, 36
  %v4776 = vpop.permute.xlu0 %4775
  %4777 = vrot.lane.b32.xlu0 %v4692, 36
  %v4778 = vpop.permute.xlu0 %4777
  %4779 = vrot.lane.b32.xlu0 %v4693, 36
  %v4780 = vpop.permute.xlu0 %4779
  %4781 = vrot.lane.b32.xlu0 %v4694, 36
  %v4782 = vpop.permute.xlu0 %4781
  %4783 = vrot.lane.b32.xlu0 %v4703, 36
  %v4784 = vpop.permute.xlu0 %4783
  %4785 = vrot.lane.b32.xlu0 %v4704, 36
  %v4786 = vpop.permute.xlu0 %4785
  %4787 = vrot.lane.b32.xlu0 %v4705, 36
  %v4788 = vpop.permute.xlu0 %4787
  %4789 = vrot.lane.b32.xlu0 %v4706, 36
  %v4790 = vpop.permute.xlu0 %4789
  %4791 = vrot.lane.b32.xlu0 %v4715, 36
  %v4792 = vpop.permute.xlu0 %4791
  %4793 = vrot.lane.b32.xlu0 %v4716, 36
  %v4794 = vpop.permute.xlu0 %4793
  %4795 = vrot.lane.b32.xlu0 %v4717, 36
  %v4796 = vpop.permute.xlu0 %4795
  %4797 = vrot.lane.b32.xlu0 %v4718, 36
  %v4798 = vpop.permute.xlu0 %4797
  %4799 = vrot.lane.b32.xlu0 %v4727, 36
  %v4800 = vpop.permute.xlu0 %4799
  %4801 = vrot.lane.b32.xlu0 %v4728, 36
  %v4802 = vpop.permute.xlu0 %4801
  %4803 = vrot.lane.b32.xlu0 %v4729, 36
  %v4804 = vpop.permute.xlu0 %4803
  %4805 = vrot.lane.b32.xlu0 %v4730, 36
  %v4806 = vpop.permute.xlu0 %4805
  %4807 = vrot.lane.b32.xlu0 %v4739, 36
  %v4808 = vpop.permute.xlu0 %4807
  %4809 = vrot.lane.b32.xlu0 %v4740, 36
  %v4810 = vpop.permute.xlu0 %4809
  %4811 = vrot.lane.b32.xlu0 %v4741, 36
  %v4812 = vpop.permute.xlu0 %4811
  %4813 = vrot.lane.b32.xlu0 %v4742, 36
  %v4814 = vpop.permute.xlu0 %4813
  %vm4851 = vcmask 318752
  %4852 = vst.msk [vmem:[#allocation2] sm:$0xff] %vm4851, %v4744
  %4853 = vst.msk [vmem:[#allocation2 + $0x8] sm:$0xff] %vm4851, %v4746
  %4854 = vst.msk [vmem:[#allocation2 + $0x10] sm:$0xff] %vm4851, %v4748
  %4855 = vst.msk [vmem:[#allocation2 + $0x18] sm:$0xff] %vm4851, %v4750
  %4856 = vst.msk [vmem:[#allocation2 + $0x20] sm:$0xff] %vm4851, %v4752
  %4857 = vst.msk [vmem:[#allocation2 + $0x28] sm:$0xff] %vm4851, %v4754
  %4858 = vst.msk [vmem:[#allocation2 + $0x30] sm:$0xff] %vm4851, %v4756
  %4859 = vst.msk [vmem:[#allocation2 + $0x38] sm:$0xff] %vm4851, %v4758
  %4860 = vst.msk [vmem:[#allocation2 + $0x40] sm:$0xff] %vm4851, %v4760
  %4861 = vst.msk [vmem:[#allocation2 + $0x48] sm:$0xff] %vm4851, %v4762
  %4862 = vst.msk [vmem:[#allocation2 + $0x50] sm:$0xff] %vm4851, %v4764
  %4863 = vst.msk [vmem:[#allocation2 + $0x58] sm:$0xff] %vm4851, %v4766
  %4864 = vst.msk [vmem:[#allocation2 + $0x60] sm:$0xff] %vm4851, %v4768
  %4865 = vst.msk [vmem:[#allocation2 + $0x68] sm:$0xff] %vm4851, %v4770
  %4866 = vst.msk [vmem:[#allocation2 + $0x70] sm:$0xff] %vm4851, %v4772
  %4867 = vst.msk [vmem:[#allocation2 + $0x78] sm:$0xff] %vm4851, %v4774
  %4868 = vst.msk [vmem:[#allocation2 + $0x80] sm:$0xff] %vm4851, %v4776
  %4869 = vst.msk [vmem:[#allocation2 + $0x88] sm:$0xff] %vm4851, %v4778
  %4870 = vst.msk [vmem:[#allocation2 + $0x90] sm:$0xff] %vm4851, %v4780
  %4871 = vst.msk [vmem:[#allocation2 + $0x98] sm:$0xff] %vm4851, %v4782
  %4872 = vst.msk [vmem:[#allocation2 + $0xa0] sm:$0xff] %vm4851, %v4784
  %4873 = vst.msk [vmem:[#allocation2 + $0xa8] sm:$0xff] %vm4851, %v4786
  %4874 = vst.msk [vmem:[#allocation2 + $0xb0] sm:$0xff] %vm4851, %v4788
  %4875 = vst.msk [vmem:[#allocation2 + $0xb8] sm:$0xff] %vm4851, %v4790
  %4876 = vst.msk [vmem:[#allocation2 + $0xc0] sm:$0xff] %vm4851, %v4792
  %4877 = vst.msk [vmem:[#allocation2 + $0xc8] sm:$0xff] %vm4851, %v4794
  %4878 = vst.msk [vmem:[#allocation2 + $0xd0] sm:$0xff] %vm4851, %v4796
  %4879 = vst.msk [vmem:[#allocation2 + $0xd8] sm:$0xff] %vm4851, %v4798
  %4880 = vst.msk [vmem:[#allocation2 + $0xe0] sm:$0xff] %vm4851, %v4800
  %4881 = vst.msk [vmem:[#allocation2 + $0xe8] sm:$0xff] %vm4851, %v4802
  %4882 = vst.msk [vmem:[#allocation2 + $0xf0] sm:$0xff] %vm4851, %v4804
  %4883 = vst.msk [vmem:[#allocation2 + $0xf8] sm:$0xff] %vm4851, %v4806
  %4884 = vst.msk [vmem:[#allocation2 + $0x100] sm:$0xff] %vm4851, %v4808
  %4885 = vst.msk [vmem:[#allocation2 + $0x108] sm:$0xff] %vm4851, %v4810
  %4886 = vst.msk [vmem:[#allocation2 + $0x110] sm:$0xff] %vm4851, %v4812
  %4887 = vst.msk [vmem:[#allocation2 + $0x118] sm:$0xff] %vm4851, %v4814
  %v4888 = vld [vmem:[%s3747 + $0x3] sm:$0xff]
  %v4889 = vld [vmem:[%s3747 + $0xb] sm:$0xf]
  %v4890 = vld [vmem:[%s3747 + $0x13] sm:$0xff]
  %v4891 = vld [vmem:[%s3747 + $0x1b] sm:$0xf]
  %v4892 = vld [vmem:[%s3747 + $0x23] sm:$0xff]
  %v4893 = vld [vmem:[%s3747 + $0x2b] sm:$0xf]
  %v4894 = vld [vmem:[%s3747 + $0x33] sm:$0xff]
  %v4895 = vld [vmem:[%s3747 + $0x3b] sm:$0xf]
  %v4896 = vld [vmem:[%s3747 + $0x43] sm:$0xff]
  %v4897 = vld [vmem:[%s3747 + $0x4b] sm:$0xf]
  %v4898 = vld [vmem:[%s3747 + $0x53] sm:$0xff]
  %v4899 = vld [vmem:[%s3747 + $0x5b] sm:$0xf]
  %v4900 = vld [vmem:[%s3747 + $0x63] sm:$0xff]
  %v4901 = vld [vmem:[%s3747 + $0x6b] sm:$0xf]
  %v4902 = vld [vmem:[%s3747 + $0x73] sm:$0xff]
  %v4903 = vld [vmem:[%s3747 + $0x7b] sm:$0xf]
  %v4904 = vld [vmem:[%s3747 + $0x83] sm:$0xff]
  %v4905 = vld [vmem:[%s3747 + $0x8b] sm:$0xf]
  %v4906 = vld [vmem:[%s3747 + $0x93] sm:$0xff]
  %v4907 = vld [vmem:[%s3747 + $0x9b] sm:$0xf]
  %v4908 = vld [vmem:[%s3747 + $0xa3] sm:$0xff]
  %v4909 = vld [vmem:[%s3747 + $0xab] sm:$0xf]
  %v4910 = vld [vmem:[%s3747 + $0xb3] sm:$0xff]
  %v4911 = vld [vmem:[%s3747 + $0xbb] sm:$0xf]
  %v4912 = vld [vmem:[%s3747 + $0x103] sm:$0xff]
  %v4913 = vld [vmem:[%s3747 + $0x10b] sm:$0xf]
  %v4914 = vld [vmem:[%s3747 + $0x113] sm:$0xff]
  %v4915 = vld [vmem:[%s3747 + $0x11b] sm:$0xf]
  %v4916 = vld [vmem:[%s3747 + $0x123] sm:$0xff]
  %v4917 = vld [vmem:[%s3747 + $0x12b] sm:$0xf]
  %v4918 = vld [vmem:[%s3747 + $0x133] sm:$0xff]
  %v4919 = vld [vmem:[%s3747 + $0x13b] sm:$0xf]
  %v4920 = vld [vmem:[%s3747 + $0x143] sm:$0xff]
  %v4921 = vld [vmem:[%s3747 + $0x14b] sm:$0xf]
  %v4922 = vld [vmem:[%s3747 + $0x153] sm:$0xff]
  %v4923 = vld [vmem:[%s3747 + $0x15b] sm:$0xf]
  %v4924 = vld [vmem:[%s3747 + $0x163] sm:$0xff]
  %v4925 = vld [vmem:[%s3747 + $0x16b] sm:$0xf]
  %v4926 = vld [vmem:[%s3747 + $0x173] sm:$0xff]
  %v4927 = vld [vmem:[%s3747 + $0x17b] sm:$0xf]
  %v4928 = vld [vmem:[%s3747 + $0x183] sm:$0xff]
  %v4929 = vld [vmem:[%s3747 + $0x18b] sm:$0xf]
  %v4930 = vld [vmem:[%s3747 + $0x193] sm:$0xff]
  %v4931 = vld [vmem:[%s3747 + $0x19b] sm:$0xf]
  %v4932 = vld [vmem:[%s3747 + $0x1a3] sm:$0xff]
  %v4933 = vld [vmem:[%s3747 + $0x1ab] sm:$0xf]
  %v4934 = vld [vmem:[%s3747 + $0x1b3] sm:$0xff]
  %v4935 = vld [vmem:[%s3747 + $0x1bb] sm:$0xf]
  %v4984 = vrot.slane %v4888, 4
  %v4985 = vrot.slane %v4890, 4
  %v4986 = vrot.slane %v4892, 4
  %v4987 = vrot.slane %v4894, 4
  %v4988 = vrot.slane %v4896, 4
  %v4989 = vrot.slane %v4898, 4
  %v4990 = vrot.slane %v4900, 4
  %v4991 = vrot.slane %v4902, 4
  %v4992 = vrot.slane %v4904, 4
  %v4993 = vrot.slane %v4906, 4
  %v4994 = vrot.slane %v4908, 4
  %v4995 = vrot.slane %v4910, 4
  %v4996 = vrot.slane %v4912, 4
  %v4997 = vrot.slane %v4914, 4
  %v4998 = vrot.slane %v4916, 4
  %v4999 = vrot.slane %v4918, 4
  %v5000 = vrot.slane %v4920, 4
  %v5001 = vrot.slane %v4922, 4
  %v5002 = vrot.slane %v4924, 4
  %v5003 = vrot.slane %v4926, 4
  %v5004 = vrot.slane %v4928, 4
  %v5005 = vrot.slane %v4930, 4
  %v5006 = vrot.slane %v4932, 4
  %v5007 = vrot.slane %v4934, 4
  %5008 = vst [vmem:[#allocation1] ss:$2 sm:$0xff] %v4888
  %s5009 = scalar_lea.vmem [#allocation1], 1
  %5010 = vst [vmem:[%s5009] ss:$2 sm:$0xff] %v4984
  %s5011 = scalar_lea.vmem [#allocation1], 16
  %5012 = vst [vmem:[%s5011] ss:$2 sm:$0xff] %v4889
  %s5013 = scalar_lea.vmem [#allocation1], 17
  %5014 = vst [vmem:[%s5013] ss:$2 sm:$0xff] %v4890
  %s5015 = scalar_lea.vmem [#allocation1], 32
  %5016 = vst [vmem:[%s5015] ss:$2 sm:$0xff] %v4985
  %s5017 = scalar_lea.vmem [#allocation1], 33
  %5018 = vst [vmem:[%s5017] ss:$2 sm:$0xff] %v4891
  %s5019 = scalar_lea.vmem [#allocation1], 48
  %5020 = vst [vmem:[%s5019] ss:$2 sm:$0xff] %v4892
  %s5021 = scalar_lea.vmem [#allocation1], 49
  %5022 = vst [vmem:[%s5021] ss:$2 sm:$0xff] %v4986
  %v5023 = vld.sshfl [vmem:[#allocation1] sm:$0xff pattern:$0x75316420]
  %v5024 = vld.sshfl [vmem:[#allocation1 + $0x10] sm:$0xff pattern:$0x75316420]
  %v5025 = vld.sshfl [vmem:[#allocation1 + $0x20] sm:$0xff pattern:$0x75316420]
  %v5026 = vld.sshfl [vmem:[#allocation1 + $0x30] sm:$0xff pattern:$0x75316420]
  %5027 = vst [vmem:[#allocation1] ss:$2 sm:$0xff] %v4893
  %5028 = vst [vmem:[%s5009] ss:$2 sm:$0xff] %v4894
  %5029 = vst [vmem:[%s5011] ss:$2 sm:$0xff] %v4987
  %5030 = vst [vmem:[%s5013] ss:$2 sm:$0xff] %v4895
  %5031 = vst [vmem:[%s5015] ss:$2 sm:$0xff] %v4896
  %5032 = vst [vmem:[%s5017] ss:$2 sm:$0xff] %v4988
  %5033 = vst [vmem:[%s5019] ss:$2 sm:$0xff] %v4897
  %5034 = vst [vmem:[%s5021] ss:$2 sm:$0xff] %v4898
  %v5035 = vld.sshfl [vmem:[#allocation1] sm:$0xff pattern:$0x75316420]
  %v5036 = vld.sshfl [vmem:[#allocation1 + $0x10] sm:$0xff pattern:$0x75316420]
  %v5037 = vld.sshfl [vmem:[#allocation1 + $0x20] sm:$0xff pattern:$0x75316420]
  %v5038 = vld.sshfl [vmem:[#allocation1 + $0x30] sm:$0xff pattern:$0x75316420]
  %5039 = vst [vmem:[#allocation1] ss:$2 sm:$0xff] %v4989
  %5040 = vst [vmem:[%s5009] ss:$2 sm:$0xff] %v4899
  %5041 = vst [vmem:[%s5011] ss:$2 sm:$0xff] %v4900
  %5042 = vst [vmem:[%s5013] ss:$2 sm:$0xff] %v4990
  %5043 = vst [vmem:[%s5015] ss:$2 sm:$0xff] %v4901
  %5044 = vst [vmem:[%s5017] ss:$2 sm:$0xff] %v4902
  %5045 = vst [vmem:[%s5019] ss:$2 sm:$0xff] %v4991
  %5046 = vst [vmem:[%s5021] ss:$2 sm:$0xff] %v4903
  %v5047 = vld.sshfl [vmem:[#allocation1] sm:$0xff pattern:$0x75316420]
  %v5048 = vld.sshfl [vmem:[#allocation1 + $0x10] sm:$0xff pattern:$0x75316420]
  %v5049 = vld.sshfl [vmem:[#allocation1 + $0x20] sm:$0xff pattern:$0x75316420]
  %v5050 = vld.sshfl [vmem:[#allocation1 + $0x30] sm:$0xff pattern:$0x75316420]
  %5051 = vst [vmem:[#allocation1] ss:$2 sm:$0xff] %v4904
  %5052 = vst [vmem:[%s5009] ss:$2 sm:$0xff] %v4992
  %5053 = vst [vmem:[%s5011] ss:$2 sm:$0xff] %v4905
  %5054 = vst [vmem:[%s5013] ss:$2 sm:$0xff] %v4906
  %5055 = vst [vmem:[%s5015] ss:$2 sm:$0xff] %v4993
  %5056 = vst [vmem:[%s5017] ss:$2 sm:$0xff] %v4907
  %5057 = vst [vmem:[%s5019] ss:$2 sm:$0xff] %v4908
  %5058 = vst [vmem:[%s5021] ss:$2 sm:$0xff] %v4994
  %v5059 = vld.sshfl [vmem:[#allocation1] sm:$0xff pattern:$0x75316420]
  %v5060 = vld.sshfl [vmem:[#allocation1 + $0x10] sm:$0xff pattern:$0x75316420]
  %v5061 = vld.sshfl [vmem:[#allocation1 + $0x20] sm:$0xff pattern:$0x75316420]
  %v5062 = vld.sshfl [vmem:[#allocation1 + $0x30] sm:$0xff pattern:$0x75316420]
  %5063 = vst [vmem:[#allocation1] ss:$2 sm:$0xff] %v4909
  %5064 = vst [vmem:[%s5009] ss:$2 sm:$0xff] %v4910
  %5065 = vst [vmem:[%s5011] ss:$2 sm:$0xff] %v4995
  %5066 = vst [vmem:[%s5013] ss:$2 sm:$0xff] %v4911
  %5067 = vst [vmem:[%s5015] ss:$2 sm:$0xff] %v4912
  %5068 = vst [vmem:[%s5017] ss:$2 sm:$0xff] %v4996
  %5069 = vst [vmem:[%s5019] ss:$2 sm:$0xff] %v4913
  %5070 = vst [vmem:[%s5021] ss:$2 sm:$0xff] %v4914
  %v5071 = vld.sshfl [vmem:[#allocation1] sm:$0xff pattern:$0x75316420]
  %v5072 = vld.sshfl [vmem:[#allocation1 + $0x10] sm:$0xff pattern:$0x75316420]
  %v5073 = vld.sshfl [vmem:[#allocation1 + $0x20] sm:$0xff pattern:$0x75316420]
  %v5074 = vld.sshfl [vmem:[#allocation1 + $0x30] sm:$0xff pattern:$0x75316420]
  %5075 = vst [vmem:[#allocation1] ss:$2 sm:$0xff] %v4997
  %5076 = vst [vmem:[%s5009] ss:$2 sm:$0xff] %v4915
  %5077 = vst [vmem:[%s5011] ss:$2 sm:$0xff] %v4916
  %5078 = vst [vmem:[%s5013] ss:$2 sm:$0xff] %v4998
  %5079 = vst [vmem:[%s5015] ss:$2 sm:$0xff] %v4917
  %5080 = vst [vmem:[%s5017] ss:$2 sm:$0xff] %v4918
  %5081 = vst [vmem:[%s5019] ss:$2 sm:$0xff] %v4999
  %5082 = vst [vmem:[%s5021] ss:$2 sm:$0xff] %v4919
  %v5083 = vld.sshfl [vmem:[#allocation1] sm:$0xff pattern:$0x75316420]
  %v5084 = vld.sshfl [vmem:[#allocation1 + $0x10] sm:$0xff pattern:$0x75316420]
  %v5085 = vld.sshfl [vmem:[#allocation1 + $0x20] sm:$0xff pattern:$0x75316420]
  %v5086 = vld.sshfl [vmem:[#allocation1 + $0x30] sm:$0xff pattern:$0x75316420]
  %5087 = vst [vmem:[#allocation1] ss:$2 sm:$0xff] %v4920
  %5088 = vst [vmem:[%s5009] ss:$2 sm:$0xff] %v5000
  %5089 = vst [vmem:[%s5011] ss:$2 sm:$0xff] %v4921
  %5090 = vst [vmem:[%s5013] ss:$2 sm:$0xff] %v4922
  %5091 = vst [vmem:[%s5015] ss:$2 sm:$0xff] %v5001
  %5092 = vst [vmem:[%s5017] ss:$2 sm:$0xff] %v4923
  %5093 = vst [vmem:[%s5019] ss:$2 sm:$0xff] %v4924
  %5094 = vst [vmem:[%s5021] ss:$2 sm:$0xff] %v5002
  %v5095 = vld.sshfl [vmem:[#allocation1] sm:$0xff pattern:$0x75316420]
  %v5096 = vld.sshfl [vmem:[#allocation1 + $0x10] sm:$0xff pattern:$0x75316420]
  %v5097 = vld.sshfl [vmem:[#allocation1 + $0x20] sm:$0xff pattern:$0x75316420]
  %v5098 = vld.sshfl [vmem:[#allocation1 + $0x30] sm:$0xff pattern:$0x75316420]
  %5099 = vst [vmem:[#allocation1] ss:$2 sm:$0xff] %v4925
  %5100 = vst [vmem:[%s5009] ss:$2 sm:$0xff] %v4926
  %5101 = vst [vmem:[%s5011] ss:$2 sm:$0xff] %v5003
  %5102 = vst [vmem:[%s5013] ss:$2 sm:$0xff] %v4927
  %5103 = vst [vmem:[%s5015] ss:$2 sm:$0xff] %v4928
  %5104 = vst [vmem:[%s5017] ss:$2 sm:$0xff] %v5004
  %5105 = vst [vmem:[%s5019] ss:$2 sm:$0xff] %v4929
  %5106 = vst [vmem:[%s5021] ss:$2 sm:$0xff] %v4930
  %v5107 = vld.sshfl [vmem:[#allocation1] sm:$0xff pattern:$0x75316420]
  %v5108 = vld.sshfl [vmem:[#allocation1 + $0x10] sm:$0xff pattern:$0x75316420]
  %v5109 = vld.sshfl [vmem:[#allocation1 + $0x20] sm:$0xff pattern:$0x75316420]
  %v5110 = vld.sshfl [vmem:[#allocation1 + $0x30] sm:$0xff pattern:$0x75316420]
  %5111 = vst [vmem:[#allocation1] ss:$2 sm:$0xff] %v5005
  %5112 = vst [vmem:[%s5009] ss:$2 sm:$0xff] %v4931
  %5113 = vst [vmem:[%s5011] ss:$2 sm:$0xff] %v4932
  %5114 = vst [vmem:[%s5013] ss:$2 sm:$0xff] %v5006
  %5115 = vst [vmem:[%s5015] ss:$2 sm:$0xff] %v4933
  %5116 = vst [vmem:[%s5017] ss:$2 sm:$0xff] %v4934
  %5117 = vst [vmem:[%s5019] ss:$2 sm:$0xff] %v5007
  %5118 = vst [vmem:[%s5021] ss:$2 sm:$0xff] %v4935
  %v5119 = vld.sshfl [vmem:[#allocation1] sm:$0xff pattern:$0x75316420]
  %v5120 = vld.sshfl [vmem:[#allocation1 + $0x10] sm:$0xff pattern:$0x75316420]
  %v5121 = vld.sshfl [vmem:[#allocation1 + $0x20] sm:$0xff pattern:$0x75316420]
  %v5122 = vld.sshfl [vmem:[#allocation1 + $0x30] sm:$0xff pattern:$0x75316420]
  %5123 = vrot.lane.b32.xlu0 %v5023, 39
  %v5124 = vpop.permute.xlu0 %5123
  %5125 = vrot.lane.b32.xlu0 %v5024, 39
  %v5126 = vpop.permute.xlu0 %5125
  %5127 = vrot.lane.b32.xlu0 %v5025, 39
  %v5128 = vpop.permute.xlu0 %5127
  %5129 = vrot.lane.b32.xlu0 %v5026, 39
  %v5130 = vpop.permute.xlu0 %5129
  %5131 = vrot.lane.b32.xlu0 %v5035, 39
  %v5132 = vpop.permute.xlu0 %5131
  %5133 = vrot.lane.b32.xlu0 %v5036, 39
  %v5134 = vpop.permute.xlu0 %5133
  %5135 = vrot.lane.b32.xlu0 %v5037, 39
  %v5136 = vpop.permute.xlu0 %5135
  %5137 = vrot.lane.b32.xlu0 %v5038, 39
  %v5138 = vpop.permute.xlu0 %5137
  %5139 = vrot.lane.b32.xlu0 %v5047, 39
  %v5140 = vpop.permute.xlu0 %5139
  %5141 = vrot.lane.b32.xlu0 %v5048, 39
  %v5142 = vpop.permute.xlu0 %5141
  %5143 = vrot.lane.b32.xlu0 %v5049, 39
  %v5144 = vpop.permute.xlu0 %5143
  %5145 = vrot.lane.b32.xlu0 %v5050, 39
  %v5146 = vpop.permute.xlu0 %5145
  %5147 = vrot.lane.b32.xlu0 %v5059, 39
  %v5148 = vpop.permute.xlu0 %5147
  %5149 = vrot.lane.b32.xlu0 %v5060, 39
  %v5150 = vpop.permute.xlu0 %5149
  %5151 = vrot.lane.b32.xlu0 %v5061, 39
  %v5152 = vpop.permute.xlu0 %5151
  %5153 = vrot.lane.b32.xlu0 %v5062, 39
  %v5154 = vpop.permute.xlu0 %5153
  %5155 = vrot.lane.b32.xlu0 %v5071, 39
  %v5156 = vpop.permute.xlu0 %5155
  %5157 = vrot.lane.b32.xlu0 %v5072, 39
  %v5158 = vpop.permute.xlu0 %5157
  %5159 = vrot.lane.b32.xlu0 %v5073, 39
  %v5160 = vpop.permute.xlu0 %5159
  %5161 = vrot.lane.b32.xlu0 %v5074, 39
  %v5162 = vpop.permute.xlu0 %5161
  %5163 = vrot.lane.b32.xlu0 %v5083, 39
  %v5164 = vpop.permute.xlu0 %5163
  %5165 = vrot.lane.b32.xlu0 %v5084, 39
  %v5166 = vpop.permute.xlu0 %5165
  %5167 = vrot.lane.b32.xlu0 %v5085, 39
  %v5168 = vpop.permute.xlu0 %5167
  %5169 = vrot.lane.b32.xlu0 %v5086, 39
  %v5170 = vpop.permute.xlu0 %5169
  %5171 = vrot.lane.b32.xlu0 %v5095, 39
  %v5172 = vpop.permute.xlu0 %5171
  %5173 = vrot.lane.b32.xlu0 %v5096, 39
  %v5174 = vpop.permute.xlu0 %5173
  %5175 = vrot.lane.b32.xlu0 %v5097, 39
  %v5176 = vpop.permute.xlu0 %5175
  %5177 = vrot.lane.b32.xlu0 %v5098, 39
  %v5178 = vpop.permute.xlu0 %5177
  %5179 = vrot.lane.b32.xlu0 %v5107, 39
  %v5180 = vpop.permute.xlu0 %5179
  %5181 = vrot.lane.b32.xlu0 %v5108, 39
  %v5182 = vpop.permute.xlu0 %5181
  %5183 = vrot.lane.b32.xlu0 %v5109, 39
  %v5184 = vpop.permute.xlu0 %5183
  %5185 = vrot.lane.b32.xlu0 %v5110, 39
  %v5186 = vpop.permute.xlu0 %5185
  %5187 = vrot.lane.b32.xlu0 %v5119, 39
  %v5188 = vpop.permute.xlu0 %5187
  %5189 = vrot.lane.b32.xlu0 %v5120, 39
  %v5190 = vpop.permute.xlu0 %5189
  %5191 = vrot.lane.b32.xlu0 %v5121, 39
  %v5192 = vpop.permute.xlu0 %5191
  %5193 = vrot.lane.b32.xlu0 %v5122, 39
  %v5194 = vpop.permute.xlu0 %5193
  %vm5231 = vcmask 343352
  %5232 = vst.msk [vmem:[#allocation2] sm:$0xff] %vm5231, %v5124
  %5233 = vst.msk [vmem:[#allocation2 + $0x8] sm:$0xff] %vm5231, %v5126
  %5234 = vst.msk [vmem:[#allocation2 + $0x10] sm:$0xff] %vm5231, %v5128
  %5235 = vst.msk [vmem:[#allocation2 + $0x18] sm:$0xff] %vm5231, %v5130
  %5236 = vst.msk [vmem:[#allocation2 + $0x20] sm:$0xff] %vm5231, %v5132
  %5237 = vst.msk [vmem:[#allocation2 + $0x28] sm:$0xff] %vm5231, %v5134
  %5238 = vst.msk [vmem:[#allocation2 + $0x30] sm:$0xff] %vm5231, %v5136
  %5239 = vst.msk [vmem:[#allocation2 + $0x38] sm:$0xff] %vm5231, %v5138
  %5240 = vst.msk [vmem:[#allocation2 + $0x40] sm:$0xff] %vm5231, %v5140
  %5241 = vst.msk [vmem:[#allocation2 + $0x48] sm:$0xff] %vm5231, %v5142
  %5242 = vst.msk [vmem:[#allocation2 + $0x50] sm:$0xff] %vm5231, %v5144
  %5243 = vst.msk [vmem:[#allocation2 + $0x58] sm:$0xff] %vm5231, %v5146
  %5244 = vst.msk [vmem:[#allocation2 + $0x60] sm:$0xff] %vm5231, %v5148
  %5245 = vst.msk [vmem:[#allocation2 + $0x68] sm:$0xff] %vm5231, %v5150
  %5246 = vst.msk [vmem:[#allocation2 + $0x70] sm:$0xff] %vm5231, %v5152
  %5247 = vst.msk [vmem:[#allocation2 + $0x78] sm:$0xff] %vm5231, %v5154
  %5248 = vst.msk [vmem:[#allocation2 + $0x80] sm:$0xff] %vm5231, %v5156
  %5249 = vst.msk [vmem:[#allocation2 + $0x88] sm:$0xff] %vm5231, %v5158
  %5250 = vst.msk [vmem:[#allocation2 + $0x90] sm:$0xff] %vm5231, %v5160
  %5251 = vst.msk [vmem:[#allocation2 + $0x98] sm:$0xff] %vm5231, %v5162
  %5252 = vst.msk [vmem:[#allocation2 + $0xa0] sm:$0xff] %vm5231, %v5164
  %5253 = vst.msk [vmem:[#allocation2 + $0xa8] sm:$0xff] %vm5231, %v5166
  %5254 = vst.msk [vmem:[#allocation2 + $0xb0] sm:$0xff] %vm5231, %v5168
  %5255 = vst.msk [vmem:[#allocation2 + $0xb8] sm:$0xff] %vm5231, %v5170
  %5256 = vst.msk [vmem:[#allocation2 + $0xc0] sm:$0xff] %vm5231, %v5172
  %5257 = vst.msk [vmem:[#allocation2 + $0xc8] sm:$0xff] %vm5231, %v5174
  %5258 = vst.msk [vmem:[#allocation2 + $0xd0] sm:$0xff] %vm5231, %v5176
  %5259 = vst.msk [vmem:[#allocation2 + $0xd8] sm:$0xff] %vm5231, %v5178
  %5260 = vst.msk [vmem:[#allocation2 + $0xe0] sm:$0xff] %vm5231, %v5180
  %5261 = vst.msk [vmem:[#allocation2 + $0xe8] sm:$0xff] %vm5231, %v5182
  %5262 = vst.msk [vmem:[#allocation2 + $0xf0] sm:$0xff] %vm5231, %v5184
  %5263 = vst.msk [vmem:[#allocation2 + $0xf8] sm:$0xff] %vm5231, %v5186
  %5264 = vst.msk [vmem:[#allocation2 + $0x100] sm:$0xff] %vm5231, %v5188
  %5265 = vst.msk [vmem:[#allocation2 + $0x108] sm:$0xff] %vm5231, %v5190
  %5266 = vst.msk [vmem:[#allocation2 + $0x110] sm:$0xff] %vm5231, %v5192
  %5267 = vst.msk [vmem:[#allocation2 + $0x118] sm:$0xff] %vm5231, %v5194
  %v5268 = vld [vmem:[%s3747 + $0x4] sm:$0xff]
  %v5269 = vld [vmem:[%s3747 + $0xc] sm:$0xf]
  %v5270 = vld [vmem:[%s3747 + $0x14] sm:$0xff]
  %v5271 = vld [vmem:[%s3747 + $0x1c] sm:$0xf]
  %v5272 = vld [vmem:[%s3747 + $0x24] sm:$0xff]
  %v5273 = vld [vmem:[%s3747 + $0x2c] sm:$0xf]
  %v5274 = vld [vmem:[%s3747 + $0x34] sm:$0xff]
  %v5275 = vld [vmem:[%s3747 + $0x3c] sm:$0xf]
  %v5276 = vld [vmem:[%s3747 + $0x44] sm:$0xff]
  %v5277 = vld [vmem:[%s3747 + $0x4c] sm:$0xf]
  %v5278 = vld [vmem:[%s3747 + $0x54] sm:$0xff]
  %v5279 = vld [vmem:[%s3747 + $0x5c] sm:$0xf]
  %v5280 = vld [vmem:[%s3747 + $0x64] sm:$0xff]
  %v5281 = vld [vmem:[%s3747 + $0x6c] sm:$0xf]
  %v5282 = vld [vmem:[%s3747 + $0x74] sm:$0xff]
  %v5283 = vld [vmem:[%s3747 + $0x7c] sm:$0xf]
  %v5284 = vld [vmem:[%s3747 + $0x84] sm:$0xff]
  %v5285 = vld [vmem:[%s3747 + $0x8c] sm:$0xf]
  %v5286 = vld [vmem:[%s3747 + $0x94] sm:$0xff]
  %v5287 = vld [vmem:[%s3747 + $0x9c] sm:$0xf]
  %v5288 = vld [vmem:[%s3747 + $0xa4] sm:$0xff]
  %v5289 = vld [vmem:[%s3747 + $0xac] sm:$0xf]
  %v5290 = vld [vmem:[%s3747 + $0xb4] sm:$0xff]
  %v5291 = vld [vmem:[%s3747 + $0xbc] sm:$0xf]
  %v5292 = vld [vmem:[%s3747 + $0x104] sm:$0xff]
  %v5293 = vld [vmem:[%s3747 + $0x10c] sm:$0xf]
  %v5294 = vld [vmem:[%s3747 + $0x114] sm:$0xff]
  %v5295 = vld [vmem:[%s3747 + $0x11c] sm:$0xf]
  %v5296 = vld [vmem:[%s3747 + $0x124] sm:$0xff]
  %v5297 = vld [vmem:[%s3747 + $0x12c] sm:$0xf]
  %v5298 = vld [vmem:[%s3747 + $0x134] sm:$0xff]
  %v5299 = vld [vmem:[%s3747 + $0x13c] sm:$0xf]
  %v5300 = vld [vmem:[%s3747 + $0x144] sm:$0xff]
  %v5301 = vld [vmem:[%s3747 + $0x14c] sm:$0xf]
  %v5302 = vld [vmem:[%s3747 + $0x154] sm:$0xff]
  %v5303 = vld [vmem:[%s3747 + $0x15c] sm:$0xf]
  %v5304 = vld [vmem:[%s3747 + $0x164] sm:$0xff]
  %v5305 = vld [vmem:[%s3747 + $0x16c] sm:$0xf]
  %v5306 = vld [vmem:[%s3747 + $0x174] sm:$0xff]
  %v5307 = vld [vmem:[%s3747 + $0x17c] sm:$0xf]
  %v5308 = vld [vmem:[%s3747 + $0x184] sm:$0xff]
  %v5309 = vld [vmem:[%s3747 + $0x18c] sm:$0xf]
  %v5310 = vld [vmem:[%s3747 + $0x194] sm:$0xff]
  %v5311 = vld [vmem:[%s3747 + $0x19c] sm:$0xf]
  %v5312 = vld [vmem:[%s3747 + $0x1a4] sm:$0xff]
  %v5313 = vld [vmem:[%s3747 + $0x1ac] sm:$0xf]
  %v5314 = vld [vmem:[%s3747 + $0x1b4] sm:$0xff]
  %v5315 = vld [vmem:[%s3747 + $0x1bc] sm:$0xf]
  %v5364 = vrot.slane %v5268, 4
  %v5365 = vrot.slane %v5270, 4
  %v5366 = vrot.slane %v5272, 4
  %v5367 = vrot.slane %v5274, 4
  %v5368 = vrot.slane %v5276, 4
  %v5369 = vrot.slane %v5278, 4
  %v5370 = vrot.slane %v5280, 4
  %v5371 = vrot.slane %v5282, 4
  %v5372 = vrot.slane %v5284, 4
  %v5373 = vrot.slane %v5286, 4
  %v5374 = vrot.slane %v5288, 4
  %v5375 = vrot.slane %v5290, 4
  %v5376 = vrot.slane %v5292, 4
  %v5377 = vrot.slane %v5294, 4
  %v5378 = vrot.slane %v5296, 4
  %v5379 = vrot.slane %v5298, 4
  %v5380 = vrot.slane %v5300, 4
  %v5381 = vrot.slane %v5302, 4
  %v5382 = vrot.slane %v5304, 4
  %v5383 = vrot.slane %v5306, 4
  %v5384 = vrot.slane %v5308, 4
  %v5385 = vrot.slane %v5310, 4
  %v5386 = vrot.slane %v5312, 4
  %v5387 = vrot.slane %v5314, 4
  %5388 = vst [vmem:[#allocation1] ss:$2 sm:$0xff] %v5268
  %s5389 = scalar_lea.vmem [#allocation1], 1
  %5390 = vst [vmem:[%s5389] ss:$2 sm:$0xff] %v5364
  %s5391 = scalar_lea.vmem [#allocation1], 16
  %5392 = vst [vmem:[%s5391] ss:$2 sm:$0xff] %v5269
  %s5393 = scalar_lea.vmem [#allocation1], 17
  %5394 = vst [vmem:[%s5393] ss:$2 sm:$0xff] %v5270
  %s5395 = scalar_lea.vmem [#allocation1], 32
  %5396 = vst [vmem:[%s5395] ss:$2 sm:$0xff] %v5365
  %s5397 = scalar_lea.vmem [#allocation1], 33
  %5398 = vst [vmem:[%s5397] ss:$2 sm:$0xff] %v5271
  %s5399 = scalar_lea.vmem [#allocation1], 48
  %5400 = vst [vmem:[%s5399] ss:$2 sm:$0xff] %v5272
  %s5401 = scalar_lea.vmem [#allocation1], 49
  %5402 = vst [vmem:[%s5401] ss:$2 sm:$0xff] %v5366
  %v5403 = vld.sshfl [vmem:[#allocation1] sm:$0xff pattern:$0x75316420]
  %v5404 = vld.sshfl [vmem:[#allocation1 + $0x10] sm:$0xff pattern:$0x75316420]
  %v5405 = vld.sshfl [vmem:[#allocation1 + $0x20] sm:$0xff pattern:$0x75316420]
  %v5406 = vld.sshfl [vmem:[#allocation1 + $0x30] sm:$0xff pattern:$0x75316420]
  %5407 = vst [vmem:[#allocation1] ss:$2 sm:$0xff] %v5273
  %5408 = vst [vmem:[%s5389] ss:$2 sm:$0xff] %v5274
  %5409 = vst [vmem:[%s5391] ss:$2 sm:$0xff] %v5367
  %5410 = vst [vmem:[%s5393] ss:$2 sm:$0xff] %v5275
  %5411 = vst [vmem:[%s5395] ss:$2 sm:$0xff] %v5276
  %5412 = vst [vmem:[%s5397] ss:$2 sm:$0xff] %v5368
  %5413 = vst [vmem:[%s5399] ss:$2 sm:$0xff] %v5277
  %5414 = vst [vmem:[%s5401] ss:$2 sm:$0xff] %v5278
  %v5415 = vld.sshfl [vmem:[#allocation1] sm:$0xff pattern:$0x75316420]
  %v5416 = vld.sshfl [vmem:[#allocation1 + $0x10] sm:$0xff pattern:$0x75316420]
  %v5417 = vld.sshfl [vmem:[#allocation1 + $0x20] sm:$0xff pattern:$0x75316420]
  %v5418 = vld.sshfl [vmem:[#allocation1 + $0x30] sm:$0xff pattern:$0x75316420]
  %5419 = vst [vmem:[#allocation1] ss:$2 sm:$0xff] %v5369
  %5420 = vst [vmem:[%s5389] ss:$2 sm:$0xff] %v5279
  %5421 = vst [vmem:[%s5391] ss:$2 sm:$0xff] %v5280
  %5422 = vst [vmem:[%s5393] ss:$2 sm:$0xff] %v5370
  %5423 = vst [vmem:[%s5395] ss:$2 sm:$0xff] %v5281
  %5424 = vst [vmem:[%s5397] ss:$2 sm:$0xff] %v5282
  %5425 = vst [vmem:[%s5399] ss:$2 sm:$0xff] %v5371
  %5426 = vst [vmem:[%s5401] ss:$2 sm:$0xff] %v5283
  %v5427 = vld.sshfl [vmem:[#allocation1] sm:$0xff pattern:$0x75316420]
  %v5428 = vld.sshfl [vmem:[#allocation1 + $0x10] sm:$0xff pattern:$0x75316420]
  %v5429 = vld.sshfl [vmem:[#allocation1 + $0x20] sm:$0xff pattern:$0x75316420]
  %v5430 = vld.sshfl [vmem:[#allocation1 + $0x30] sm:$0xff pattern:$0x75316420]
  %5431 = vst [vmem:[#allocation1] ss:$2 sm:$0xff] %v5284
  %5432 = vst [vmem:[%s5389] ss:$2 sm:$0xff] %v5372
  %5433 = vst [vmem:[%s5391] ss:$2 sm:$0xff] %v5285
  %5434 = vst [vmem:[%s5393] ss:$2 sm:$0xff] %v5286
  %5435 = vst [vmem:[%s5395] ss:$2 sm:$0xff] %v5373
  %5436 = vst [vmem:[%s5397] ss:$2 sm:$0xff] %v5287
  %5437 = vst [vmem:[%s5399] ss:$2 sm:$0xff] %v5288
  %5438 = vst [vmem:[%s5401] ss:$2 sm:$0xff] %v5374
  %v5439 = vld.sshfl [vmem:[#allocation1] sm:$0xff pattern:$0x75316420]
  %v5440 = vld.sshfl [vmem:[#allocation1 + $0x10] sm:$0xff pattern:$0x75316420]
  %v5441 = vld.sshfl [vmem:[#allocation1 + $0x20] sm:$0xff pattern:$0x75316420]
  %v5442 = vld.sshfl [vmem:[#allocation1 + $0x30] sm:$0xff pattern:$0x75316420]
  %5443 = vst [vmem:[#allocation1] ss:$2 sm:$0xff] %v5289
  %5444 = vst [vmem:[%s5389] ss:$2 sm:$0xff] %v5290
  %5445 = vst [vmem:[%s5391] ss:$2 sm:$0xff] %v5375
  %5446 = vst [vmem:[%s5393] ss:$2 sm:$0xff] %v5291
  %5447 = vst [vmem:[%s5395] ss:$2 sm:$0xff] %v5292
  %5448 = vst [vmem:[%s5397] ss:$2 sm:$0xff] %v5376
  %5449 = vst [vmem:[%s5399] ss:$2 sm:$0xff] %v5293
  %5450 = vst [vmem:[%s5401] ss:$2 sm:$0xff] %v5294
  %v5451 = vld.sshfl [vmem:[#allocation1] sm:$0xff pattern:$0x75316420]
  %v5452 = vld.sshfl [vmem:[#allocation1 + $0x10] sm:$0xff pattern:$0x75316420]
  %v5453 = vld.sshfl [vmem:[#allocation1 + $0x20] sm:$0xff pattern:$0x75316420]
  %v5454 = vld.sshfl [vmem:[#allocation1 + $0x30] sm:$0xff pattern:$0x75316420]
  %5455 = vst [vmem:[#allocation1] ss:$2 sm:$0xff] %v5377
  %5456 = vst [vmem:[%s5389] ss:$2 sm:$0xff] %v5295
  %5457 = vst [vmem:[%s5391] ss:$2 sm:$0xff] %v5296
  %5458 = vst [vmem:[%s5393] ss:$2 sm:$0xff] %v5378
  %5459 = vst [vmem:[%s5395] ss:$2 sm:$0xff] %v5297
  %5460 = vst [vmem:[%s5397] ss:$2 sm:$0xff] %v5298
  %5461 = vst [vmem:[%s5399] ss:$2 sm:$0xff] %v5379
  %5462 = vst [vmem:[%s5401] ss:$2 sm:$0xff] %v5299
  %v5463 = vld.sshfl [vmem:[#allocation1] sm:$0xff pattern:$0x75316420]
  %v5464 = vld.sshfl [vmem:[#allocation1 + $0x10] sm:$0xff pattern:$0x75316420]
  %v5465 = vld.sshfl [vmem:[#allocation1 + $0x20] sm:$0xff pattern:$0x75316420]
  %v5466 = vld.sshfl [vmem:[#allocation1 + $0x30] sm:$0xff pattern:$0x75316420]
  %5467 = vst [vmem:[#allocation1] ss:$2 sm:$0xff] %v5300
  %5468 = vst [vmem:[%s5389] ss:$2 sm:$0xff] %v5380
  %5469 = vst [vmem:[%s5391] ss:$2 sm:$0xff] %v5301
  %5470 = vst [vmem:[%s5393] ss:$2 sm:$0xff] %v5302
  %5471 = vst [vmem:[%s5395] ss:$2 sm:$0xff] %v5381
  %5472 = vst [vmem:[%s5397] ss:$2 sm:$0xff] %v5303
  %5473 = vst [vmem:[%s5399] ss:$2 sm:$0xff] %v5304
  %5474 = vst [vmem:[%s5401] ss:$2 sm:$0xff] %v5382
  %v5475 = vld.sshfl [vmem:[#allocation1] sm:$0xff pattern:$0x75316420]
  %v5476 = vld.sshfl [vmem:[#allocation1 + $0x10] sm:$0xff pattern:$0x75316420]
  %v5477 = vld.sshfl [vmem:[#allocation1 + $0x20] sm:$0xff pattern:$0x75316420]
  %v5478 = vld.sshfl [vmem:[#allocation1 + $0x30] sm:$0xff pattern:$0x75316420]
  %5479 = vst [vmem:[#allocation1] ss:$2 sm:$0xff] %v5305
  %5480 = vst [vmem:[%s5389] ss:$2 sm:$0xff] %v5306
  %5481 = vst [vmem:[%s5391] ss:$2 sm:$0xff] %v5383
  %5482 = vst [vmem:[%s5393] ss:$2 sm:$0xff] %v5307
  %5483 = vst [vmem:[%s5395] ss:$2 sm:$0xff] %v5308
  %5484 = vst [vmem:[%s5397] ss:$2 sm:$0xff] %v5384
  %5485 = vst [vmem:[%s5399] ss:$2 sm:$0xff] %v5309
  %5486 = vst [vmem:[%s5401] ss:$2 sm:$0xff] %v5310
  %v5487 = vld.sshfl [vmem:[#allocation1] sm:$0xff pattern:$0x75316420]
  %v5488 = vld.sshfl [vmem:[#allocation1 + $0x10] sm:$0xff pattern:$0x75316420]
  %v5489 = vld.sshfl [vmem:[#allocation1 + $0x20] sm:$0xff pattern:$0x75316420]
  %v5490 = vld.sshfl [vmem:[#allocation1 + $0x30] sm:$0xff pattern:$0x75316420]
  %5491 = vst [vmem:[#allocation1] ss:$2 sm:$0xff] %v5385
  %5492 = vst [vmem:[%s5389] ss:$2 sm:$0xff] %v5311
  %5493 = vst [vmem:[%s5391] ss:$2 sm:$0xff] %v5312
  %5494 = vst [vmem:[%s5393] ss:$2 sm:$0xff] %v5386
  %5495 = vst [vmem:[%s5395] ss:$2 sm:$0xff] %v5313
  %5496 = vst [vmem:[%s5397] ss:$2 sm:$0xff] %v5314
  %5497 = vst [vmem:[%s5399] ss:$2 sm:$0xff] %v5387
  %5498 = vst [vmem:[%s5401] ss:$2 sm:$0xff] %v5315
  %v5499 = vld.sshfl [vmem:[#allocation1] sm:$0xff pattern:$0x75316420]
  %v5500 = vld.sshfl [vmem:[#allocation1 + $0x10] sm:$0xff pattern:$0x75316420]
  %v5501 = vld.sshfl [vmem:[#allocation1 + $0x20] sm:$0xff pattern:$0x75316420]
  %v5502 = vld.sshfl [vmem:[#allocation1 + $0x30] sm:$0xff pattern:$0x75316420]
  %5503 = vrot.lane.b32.xlu0 %v5403, 42
  %v5504 = vpop.permute.xlu0 %5503
  %5505 = vrot.lane.b32.xlu0 %v5404, 42
  %v5506 = vpop.permute.xlu0 %5505
  %5507 = vrot.lane.b32.xlu0 %v5405, 42
  %v5508 = vpop.permute.xlu0 %5507
  %5509 = vrot.lane.b32.xlu0 %v5406, 42
  %v5510 = vpop.permute.xlu0 %5509
  %5511 = vrot.lane.b32.xlu0 %v5415, 42
  %v5512 = vpop.permute.xlu0 %5511
  %5513 = vrot.lane.b32.xlu0 %v5416, 42
  %v5514 = vpop.permute.xlu0 %5513
  %5515 = vrot.lane.b32.xlu0 %v5417, 42
  %v5516 = vpop.permute.xlu0 %5515
  %5517 = vrot.lane.b32.xlu0 %v5418, 42
  %v5518 = vpop.permute.xlu0 %5517
  %5519 = vrot.lane.b32.xlu0 %v5427, 42
  %v5520 = vpop.permute.xlu0 %5519
  %5521 = vrot.lane.b32.xlu0 %v5428, 42
  %v5522 = vpop.permute.xlu0 %5521
  %5523 = vrot.lane.b32.xlu0 %v5429, 42
  %v5524 = vpop.permute.xlu0 %5523
  %5525 = vrot.lane.b32.xlu0 %v5430, 42
  %v5526 = vpop.permute.xlu0 %5525
  %5527 = vrot.lane.b32.xlu0 %v5439, 42
  %v5528 = vpop.permute.xlu0 %5527
  %5529 = vrot.lane.b32.xlu0 %v5440, 42
  %v5530 = vpop.permute.xlu0 %5529
  %5531 = vrot.lane.b32.xlu0 %v5441, 42
  %v5532 = vpop.permute.xlu0 %5531
  %5533 = vrot.lane.b32.xlu0 %v5442, 42
  %v5534 = vpop.permute.xlu0 %5533
  %5535 = vrot.lane.b32.xlu0 %v5451, 42
  %v5536 = vpop.permute.xlu0 %5535
  %5537 = vrot.lane.b32.xlu0 %v5452, 42
  %v5538 = vpop.permute.xlu0 %5537
  %5539 = vrot.lane.b32.xlu0 %v5453, 42
  %v5540 = vpop.permute.xlu0 %5539
  %5541 = vrot.lane.b32.xlu0 %v5454, 42
  %v5542 = vpop.permute.xlu0 %5541
  %5543 = vrot.lane.b32.xlu0 %v5463, 42
  %v5544 = vpop.permute.xlu0 %5543
  %5545 = vrot.lane.b32.xlu0 %v5464, 42
  %v5546 = vpop.permute.xlu0 %5545
  %5547 = vrot.lane.b32.xlu0 %v5465, 42
  %v5548 = vpop.permute.xlu0 %5547
  %5549 = vrot.lane.b32.xlu0 %v5466, 42
  %v5550 = vpop.permute.xlu0 %5549
  %5551 = vrot.lane.b32.xlu0 %v5475, 42
  %v5552 = vpop.permute.xlu0 %5551
  %5553 = vrot.lane.b32.xlu0 %v5476, 42
  %v5554 = vpop.permute.xlu0 %5553
  %5555 = vrot.lane.b32.xlu0 %v5477, 42
  %v5556 = vpop.permute.xlu0 %5555
  %5557 = vrot.lane.b32.xlu0 %v5478, 42
  %v5558 = vpop.permute.xlu0 %5557
  %5559 = vrot.lane.b32.xlu0 %v5487, 42
  %v5560 = vpop.permute.xlu0 %5559
  %5561 = vrot.lane.b32.xlu0 %v5488, 42
  %v5562 = vpop.permute.xlu0 %5561
  %5563 = vrot.lane.b32.xlu0 %v5489, 42
  %v5564 = vpop.permute.xlu0 %5563
  %5565 = vrot.lane.b32.xlu0 %v5490, 42
  %v5566 = vpop.permute.xlu0 %5565
  %5567 = vrot.lane.b32.xlu0 %v5499, 42
  %v5568 = vpop.permute.xlu0 %5567
  %5569 = vrot.lane.b32.xlu0 %v5500, 42
  %v5570 = vpop.permute.xlu0 %5569
  %5571 = vrot.lane.b32.xlu0 %v5501, 42
  %v5572 = vpop.permute.xlu0 %5571
  %5573 = vrot.lane.b32.xlu0 %v5502, 42
  %v5574 = vpop.permute.xlu0 %5573
  %vm5611 = vcmask 367952
  %5612 = vst.msk [vmem:[#allocation2] sm:$0xff] %vm5611, %v5504
  %5613 = vst.msk [vmem:[#allocation2 + $0x8] sm:$0xff] %vm5611, %v5506
  %5614 = vst.msk [vmem:[#allocation2 + $0x10] sm:$0xff] %vm5611, %v5508
  %5615 = vst.msk [vmem:[#allocation2 + $0x18] sm:$0xff] %vm5611, %v5510
  %5616 = vst.msk [vmem:[#allocation2 + $0x20] sm:$0xff] %vm5611, %v5512
  %5617 = vst.msk [vmem:[#allocation2 + $0x28] sm:$0xff] %vm5611, %v5514
  %5618 = vst.msk [vmem:[#allocation2 + $0x30] sm:$0xff] %vm5611, %v5516
  %5619 = vst.msk [vmem:[#allocation2 + $0x38] sm:$0xff] %vm5611, %v5518
  %5620 = vst.msk [vmem:[#allocation2 + $0x40] sm:$0xff] %vm5611, %v5520
  %5621 = vst.msk [vmem:[#allocation2 + $0x48] sm:$0xff] %vm5611, %v5522
  %5622 = vst.msk [vmem:[#allocation2 + $0x50] sm:$0xff] %vm5611, %v5524
  %5623 = vst.msk [vmem:[#allocation2 + $0x58] sm:$0xff] %vm5611, %v5526
  %5624 = vst.msk [vmem:[#allocation2 + $0x60] sm:$0xff] %vm5611, %v5528
  %5625 = vst.msk [vmem:[#allocation2 + $0x68] sm:$0xff] %vm5611, %v5530
  %5626 = vst.msk [vmem:[#allocation2 + $0x70] sm:$0xff] %vm5611, %v5532
  %5627 = vst.msk [vmem:[#allocation2 + $0x78] sm:$0xff] %vm5611, %v5534
  %5628 = vst.msk [vmem:[#allocation2 + $0x80] sm:$0xff] %vm5611, %v5536
  %5629 = vst.msk [vmem:[#allocation2 + $0x88] sm:$0xff] %vm5611, %v5538
  %5630 = vst.msk [vmem:[#allocation2 + $0x90] sm:$0xff] %vm5611, %v5540
  %5631 = vst.msk [vmem:[#allocation2 + $0x98] sm:$0xff] %vm5611, %v5542
  %5632 = vst.msk [vmem:[#allocation2 + $0xa0] sm:$0xff] %vm5611, %v5544
  %5633 = vst.msk [vmem:[#allocation2 + $0xa8] sm:$0xff] %vm5611, %v5546
  %5634 = vst.msk [vmem:[#allocation2 + $0xb0] sm:$0xff] %vm5611, %v5548
  %5635 = vst.msk [vmem:[#allocation2 + $0xb8] sm:$0xff] %vm5611, %v5550
  %5636 = vst.msk [vmem:[#allocation2 + $0xc0] sm:$0xff] %vm5611, %v5552
  %5637 = vst.msk [vmem:[#allocation2 + $0xc8] sm:$0xff] %vm5611, %v5554
  %5638 = vst.msk [vmem:[#allocation2 + $0xd0] sm:$0xff] %vm5611, %v5556
  %5639 = vst.msk [vmem:[#allocation2 + $0xd8] sm:$0xff] %vm5611, %v5558
  %5640 = vst.msk [vmem:[#allocation2 + $0xe0] sm:$0xff] %vm5611, %v5560
  %5641 = vst.msk [vmem:[#allocation2 + $0xe8] sm:$0xff] %vm5611, %v5562
  %5642 = vst.msk [vmem:[#allocation2 + $0xf0] sm:$0xff] %vm5611, %v5564
  %5643 = vst.msk [vmem:[#allocation2 + $0xf8] sm:$0xff] %vm5611, %v5566
  %5644 = vst.msk [vmem:[#allocation2 + $0x100] sm:$0xff] %vm5611, %v5568
  %5645 = vst.msk [vmem:[#allocation2 + $0x108] sm:$0xff] %vm5611, %v5570
  %5646 = vst.msk [vmem:[#allocation2 + $0x110] sm:$0xff] %vm5611, %v5572
  %5647 = vst.msk [vmem:[#allocation2 + $0x118] sm:$0xff] %vm5611, %v5574
  %s5648 = scalar_lea.vmem %s1, 48
  %v5649 = vld [vmem:[%s5648] sm:$0xff]
  %v5650 = vld [vmem:[%s5648 + $0x8] sm:$0xf]
  %v5651 = vld [vmem:[%s5648 + $0x10] sm:$0xff]
  %v5652 = vld [vmem:[%s5648 + $0x18] sm:$0xf]
  %v5653 = vld [vmem:[%s5648 + $0x20] sm:$0xff]
  %v5654 = vld [vmem:[%s5648 + $0x28] sm:$0xf]
  %v5655 = vld [vmem:[%s5648 + $0x30] sm:$0xff]
  %v5656 = vld [vmem:[%s5648 + $0x38] sm:$0xf]
  %v5657 = vld [vmem:[%s5648 + $0x40] sm:$0xff]
  %v5658 = vld [vmem:[%s5648 + $0x48] sm:$0xf]
  %v5659 = vld [vmem:[%s5648 + $0x50] sm:$0xff]
  %v5660 = vld [vmem:[%s5648 + $0x58] sm:$0xf]
  %v5661 = vld [vmem:[%s5648 + $0x60] sm:$0xff]
  %v5662 = vld [vmem:[%s5648 + $0x68] sm:$0xf]
  %v5663 = vld [vmem:[%s5648 + $0x70] sm:$0xff]
  %v5664 = vld [vmem:[%s5648 + $0x78] sm:$0xf]
  %v5665 = vld [vmem:[%s5648 + $0x80] sm:$0xff]
  %v5666 = vld [vmem:[%s5648 + $0x88] sm:$0xf]
  %v5667 = vld [vmem:[%s5648 + $0x90] sm:$0xff]
  %v5668 = vld [vmem:[%s5648 + $0x98] sm:$0xf]
  %v5669 = vld [vmem:[%s5648 + $0xa0] sm:$0xff]
  %v5670 = vld [vmem:[%s5648 + $0xa8] sm:$0xf]
  %v5671 = vld [vmem:[%s5648 + $0xb0] sm:$0xff]
  %v5672 = vld [vmem:[%s5648 + $0xb8] sm:$0xf]
  %v5673 = vld [vmem:[%s5648 + $0x100] sm:$0xff]
  %v5674 = vld [vmem:[%s5648 + $0x108] sm:$0xf]
  %v5675 = vld [vmem:[%s5648 + $0x110] sm:$0xff]
  %v5676 = vld [vmem:[%s5648 + $0x118] sm:$0xf]
  %v5677 = vld [vmem:[%s5648 + $0x120] sm:$0xff]
  %v5678 = vld [vmem:[%s5648 + $0x128] sm:$0xf]
  %v5679 = vld [vmem:[%s5648 + $0x130] sm:$0xff]
  %v5680 = vld [vmem:[%s5648 + $0x138] sm:$0xf]
  %v5681 = vld [vmem:[%s5648 + $0x140] sm:$0xff]
  %v5682 = vld [vmem:[%s5648 + $0x148] sm:$0xf]
  %v5683 = vld [vmem:[%s5648 + $0x150] sm:$0xff]
  %v5684 = vld [vmem:[%s5648 + $0x158] sm:$0xf]
  %v5685 = vld [vmem:[%s5648 + $0x160] sm:$0xff]
  %v5686 = vld [vmem:[%s5648 + $0x168] sm:$0xf]
  %v5687 = vld [vmem:[%s5648 + $0x170] sm:$0xff]
  %v5688 = vld [vmem:[%s5648 + $0x178] sm:$0xf]
  %v5689 = vld [vmem:[%s5648 + $0x180] sm:$0xff]
  %v5690 = vld [vmem:[%s5648 + $0x188] sm:$0xf]
  %v5691 = vld [vmem:[%s5648 + $0x190] sm:$0xff]
  %v5692 = vld [vmem:[%s5648 + $0x198] sm:$0xf]
  %v5693 = vld [vmem:[%s5648 + $0x1a0] sm:$0xff]
  %v5694 = vld [vmem:[%s5648 + $0x1a8] sm:$0xf]
  %v5695 = vld [vmem:[%s5648 + $0x1b0] sm:$0xff]
  %v5696 = vld [vmem:[%s5648 + $0x1b8] sm:$0xf]
  %v5745 = vrot.slane %v5649, 4
  %v5746 = vrot.slane %v5651, 4
  %v5747 = vrot.slane %v5653, 4
  %v5748 = vrot.slane %v5655, 4
  %v5749 = vrot.slane %v5657, 4
  %v5750 = vrot.slane %v5659, 4
  %v5751 = vrot.slane %v5661, 4
  %v5752 = vrot.slane %v5663, 4
  %v5753 = vrot.slane %v5665, 4
  %v5754 = vrot.slane %v5667, 4
  %v5755 = vrot.slane %v5669, 4
  %v5756 = vrot.slane %v5671, 4
  %v5757 = vrot.slane %v5673, 4
  %v5758 = vrot.slane %v5675, 4
  %v5759 = vrot.slane %v5677, 4
  %v5760 = vrot.slane %v5679, 4
  %v5761 = vrot.slane %v5681, 4
  %v5762 = vrot.slane %v5683, 4
  %v5763 = vrot.slane %v5685, 4
  %v5764 = vrot.slane %v5687, 4
  %v5765 = vrot.slane %v5689, 4
  %v5766 = vrot.slane %v5691, 4
  %v5767 = vrot.slane %v5693, 4
  %v5768 = vrot.slane %v5695, 4
  %5769 = vst [vmem:[#allocation1] ss:$2 sm:$0xff] %v5649
  %s5770 = scalar_lea.vmem [#allocation1], 1
  %5771 = vst [vmem:[%s5770] ss:$2 sm:$0xff] %v5745
  %s5772 = scalar_lea.vmem [#allocation1], 16
  %5773 = vst [vmem:[%s5772] ss:$2 sm:$0xff] %v5650
  %s5774 = scalar_lea.vmem [#allocation1], 17
  %5775 = vst [vmem:[%s5774] ss:$2 sm:$0xff] %v5651
  %s5776 = scalar_lea.vmem [#allocation1], 32
  %5777 = vst [vmem:[%s5776] ss:$2 sm:$0xff] %v5746
  %s5778 = scalar_lea.vmem [#allocation1], 33
  %5779 = vst [vmem:[%s5778] ss:$2 sm:$0xff] %v5652
  %s5780 = scalar_lea.vmem [#allocation1], 48
  %5781 = vst [vmem:[%s5780] ss:$2 sm:$0xff] %v5653
  %s5782 = scalar_lea.vmem [#allocation1], 49
  %5783 = vst [vmem:[%s5782] ss:$2 sm:$0xff] %v5747
  %v5784 = vld.sshfl [vmem:[#allocation1] sm:$0xff pattern:$0x75316420]
  %v5785 = vld.sshfl [vmem:[#allocation1 + $0x10] sm:$0xff pattern:$0x75316420]
  %v5786 = vld.sshfl [vmem:[#allocation1 + $0x20] sm:$0xff pattern:$0x75316420]
  %v5787 = vld.sshfl [vmem:[#allocation1 + $0x30] sm:$0xff pattern:$0x75316420]
  %5788 = vst [vmem:[#allocation1] ss:$2 sm:$0xff] %v5654
  %5789 = vst [vmem:[%s5770] ss:$2 sm:$0xff] %v5655
  %5790 = vst [vmem:[%s5772] ss:$2 sm:$0xff] %v5748
  %5791 = vst [vmem:[%s5774] ss:$2 sm:$0xff] %v5656
  %5792 = vst [vmem:[%s5776] ss:$2 sm:$0xff] %v5657
  %5793 = vst [vmem:[%s5778] ss:$2 sm:$0xff] %v5749
  %5794 = vst [vmem:[%s5780] ss:$2 sm:$0xff] %v5658
  %5795 = vst [vmem:[%s5782] ss:$2 sm:$0xff] %v5659
  %v5796 = vld.sshfl [vmem:[#allocation1] sm:$0xff pattern:$0x75316420]
  %v5797 = vld.sshfl [vmem:[#allocation1 + $0x10] sm:$0xff pattern:$0x75316420]
  %v5798 = vld.sshfl [vmem:[#allocation1 + $0x20] sm:$0xff pattern:$0x75316420]
  %v5799 = vld.sshfl [vmem:[#allocation1 + $0x30] sm:$0xff pattern:$0x75316420]
  %5800 = vst [vmem:[#allocation1] ss:$2 sm:$0xff] %v5750
  %5801 = vst [vmem:[%s5770] ss:$2 sm:$0xff] %v5660
  %5802 = vst [vmem:[%s5772] ss:$2 sm:$0xff] %v5661
  %5803 = vst [vmem:[%s5774] ss:$2 sm:$0xff] %v5751
  %5804 = vst [vmem:[%s5776] ss:$2 sm:$0xff] %v5662
  %5805 = vst [vmem:[%s5778] ss:$2 sm:$0xff] %v5663
  %5806 = vst [vmem:[%s5780] ss:$2 sm:$0xff] %v5752
  %5807 = vst [vmem:[%s5782] ss:$2 sm:$0xff] %v5664
  %v5808 = vld.sshfl [vmem:[#allocation1] sm:$0xff pattern:$0x75316420]
  %v5809 = vld.sshfl [vmem:[#allocation1 + $0x10] sm:$0xff pattern:$0x75316420]
  %v5810 = vld.sshfl [vmem:[#allocation1 + $0x20] sm:$0xff pattern:$0x75316420]
  %v5811 = vld.sshfl [vmem:[#allocation1 + $0x30] sm:$0xff pattern:$0x75316420]
  %5812 = vst [vmem:[#allocation1] ss:$2 sm:$0xff] %v5665
  %5813 = vst [vmem:[%s5770] ss:$2 sm:$0xff] %v5753
  %5814 = vst [vmem:[%s5772] ss:$2 sm:$0xff] %v5666
  %5815 = vst [vmem:[%s5774] ss:$2 sm:$0xff] %v5667
  %5816 = vst [vmem:[%s5776] ss:$2 sm:$0xff] %v5754
  %5817 = vst [vmem:[%s5778] ss:$2 sm:$0xff] %v5668
  %5818 = vst [vmem:[%s5780] ss:$2 sm:$0xff] %v5669
  %5819 = vst [vmem:[%s5782] ss:$2 sm:$0xff] %v5755
  %v5820 = vld.sshfl [vmem:[#allocation1] sm:$0xff pattern:$0x75316420]
  %v5821 = vld.sshfl [vmem:[#allocation1 + $0x10] sm:$0xff pattern:$0x75316420]
  %v5822 = vld.sshfl [vmem:[#allocation1 + $0x20] sm:$0xff pattern:$0x75316420]
  %v5823 = vld.sshfl [vmem:[#allocation1 + $0x30] sm:$0xff pattern:$0x75316420]
  %5824 = vst [vmem:[#allocation1] ss:$2 sm:$0xff] %v5670
  %5825 = vst [vmem:[%s5770] ss:$2 sm:$0xff] %v5671
  %5826 = vst [vmem:[%s5772] ss:$2 sm:$0xff] %v5756
  %5827 = vst [vmem:[%s5774] ss:$2 sm:$0xff] %v5672
  %5828 = vst [vmem:[%s5776] ss:$2 sm:$0xff] %v5673
  %5829 = vst [vmem:[%s5778] ss:$2 sm:$0xff] %v5757
  %5830 = vst [vmem:[%s5780] ss:$2 sm:$0xff] %v5674
  %5831 = vst [vmem:[%s5782] ss:$2 sm:$0xff] %v5675
  %v5832 = vld.sshfl [vmem:[#allocation1] sm:$0xff pattern:$0x75316420]
  %v5833 = vld.sshfl [vmem:[#allocation1 + $0x10] sm:$0xff pattern:$0x75316420]
  %v5834 = vld.sshfl [vmem:[#allocation1 + $0x20] sm:$0xff pattern:$0x75316420]
  %v5835 = vld.sshfl [vmem:[#allocation1 + $0x30] sm:$0xff pattern:$0x75316420]
  %5836 = vst [vmem:[#allocation1] ss:$2 sm:$0xff] %v5758
  %5837 = vst [vmem:[%s5770] ss:$2 sm:$0xff] %v5676
  %5838 = vst [vmem:[%s5772] ss:$2 sm:$0xff] %v5677
  %5839 = vst [vmem:[%s5774] ss:$2 sm:$0xff] %v5759
  %5840 = vst [vmem:[%s5776] ss:$2 sm:$0xff] %v5678
  %5841 = vst [vmem:[%s5778] ss:$2 sm:$0xff] %v5679
  %5842 = vst [vmem:[%s5780] ss:$2 sm:$0xff] %v5760
  %5843 = vst [vmem:[%s5782] ss:$2 sm:$0xff] %v5680
  %v5844 = vld.sshfl [vmem:[#allocation1] sm:$0xff pattern:$0x75316420]
  %v5845 = vld.sshfl [vmem:[#allocation1 + $0x10] sm:$0xff pattern:$0x75316420]
  %v5846 = vld.sshfl [vmem:[#allocation1 + $0x20] sm:$0xff pattern:$0x75316420]
  %v5847 = vld.sshfl [vmem:[#allocation1 + $0x30] sm:$0xff pattern:$0x75316420]
  %5848 = vst [vmem:[#allocation1] ss:$2 sm:$0xff] %v5681
  %5849 = vst [vmem:[%s5770] ss:$2 sm:$0xff] %v5761
  %5850 = vst [vmem:[%s5772] ss:$2 sm:$0xff] %v5682
  %5851 = vst [vmem:[%s5774] ss:$2 sm:$0xff] %v5683
  %5852 = vst [vmem:[%s5776] ss:$2 sm:$0xff] %v5762
  %5853 = vst [vmem:[%s5778] ss:$2 sm:$0xff] %v5684
  %5854 = vst [vmem:[%s5780] ss:$2 sm:$0xff] %v5685
  %5855 = vst [vmem:[%s5782] ss:$2 sm:$0xff] %v5763
  %v5856 = vld.sshfl [vmem:[#allocation1] sm:$0xff pattern:$0x75316420]
  %v5857 = vld.sshfl [vmem:[#allocation1 + $0x10] sm:$0xff pattern:$0x75316420]
  %v5858 = vld.sshfl [vmem:[#allocation1 + $0x20] sm:$0xff pattern:$0x75316420]
  %v5859 = vld.sshfl [vmem:[#allocation1 + $0x30] sm:$0xff pattern:$0x75316420]
  %5860 = vst [vmem:[#allocation1] ss:$2 sm:$0xff] %v5686
  %5861 = vst [vmem:[%s5770] ss:$2 sm:$0xff] %v5687
  %5862 = vst [vmem:[%s5772] ss:$2 sm:$0xff] %v5764
  %5863 = vst [vmem:[%s5774] ss:$2 sm:$0xff] %v5688
  %5864 = vst [vmem:[%s5776] ss:$2 sm:$0xff] %v5689
  %5865 = vst [vmem:[%s5778] ss:$2 sm:$0xff] %v5765
  %5866 = vst [vmem:[%s5780] ss:$2 sm:$0xff] %v5690
  %5867 = vst [vmem:[%s5782] ss:$2 sm:$0xff] %v5691
  %v5868 = vld.sshfl [vmem:[#allocation1] sm:$0xff pattern:$0x75316420]
  %v5869 = vld.sshfl [vmem:[#allocation1 + $0x10] sm:$0xff pattern:$0x75316420]
  %v5870 = vld.sshfl [vmem:[#allocation1 + $0x20] sm:$0xff pattern:$0x75316420]
  %v5871 = vld.sshfl [vmem:[#allocation1 + $0x30] sm:$0xff pattern:$0x75316420]
  %5872 = vst [vmem:[#allocation1] ss:$2 sm:$0xff] %v5766
  %5873 = vst [vmem:[%s5770] ss:$2 sm:$0xff] %v5692
  %5874 = vst [vmem:[%s5772] ss:$2 sm:$0xff] %v5693
  %5875 = vst [vmem:[%s5774] ss:$2 sm:$0xff] %v5767
  %5876 = vst [vmem:[%s5776] ss:$2 sm:$0xff] %v5694
  %5877 = vst [vmem:[%s5778] ss:$2 sm:$0xff] %v5695
  %5878 = vst [vmem:[%s5780] ss:$2 sm:$0xff] %v5768
  %5879 = vst [vmem:[%s5782] ss:$2 sm:$0xff] %v5696
  %v5880 = vld.sshfl [vmem:[#allocation1] sm:$0xff pattern:$0x75316420]
  %v5881 = vld.sshfl [vmem:[#allocation1 + $0x10] sm:$0xff pattern:$0x75316420]
  %v5882 = vld.sshfl [vmem:[#allocation1 + $0x20] sm:$0xff pattern:$0x75316420]
  %v5883 = vld.sshfl [vmem:[#allocation1 + $0x30] sm:$0xff pattern:$0x75316420]
  %5884 = vrot.lane.b32.xlu0 %v5784, 45
  %v5885 = vpop.permute.xlu0 %5884
  %5886 = vrot.lane.b32.xlu0 %v5785, 45
  %v5887 = vpop.permute.xlu0 %5886
  %5888 = vrot.lane.b32.xlu0 %v5786, 45
  %v5889 = vpop.permute.xlu0 %5888
  %5890 = vrot.lane.b32.xlu0 %v5787, 45
  %v5891 = vpop.permute.xlu0 %5890
  %5892 = vrot.lane.b32.xlu0 %v5796, 45
  %v5893 = vpop.permute.xlu0 %5892
  %5894 = vrot.lane.b32.xlu0 %v5797, 45
  %v5895 = vpop.permute.xlu0 %5894
  %5896 = vrot.lane.b32.xlu0 %v5798, 45
  %v5897 = vpop.permute.xlu0 %5896
  %5898 = vrot.lane.b32.xlu0 %v5799, 45
  %v5899 = vpop.permute.xlu0 %5898
  %5900 = vrot.lane.b32.xlu0 %v5808, 45
  %v5901 = vpop.permute.xlu0 %5900
  %5902 = vrot.lane.b32.xlu0 %v5809, 45
  %v5903 = vpop.permute.xlu0 %5902
  %5904 = vrot.lane.b32.xlu0 %v5810, 45
  %v5905 = vpop.permute.xlu0 %5904
  %5906 = vrot.lane.b32.xlu0 %v5811, 45
  %v5907 = vpop.permute.xlu0 %5906
  %5908 = vrot.lane.b32.xlu0 %v5820, 45
  %v5909 = vpop.permute.xlu0 %5908
  %5910 = vrot.lane.b32.xlu0 %v5821, 45
  %v5911 = vpop.permute.xlu0 %5910
  %5912 = vrot.lane.b32.xlu0 %v5822, 45
  %v5913 = vpop.permute.xlu0 %5912
  %5914 = vrot.lane.b32.xlu0 %v5823, 45
  %v5915 = vpop.permute.xlu0 %5914
  %5916 = vrot.lane.b32.xlu0 %v5832, 45
  %v5917 = vpop.permute.xlu0 %5916
  %5918 = vrot.lane.b32.xlu0 %v5833, 45
  %v5919 = vpop.permute.xlu0 %5918
  %5920 = vrot.lane.b32.xlu0 %v5834, 45
  %v5921 = vpop.permute.xlu0 %5920
  %5922 = vrot.lane.b32.xlu0 %v5835, 45
  %v5923 = vpop.permute.xlu0 %5922
  %5924 = vrot.lane.b32.xlu0 %v5844, 45
  %v5925 = vpop.permute.xlu0 %5924
  %5926 = vrot.lane.b32.xlu0 %v5845, 45
  %v5927 = vpop.permute.xlu0 %5926
  %5928 = vrot.lane.b32.xlu0 %v5846, 45
  %v5929 = vpop.permute.xlu0 %5928
  %5930 = vrot.lane.b32.xlu0 %v5847, 45
  %v5931 = vpop.permute.xlu0 %5930
  %5932 = vrot.lane.b32.xlu0 %v5856, 45
  %v5933 = vpop.permute.xlu0 %5932
  %5934 = vrot.lane.b32.xlu0 %v5857, 45
  %v5935 = vpop.permute.xlu0 %5934
  %5936 = vrot.lane.b32.xlu0 %v5858, 45
  %v5937 = vpop.permute.xlu0 %5936
  %5938 = vrot.lane.b32.xlu0 %v5859, 45
  %v5939 = vpop.permute.xlu0 %5938
  %5940 = vrot.lane.b32.xlu0 %v5868, 45
  %v5941 = vpop.permute.xlu0 %5940
  %5942 = vrot.lane.b32.xlu0 %v5869, 45
  %v5943 = vpop.permute.xlu0 %5942
  %5944 = vrot.lane.b32.xlu0 %v5870, 45
  %v5945 = vpop.permute.xlu0 %5944
  %5946 = vrot.lane.b32.xlu0 %v5871, 45
  %v5947 = vpop.permute.xlu0 %5946
  %5948 = vrot.lane.b32.xlu0 %v5880, 45
  %v5949 = vpop.permute.xlu0 %5948
  %5950 = vrot.lane.b32.xlu0 %v5881, 45
  %v5951 = vpop.permute.xlu0 %5950
  %5952 = vrot.lane.b32.xlu0 %v5882, 45
  %v5953 = vpop.permute.xlu0 %5952
  %5954 = vrot.lane.b32.xlu0 %v5883, 45
  %v5955 = vpop.permute.xlu0 %5954
  %vm5992 = vcmask 392552
  %5993 = vst.msk [vmem:[#allocation2] sm:$0xff] %vm5992, %v5885
  %5994 = vst.msk [vmem:[#allocation2 + $0x8] sm:$0xff] %vm5992, %v5887
  %5995 = vst.msk [vmem:[#allocation2 + $0x10] sm:$0xff] %vm5992, %v5889
  %5996 = vst.msk [vmem:[#allocation2 + $0x18] sm:$0xff] %vm5992, %v5891
  %5997 = vst.msk [vmem:[#allocation2 + $0x20] sm:$0xff] %vm5992, %v5893
  %5998 = vst.msk [vmem:[#allocation2 + $0x28] sm:$0xff] %vm5992, %v5895
  %5999 = vst.msk [vmem:[#allocation2 + $0x30] sm:$0xff] %vm5992, %v5897
  %6000 = vst.msk [vmem:[#allocation2 + $0x38] sm:$0xff] %vm5992, %v5899
  %6001 = vst.msk [vmem:[#allocation2 + $0x40] sm:$0xff] %vm5992, %v5901
  %6002 = vst.msk [vmem:[#allocation2 + $0x48] sm:$0xff] %vm5992, %v5903
  %6003 = vst.msk [vmem:[#allocation2 + $0x50] sm:$0xff] %vm5992, %v5905
  %6004 = vst.msk [vmem:[#allocation2 + $0x58] sm:$0xff] %vm5992, %v5907
  %6005 = vst.msk [vmem:[#allocation2 + $0x60] sm:$0xff] %vm5992, %v5909
  %6006 = vst.msk [vmem:[#allocation2 + $0x68] sm:$0xff] %vm5992, %v5911
  %6007 = vst.msk [vmem:[#allocation2 + $0x70] sm:$0xff] %vm5992, %v5913
  %6008 = vst.msk [vmem:[#allocation2 + $0x78] sm:$0xff] %vm5992, %v5915
  %6009 = vst.msk [vmem:[#allocation2 + $0x80] sm:$0xff] %vm5992, %v5917
  %6010 = vst.msk [vmem:[#allocation2 + $0x88] sm:$0xff] %vm5992, %v5919
  %6011 = vst.msk [vmem:[#allocation2 + $0x90] sm:$0xff] %vm5992, %v5921
  %6012 = vst.msk [vmem:[#allocation2 + $0x98] sm:$0xff] %vm5992, %v5923
  %6013 = vst.msk [vmem:[#allocation2 + $0xa0] sm:$0xff] %vm5992, %v5925
  %6014 = vst.msk [vmem:[#allocation2 + $0xa8] sm:$0xff] %vm5992, %v5927
  %6015 = vst.msk [vmem:[#allocation2 + $0xb0] sm:$0xff] %vm5992, %v5929
  %6016 = vst.msk [vmem:[#allocation2 + $0xb8] sm:$0xff] %vm5992, %v5931
  %6017 = vst.msk [vmem:[#allocation2 + $0xc0] sm:$0xff] %vm5992, %v5933
  %6018 = vst.msk [vmem:[#allocation2 + $0xc8] sm:$0xff] %vm5992, %v5935
  %6019 = vst.msk [vmem:[#allocation2 + $0xd0] sm:$0xff] %vm5992, %v5937
  %6020 = vst.msk [vmem:[#allocation2 + $0xd8] sm:$0xff] %vm5992, %v5939
  %6021 = vst.msk [vmem:[#allocation2 + $0xe0] sm:$0xff] %vm5992, %v5941
  %6022 = vst.msk [vmem:[#allocation2 + $0xe8] sm:$0xff] %vm5992, %v5943
  %6023 = vst.msk [vmem:[#allocation2 + $0xf0] sm:$0xff] %vm5992, %v5945
  %6024 = vst.msk [vmem:[#allocation2 + $0xf8] sm:$0xff] %vm5992, %v5947
  %6025 = vst.msk [vmem:[#allocation2 + $0x100] sm:$0xff] %vm5992, %v5949
  %6026 = vst.msk [vmem:[#allocation2 + $0x108] sm:$0xff] %vm5992, %v5951
  %6027 = vst.msk [vmem:[#allocation2 + $0x110] sm:$0xff] %vm5992, %v5953
  %6028 = vst.msk [vmem:[#allocation2 + $0x118] sm:$0xff] %vm5992, %v5955
  %v6029 = vld [vmem:[%s5648 + $0x1] sm:$0xff]
  %v6030 = vld [vmem:[%s5648 + $0x9] sm:$0xf]
  %v6031 = vld [vmem:[%s5648 + $0x11] sm:$0xff]
  %v6032 = vld [vmem:[%s5648 + $0x19] sm:$0xf]
  %v6033 = vld [vmem:[%s5648 + $0x21] sm:$0xff]
  %v6034 = vld [vmem:[%s5648 + $0x29] sm:$0xf]
  %v6035 = vld [vmem:[%s5648 + $0x31] sm:$0xff]
  %v6036 = vld [vmem:[%s5648 + $0x39] sm:$0xf]
  %v6037 = vld [vmem:[%s5648 + $0x41] sm:$0xff]
  %v6038 = vld [vmem:[%s5648 + $0x49] sm:$0xf]
  %v6039 = vld [vmem:[%s5648 + $0x51] sm:$0xff]
  %v6040 = vld [vmem:[%s5648 + $0x59] sm:$0xf]
  %v6041 = vld [vmem:[%s5648 + $0x61] sm:$0xff]
  %v6042 = vld [vmem:[%s5648 + $0x69] sm:$0xf]
  %v6043 = vld [vmem:[%s5648 + $0x71] sm:$0xff]
  %v6044 = vld [vmem:[%s5648 + $0x79] sm:$0xf]
  %v6045 = vld [vmem:[%s5648 + $0x81] sm:$0xff]
  %v6046 = vld [vmem:[%s5648 + $0x89] sm:$0xf]
  %v6047 = vld [vmem:[%s5648 + $0x91] sm:$0xff]
  %v6048 = vld [vmem:[%s5648 + $0x99] sm:$0xf]
  %v6049 = vld [vmem:[%s5648 + $0xa1] sm:$0xff]
  %v6050 = vld [vmem:[%s5648 + $0xa9] sm:$0xf]
  %v6051 = vld [vmem:[%s5648 + $0xb1] sm:$0xff]
  %v6052 = vld [vmem:[%s5648 + $0xb9] sm:$0xf]
  %v6053 = vld [vmem:[%s5648 + $0x101] sm:$0xff]
  %v6054 = vld [vmem:[%s5648 + $0x109] sm:$0xf]
  %v6055 = vld [vmem:[%s5648 + $0x111] sm:$0xff]
  %v6056 = vld [vmem:[%s5648 + $0x119] sm:$0xf]
  %v6057 = vld [vmem:[%s5648 + $0x121] sm:$0xff]
  %v6058 = vld [vmem:[%s5648 + $0x129] sm:$0xf]
  %v6059 = vld [vmem:[%s5648 + $0x131] sm:$0xff]
  %v6060 = vld [vmem:[%s5648 + $0x139] sm:$0xf]
  %v6061 = vld [vmem:[%s5648 + $0x141] sm:$0xff]
  %v6062 = vld [vmem:[%s5648 + $0x149] sm:$0xf]
  %v6063 = vld [vmem:[%s5648 + $0x151] sm:$0xff]
  %v6064 = vld [vmem:[%s5648 + $0x159] sm:$0xf]
  %v6065 = vld [vmem:[%s5648 + $0x161] sm:$0xff]
  %v6066 = vld [vmem:[%s5648 + $0x169] sm:$0xf]
  %v6067 = vld [vmem:[%s5648 + $0x171] sm:$0xff]
  %v6068 = vld [vmem:[%s5648 + $0x179] sm:$0xf]
  %v6069 = vld [vmem:[%s5648 + $0x181] sm:$0xff]
  %v6070 = vld [vmem:[%s5648 + $0x189] sm:$0xf]
  %v6071 = vld [vmem:[%s5648 + $0x191] sm:$0xff]
  %v6072 = vld [vmem:[%s5648 + $0x199] sm:$0xf]
  %v6073 = vld [vmem:[%s5648 + $0x1a1] sm:$0xff]
  %v6074 = vld [vmem:[%s5648 + $0x1a9] sm:$0xf]
  %v6075 = vld [vmem:[%s5648 + $0x1b1] sm:$0xff]
  %v6076 = vld [vmem:[%s5648 + $0x1b9] sm:$0xf]
  %v6125 = vrot.slane %v6029, 4
  %v6126 = vrot.slane %v6031, 4
  %v6127 = vrot.slane %v6033, 4
  %v6128 = vrot.slane %v6035, 4
  %v6129 = vrot.slane %v6037, 4
  %v6130 = vrot.slane %v6039, 4
  %v6131 = vrot.slane %v6041, 4
  %v6132 = vrot.slane %v6043, 4
  %v6133 = vrot.slane %v6045, 4
  %v6134 = vrot.slane %v6047, 4
  %v6135 = vrot.slane %v6049, 4
  %v6136 = vrot.slane %v6051, 4
  %v6137 = vrot.slane %v6053, 4
  %v6138 = vrot.slane %v6055, 4
  %v6139 = vrot.slane %v6057, 4
  %v6140 = vrot.slane %v6059, 4
  %v6141 = vrot.slane %v6061, 4
  %v6142 = vrot.slane %v6063, 4
  %v6143 = vrot.slane %v6065, 4
  %v6144 = vrot.slane %v6067, 4
  %v6145 = vrot.slane %v6069, 4
  %v6146 = vrot.slane %v6071, 4
  %v6147 = vrot.slane %v6073, 4
  %v6148 = vrot.slane %v6075, 4
  %6149 = vst [vmem:[#allocation1] ss:$2 sm:$0xff] %v6029
  %s6150 = scalar_lea.vmem [#allocation1], 1
  %6151 = vst [vmem:[%s6150] ss:$2 sm:$0xff] %v6125
  %s6152 = scalar_lea.vmem [#allocation1], 16
  %6153 = vst [vmem:[%s6152] ss:$2 sm:$0xff] %v6030
  %s6154 = scalar_lea.vmem [#allocation1], 17
  %6155 = vst [vmem:[%s6154] ss:$2 sm:$0xff] %v6031
  %s6156 = scalar_lea.vmem [#allocation1], 32
  %6157 = vst [vmem:[%s6156] ss:$2 sm:$0xff] %v6126
  %s6158 = scalar_lea.vmem [#allocation1], 33
  %6159 = vst [vmem:[%s6158] ss:$2 sm:$0xff] %v6032
  %s6160 = scalar_lea.vmem [#allocation1], 48
  %6161 = vst [vmem:[%s6160] ss:$2 sm:$0xff] %v6033
  %s6162 = scalar_lea.vmem [#allocation1], 49
  %6163 = vst [vmem:[%s6162] ss:$2 sm:$0xff] %v6127
  %v6164 = vld.sshfl [vmem:[#allocation1] sm:$0xff pattern:$0x75316420]
  %v6165 = vld.sshfl [vmem:[#allocation1 + $0x10] sm:$0xff pattern:$0x75316420]
  %v6166 = vld.sshfl [vmem:[#allocation1 + $0x20] sm:$0xff pattern:$0x75316420]
  %v6167 = vld.sshfl [vmem:[#allocation1 + $0x30] sm:$0xff pattern:$0x75316420]
  %6168 = vst [vmem:[#allocation1] ss:$2 sm:$0xff] %v6034
  %6169 = vst [vmem:[%s6150] ss:$2 sm:$0xff] %v6035
  %6170 = vst [vmem:[%s6152] ss:$2 sm:$0xff] %v6128
  %6171 = vst [vmem:[%s6154] ss:$2 sm:$0xff] %v6036
  %6172 = vst [vmem:[%s6156] ss:$2 sm:$0xff] %v6037
  %6173 = vst [vmem:[%s6158] ss:$2 sm:$0xff] %v6129
  %6174 = vst [vmem:[%s6160] ss:$2 sm:$0xff] %v6038
  %6175 = vst [vmem:[%s6162] ss:$2 sm:$0xff] %v6039
  %v6176 = vld.sshfl [vmem:[#allocation1] sm:$0xff pattern:$0x75316420]
  %v6177 = vld.sshfl [vmem:[#allocation1 + $0x10] sm:$0xff pattern:$0x75316420]
  %v6178 = vld.sshfl [vmem:[#allocation1 + $0x20] sm:$0xff pattern:$0x75316420]
  %v6179 = vld.sshfl [vmem:[#allocation1 + $0x30] sm:$0xff pattern:$0x75316420]
  %6180 = vst [vmem:[#allocation1] ss:$2 sm:$0xff] %v6130
  %6181 = vst [vmem:[%s6150] ss:$2 sm:$0xff] %v6040
  %6182 = vst [vmem:[%s6152] ss:$2 sm:$0xff] %v6041
  %6183 = vst [vmem:[%s6154] ss:$2 sm:$0xff] %v6131
  %6184 = vst [vmem:[%s6156] ss:$2 sm:$0xff] %v6042
  %6185 = vst [vmem:[%s6158] ss:$2 sm:$0xff] %v6043
  %6186 = vst [vmem:[%s6160] ss:$2 sm:$0xff] %v6132
  %6187 = vst [vmem:[%s6162] ss:$2 sm:$0xff] %v6044
  %v6188 = vld.sshfl [vmem:[#allocation1] sm:$0xff pattern:$0x75316420]
  %v6189 = vld.sshfl [vmem:[#allocation1 + $0x10] sm:$0xff pattern:$0x75316420]
  %v6190 = vld.sshfl [vmem:[#allocation1 + $0x20] sm:$0xff pattern:$0x75316420]
  %v6191 = vld.sshfl [vmem:[#allocation1 + $0x30] sm:$0xff pattern:$0x75316420]
  %6192 = vst [vmem:[#allocation1] ss:$2 sm:$0xff] %v6045
  %6193 = vst [vmem:[%s6150] ss:$2 sm:$0xff] %v6133
  %6194 = vst [vmem:[%s6152] ss:$2 sm:$0xff] %v6046
  %6195 = vst [vmem:[%s6154] ss:$2 sm:$0xff] %v6047
  %6196 = vst [vmem:[%s6156] ss:$2 sm:$0xff] %v6134
  %6197 = vst [vmem:[%s6158] ss:$2 sm:$0xff] %v6048
  %6198 = vst [vmem:[%s6160] ss:$2 sm:$0xff] %v6049
  %6199 = vst [vmem:[%s6162] ss:$2 sm:$0xff] %v6135
  %v6200 = vld.sshfl [vmem:[#allocation1] sm:$0xff pattern:$0x75316420]
  %v6201 = vld.sshfl [vmem:[#allocation1 + $0x10] sm:$0xff pattern:$0x75316420]
  %v6202 = vld.sshfl [vmem:[#allocation1 + $0x20] sm:$0xff pattern:$0x75316420]
  %v6203 = vld.sshfl [vmem:[#allocation1 + $0x30] sm:$0xff pattern:$0x75316420]
  %6204 = vst [vmem:[#allocation1] ss:$2 sm:$0xff] %v6050
  %6205 = vst [vmem:[%s6150] ss:$2 sm:$0xff] %v6051
  %6206 = vst [vmem:[%s6152] ss:$2 sm:$0xff] %v6136
  %6207 = vst [vmem:[%s6154] ss:$2 sm:$0xff] %v6052
  %6208 = vst [vmem:[%s6156] ss:$2 sm:$0xff] %v6053
  %6209 = vst [vmem:[%s6158] ss:$2 sm:$0xff] %v6137
  %6210 = vst [vmem:[%s6160] ss:$2 sm:$0xff] %v6054
  %6211 = vst [vmem:[%s6162] ss:$2 sm:$0xff] %v6055
  %v6212 = vld.sshfl [vmem:[#allocation1] sm:$0xff pattern:$0x75316420]
  %v6213 = vld.sshfl [vmem:[#allocation1 + $0x10] sm:$0xff pattern:$0x75316420]
  %v6214 = vld.sshfl [vmem:[#allocation1 + $0x20] sm:$0xff pattern:$0x75316420]
  %v6215 = vld.sshfl [vmem:[#allocation1 + $0x30] sm:$0xff pattern:$0x75316420]
  %6216 = vst [vmem:[#allocation1] ss:$2 sm:$0xff] %v6138
  %6217 = vst [vmem:[%s6150] ss:$2 sm:$0xff] %v6056
  %6218 = vst [vmem:[%s6152] ss:$2 sm:$0xff] %v6057
  %6219 = vst [vmem:[%s6154] ss:$2 sm:$0xff] %v6139
  %6220 = vst [vmem:[%s6156] ss:$2 sm:$0xff] %v6058
  %6221 = vst [vmem:[%s6158] ss:$2 sm:$0xff] %v6059
  %6222 = vst [vmem:[%s6160] ss:$2 sm:$0xff] %v6140
  %6223 = vst [vmem:[%s6162] ss:$2 sm:$0xff] %v6060
  %v6224 = vld.sshfl [vmem:[#allocation1] sm:$0xff pattern:$0x75316420]
  %v6225 = vld.sshfl [vmem:[#allocation1 + $0x10] sm:$0xff pattern:$0x75316420]
  %v6226 = vld.sshfl [vmem:[#allocation1 + $0x20] sm:$0xff pattern:$0x75316420]
  %v6227 = vld.sshfl [vmem:[#allocation1 + $0x30] sm:$0xff pattern:$0x75316420]
  %6228 = vst [vmem:[#allocation1] ss:$2 sm:$0xff] %v6061
  %6229 = vst [vmem:[%s6150] ss:$2 sm:$0xff] %v6141
  %6230 = vst [vmem:[%s6152] ss:$2 sm:$0xff] %v6062
  %6231 = vst [vmem:[%s6154] ss:$2 sm:$0xff] %v6063
  %6232 = vst [vmem:[%s6156] ss:$2 sm:$0xff] %v6142
  %6233 = vst [vmem:[%s6158] ss:$2 sm:$0xff] %v6064
  %6234 = vst [vmem:[%s6160] ss:$2 sm:$0xff] %v6065
  %6235 = vst [vmem:[%s6162] ss:$2 sm:$0xff] %v6143
  %v6236 = vld.sshfl [vmem:[#allocation1] sm:$0xff pattern:$0x75316420]
  %v6237 = vld.sshfl [vmem:[#allocation1 + $0x10] sm:$0xff pattern:$0x75316420]
  %v6238 = vld.sshfl [vmem:[#allocation1 + $0x20] sm:$0xff pattern:$0x75316420]
  %v6239 = vld.sshfl [vmem:[#allocation1 + $0x30] sm:$0xff pattern:$0x75316420]
  %6240 = vst [vmem:[#allocation1] ss:$2 sm:$0xff] %v6066
  %6241 = vst [vmem:[%s6150] ss:$2 sm:$0xff] %v6067
  %6242 = vst [vmem:[%s6152] ss:$2 sm:$0xff] %v6144
  %6243 = vst [vmem:[%s6154] ss:$2 sm:$0xff] %v6068
  %6244 = vst [vmem:[%s6156] ss:$2 sm:$0xff] %v6069
  %6245 = vst [vmem:[%s6158] ss:$2 sm:$0xff] %v6145
  %6246 = vst [vmem:[%s6160] ss:$2 sm:$0xff] %v6070
  %6247 = vst [vmem:[%s6162] ss:$2 sm:$0xff] %v6071
  %v6248 = vld.sshfl [vmem:[#allocation1] sm:$0xff pattern:$0x75316420]
  %v6249 = vld.sshfl [vmem:[#allocation1 + $0x10] sm:$0xff pattern:$0x75316420]
  %v6250 = vld.sshfl [vmem:[#allocation1 + $0x20] sm:$0xff pattern:$0x75316420]
  %v6251 = vld.sshfl [vmem:[#allocation1 + $0x30] sm:$0xff pattern:$0x75316420]
  %6252 = vst [vmem:[#allocation1] ss:$2 sm:$0xff] %v6146
  %6253 = vst [vmem:[%s6150] ss:$2 sm:$0xff] %v6072
  %6254 = vst [vmem:[%s6152] ss:$2 sm:$0xff] %v6073
  %6255 = vst [vmem:[%s6154] ss:$2 sm:$0xff] %v6147
  %6256 = vst [vmem:[%s6156] ss:$2 sm:$0xff] %v6074
  %6257 = vst [vmem:[%s6158] ss:$2 sm:$0xff] %v6075
  %6258 = vst [vmem:[%s6160] ss:$2 sm:$0xff] %v6148
  %6259 = vst [vmem:[%s6162] ss:$2 sm:$0xff] %v6076
  %v6260 = vld.sshfl [vmem:[#allocation1] sm:$0xff pattern:$0x75316420]
  %v6261 = vld.sshfl [vmem:[#allocation1 + $0x10] sm:$0xff pattern:$0x75316420]
  %v6262 = vld.sshfl [vmem:[#allocation1 + $0x20] sm:$0xff pattern:$0x75316420]
  %v6263 = vld.sshfl [vmem:[#allocation1 + $0x30] sm:$0xff pattern:$0x75316420]
  %6264 = vrot.lane.b32.xlu0 %v6164, 48
  %v6265 = vpop.permute.xlu0 %6264
  %6266 = vrot.lane.b32.xlu0 %v6165, 48
  %v6267 = vpop.permute.xlu0 %6266
  %6268 = vrot.lane.b32.xlu0 %v6166, 48
  %v6269 = vpop.permute.xlu0 %6268
  %6270 = vrot.lane.b32.xlu0 %v6167, 48
  %v6271 = vpop.permute.xlu0 %6270
  %6272 = vrot.lane.b32.xlu0 %v6176, 48
  %v6273 = vpop.permute.xlu0 %6272
  %6274 = vrot.lane.b32.xlu0 %v6177, 48
  %v6275 = vpop.permute.xlu0 %6274
  %6276 = vrot.lane.b32.xlu0 %v6178, 48
  %v6277 = vpop.permute.xlu0 %6276
  %6278 = vrot.lane.b32.xlu0 %v6179, 48
  %v6279 = vpop.permute.xlu0 %6278
  %6280 = vrot.lane.b32.xlu0 %v6188, 48
  %v6281 = vpop.permute.xlu0 %6280
  %6282 = vrot.lane.b32.xlu0 %v6189, 48
  %v6283 = vpop.permute.xlu0 %6282
  %6284 = vrot.lane.b32.xlu0 %v6190, 48
  %v6285 = vpop.permute.xlu0 %6284
  %6286 = vrot.lane.b32.xlu0 %v6191, 48
  %v6287 = vpop.permute.xlu0 %6286
  %6288 = vrot.lane.b32.xlu0 %v6200, 48
  %v6289 = vpop.permute.xlu0 %6288
  %6290 = vrot.lane.b32.xlu0 %v6201, 48
  %v6291 = vpop.permute.xlu0 %6290
  %6292 = vrot.lane.b32.xlu0 %v6202, 48
  %v6293 = vpop.permute.xlu0 %6292
  %6294 = vrot.lane.b32.xlu0 %v6203, 48
  %v6295 = vpop.permute.xlu0 %6294
  %6296 = vrot.lane.b32.xlu0 %v6212, 48
  %v6297 = vpop.permute.xlu0 %6296
  %6298 = vrot.lane.b32.xlu0 %v6213, 48
  %v6299 = vpop.permute.xlu0 %6298
  %6300 = vrot.lane.b32.xlu0 %v6214, 48
  %v6301 = vpop.permute.xlu0 %6300
  %6302 = vrot.lane.b32.xlu0 %v6215, 48
  %v6303 = vpop.permute.xlu0 %6302
  %6304 = vrot.lane.b32.xlu0 %v6224, 48
  %v6305 = vpop.permute.xlu0 %6304
  %6306 = vrot.lane.b32.xlu0 %v6225, 48
  %v6307 = vpop.permute.xlu0 %6306
  %6308 = vrot.lane.b32.xlu0 %v6226, 48
  %v6309 = vpop.permute.xlu0 %6308
  %6310 = vrot.lane.b32.xlu0 %v6227, 48
  %v6311 = vpop.permute.xlu0 %6310
  %6312 = vrot.lane.b32.xlu0 %v6236, 48
  %v6313 = vpop.permute.xlu0 %6312
  %6314 = vrot.lane.b32.xlu0 %v6237, 48
  %v6315 = vpop.permute.xlu0 %6314
  %6316 = vrot.lane.b32.xlu0 %v6238, 48
  %v6317 = vpop.permute.xlu0 %6316
  %6318 = vrot.lane.b32.xlu0 %v6239, 48
  %v6319 = vpop.permute.xlu0 %6318
  %6320 = vrot.lane.b32.xlu0 %v6248, 48
  %v6321 = vpop.permute.xlu0 %6320
  %6322 = vrot.lane.b32.xlu0 %v6249, 48
  %v6323 = vpop.permute.xlu0 %6322
  %6324 = vrot.lane.b32.xlu0 %v6250, 48
  %v6325 = vpop.permute.xlu0 %6324
  %6326 = vrot.lane.b32.xlu0 %v6251, 48
  %v6327 = vpop.permute.xlu0 %6326
  %6328 = vrot.lane.b32.xlu0 %v6260, 48
  %v6329 = vpop.permute.xlu0 %6328
  %6330 = vrot.lane.b32.xlu0 %v6261, 48
  %v6331 = vpop.permute.xlu0 %6330
  %6332 = vrot.lane.b32.xlu0 %v6262, 48
  %v6333 = vpop.permute.xlu0 %6332
  %6334 = vrot.lane.b32.xlu0 %v6263, 48
  %v6335 = vpop.permute.xlu0 %6334
  %vm6372 = vcmask 417152
  %6373 = vst.msk [vmem:[#allocation2] sm:$0xff] %vm6372, %v6265
  %6374 = vst.msk [vmem:[#allocation2 + $0x8] sm:$0xff] %vm6372, %v6267
  %6375 = vst.msk [vmem:[#allocation2 + $0x10] sm:$0xff] %vm6372, %v6269
  %6376 = vst.msk [vmem:[#allocation2 + $0x18] sm:$0xff] %vm6372, %v6271
  %6377 = vst.msk [vmem:[#allocation2 + $0x20] sm:$0xff] %vm6372, %v6273
  %6378 = vst.msk [vmem:[#allocation2 + $0x28] sm:$0xff] %vm6372, %v6275
  %6379 = vst.msk [vmem:[#allocation2 + $0x30] sm:$0xff] %vm6372, %v6277
  %6380 = vst.msk [vmem:[#allocation2 + $0x38] sm:$0xff] %vm6372, %v6279
  %6381 = vst.msk [vmem:[#allocation2 + $0x40] sm:$0xff] %vm6372, %v6281
  %6382 = vst.msk [vmem:[#allocation2 + $0x48] sm:$0xff] %vm6372, %v6283
  %6383 = vst.msk [vmem:[#allocation2 + $0x50] sm:$0xff] %vm6372, %v6285
  %6384 = vst.msk [vmem:[#allocation2 + $0x58] sm:$0xff] %vm6372, %v6287
  %6385 = vst.msk [vmem:[#allocation2 + $0x60] sm:$0xff] %vm6372, %v6289
  %6386 = vst.msk [vmem:[#allocation2 + $0x68] sm:$0xff] %vm6372, %v6291
  %6387 = vst.msk [vmem:[#allocation2 + $0x70] sm:$0xff] %vm6372, %v6293
  %6388 = vst.msk [vmem:[#allocation2 + $0x78] sm:$0xff] %vm6372, %v6295
  %6389 = vst.msk [vmem:[#allocation2 + $0x80] sm:$0xff] %vm6372, %v6297
  %6390 = vst.msk [vmem:[#allocation2 + $0x88] sm:$0xff] %vm6372, %v6299
  %6391 = vst.msk [vmem:[#allocation2 + $0x90] sm:$0xff] %vm6372, %v6301
  %6392 = vst.msk [vmem:[#allocation2 + $0x98] sm:$0xff] %vm6372, %v6303
  %6393 = vst.msk [vmem:[#allocation2 + $0xa0] sm:$0xff] %vm6372, %v6305
  %6394 = vst.msk [vmem:[#allocation2 + $0xa8] sm:$0xff] %vm6372, %v6307
  %6395 = vst.msk [vmem:[#allocation2 + $0xb0] sm:$0xff] %vm6372, %v6309
  %6396 = vst.msk [vmem:[#allocation2 + $0xb8] sm:$0xff] %vm6372, %v6311
  %6397 = vst.msk [vmem:[#allocation2 + $0xc0] sm:$0xff] %vm6372, %v6313
  %6398 = vst.msk [vmem:[#allocation2 + $0xc8] sm:$0xff] %vm6372, %v6315
  %6399 = vst.msk [vmem:[#allocation2 + $0xd0] sm:$0xff] %vm6372, %v6317
  %6400 = vst.msk [vmem:[#allocation2 + $0xd8] sm:$0xff] %vm6372, %v6319
  %6401 = vst.msk [vmem:[#allocation2 + $0xe0] sm:$0xff] %vm6372, %v6321
  %6402 = vst.msk [vmem:[#allocation2 + $0xe8] sm:$0xff] %vm6372, %v6323
  %6403 = vst.msk [vmem:[#allocation2 + $0xf0] sm:$0xff] %vm6372, %v6325
  %6404 = vst.msk [vmem:[#allocation2 + $0xf8] sm:$0xff] %vm6372, %v6327
  %6405 = vst.msk [vmem:[#allocation2 + $0x100] sm:$0xff] %vm6372, %v6329
  %6406 = vst.msk [vmem:[#allocation2 + $0x108] sm:$0xff] %vm6372, %v6331
  %6407 = vst.msk [vmem:[#allocation2 + $0x110] sm:$0xff] %vm6372, %v6333
  %6408 = vst.msk [vmem:[#allocation2 + $0x118] sm:$0xff] %vm6372, %v6335
  %v6409 = vld [vmem:[%s5648 + $0x2] sm:$0xff]
  %v6410 = vld [vmem:[%s5648 + $0xa] sm:$0xf]
  %v6411 = vld [vmem:[%s5648 + $0x12] sm:$0xff]
  %v6412 = vld [vmem:[%s5648 + $0x1a] sm:$0xf]
  %v6413 = vld [vmem:[%s5648 + $0x22] sm:$0xff]
  %v6414 = vld [vmem:[%s5648 + $0x2a] sm:$0xf]
  %v6415 = vld [vmem:[%s5648 + $0x32] sm:$0xff]
  %v6416 = vld [vmem:[%s5648 + $0x3a] sm:$0xf]
  %v6417 = vld [vmem:[%s5648 + $0x42] sm:$0xff]
  %v6418 = vld [vmem:[%s5648 + $0x4a] sm:$0xf]
  %v6419 = vld [vmem:[%s5648 + $0x52] sm:$0xff]
  %v6420 = vld [vmem:[%s5648 + $0x5a] sm:$0xf]
  %v6421 = vld [vmem:[%s5648 + $0x62] sm:$0xff]
  %v6422 = vld [vmem:[%s5648 + $0x6a] sm:$0xf]
  %v6423 = vld [vmem:[%s5648 + $0x72] sm:$0xff]
  %v6424 = vld [vmem:[%s5648 + $0x7a] sm:$0xf]
  %v6425 = vld [vmem:[%s5648 + $0x82] sm:$0xff]
  %v6426 = vld [vmem:[%s5648 + $0x8a] sm:$0xf]
  %v6427 = vld [vmem:[%s5648 + $0x92] sm:$0xff]
  %v6428 = vld [vmem:[%s5648 + $0x9a] sm:$0xf]
  %v6429 = vld [vmem:[%s5648 + $0xa2] sm:$0xff]
  %v6430 = vld [vmem:[%s5648 + $0xaa] sm:$0xf]
  %v6431 = vld [vmem:[%s5648 + $0xb2] sm:$0xff]
  %v6432 = vld [vmem:[%s5648 + $0xba] sm:$0xf]
  %v6433 = vld [vmem:[%s5648 + $0x102] sm:$0xff]
  %v6434 = vld [vmem:[%s5648 + $0x10a] sm:$0xf]
  %v6435 = vld [vmem:[%s5648 + $0x112] sm:$0xff]
  %v6436 = vld [vmem:[%s5648 + $0x11a] sm:$0xf]
  %v6437 = vld [vmem:[%s5648 + $0x122] sm:$0xff]
  %v6438 = vld [vmem:[%s5648 + $0x12a] sm:$0xf]
  %v6439 = vld [vmem:[%s5648 + $0x132] sm:$0xff]
  %v6440 = vld [vmem:[%s5648 + $0x13a] sm:$0xf]
  %v6441 = vld [vmem:[%s5648 + $0x142] sm:$0xff]
  %v6442 = vld [vmem:[%s5648 + $0x14a] sm:$0xf]
  %v6443 = vld [vmem:[%s5648 + $0x152] sm:$0xff]
  %v6444 = vld [vmem:[%s5648 + $0x15a] sm:$0xf]
  %v6445 = vld [vmem:[%s5648 + $0x162] sm:$0xff]
  %v6446 = vld [vmem:[%s5648 + $0x16a] sm:$0xf]
  %v6447 = vld [vmem:[%s5648 + $0x172] sm:$0xff]
  %v6448 = vld [vmem:[%s5648 + $0x17a] sm:$0xf]
  %v6449 = vld [vmem:[%s5648 + $0x182] sm:$0xff]
  %v6450 = vld [vmem:[%s5648 + $0x18a] sm:$0xf]
  %v6451 = vld [vmem:[%s5648 + $0x192] sm:$0xff]
  %v6452 = vld [vmem:[%s5648 + $0x19a] sm:$0xf]
  %v6453 = vld [vmem:[%s5648 + $0x1a2] sm:$0xff]
  %v6454 = vld [vmem:[%s5648 + $0x1aa] sm:$0xf]
  %v6455 = vld [vmem:[%s5648 + $0x1b2] sm:$0xff]
  %v6456 = vld [vmem:[%s5648 + $0x1ba] sm:$0xf]
  %v6505 = vrot.slane %v6409, 4
  %v6506 = vrot.slane %v6411, 4
  %v6507 = vrot.slane %v6413, 4
  %v6508 = vrot.slane %v6415, 4
  %v6509 = vrot.slane %v6417, 4
  %v6510 = vrot.slane %v6419, 4
  %v6511 = vrot.slane %v6421, 4
  %v6512 = vrot.slane %v6423, 4
  %v6513 = vrot.slane %v6425, 4
  %v6514 = vrot.slane %v6427, 4
  %v6515 = vrot.slane %v6429, 4
  %v6516 = vrot.slane %v6431, 4
  %v6517 = vrot.slane %v6433, 4
  %v6518 = vrot.slane %v6435, 4
  %v6519 = vrot.slane %v6437, 4
  %v6520 = vrot.slane %v6439, 4
  %v6521 = vrot.slane %v6441, 4
  %v6522 = vrot.slane %v6443, 4
  %v6523 = vrot.slane %v6445, 4
  %v6524 = vrot.slane %v6447, 4
  %v6525 = vrot.slane %v6449, 4
  %v6526 = vrot.slane %v6451, 4
  %v6527 = vrot.slane %v6453, 4
  %v6528 = vrot.slane %v6455, 4
  %6529 = vst [vmem:[#allocation1] ss:$2 sm:$0xff] %v6409
  %s6530 = scalar_lea.vmem [#allocation1], 1
  %6531 = vst [vmem:[%s6530] ss:$2 sm:$0xff] %v6505
  %s6532 = scalar_lea.vmem [#allocation1], 16
  %6533 = vst [vmem:[%s6532] ss:$2 sm:$0xff] %v6410
  %s6534 = scalar_lea.vmem [#allocation1], 17
  %6535 = vst [vmem:[%s6534] ss:$2 sm:$0xff] %v6411
  %s6536 = scalar_lea.vmem [#allocation1], 32
  %6537 = vst [vmem:[%s6536] ss:$2 sm:$0xff] %v6506
  %s6538 = scalar_lea.vmem [#allocation1], 33
  %6539 = vst [vmem:[%s6538] ss:$2 sm:$0xff] %v6412
  %s6540 = scalar_lea.vmem [#allocation1], 48
  %6541 = vst [vmem:[%s6540] ss:$2 sm:$0xff] %v6413
  %s6542 = scalar_lea.vmem [#allocation1], 49
  %6543 = vst [vmem:[%s6542] ss:$2 sm:$0xff] %v6507
  %v6544 = vld.sshfl [vmem:[#allocation1] sm:$0xff pattern:$0x75316420]
  %v6545 = vld.sshfl [vmem:[#allocation1 + $0x10] sm:$0xff pattern:$0x75316420]
  %v6546 = vld.sshfl [vmem:[#allocation1 + $0x20] sm:$0xff pattern:$0x75316420]
  %v6547 = vld.sshfl [vmem:[#allocation1 + $0x30] sm:$0xff pattern:$0x75316420]
  %6548 = vst [vmem:[#allocation1] ss:$2 sm:$0xff] %v6414
  %6549 = vst [vmem:[%s6530] ss:$2 sm:$0xff] %v6415
  %6550 = vst [vmem:[%s6532] ss:$2 sm:$0xff] %v6508
  %6551 = vst [vmem:[%s6534] ss:$2 sm:$0xff] %v6416
  %6552 = vst [vmem:[%s6536] ss:$2 sm:$0xff] %v6417
  %6553 = vst [vmem:[%s6538] ss:$2 sm:$0xff] %v6509
  %6554 = vst [vmem:[%s6540] ss:$2 sm:$0xff] %v6418
  %6555 = vst [vmem:[%s6542] ss:$2 sm:$0xff] %v6419
  %v6556 = vld.sshfl [vmem:[#allocation1] sm:$0xff pattern:$0x75316420]
  %v6557 = vld.sshfl [vmem:[#allocation1 + $0x10] sm:$0xff pattern:$0x75316420]
  %v6558 = vld.sshfl [vmem:[#allocation1 + $0x20] sm:$0xff pattern:$0x75316420]
  %v6559 = vld.sshfl [vmem:[#allocation1 + $0x30] sm:$0xff pattern:$0x75316420]
  %6560 = vst [vmem:[#allocation1] ss:$2 sm:$0xff] %v6510
  %6561 = vst [vmem:[%s6530] ss:$2 sm:$0xff] %v6420
  %6562 = vst [vmem:[%s6532] ss:$2 sm:$0xff] %v6421
  %6563 = vst [vmem:[%s6534] ss:$2 sm:$0xff] %v6511
  %6564 = vst [vmem:[%s6536] ss:$2 sm:$0xff] %v6422
  %6565 = vst [vmem:[%s6538] ss:$2 sm:$0xff] %v6423
  %6566 = vst [vmem:[%s6540] ss:$2 sm:$0xff] %v6512
  %6567 = vst [vmem:[%s6542] ss:$2 sm:$0xff] %v6424
  %v6568 = vld.sshfl [vmem:[#allocation1] sm:$0xff pattern:$0x75316420]
  %v6569 = vld.sshfl [vmem:[#allocation1 + $0x10] sm:$0xff pattern:$0x75316420]
  %v6570 = vld.sshfl [vmem:[#allocation1 + $0x20] sm:$0xff pattern:$0x75316420]
  %v6571 = vld.sshfl [vmem:[#allocation1 + $0x30] sm:$0xff pattern:$0x75316420]
  %6572 = vst [vmem:[#allocation1] ss:$2 sm:$0xff] %v6425
  %6573 = vst [vmem:[%s6530] ss:$2 sm:$0xff] %v6513
  %6574 = vst [vmem:[%s6532] ss:$2 sm:$0xff] %v6426
  %6575 = vst [vmem:[%s6534] ss:$2 sm:$0xff] %v6427
  %6576 = vst [vmem:[%s6536] ss:$2 sm:$0xff] %v6514
  %6577 = vst [vmem:[%s6538] ss:$2 sm:$0xff] %v6428
  %6578 = vst [vmem:[%s6540] ss:$2 sm:$0xff] %v6429
  %6579 = vst [vmem:[%s6542] ss:$2 sm:$0xff] %v6515
  %v6580 = vld.sshfl [vmem:[#allocation1] sm:$0xff pattern:$0x75316420]
  %v6581 = vld.sshfl [vmem:[#allocation1 + $0x10] sm:$0xff pattern:$0x75316420]
  %v6582 = vld.sshfl [vmem:[#allocation1 + $0x20] sm:$0xff pattern:$0x75316420]
  %v6583 = vld.sshfl [vmem:[#allocation1 + $0x30] sm:$0xff pattern:$0x75316420]
  %6584 = vst [vmem:[#allocation1] ss:$2 sm:$0xff] %v6430
  %6585 = vst [vmem:[%s6530] ss:$2 sm:$0xff] %v6431
  %6586 = vst [vmem:[%s6532] ss:$2 sm:$0xff] %v6516
  %6587 = vst [vmem:[%s6534] ss:$2 sm:$0xff] %v6432
  %6588 = vst [vmem:[%s6536] ss:$2 sm:$0xff] %v6433
  %6589 = vst [vmem:[%s6538] ss:$2 sm:$0xff] %v6517
  %6590 = vst [vmem:[%s6540] ss:$2 sm:$0xff] %v6434
  %6591 = vst [vmem:[%s6542] ss:$2 sm:$0xff] %v6435
  %v6592 = vld.sshfl [vmem:[#allocation1] sm:$0xff pattern:$0x75316420]
  %v6593 = vld.sshfl [vmem:[#allocation1 + $0x10] sm:$0xff pattern:$0x75316420]
  %v6594 = vld.sshfl [vmem:[#allocation1 + $0x20] sm:$0xff pattern:$0x75316420]
  %v6595 = vld.sshfl [vmem:[#allocation1 + $0x30] sm:$0xff pattern:$0x75316420]
  %6596 = vst [vmem:[#allocation1] ss:$2 sm:$0xff] %v6518
  %6597 = vst [vmem:[%s6530] ss:$2 sm:$0xff] %v6436
  %6598 = vst [vmem:[%s6532] ss:$2 sm:$0xff] %v6437
  %6599 = vst [vmem:[%s6534] ss:$2 sm:$0xff] %v6519
  %6600 = vst [vmem:[%s6536] ss:$2 sm:$0xff] %v6438
  %6601 = vst [vmem:[%s6538] ss:$2 sm:$0xff] %v6439
  %6602 = vst [vmem:[%s6540] ss:$2 sm:$0xff] %v6520
  %6603 = vst [vmem:[%s6542] ss:$2 sm:$0xff] %v6440
  %v6604 = vld.sshfl [vmem:[#allocation1] sm:$0xff pattern:$0x75316420]
  %v6605 = vld.sshfl [vmem:[#allocation1 + $0x10] sm:$0xff pattern:$0x75316420]
  %v6606 = vld.sshfl [vmem:[#allocation1 + $0x20] sm:$0xff pattern:$0x75316420]
  %v6607 = vld.sshfl [vmem:[#allocation1 + $0x30] sm:$0xff pattern:$0x75316420]
  %6608 = vst [vmem:[#allocation1] ss:$2 sm:$0xff] %v6441
  %6609 = vst [vmem:[%s6530] ss:$2 sm:$0xff] %v6521
  %6610 = vst [vmem:[%s6532] ss:$2 sm:$0xff] %v6442
  %6611 = vst [vmem:[%s6534] ss:$2 sm:$0xff] %v6443
  %6612 = vst [vmem:[%s6536] ss:$2 sm:$0xff] %v6522
  %6613 = vst [vmem:[%s6538] ss:$2 sm:$0xff] %v6444
  %6614 = vst [vmem:[%s6540] ss:$2 sm:$0xff] %v6445
  %6615 = vst [vmem:[%s6542] ss:$2 sm:$0xff] %v6523
  %v6616 = vld.sshfl [vmem:[#allocation1] sm:$0xff pattern:$0x75316420]
  %v6617 = vld.sshfl [vmem:[#allocation1 + $0x10] sm:$0xff pattern:$0x75316420]
  %v6618 = vld.sshfl [vmem:[#allocation1 + $0x20] sm:$0xff pattern:$0x75316420]
  %v6619 = vld.sshfl [vmem:[#allocation1 + $0x30] sm:$0xff pattern:$0x75316420]
  %6620 = vst [vmem:[#allocation1] ss:$2 sm:$0xff] %v6446
  %6621 = vst [vmem:[%s6530] ss:$2 sm:$0xff] %v6447
  %6622 = vst [vmem:[%s6532] ss:$2 sm:$0xff] %v6524
  %6623 = vst [vmem:[%s6534] ss:$2 sm:$0xff] %v6448
  %6624 = vst [vmem:[%s6536] ss:$2 sm:$0xff] %v6449
  %6625 = vst [vmem:[%s6538] ss:$2 sm:$0xff] %v6525
  %6626 = vst [vmem:[%s6540] ss:$2 sm:$0xff] %v6450
  %6627 = vst [vmem:[%s6542] ss:$2 sm:$0xff] %v6451
  %v6628 = vld.sshfl [vmem:[#allocation1] sm:$0xff pattern:$0x75316420]
  %v6629 = vld.sshfl [vmem:[#allocation1 + $0x10] sm:$0xff pattern:$0x75316420]
  %v6630 = vld.sshfl [vmem:[#allocation1 + $0x20] sm:$0xff pattern:$0x75316420]
  %v6631 = vld.sshfl [vmem:[#allocation1 + $0x30] sm:$0xff pattern:$0x75316420]
  %6632 = vst [vmem:[#allocation1] ss:$2 sm:$0xff] %v6526
  %6633 = vst [vmem:[%s6530] ss:$2 sm:$0xff] %v6452
  %6634 = vst [vmem:[%s6532] ss:$2 sm:$0xff] %v6453
  %6635 = vst [vmem:[%s6534] ss:$2 sm:$0xff] %v6527
  %6636 = vst [vmem:[%s6536] ss:$2 sm:$0xff] %v6454
  %6637 = vst [vmem:[%s6538] ss:$2 sm:$0xff] %v6455
  %6638 = vst [vmem:[%s6540] ss:$2 sm:$0xff] %v6528
  %6639 = vst [vmem:[%s6542] ss:$2 sm:$0xff] %v6456
  %v6640 = vld.sshfl [vmem:[#allocation1] sm:$0xff pattern:$0x75316420]
  %v6641 = vld.sshfl [vmem:[#allocation1 + $0x10] sm:$0xff pattern:$0x75316420]
  %v6642 = vld.sshfl [vmem:[#allocation1 + $0x20] sm:$0xff pattern:$0x75316420]
  %v6643 = vld.sshfl [vmem:[#allocation1 + $0x30] sm:$0xff pattern:$0x75316420]
  %6644 = vrot.lane.b32.xlu0 %v6544, 51
  %v6645 = vpop.permute.xlu0 %6644
  %6646 = vrot.lane.b32.xlu0 %v6545, 51
  %v6647 = vpop.permute.xlu0 %6646
  %6648 = vrot.lane.b32.xlu0 %v6546, 51
  %v6649 = vpop.permute.xlu0 %6648
  %6650 = vrot.lane.b32.xlu0 %v6547, 51
  %v6651 = vpop.permute.xlu0 %6650
  %6652 = vrot.lane.b32.xlu0 %v6556, 51
  %v6653 = vpop.permute.xlu0 %6652
  %6654 = vrot.lane.b32.xlu0 %v6557, 51
  %v6655 = vpop.permute.xlu0 %6654
  %6656 = vrot.lane.b32.xlu0 %v6558, 51
  %v6657 = vpop.permute.xlu0 %6656
  %6658 = vrot.lane.b32.xlu0 %v6559, 51
  %v6659 = vpop.permute.xlu0 %6658
  %6660 = vrot.lane.b32.xlu0 %v6568, 51
  %v6661 = vpop.permute.xlu0 %6660
  %6662 = vrot.lane.b32.xlu0 %v6569, 51
  %v6663 = vpop.permute.xlu0 %6662
  %6664 = vrot.lane.b32.xlu0 %v6570, 51
  %v6665 = vpop.permute.xlu0 %6664
  %6666 = vrot.lane.b32.xlu0 %v6571, 51
  %v6667 = vpop.permute.xlu0 %6666
  %6668 = vrot.lane.b32.xlu0 %v6580, 51
  %v6669 = vpop.permute.xlu0 %6668
  %6670 = vrot.lane.b32.xlu0 %v6581, 51
  %v6671 = vpop.permute.xlu0 %6670
  %6672 = vrot.lane.b32.xlu0 %v6582, 51
  %v6673 = vpop.permute.xlu0 %6672
  %6674 = vrot.lane.b32.xlu0 %v6583, 51
  %v6675 = vpop.permute.xlu0 %6674
  %6676 = vrot.lane.b32.xlu0 %v6592, 51
  %v6677 = vpop.permute.xlu0 %6676
  %6678 = vrot.lane.b32.xlu0 %v6593, 51
  %v6679 = vpop.permute.xlu0 %6678
  %6680 = vrot.lane.b32.xlu0 %v6594, 51
  %v6681 = vpop.permute.xlu0 %6680
  %6682 = vrot.lane.b32.xlu0 %v6595, 51
  %v6683 = vpop.permute.xlu0 %6682
  %6684 = vrot.lane.b32.xlu0 %v6604, 51
  %v6685 = vpop.permute.xlu0 %6684
  %6686 = vrot.lane.b32.xlu0 %v6605, 51
  %v6687 = vpop.permute.xlu0 %6686
  %6688 = vrot.lane.b32.xlu0 %v6606, 51
  %v6689 = vpop.permute.xlu0 %6688
  %6690 = vrot.lane.b32.xlu0 %v6607, 51
  %v6691 = vpop.permute.xlu0 %6690
  %6692 = vrot.lane.b32.xlu0 %v6616, 51
  %v6693 = vpop.permute.xlu0 %6692
  %6694 = vrot.lane.b32.xlu0 %v6617, 51
  %v6695 = vpop.permute.xlu0 %6694
  %6696 = vrot.lane.b32.xlu0 %v6618, 51
  %v6697 = vpop.permute.xlu0 %6696
  %6698 = vrot.lane.b32.xlu0 %v6619, 51
  %v6699 = vpop.permute.xlu0 %6698
  %6700 = vrot.lane.b32.xlu0 %v6628, 51
  %v6701 = vpop.permute.xlu0 %6700
  %6702 = vrot.lane.b32.xlu0 %v6629, 51
  %v6703 = vpop.permute.xlu0 %6702
  %6704 = vrot.lane.b32.xlu0 %v6630, 51
  %v6705 = vpop.permute.xlu0 %6704
  %6706 = vrot.lane.b32.xlu0 %v6631, 51
  %v6707 = vpop.permute.xlu0 %6706
  %6708 = vrot.lane.b32.xlu0 %v6640, 51
  %v6709 = vpop.permute.xlu0 %6708
  %6710 = vrot.lane.b32.xlu0 %v6641, 51
  %v6711 = vpop.permute.xlu0 %6710
  %6712 = vrot.lane.b32.xlu0 %v6642, 51
  %v6713 = vpop.permute.xlu0 %6712
  %6714 = vrot.lane.b32.xlu0 %v6643, 51
  %v6715 = vpop.permute.xlu0 %6714
  %vm6752 = vcmask 441752
  %6753 = vst.msk [vmem:[#allocation2] sm:$0xff] %vm6752, %v6645
  %6754 = vst.msk [vmem:[#allocation2 + $0x8] sm:$0xff] %vm6752, %v6647
  %6755 = vst.msk [vmem:[#allocation2 + $0x10] sm:$0xff] %vm6752, %v6649
  %6756 = vst.msk [vmem:[#allocation2 + $0x18] sm:$0xff] %vm6752, %v6651
  %6757 = vst.msk [vmem:[#allocation2 + $0x20] sm:$0xff] %vm6752, %v6653
  %6758 = vst.msk [vmem:[#allocation2 + $0x28] sm:$0xff] %vm6752, %v6655
  %6759 = vst.msk [vmem:[#allocation2 + $0x30] sm:$0xff] %vm6752, %v6657
  %6760 = vst.msk [vmem:[#allocation2 + $0x38] sm:$0xff] %vm6752, %v6659
  %6761 = vst.msk [vmem:[#allocation2 + $0x40] sm:$0xff] %vm6752, %v6661
  %6762 = vst.msk [vmem:[#allocation2 + $0x48] sm:$0xff] %vm6752, %v6663
  %6763 = vst.msk [vmem:[#allocation2 + $0x50] sm:$0xff] %vm6752, %v6665
  %6764 = vst.msk [vmem:[#allocation2 + $0x58] sm:$0xff] %vm6752, %v6667
  %6765 = vst.msk [vmem:[#allocation2 + $0x60] sm:$0xff] %vm6752, %v6669
  %6766 = vst.msk [vmem:[#allocation2 + $0x68] sm:$0xff] %vm6752, %v6671
  %6767 = vst.msk [vmem:[#allocation2 + $0x70] sm:$0xff] %vm6752, %v6673
  %6768 = vst.msk [vmem:[#allocation2 + $0x78] sm:$0xff] %vm6752, %v6675
  %6769 = vst.msk [vmem:[#allocation2 + $0x80] sm:$0xff] %vm6752, %v6677
  %6770 = vst.msk [vmem:[#allocation2 + $0x88] sm:$0xff] %vm6752, %v6679
  %6771 = vst.msk [vmem:[#allocation2 + $0x90] sm:$0xff] %vm6752, %v6681
  %6772 = vst.msk [vmem:[#allocation2 + $0x98] sm:$0xff] %vm6752, %v6683
  %6773 = vst.msk [vmem:[#allocation2 + $0xa0] sm:$0xff] %vm6752, %v6685
  %6774 = vst.msk [vmem:[#allocation2 + $0xa8] sm:$0xff] %vm6752, %v6687
  %6775 = vst.msk [vmem:[#allocation2 + $0xb0] sm:$0xff] %vm6752, %v6689
  %6776 = vst.msk [vmem:[#allocation2 + $0xb8] sm:$0xff] %vm6752, %v6691
  %6777 = vst.msk [vmem:[#allocation2 + $0xc0] sm:$0xff] %vm6752, %v6693
  %6778 = vst.msk [vmem:[#allocation2 + $0xc8] sm:$0xff] %vm6752, %v6695
  %6779 = vst.msk [vmem:[#allocation2 + $0xd0] sm:$0xff] %vm6752, %v6697
  %6780 = vst.msk [vmem:[#allocation2 + $0xd8] sm:$0xff] %vm6752, %v6699
  %6781 = vst.msk [vmem:[#allocation2 + $0xe0] sm:$0xff] %vm6752, %v6701
  %6782 = vst.msk [vmem:[#allocation2 + $0xe8] sm:$0xff] %vm6752, %v6703
  %6783 = vst.msk [vmem:[#allocation2 + $0xf0] sm:$0xff] %vm6752, %v6705
  %6784 = vst.msk [vmem:[#allocation2 + $0xf8] sm:$0xff] %vm6752, %v6707
  %6785 = vst.msk [vmem:[#allocation2 + $0x100] sm:$0xff] %vm6752, %v6709
  %6786 = vst.msk [vmem:[#allocation2 + $0x108] sm:$0xff] %vm6752, %v6711
  %6787 = vst.msk [vmem:[#allocation2 + $0x110] sm:$0xff] %vm6752, %v6713
  %6788 = vst.msk [vmem:[#allocation2 + $0x118] sm:$0xff] %vm6752, %v6715
  %v6789 = vld [vmem:[%s5648 + $0x3] sm:$0xff]
  %v6790 = vld [vmem:[%s5648 + $0xb] sm:$0xf]
  %v6791 = vld [vmem:[%s5648 + $0x13] sm:$0xff]
  %v6792 = vld [vmem:[%s5648 + $0x1b] sm:$0xf]
  %v6793 = vld [vmem:[%s5648 + $0x23] sm:$0xff]
  %v6794 = vld [vmem:[%s5648 + $0x2b] sm:$0xf]
  %v6795 = vld [vmem:[%s5648 + $0x33] sm:$0xff]
  %v6796 = vld [vmem:[%s5648 + $0x3b] sm:$0xf]
  %v6797 = vld [vmem:[%s5648 + $0x43] sm:$0xff]
  %v6798 = vld [vmem:[%s5648 + $0x4b] sm:$0xf]
  %v6799 = vld [vmem:[%s5648 + $0x53] sm:$0xff]
  %v6800 = vld [vmem:[%s5648 + $0x5b] sm:$0xf]
  %v6801 = vld [vmem:[%s5648 + $0x63] sm:$0xff]
  %v6802 = vld [vmem:[%s5648 + $0x6b] sm:$0xf]
  %v6803 = vld [vmem:[%s5648 + $0x73] sm:$0xff]
  %v6804 = vld [vmem:[%s5648 + $0x7b] sm:$0xf]
  %v6805 = vld [vmem:[%s5648 + $0x83] sm:$0xff]
  %v6806 = vld [vmem:[%s5648 + $0x8b] sm:$0xf]
  %v6807 = vld [vmem:[%s5648 + $0x93] sm:$0xff]
  %v6808 = vld [vmem:[%s5648 + $0x9b] sm:$0xf]
  %v6809 = vld [vmem:[%s5648 + $0xa3] sm:$0xff]
  %v6810 = vld [vmem:[%s5648 + $0xab] sm:$0xf]
  %v6811 = vld [vmem:[%s5648 + $0xb3] sm:$0xff]
  %v6812 = vld [vmem:[%s5648 + $0xbb] sm:$0xf]
  %v6813 = vld [vmem:[%s5648 + $0x103] sm:$0xff]
  %v6814 = vld [vmem:[%s5648 + $0x10b] sm:$0xf]
  %v6815 = vld [vmem:[%s5648 + $0x113] sm:$0xff]
  %v6816 = vld [vmem:[%s5648 + $0x11b] sm:$0xf]
  %v6817 = vld [vmem:[%s5648 + $0x123] sm:$0xff]
  %v6818 = vld [vmem:[%s5648 + $0x12b] sm:$0xf]
  %v6819 = vld [vmem:[%s5648 + $0x133] sm:$0xff]
  %v6820 = vld [vmem:[%s5648 + $0x13b] sm:$0xf]
  %v6821 = vld [vmem:[%s5648 + $0x143] sm:$0xff]
  %v6822 = vld [vmem:[%s5648 + $0x14b] sm:$0xf]
  %v6823 = vld [vmem:[%s5648 + $0x153] sm:$0xff]
  %v6824 = vld [vmem:[%s5648 + $0x15b] sm:$0xf]
  %v6825 = vld [vmem:[%s5648 + $0x163] sm:$0xff]
  %v6826 = vld [vmem:[%s5648 + $0x16b] sm:$0xf]
  %v6827 = vld [vmem:[%s5648 + $0x173] sm:$0xff]
  %v6828 = vld [vmem:[%s5648 + $0x17b] sm:$0xf]
  %v6829 = vld [vmem:[%s5648 + $0x183] sm:$0xff]
  %v6830 = vld [vmem:[%s5648 + $0x18b] sm:$0xf]
  %v6831 = vld [vmem:[%s5648 + $0x193] sm:$0xff]
  %v6832 = vld [vmem:[%s5648 + $0x19b] sm:$0xf]
  %v6833 = vld [vmem:[%s5648 + $0x1a3] sm:$0xff]
  %v6834 = vld [vmem:[%s5648 + $0x1ab] sm:$0xf]
  %v6835 = vld [vmem:[%s5648 + $0x1b3] sm:$0xff]
  %v6836 = vld [vmem:[%s5648 + $0x1bb] sm:$0xf]
  %v6885 = vrot.slane %v6789, 4
  %v6886 = vrot.slane %v6791, 4
  %v6887 = vrot.slane %v6793, 4
  %v6888 = vrot.slane %v6795, 4
  %v6889 = vrot.slane %v6797, 4
  %v6890 = vrot.slane %v6799, 4
  %v6891 = vrot.slane %v6801, 4
  %v6892 = vrot.slane %v6803, 4
  %v6893 = vrot.slane %v6805, 4
  %v6894 = vrot.slane %v6807, 4
  %v6895 = vrot.slane %v6809, 4
  %v6896 = vrot.slane %v6811, 4
  %v6897 = vrot.slane %v6813, 4
  %v6898 = vrot.slane %v6815, 4
  %v6899 = vrot.slane %v6817, 4
  %v6900 = vrot.slane %v6819, 4
  %v6901 = vrot.slane %v6821, 4
  %v6902 = vrot.slane %v6823, 4
  %v6903 = vrot.slane %v6825, 4
  %v6904 = vrot.slane %v6827, 4
  %v6905 = vrot.slane %v6829, 4
  %v6906 = vrot.slane %v6831, 4
  %v6907 = vrot.slane %v6833, 4
  %v6908 = vrot.slane %v6835, 4
  %6909 = vst [vmem:[#allocation1] ss:$2 sm:$0xff] %v6789
  %s6910 = scalar_lea.vmem [#allocation1], 1
  %6911 = vst [vmem:[%s6910] ss:$2 sm:$0xff] %v6885
  %s6912 = scalar_lea.vmem [#allocation1], 16
  %6913 = vst [vmem:[%s6912] ss:$2 sm:$0xff] %v6790
  %s6914 = scalar_lea.vmem [#allocation1], 17
  %6915 = vst [vmem:[%s6914] ss:$2 sm:$0xff] %v6791
  %s6916 = scalar_lea.vmem [#allocation1], 32
  %6917 = vst [vmem:[%s6916] ss:$2 sm:$0xff] %v6886
  %s6918 = scalar_lea.vmem [#allocation1], 33
  %6919 = vst [vmem:[%s6918] ss:$2 sm:$0xff] %v6792
  %s6920 = scalar_lea.vmem [#allocation1], 48
  %6921 = vst [vmem:[%s6920] ss:$2 sm:$0xff] %v6793
  %s6922 = scalar_lea.vmem [#allocation1], 49
  %6923 = vst [vmem:[%s6922] ss:$2 sm:$0xff] %v6887
  %v6924 = vld.sshfl [vmem:[#allocation1] sm:$0xff pattern:$0x75316420]
  %v6925 = vld.sshfl [vmem:[#allocation1 + $0x10] sm:$0xff pattern:$0x75316420]
  %v6926 = vld.sshfl [vmem:[#allocation1 + $0x20] sm:$0xff pattern:$0x75316420]
  %v6927 = vld.sshfl [vmem:[#allocation1 + $0x30] sm:$0xff pattern:$0x75316420]
  %6928 = vst [vmem:[#allocation1] ss:$2 sm:$0xff] %v6794
  %6929 = vst [vmem:[%s6910] ss:$2 sm:$0xff] %v6795
  %6930 = vst [vmem:[%s6912] ss:$2 sm:$0xff] %v6888
  %6931 = vst [vmem:[%s6914] ss:$2 sm:$0xff] %v6796
  %6932 = vst [vmem:[%s6916] ss:$2 sm:$0xff] %v6797
  %6933 = vst [vmem:[%s6918] ss:$2 sm:$0xff] %v6889
  %6934 = vst [vmem:[%s6920] ss:$2 sm:$0xff] %v6798
  %6935 = vst [vmem:[%s6922] ss:$2 sm:$0xff] %v6799
  %v6936 = vld.sshfl [vmem:[#allocation1] sm:$0xff pattern:$0x75316420]
  %v6937 = vld.sshfl [vmem:[#allocation1 + $0x10] sm:$0xff pattern:$0x75316420]
  %v6938 = vld.sshfl [vmem:[#allocation1 + $0x20] sm:$0xff pattern:$0x75316420]
  %v6939 = vld.sshfl [vmem:[#allocation1 + $0x30] sm:$0xff pattern:$0x75316420]
  %6940 = vst [vmem:[#allocation1] ss:$2 sm:$0xff] %v6890
  %6941 = vst [vmem:[%s6910] ss:$2 sm:$0xff] %v6800
  %6942 = vst [vmem:[%s6912] ss:$2 sm:$0xff] %v6801
  %6943 = vst [vmem:[%s6914] ss:$2 sm:$0xff] %v6891
  %6944 = vst [vmem:[%s6916] ss:$2 sm:$0xff] %v6802
  %6945 = vst [vmem:[%s6918] ss:$2 sm:$0xff] %v6803
  %6946 = vst [vmem:[%s6920] ss:$2 sm:$0xff] %v6892
  %6947 = vst [vmem:[%s6922] ss:$2 sm:$0xff] %v6804
  %v6948 = vld.sshfl [vmem:[#allocation1] sm:$0xff pattern:$0x75316420]
  %v6949 = vld.sshfl [vmem:[#allocation1 + $0x10] sm:$0xff pattern:$0x75316420]
  %v6950 = vld.sshfl [vmem:[#allocation1 + $0x20] sm:$0xff pattern:$0x75316420]
  %v6951 = vld.sshfl [vmem:[#allocation1 + $0x30] sm:$0xff pattern:$0x75316420]
  %6952 = vst [vmem:[#allocation1] ss:$2 sm:$0xff] %v6805
  %6953 = vst [vmem:[%s6910] ss:$2 sm:$0xff] %v6893
  %6954 = vst [vmem:[%s6912] ss:$2 sm:$0xff] %v6806
  %6955 = vst [vmem:[%s6914] ss:$2 sm:$0xff] %v6807
  %6956 = vst [vmem:[%s6916] ss:$2 sm:$0xff] %v6894
  %6957 = vst [vmem:[%s6918] ss:$2 sm:$0xff] %v6808
  %6958 = vst [vmem:[%s6920] ss:$2 sm:$0xff] %v6809
  %6959 = vst [vmem:[%s6922] ss:$2 sm:$0xff] %v6895
  %v6960 = vld.sshfl [vmem:[#allocation1] sm:$0xff pattern:$0x75316420]
  %v6961 = vld.sshfl [vmem:[#allocation1 + $0x10] sm:$0xff pattern:$0x75316420]
  %v6962 = vld.sshfl [vmem:[#allocation1 + $0x20] sm:$0xff pattern:$0x75316420]
  %v6963 = vld.sshfl [vmem:[#allocation1 + $0x30] sm:$0xff pattern:$0x75316420]
  %6964 = vst [vmem:[#allocation1] ss:$2 sm:$0xff] %v6810
  %6965 = vst [vmem:[%s6910] ss:$2 sm:$0xff] %v6811
  %6966 = vst [vmem:[%s6912] ss:$2 sm:$0xff] %v6896
  %6967 = vst [vmem:[%s6914] ss:$2 sm:$0xff] %v6812
  %6968 = vst [vmem:[%s6916] ss:$2 sm:$0xff] %v6813
  %6969 = vst [vmem:[%s6918] ss:$2 sm:$0xff] %v6897
  %6970 = vst [vmem:[%s6920] ss:$2 sm:$0xff] %v6814
  %6971 = vst [vmem:[%s6922] ss:$2 sm:$0xff] %v6815
  %v6972 = vld.sshfl [vmem:[#allocation1] sm:$0xff pattern:$0x75316420]
  %v6973 = vld.sshfl [vmem:[#allocation1 + $0x10] sm:$0xff pattern:$0x75316420]
  %v6974 = vld.sshfl [vmem:[#allocation1 + $0x20] sm:$0xff pattern:$0x75316420]
  %v6975 = vld.sshfl [vmem:[#allocation1 + $0x30] sm:$0xff pattern:$0x75316420]
  %6976 = vst [vmem:[#allocation1] ss:$2 sm:$0xff] %v6898
  %6977 = vst [vmem:[%s6910] ss:$2 sm:$0xff] %v6816
  %6978 = vst [vmem:[%s6912] ss:$2 sm:$0xff] %v6817
  %6979 = vst [vmem:[%s6914] ss:$2 sm:$0xff] %v6899
  %6980 = vst [vmem:[%s6916] ss:$2 sm:$0xff] %v6818
  %6981 = vst [vmem:[%s6918] ss:$2 sm:$0xff] %v6819
  %6982 = vst [vmem:[%s6920] ss:$2 sm:$0xff] %v6900
  %6983 = vst [vmem:[%s6922] ss:$2 sm:$0xff] %v6820
  %v6984 = vld.sshfl [vmem:[#allocation1] sm:$0xff pattern:$0x75316420]
  %v6985 = vld.sshfl [vmem:[#allocation1 + $0x10] sm:$0xff pattern:$0x75316420]
  %v6986 = vld.sshfl [vmem:[#allocation1 + $0x20] sm:$0xff pattern:$0x75316420]
  %v6987 = vld.sshfl [vmem:[#allocation1 + $0x30] sm:$0xff pattern:$0x75316420]
  %6988 = vst [vmem:[#allocation1] ss:$2 sm:$0xff] %v6821
  %6989 = vst [vmem:[%s6910] ss:$2 sm:$0xff] %v6901
  %6990 = vst [vmem:[%s6912] ss:$2 sm:$0xff] %v6822
  %6991 = vst [vmem:[%s6914] ss:$2 sm:$0xff] %v6823
  %6992 = vst [vmem:[%s6916] ss:$2 sm:$0xff] %v6902
  %6993 = vst [vmem:[%s6918] ss:$2 sm:$0xff] %v6824
  %6994 = vst [vmem:[%s6920] ss:$2 sm:$0xff] %v6825
  %6995 = vst [vmem:[%s6922] ss:$2 sm:$0xff] %v6903
  %v6996 = vld.sshfl [vmem:[#allocation1] sm:$0xff pattern:$0x75316420]
  %v6997 = vld.sshfl [vmem:[#allocation1 + $0x10] sm:$0xff pattern:$0x75316420]
  %v6998 = vld.sshfl [vmem:[#allocation1 + $0x20] sm:$0xff pattern:$0x75316420]
  %v6999 = vld.sshfl [vmem:[#allocation1 + $0x30] sm:$0xff pattern:$0x75316420]
  %7000 = vst [vmem:[#allocation1] ss:$2 sm:$0xff] %v6826
  %7001 = vst [vmem:[%s6910] ss:$2 sm:$0xff] %v6827
  %7002 = vst [vmem:[%s6912] ss:$2 sm:$0xff] %v6904
  %7003 = vst [vmem:[%s6914] ss:$2 sm:$0xff] %v6828
  %7004 = vst [vmem:[%s6916] ss:$2 sm:$0xff] %v6829
  %7005 = vst [vmem:[%s6918] ss:$2 sm:$0xff] %v6905
  %7006 = vst [vmem:[%s6920] ss:$2 sm:$0xff] %v6830
  %7007 = vst [vmem:[%s6922] ss:$2 sm:$0xff] %v6831
  %v7008 = vld.sshfl [vmem:[#allocation1] sm:$0xff pattern:$0x75316420]
  %v7009 = vld.sshfl [vmem:[#allocation1 + $0x10] sm:$0xff pattern:$0x75316420]
  %v7010 = vld.sshfl [vmem:[#allocation1 + $0x20] sm:$0xff pattern:$0x75316420]
  %v7011 = vld.sshfl [vmem:[#allocation1 + $0x30] sm:$0xff pattern:$0x75316420]
  %7012 = vst [vmem:[#allocation1] ss:$2 sm:$0xff] %v6906
  %7013 = vst [vmem:[%s6910] ss:$2 sm:$0xff] %v6832
  %7014 = vst [vmem:[%s6912] ss:$2 sm:$0xff] %v6833
  %7015 = vst [vmem:[%s6914] ss:$2 sm:$0xff] %v6907
  %7016 = vst [vmem:[%s6916] ss:$2 sm:$0xff] %v6834
  %7017 = vst [vmem:[%s6918] ss:$2 sm:$0xff] %v6835
  %7018 = vst [vmem:[%s6920] ss:$2 sm:$0xff] %v6908
  %7019 = vst [vmem:[%s6922] ss:$2 sm:$0xff] %v6836
  %v7020 = vld.sshfl [vmem:[#allocation1] sm:$0xff pattern:$0x75316420]
  %v7021 = vld.sshfl [vmem:[#allocation1 + $0x10] sm:$0xff pattern:$0x75316420]
  %v7022 = vld.sshfl [vmem:[#allocation1 + $0x20] sm:$0xff pattern:$0x75316420]
  %v7023 = vld.sshfl [vmem:[#allocation1 + $0x30] sm:$0xff pattern:$0x75316420]
  %7024 = vrot.lane.b32.xlu0 %v6924, 54
  %v7025 = vpop.permute.xlu0 %7024
  %7026 = vrot.lane.b32.xlu0 %v6925, 54
  %v7027 = vpop.permute.xlu0 %7026
  %7028 = vrot.lane.b32.xlu0 %v6926, 54
  %v7029 = vpop.permute.xlu0 %7028
  %7030 = vrot.lane.b32.xlu0 %v6927, 54
  %v7031 = vpop.permute.xlu0 %7030
  %7032 = vrot.lane.b32.xlu0 %v6936, 54
  %v7033 = vpop.permute.xlu0 %7032
  %7034 = vrot.lane.b32.xlu0 %v6937, 54
  %v7035 = vpop.permute.xlu0 %7034
  %7036 = vrot.lane.b32.xlu0 %v6938, 54
  %v7037 = vpop.permute.xlu0 %7036
  %7038 = vrot.lane.b32.xlu0 %v6939, 54
  %v7039 = vpop.permute.xlu0 %7038
  %7040 = vrot.lane.b32.xlu0 %v6948, 54
  %v7041 = vpop.permute.xlu0 %7040
  %7042 = vrot.lane.b32.xlu0 %v6949, 54
  %v7043 = vpop.permute.xlu0 %7042
  %7044 = vrot.lane.b32.xlu0 %v6950, 54
  %v7045 = vpop.permute.xlu0 %7044
  %7046 = vrot.lane.b32.xlu0 %v6951, 54
  %v7047 = vpop.permute.xlu0 %7046
  %7048 = vrot.lane.b32.xlu0 %v6960, 54
  %v7049 = vpop.permute.xlu0 %7048
  %7050 = vrot.lane.b32.xlu0 %v6961, 54
  %v7051 = vpop.permute.xlu0 %7050
  %7052 = vrot.lane.b32.xlu0 %v6962, 54
  %v7053 = vpop.permute.xlu0 %7052
  %7054 = vrot.lane.b32.xlu0 %v6963, 54
  %v7055 = vpop.permute.xlu0 %7054
  %7056 = vrot.lane.b32.xlu0 %v6972, 54
  %v7057 = vpop.permute.xlu0 %7056
  %7058 = vrot.lane.b32.xlu0 %v6973, 54
  %v7059 = vpop.permute.xlu0 %7058
  %7060 = vrot.lane.b32.xlu0 %v6974, 54
  %v7061 = vpop.permute.xlu0 %7060
  %7062 = vrot.lane.b32.xlu0 %v6975, 54
  %v7063 = vpop.permute.xlu0 %7062
  %7064 = vrot.lane.b32.xlu0 %v6984, 54
  %v7065 = vpop.permute.xlu0 %7064
  %7066 = vrot.lane.b32.xlu0 %v6985, 54
  %v7067 = vpop.permute.xlu0 %7066
  %7068 = vrot.lane.b32.xlu0 %v6986, 54
  %v7069 = vpop.permute.xlu0 %7068
  %7070 = vrot.lane.b32.xlu0 %v6987, 54
  %v7071 = vpop.permute.xlu0 %7070
  %7072 = vrot.lane.b32.xlu0 %v6996, 54
  %v7073 = vpop.permute.xlu0 %7072
  %7074 = vrot.lane.b32.xlu0 %v6997, 54
  %v7075 = vpop.permute.xlu0 %7074
  %7076 = vrot.lane.b32.xlu0 %v6998, 54
  %v7077 = vpop.permute.xlu0 %7076
  %7078 = vrot.lane.b32.xlu0 %v6999, 54
  %v7079 = vpop.permute.xlu0 %7078
  %7080 = vrot.lane.b32.xlu0 %v7008, 54
  %v7081 = vpop.permute.xlu0 %7080
  %7082 = vrot.lane.b32.xlu0 %v7009, 54
  %v7083 = vpop.permute.xlu0 %7082
  %7084 = vrot.lane.b32.xlu0 %v7010, 54
  %v7085 = vpop.permute.xlu0 %7084
  %7086 = vrot.lane.b32.xlu0 %v7011, 54
  %v7087 = vpop.permute.xlu0 %7086
  %7088 = vrot.lane.b32.xlu0 %v7020, 54
  %v7089 = vpop.permute.xlu0 %7088
  %7090 = vrot.lane.b32.xlu0 %v7021, 54
  %v7091 = vpop.permute.xlu0 %7090
  %7092 = vrot.lane.b32.xlu0 %v7022, 54
  %v7093 = vpop.permute.xlu0 %7092
  %7094 = vrot.lane.b32.xlu0 %v7023, 54
  %v7095 = vpop.permute.xlu0 %7094
  %vm7132 = vcmask 466352
  %7133 = vst.msk [vmem:[#allocation2] sm:$0xff] %vm7132, %v7025
  %7134 = vst.msk [vmem:[#allocation2 + $0x8] sm:$0xff] %vm7132, %v7027
  %7135 = vst.msk [vmem:[#allocation2 + $0x10] sm:$0xff] %vm7132, %v7029
  %7136 = vst.msk [vmem:[#allocation2 + $0x18] sm:$0xff] %vm7132, %v7031
  %7137 = vst.msk [vmem:[#allocation2 + $0x20] sm:$0xff] %vm7132, %v7033
  %7138 = vst.msk [vmem:[#allocation2 + $0x28] sm:$0xff] %vm7132, %v7035
  %7139 = vst.msk [vmem:[#allocation2 + $0x30] sm:$0xff] %vm7132, %v7037
  %7140 = vst.msk [vmem:[#allocation2 + $0x38] sm:$0xff] %vm7132, %v7039
  %7141 = vst.msk [vmem:[#allocation2 + $0x40] sm:$0xff] %vm7132, %v7041
  %7142 = vst.msk [vmem:[#allocation2 + $0x48] sm:$0xff] %vm7132, %v7043
  %7143 = vst.msk [vmem:[#allocation2 + $0x50] sm:$0xff] %vm7132, %v7045
  %7144 = vst.msk [vmem:[#allocation2 + $0x58] sm:$0xff] %vm7132, %v7047
  %7145 = vst.msk [vmem:[#allocation2 + $0x60] sm:$0xff] %vm7132, %v7049
  %7146 = vst.msk [vmem:[#allocation2 + $0x68] sm:$0xff] %vm7132, %v7051
  %7147 = vst.msk [vmem:[#allocation2 + $0x70] sm:$0xff] %vm7132, %v7053
  %7148 = vst.msk [vmem:[#allocation2 + $0x78] sm:$0xff] %vm7132, %v7055
  %7149 = vst.msk [vmem:[#allocation2 + $0x80] sm:$0xff] %vm7132, %v7057
  %7150 = vst.msk [vmem:[#allocation2 + $0x88] sm:$0xff] %vm7132, %v7059
  %7151 = vst.msk [vmem:[#allocation2 + $0x90] sm:$0xff] %vm7132, %v7061
  %7152 = vst.msk [vmem:[#allocation2 + $0x98] sm:$0xff] %vm7132, %v7063
  %7153 = vst.msk [vmem:[#allocation2 + $0xa0] sm:$0xff] %vm7132, %v7065
  %7154 = vst.msk [vmem:[#allocation2 + $0xa8] sm:$0xff] %vm7132, %v7067
  %7155 = vst.msk [vmem:[#allocation2 + $0xb0] sm:$0xff] %vm7132, %v7069
  %7156 = vst.msk [vmem:[#allocation2 + $0xb8] sm:$0xff] %vm7132, %v7071
  %7157 = vst.msk [vmem:[#allocation2 + $0xc0] sm:$0xff] %vm7132, %v7073
  %7158 = vst.msk [vmem:[#allocation2 + $0xc8] sm:$0xff] %vm7132, %v7075
  %7159 = vst.msk [vmem:[#allocation2 + $0xd0] sm:$0xff] %vm7132, %v7077
  %7160 = vst.msk [vmem:[#allocation2 + $0xd8] sm:$0xff] %vm7132, %v7079
  %7161 = vst.msk [vmem:[#allocation2 + $0xe0] sm:$0xff] %vm7132, %v7081
  %7162 = vst.msk [vmem:[#allocation2 + $0xe8] sm:$0xff] %vm7132, %v7083
  %7163 = vst.msk [vmem:[#allocation2 + $0xf0] sm:$0xff] %vm7132, %v7085
  %7164 = vst.msk [vmem:[#allocation2 + $0xf8] sm:$0xff] %vm7132, %v7087
  %7165 = vst.msk [vmem:[#allocation2 + $0x100] sm:$0xff] %vm7132, %v7089
  %7166 = vst.msk [vmem:[#allocation2 + $0x108] sm:$0xff] %vm7132, %v7091
  %7167 = vst.msk [vmem:[#allocation2 + $0x110] sm:$0xff] %vm7132, %v7093
  %7168 = vst.msk [vmem:[#allocation2 + $0x118] sm:$0xff] %vm7132, %v7095
  %v7169 = vld [vmem:[%s5648 + $0x4] sm:$0xff]
  %v7170 = vld [vmem:[%s5648 + $0xc] sm:$0xf]
  %v7171 = vld [vmem:[%s5648 + $0x14] sm:$0xff]
  %v7172 = vld [vmem:[%s5648 + $0x1c] sm:$0xf]
  %v7173 = vld [vmem:[%s5648 + $0x24] sm:$0xff]
  %v7174 = vld [vmem:[%s5648 + $0x2c] sm:$0xf]
  %v7175 = vld [vmem:[%s5648 + $0x34] sm:$0xff]
  %v7176 = vld [vmem:[%s5648 + $0x3c] sm:$0xf]
  %v7177 = vld [vmem:[%s5648 + $0x44] sm:$0xff]
  %v7178 = vld [vmem:[%s5648 + $0x4c] sm:$0xf]
  %v7179 = vld [vmem:[%s5648 + $0x54] sm:$0xff]
  %v7180 = vld [vmem:[%s5648 + $0x5c] sm:$0xf]
  %v7181 = vld [vmem:[%s5648 + $0x64] sm:$0xff]
  %v7182 = vld [vmem:[%s5648 + $0x6c] sm:$0xf]
  %v7183 = vld [vmem:[%s5648 + $0x74] sm:$0xff]
  %v7184 = vld [vmem:[%s5648 + $0x7c] sm:$0xf]
  %v7185 = vld [vmem:[%s5648 + $0x84] sm:$0xff]
  %v7186 = vld [vmem:[%s5648 + $0x8c] sm:$0xf]
  %v7187 = vld [vmem:[%s5648 + $0x94] sm:$0xff]
  %v7188 = vld [vmem:[%s5648 + $0x9c] sm:$0xf]
  %v7189 = vld [vmem:[%s5648 + $0xa4] sm:$0xff]
  %v7190 = vld [vmem:[%s5648 + $0xac] sm:$0xf]
  %v7191 = vld [vmem:[%s5648 + $0xb4] sm:$0xff]
  %v7192 = vld [vmem:[%s5648 + $0xbc] sm:$0xf]
  %v7193 = vld [vmem:[%s5648 + $0x104] sm:$0xff]
  %v7194 = vld [vmem:[%s5648 + $0x10c] sm:$0xf]
  %v7195 = vld [vmem:[%s5648 + $0x114] sm:$0xff]
  %v7196 = vld [vmem:[%s5648 + $0x11c] sm:$0xf]
  %v7197 = vld [vmem:[%s5648 + $0x124] sm:$0xff]
  %v7198 = vld [vmem:[%s5648 + $0x12c] sm:$0xf]
  %v7199 = vld [vmem:[%s5648 + $0x134] sm:$0xff]
  %v7200 = vld [vmem:[%s5648 + $0x13c] sm:$0xf]
  %v7201 = vld [vmem:[%s5648 + $0x144] sm:$0xff]
  %v7202 = vld [vmem:[%s5648 + $0x14c] sm:$0xf]
  %v7203 = vld [vmem:[%s5648 + $0x154] sm:$0xff]
  %v7204 = vld [vmem:[%s5648 + $0x15c] sm:$0xf]
  %v7205 = vld [vmem:[%s5648 + $0x164] sm:$0xff]
  %v7206 = vld [vmem:[%s5648 + $0x16c] sm:$0xf]
  %v7207 = vld [vmem:[%s5648 + $0x174] sm:$0xff]
  %v7208 = vld [vmem:[%s5648 + $0x17c] sm:$0xf]
  %v7209 = vld [vmem:[%s5648 + $0x184] sm:$0xff]
  %v7210 = vld [vmem:[%s5648 + $0x18c] sm:$0xf]
  %v7211 = vld [vmem:[%s5648 + $0x194] sm:$0xff]
  %v7212 = vld [vmem:[%s5648 + $0x19c] sm:$0xf]
  %v7213 = vld [vmem:[%s5648 + $0x1a4] sm:$0xff]
  %v7214 = vld [vmem:[%s5648 + $0x1ac] sm:$0xf]
  %v7215 = vld [vmem:[%s5648 + $0x1b4] sm:$0xff]
  %v7216 = vld [vmem:[%s5648 + $0x1bc] sm:$0xf]
  %v7265 = vrot.slane %v7169, 4
  %v7266 = vrot.slane %v7171, 4
  %v7267 = vrot.slane %v7173, 4
  %v7268 = vrot.slane %v7175, 4
  %v7269 = vrot.slane %v7177, 4
  %v7270 = vrot.slane %v7179, 4
  %v7271 = vrot.slane %v7181, 4
  %v7272 = vrot.slane %v7183, 4
  %v7273 = vrot.slane %v7185, 4
  %v7274 = vrot.slane %v7187, 4
  %v7275 = vrot.slane %v7189, 4
  %v7276 = vrot.slane %v7191, 4
  %v7277 = vrot.slane %v7193, 4
  %v7278 = vrot.slane %v7195, 4
  %v7279 = vrot.slane %v7197, 4
  %v7280 = vrot.slane %v7199, 4
  %v7281 = vrot.slane %v7201, 4
  %v7282 = vrot.slane %v7203, 4
  %v7283 = vrot.slane %v7205, 4
  %v7284 = vrot.slane %v7207, 4
  %v7285 = vrot.slane %v7209, 4
  %v7286 = vrot.slane %v7211, 4
  %v7287 = vrot.slane %v7213, 4
  %v7288 = vrot.slane %v7215, 4
  %7289 = vst [vmem:[#allocation1] ss:$2 sm:$0xff] %v7169
  %s7290 = scalar_lea.vmem [#allocation1], 1
  %7291 = vst [vmem:[%s7290] ss:$2 sm:$0xff] %v7265
  %s7292 = scalar_lea.vmem [#allocation1], 16
  %7293 = vst [vmem:[%s7292] ss:$2 sm:$0xff] %v7170
  %s7294 = scalar_lea.vmem [#allocation1], 17
  %7295 = vst [vmem:[%s7294] ss:$2 sm:$0xff] %v7171
  %s7296 = scalar_lea.vmem [#allocation1], 32
  %7297 = vst [vmem:[%s7296] ss:$2 sm:$0xff] %v7266
  %s7298 = scalar_lea.vmem [#allocation1], 33
  %7299 = vst [vmem:[%s7298] ss:$2 sm:$0xff] %v7172
  %s7300 = scalar_lea.vmem [#allocation1], 48
  %7301 = vst [vmem:[%s7300] ss:$2 sm:$0xff] %v7173
  %s7302 = scalar_lea.vmem [#allocation1], 49
  %7303 = vst [vmem:[%s7302] ss:$2 sm:$0xff] %v7267
  %v7304 = vld.sshfl [vmem:[#allocation1] sm:$0xff pattern:$0x75316420]
  %v7305 = vld.sshfl [vmem:[#allocation1 + $0x10] sm:$0xff pattern:$0x75316420]
  %v7306 = vld.sshfl [vmem:[#allocation1 + $0x20] sm:$0xff pattern:$0x75316420]
  %v7307 = vld.sshfl [vmem:[#allocation1 + $0x30] sm:$0xff pattern:$0x75316420]
  %7308 = vst [vmem:[#allocation1] ss:$2 sm:$0xff] %v7174
  %7309 = vst [vmem:[%s7290] ss:$2 sm:$0xff] %v7175
  %7310 = vst [vmem:[%s7292] ss:$2 sm:$0xff] %v7268
  %7311 = vst [vmem:[%s7294] ss:$2 sm:$0xff] %v7176
  %7312 = vst [vmem:[%s7296] ss:$2 sm:$0xff] %v7177
  %7313 = vst [vmem:[%s7298] ss:$2 sm:$0xff] %v7269
  %7314 = vst [vmem:[%s7300] ss:$2 sm:$0xff] %v7178
  %7315 = vst [vmem:[%s7302] ss:$2 sm:$0xff] %v7179
  %v7316 = vld.sshfl [vmem:[#allocation1] sm:$0xff pattern:$0x75316420]
  %v7317 = vld.sshfl [vmem:[#allocation1 + $0x10] sm:$0xff pattern:$0x75316420]
  %v7318 = vld.sshfl [vmem:[#allocation1 + $0x20] sm:$0xff pattern:$0x75316420]
  %v7319 = vld.sshfl [vmem:[#allocation1 + $0x30] sm:$0xff pattern:$0x75316420]
  %7320 = vst [vmem:[#allocation1] ss:$2 sm:$0xff] %v7270
  %7321 = vst [vmem:[%s7290] ss:$2 sm:$0xff] %v7180
  %7322 = vst [vmem:[%s7292] ss:$2 sm:$0xff] %v7181
  %7323 = vst [vmem:[%s7294] ss:$2 sm:$0xff] %v7271
  %7324 = vst [vmem:[%s7296] ss:$2 sm:$0xff] %v7182
  %7325 = vst [vmem:[%s7298] ss:$2 sm:$0xff] %v7183
  %7326 = vst [vmem:[%s7300] ss:$2 sm:$0xff] %v7272
  %7327 = vst [vmem:[%s7302] ss:$2 sm:$0xff] %v7184
  %v7328 = vld.sshfl [vmem:[#allocation1] sm:$0xff pattern:$0x75316420]
  %v7329 = vld.sshfl [vmem:[#allocation1 + $0x10] sm:$0xff pattern:$0x75316420]
  %v7330 = vld.sshfl [vmem:[#allocation1 + $0x20] sm:$0xff pattern:$0x75316420]
  %v7331 = vld.sshfl [vmem:[#allocation1 + $0x30] sm:$0xff pattern:$0x75316420]
  %7332 = vst [vmem:[#allocation1] ss:$2 sm:$0xff] %v7185
  %7333 = vst [vmem:[%s7290] ss:$2 sm:$0xff] %v7273
  %7334 = vst [vmem:[%s7292] ss:$2 sm:$0xff] %v7186
  %7335 = vst [vmem:[%s7294] ss:$2 sm:$0xff] %v7187
  %7336 = vst [vmem:[%s7296] ss:$2 sm:$0xff] %v7274
  %7337 = vst [vmem:[%s7298] ss:$2 sm:$0xff] %v7188
  %7338 = vst [vmem:[%s7300] ss:$2 sm:$0xff] %v7189
  %7339 = vst [vmem:[%s7302] ss:$2 sm:$0xff] %v7275
  %v7340 = vld.sshfl [vmem:[#allocation1] sm:$0xff pattern:$0x75316420]
  %v7341 = vld.sshfl [vmem:[#allocation1 + $0x10] sm:$0xff pattern:$0x75316420]
  %v7342 = vld.sshfl [vmem:[#allocation1 + $0x20] sm:$0xff pattern:$0x75316420]
  %v7343 = vld.sshfl [vmem:[#allocation1 + $0x30] sm:$0xff pattern:$0x75316420]
  %7344 = vst [vmem:[#allocation1] ss:$2 sm:$0xff] %v7190
  %7345 = vst [vmem:[%s7290] ss:$2 sm:$0xff] %v7191
  %7346 = vst [vmem:[%s7292] ss:$2 sm:$0xff] %v7276
  %7347 = vst [vmem:[%s7294] ss:$2 sm:$0xff] %v7192
  %7348 = vst [vmem:[%s7296] ss:$2 sm:$0xff] %v7193
  %7349 = vst [vmem:[%s7298] ss:$2 sm:$0xff] %v7277
  %7350 = vst [vmem:[%s7300] ss:$2 sm:$0xff] %v7194
  %7351 = vst [vmem:[%s7302] ss:$2 sm:$0xff] %v7195
  %v7352 = vld.sshfl [vmem:[#allocation1] sm:$0xff pattern:$0x75316420]
  %v7353 = vld.sshfl [vmem:[#allocation1 + $0x10] sm:$0xff pattern:$0x75316420]
  %v7354 = vld.sshfl [vmem:[#allocation1 + $0x20] sm:$0xff pattern:$0x75316420]
  %v7355 = vld.sshfl [vmem:[#allocation1 + $0x30] sm:$0xff pattern:$0x75316420]
  %7356 = vst [vmem:[#allocation1] ss:$2 sm:$0xff] %v7278
  %7357 = vst [vmem:[%s7290] ss:$2 sm:$0xff] %v7196
  %7358 = vst [vmem:[%s7292] ss:$2 sm:$0xff] %v7197
  %7359 = vst [vmem:[%s7294] ss:$2 sm:$0xff] %v7279
  %7360 = vst [vmem:[%s7296] ss:$2 sm:$0xff] %v7198
  %7361 = vst [vmem:[%s7298] ss:$2 sm:$0xff] %v7199
  %7362 = vst [vmem:[%s7300] ss:$2 sm:$0xff] %v7280
  %7363 = vst [vmem:[%s7302] ss:$2 sm:$0xff] %v7200
  %v7364 = vld.sshfl [vmem:[#allocation1] sm:$0xff pattern:$0x75316420]
  %v7365 = vld.sshfl [vmem:[#allocation1 + $0x10] sm:$0xff pattern:$0x75316420]
  %v7366 = vld.sshfl [vmem:[#allocation1 + $0x20] sm:$0xff pattern:$0x75316420]
  %v7367 = vld.sshfl [vmem:[#allocation1 + $0x30] sm:$0xff pattern:$0x75316420]
  %7368 = vst [vmem:[#allocation1] ss:$2 sm:$0xff] %v7201
  %7369 = vst [vmem:[%s7290] ss:$2 sm:$0xff] %v7281
  %7370 = vst [vmem:[%s7292] ss:$2 sm:$0xff] %v7202
  %7371 = vst [vmem:[%s7294] ss:$2 sm:$0xff] %v7203
  %7372 = vst [vmem:[%s7296] ss:$2 sm:$0xff] %v7282
  %7373 = vst [vmem:[%s7298] ss:$2 sm:$0xff] %v7204
  %7374 = vst [vmem:[%s7300] ss:$2 sm:$0xff] %v7205
  %7375 = vst [vmem:[%s7302] ss:$2 sm:$0xff] %v7283
  %v7376 = vld.sshfl [vmem:[#allocation1] sm:$0xff pattern:$0x75316420]
  %v7377 = vld.sshfl [vmem:[#allocation1 + $0x10] sm:$0xff pattern:$0x75316420]
  %v7378 = vld.sshfl [vmem:[#allocation1 + $0x20] sm:$0xff pattern:$0x75316420]
  %v7379 = vld.sshfl [vmem:[#allocation1 + $0x30] sm:$0xff pattern:$0x75316420]
  %7380 = vst [vmem:[#allocation1] ss:$2 sm:$0xff] %v7206
  %7381 = vst [vmem:[%s7290] ss:$2 sm:$0xff] %v7207
  %7382 = vst [vmem:[%s7292] ss:$2 sm:$0xff] %v7284
  %7383 = vst [vmem:[%s7294] ss:$2 sm:$0xff] %v7208
  %7384 = vst [vmem:[%s7296] ss:$2 sm:$0xff] %v7209
  %7385 = vst [vmem:[%s7298] ss:$2 sm:$0xff] %v7285
  %7386 = vst [vmem:[%s7300] ss:$2 sm:$0xff] %v7210
  %7387 = vst [vmem:[%s7302] ss:$2 sm:$0xff] %v7211
  %v7388 = vld.sshfl [vmem:[#allocation1] sm:$0xff pattern:$0x75316420]
  %v7389 = vld.sshfl [vmem:[#allocation1 + $0x10] sm:$0xff pattern:$0x75316420]
  %v7390 = vld.sshfl [vmem:[#allocation1 + $0x20] sm:$0xff pattern:$0x75316420]
  %v7391 = vld.sshfl [vmem:[#allocation1 + $0x30] sm:$0xff pattern:$0x75316420]
  %7392 = vst [vmem:[#allocation1] ss:$2 sm:$0xff] %v7286
  %7393 = vst [vmem:[%s7290] ss:$2 sm:$0xff] %v7212
  %7394 = vst [vmem:[%s7292] ss:$2 sm:$0xff] %v7213
  %7395 = vst [vmem:[%s7294] ss:$2 sm:$0xff] %v7287
  %7396 = vst [vmem:[%s7296] ss:$2 sm:$0xff] %v7214
  %7397 = vst [vmem:[%s7298] ss:$2 sm:$0xff] %v7215
  %7398 = vst [vmem:[%s7300] ss:$2 sm:$0xff] %v7288
  %7399 = vst [vmem:[%s7302] ss:$2 sm:$0xff] %v7216
  %v7400 = vld.sshfl [vmem:[#allocation1] sm:$0xff pattern:$0x75316420]
  %v7401 = vld.sshfl [vmem:[#allocation1 + $0x10] sm:$0xff pattern:$0x75316420]
  %v7402 = vld.sshfl [vmem:[#allocation1 + $0x20] sm:$0xff pattern:$0x75316420]
  %v7403 = vld.sshfl [vmem:[#allocation1 + $0x30] sm:$0xff pattern:$0x75316420]
  %7404 = vrot.lane.b32.xlu0 %v7304, 57
  %v7405 = vpop.permute.xlu0 %7404
  %7406 = vrot.lane.b32.xlu0 %v7305, 57
  %v7407 = vpop.permute.xlu0 %7406
  %7408 = vrot.lane.b32.xlu0 %v7306, 57
  %v7409 = vpop.permute.xlu0 %7408
  %7410 = vrot.lane.b32.xlu0 %v7307, 57
  %v7411 = vpop.permute.xlu0 %7410
  %7412 = vrot.lane.b32.xlu0 %v7316, 57
  %v7413 = vpop.permute.xlu0 %7412
  %7414 = vrot.lane.b32.xlu0 %v7317, 57
  %v7415 = vpop.permute.xlu0 %7414
  %7416 = vrot.lane.b32.xlu0 %v7318, 57
  %v7417 = vpop.permute.xlu0 %7416
  %7418 = vrot.lane.b32.xlu0 %v7319, 57
  %v7419 = vpop.permute.xlu0 %7418
  %7420 = vrot.lane.b32.xlu0 %v7328, 57
  %v7421 = vpop.permute.xlu0 %7420
  %7422 = vrot.lane.b32.xlu0 %v7329, 57
  %v7423 = vpop.permute.xlu0 %7422
  %7424 = vrot.lane.b32.xlu0 %v7330, 57
  %v7425 = vpop.permute.xlu0 %7424
  %7426 = vrot.lane.b32.xlu0 %v7331, 57
  %v7427 = vpop.permute.xlu0 %7426
  %7428 = vrot.lane.b32.xlu0 %v7340, 57
  %v7429 = vpop.permute.xlu0 %7428
  %7430 = vrot.lane.b32.xlu0 %v7341, 57
  %v7431 = vpop.permute.xlu0 %7430
  %7432 = vrot.lane.b32.xlu0 %v7342, 57
  %v7433 = vpop.permute.xlu0 %7432
  %7434 = vrot.lane.b32.xlu0 %v7343, 57
  %v7435 = vpop.permute.xlu0 %7434
  %7436 = vrot.lane.b32.xlu0 %v7352, 57
  %v7437 = vpop.permute.xlu0 %7436
  %7438 = vrot.lane.b32.xlu0 %v7353, 57
  %v7439 = vpop.permute.xlu0 %7438
  %7440 = vrot.lane.b32.xlu0 %v7354, 57
  %v7441 = vpop.permute.xlu0 %7440
  %7442 = vrot.lane.b32.xlu0 %v7355, 57
  %v7443 = vpop.permute.xlu0 %7442
  %7444 = vrot.lane.b32.xlu0 %v7364, 57
  %v7445 = vpop.permute.xlu0 %7444
  %7446 = vrot.lane.b32.xlu0 %v7365, 57
  %v7447 = vpop.permute.xlu0 %7446
  %7448 = vrot.lane.b32.xlu0 %v7366, 57
  %v7449 = vpop.permute.xlu0 %7448
  %7450 = vrot.lane.b32.xlu0 %v7367, 57
  %v7451 = vpop.permute.xlu0 %7450
  %7452 = vrot.lane.b32.xlu0 %v7376, 57
  %v7453 = vpop.permute.xlu0 %7452
  %7454 = vrot.lane.b32.xlu0 %v7377, 57
  %v7455 = vpop.permute.xlu0 %7454
  %7456 = vrot.lane.b32.xlu0 %v7378, 57
  %v7457 = vpop.permute.xlu0 %7456
  %7458 = vrot.lane.b32.xlu0 %v7379, 57
  %v7459 = vpop.permute.xlu0 %7458
  %7460 = vrot.lane.b32.xlu0 %v7388, 57
  %v7461 = vpop.permute.xlu0 %7460
  %7462 = vrot.lane.b32.xlu0 %v7389, 57
  %v7463 = vpop.permute.xlu0 %7462
  %7464 = vrot.lane.b32.xlu0 %v7390, 57
  %v7465 = vpop.permute.xlu0 %7464
  %7466 = vrot.lane.b32.xlu0 %v7391, 57
  %v7467 = vpop.permute.xlu0 %7466
  %7468 = vrot.lane.b32.xlu0 %v7400, 57
  %v7469 = vpop.permute.xlu0 %7468
  %7470 = vrot.lane.b32.xlu0 %v7401, 57
  %v7471 = vpop.permute.xlu0 %7470
  %7472 = vrot.lane.b32.xlu0 %v7402, 57
  %v7473 = vpop.permute.xlu0 %7472
  %7474 = vrot.lane.b32.xlu0 %v7403, 57
  %v7475 = vpop.permute.xlu0 %7474
  %vm7512 = vcmask 490952
  %7513 = vst.msk [vmem:[#allocation2] sm:$0xff] %vm7512, %v7405
  %7514 = vst.msk [vmem:[#allocation2 + $0x8] sm:$0xff] %vm7512, %v7407
  %7515 = vst.msk [vmem:[#allocation2 + $0x10] sm:$0xff] %vm7512, %v7409
  %7516 = vst.msk [vmem:[#allocation2 + $0x18] sm:$0xff] %vm7512, %v7411
  %7517 = vst.msk [vmem:[#allocation2 + $0x20] sm:$0xff] %vm7512, %v7413
  %7518 = vst.msk [vmem:[#allocation2 + $0x28] sm:$0xff] %vm7512, %v7415
  %7519 = vst.msk [vmem:[#allocation2 + $0x30] sm:$0xff] %vm7512, %v7417
  %7520 = vst.msk [vmem:[#allocation2 + $0x38] sm:$0xff] %vm7512, %v7419
  %7521 = vst.msk [vmem:[#allocation2 + $0x40] sm:$0xff] %vm7512, %v7421
  %7522 = vst.msk [vmem:[#allocation2 + $0x48] sm:$0xff] %vm7512, %v7423
  %7523 = vst.msk [vmem:[#allocation2 + $0x50] sm:$0xff] %vm7512, %v7425
  %7524 = vst.msk [vmem:[#allocation2 + $0x58] sm:$0xff] %vm7512, %v7427
  %7525 = vst.msk [vmem:[#allocation2 + $0x60] sm:$0xff] %vm7512, %v7429
  %7526 = vst.msk [vmem:[#allocation2 + $0x68] sm:$0xff] %vm7512, %v7431
  %7527 = vst.msk [vmem:[#allocation2 + $0x70] sm:$0xff] %vm7512, %v7433
  %7528 = vst.msk [vmem:[#allocation2 + $0x78] sm:$0xff] %vm7512, %v7435
  %7529 = vst.msk [vmem:[#allocation2 + $0x80] sm:$0xff] %vm7512, %v7437
  %7530 = vst.msk [vmem:[#allocation2 + $0x88] sm:$0xff] %vm7512, %v7439
  %7531 = vst.msk [vmem:[#allocation2 + $0x90] sm:$0xff] %vm7512, %v7441
  %7532 = vst.msk [vmem:[#allocation2 + $0x98] sm:$0xff] %vm7512, %v7443
  %7533 = vst.msk [vmem:[#allocation2 + $0xa0] sm:$0xff] %vm7512, %v7445
  %7534 = vst.msk [vmem:[#allocation2 + $0xa8] sm:$0xff] %vm7512, %v7447
  %7535 = vst.msk [vmem:[#allocation2 + $0xb0] sm:$0xff] %vm7512, %v7449
  %7536 = vst.msk [vmem:[#allocation2 + $0xb8] sm:$0xff] %vm7512, %v7451
  %7537 = vst.msk [vmem:[#allocation2 + $0xc0] sm:$0xff] %vm7512, %v7453
  %7538 = vst.msk [vmem:[#allocation2 + $0xc8] sm:$0xff] %vm7512, %v7455
  %7539 = vst.msk [vmem:[#allocation2 + $0xd0] sm:$0xff] %vm7512, %v7457
  %7540 = vst.msk [vmem:[#allocation2 + $0xd8] sm:$0xff] %vm7512, %v7459
  %7541 = vst.msk [vmem:[#allocation2 + $0xe0] sm:$0xff] %vm7512, %v7461
  %7542 = vst.msk [vmem:[#allocation2 + $0xe8] sm:$0xff] %vm7512, %v7463
  %7543 = vst.msk [vmem:[#allocation2 + $0xf0] sm:$0xff] %vm7512, %v7465
  %7544 = vst.msk [vmem:[#allocation2 + $0xf8] sm:$0xff] %vm7512, %v7467
  %7545 = vst.msk [vmem:[#allocation2 + $0x100] sm:$0xff] %vm7512, %v7469
  %7546 = vst.msk [vmem:[#allocation2 + $0x108] sm:$0xff] %vm7512, %v7471
  %7547 = vst.msk [vmem:[#allocation2 + $0x110] sm:$0xff] %vm7512, %v7473
  %7548 = vst.msk [vmem:[#allocation2 + $0x118] sm:$0xff] %vm7512, %v7475
  %s7549 = scalar_lea.vmem %s1, 64
  %v7550 = vld [vmem:[%s7549] sm:$0xff]
  %v7551 = vld [vmem:[%s7549 + $0x8] sm:$0xf]
  %v7552 = vld [vmem:[%s7549 + $0x10] sm:$0xff]
  %v7553 = vld [vmem:[%s7549 + $0x18] sm:$0xf]
  %v7554 = vld [vmem:[%s7549 + $0x20] sm:$0xff]
  %v7555 = vld [vmem:[%s7549 + $0x28] sm:$0xf]
  %v7556 = vld [vmem:[%s7549 + $0x30] sm:$0xff]
  %v7557 = vld [vmem:[%s7549 + $0x38] sm:$0xf]
  %v7558 = vld [vmem:[%s7549 + $0x40] sm:$0xff]
  %v7559 = vld [vmem:[%s7549 + $0x48] sm:$0xf]
  %v7560 = vld [vmem:[%s7549 + $0x50] sm:$0xff]
  %v7561 = vld [vmem:[%s7549 + $0x58] sm:$0xf]
  %v7562 = vld [vmem:[%s7549 + $0x60] sm:$0xff]
  %v7563 = vld [vmem:[%s7549 + $0x68] sm:$0xf]
  %v7564 = vld [vmem:[%s7549 + $0x70] sm:$0xff]
  %v7565 = vld [vmem:[%s7549 + $0x78] sm:$0xf]
  %v7566 = vld [vmem:[%s7549 + $0x80] sm:$0xff]
  %v7567 = vld [vmem:[%s7549 + $0x88] sm:$0xf]
  %v7568 = vld [vmem:[%s7549 + $0x90] sm:$0xff]
  %v7569 = vld [vmem:[%s7549 + $0x98] sm:$0xf]
  %v7570 = vld [vmem:[%s7549 + $0xa0] sm:$0xff]
  %v7571 = vld [vmem:[%s7549 + $0xa8] sm:$0xf]
  %v7572 = vld [vmem:[%s7549 + $0xb0] sm:$0xff]
  %v7573 = vld [vmem:[%s7549 + $0xb8] sm:$0xf]
  %v7574 = vld [vmem:[%s7549 + $0x100] sm:$0xff]
  %v7575 = vld [vmem:[%s7549 + $0x108] sm:$0xf]
  %v7576 = vld [vmem:[%s7549 + $0x110] sm:$0xff]
  %v7577 = vld [vmem:[%s7549 + $0x118] sm:$0xf]
  %v7578 = vld [vmem:[%s7549 + $0x120] sm:$0xff]
  %v7579 = vld [vmem:[%s7549 + $0x128] sm:$0xf]
  %v7580 = vld [vmem:[%s7549 + $0x130] sm:$0xff]
  %v7581 = vld [vmem:[%s7549 + $0x138] sm:$0xf]
  %v7582 = vld [vmem:[%s7549 + $0x140] sm:$0xff]
  %v7583 = vld [vmem:[%s7549 + $0x148] sm:$0xf]
  %v7584 = vld [vmem:[%s7549 + $0x150] sm:$0xff]
  %v7585 = vld [vmem:[%s7549 + $0x158] sm:$0xf]
  %v7586 = vld [vmem:[%s7549 + $0x160] sm:$0xff]
  %v7587 = vld [vmem:[%s7549 + $0x168] sm:$0xf]
  %v7588 = vld [vmem:[%s7549 + $0x170] sm:$0xff]
  %v7589 = vld [vmem:[%s7549 + $0x178] sm:$0xf]
  %v7590 = vld [vmem:[%s7549 + $0x180] sm:$0xff]
  %v7591 = vld [vmem:[%s7549 + $0x188] sm:$0xf]
  %v7592 = vld [vmem:[%s7549 + $0x190] sm:$0xff]
  %v7593 = vld [vmem:[%s7549 + $0x198] sm:$0xf]
  %v7594 = vld [vmem:[%s7549 + $0x1a0] sm:$0xff]
  %v7595 = vld [vmem:[%s7549 + $0x1a8] sm:$0xf]
  %v7596 = vld [vmem:[%s7549 + $0x1b0] sm:$0xff]
  %v7597 = vld [vmem:[%s7549 + $0x1b8] sm:$0xf]
  %v7646 = vrot.slane %v7550, 4
  %v7647 = vrot.slane %v7552, 4
  %v7648 = vrot.slane %v7554, 4
  %v7649 = vrot.slane %v7556, 4
  %v7650 = vrot.slane %v7558, 4
  %v7651 = vrot.slane %v7560, 4
  %v7652 = vrot.slane %v7562, 4
  %v7653 = vrot.slane %v7564, 4
  %v7654 = vrot.slane %v7566, 4
  %v7655 = vrot.slane %v7568, 4
  %v7656 = vrot.slane %v7570, 4
  %v7657 = vrot.slane %v7572, 4
  %v7658 = vrot.slane %v7574, 4
  %v7659 = vrot.slane %v7576, 4
  %v7660 = vrot.slane %v7578, 4
  %v7661 = vrot.slane %v7580, 4
  %v7662 = vrot.slane %v7582, 4
  %v7663 = vrot.slane %v7584, 4
  %v7664 = vrot.slane %v7586, 4
  %v7665 = vrot.slane %v7588, 4
  %v7666 = vrot.slane %v7590, 4
  %v7667 = vrot.slane %v7592, 4
  %v7668 = vrot.slane %v7594, 4
  %v7669 = vrot.slane %v7596, 4
  %7670 = vst [vmem:[#allocation1] ss:$2 sm:$0xff] %v7550
  %s7671 = scalar_lea.vmem [#allocation1], 1
  %7672 = vst [vmem:[%s7671] ss:$2 sm:$0xff] %v7646
  %s7673 = scalar_lea.vmem [#allocation1], 16
  %7674 = vst [vmem:[%s7673] ss:$2 sm:$0xff] %v7551
  %s7675 = scalar_lea.vmem [#allocation1], 17
  %7676 = vst [vmem:[%s7675] ss:$2 sm:$0xff] %v7552
  %s7677 = scalar_lea.vmem [#allocation1], 32
  %7678 = vst [vmem:[%s7677] ss:$2 sm:$0xff] %v7647
  %s7679 = scalar_lea.vmem [#allocation1], 33
  %7680 = vst [vmem:[%s7679] ss:$2 sm:$0xff] %v7553
  %s7681 = scalar_lea.vmem [#allocation1], 48
  %7682 = vst [vmem:[%s7681] ss:$2 sm:$0xff] %v7554
  %s7683 = scalar_lea.vmem [#allocation1], 49
  %7684 = vst [vmem:[%s7683] ss:$2 sm:$0xff] %v7648
  %v7685 = vld.sshfl [vmem:[#allocation1] sm:$0xff pattern:$0x75316420]
  %v7686 = vld.sshfl [vmem:[#allocation1 + $0x10] sm:$0xff pattern:$0x75316420]
  %v7687 = vld.sshfl [vmem:[#allocation1 + $0x20] sm:$0xff pattern:$0x75316420]
  %v7688 = vld.sshfl [vmem:[#allocation1 + $0x30] sm:$0xff pattern:$0x75316420]
  %7689 = vst [vmem:[#allocation1] ss:$2 sm:$0xff] %v7555
  %7690 = vst [vmem:[%s7671] ss:$2 sm:$0xff] %v7556
  %7691 = vst [vmem:[%s7673] ss:$2 sm:$0xff] %v7649
  %7692 = vst [vmem:[%s7675] ss:$2 sm:$0xff] %v7557
  %7693 = vst [vmem:[%s7677] ss:$2 sm:$0xff] %v7558
  %7694 = vst [vmem:[%s7679] ss:$2 sm:$0xff] %v7650
  %7695 = vst [vmem:[%s7681] ss:$2 sm:$0xff] %v7559
  %7696 = vst [vmem:[%s7683] ss:$2 sm:$0xff] %v7560
  %v7697 = vld.sshfl [vmem:[#allocation1] sm:$0xff pattern:$0x75316420]
  %v7698 = vld.sshfl [vmem:[#allocation1 + $0x10] sm:$0xff pattern:$0x75316420]
  %v7699 = vld.sshfl [vmem:[#allocation1 + $0x20] sm:$0xff pattern:$0x75316420]
  %v7700 = vld.sshfl [vmem:[#allocation1 + $0x30] sm:$0xff pattern:$0x75316420]
  %7701 = vst [vmem:[#allocation1] ss:$2 sm:$0xff] %v7651
  %7702 = vst [vmem:[%s7671] ss:$2 sm:$0xff] %v7561
  %7703 = vst [vmem:[%s7673] ss:$2 sm:$0xff] %v7562
  %7704 = vst [vmem:[%s7675] ss:$2 sm:$0xff] %v7652
  %7705 = vst [vmem:[%s7677] ss:$2 sm:$0xff] %v7563
  %7706 = vst [vmem:[%s7679] ss:$2 sm:$0xff] %v7564
  %7707 = vst [vmem:[%s7681] ss:$2 sm:$0xff] %v7653
  %7708 = vst [vmem:[%s7683] ss:$2 sm:$0xff] %v7565
  %v7709 = vld.sshfl [vmem:[#allocation1] sm:$0xff pattern:$0x75316420]
  %v7710 = vld.sshfl [vmem:[#allocation1 + $0x10] sm:$0xff pattern:$0x75316420]
  %v7711 = vld.sshfl [vmem:[#allocation1 + $0x20] sm:$0xff pattern:$0x75316420]
  %v7712 = vld.sshfl [vmem:[#allocation1 + $0x30] sm:$0xff pattern:$0x75316420]
  %7713 = vst [vmem:[#allocation1] ss:$2 sm:$0xff] %v7566
  %7714 = vst [vmem:[%s7671] ss:$2 sm:$0xff] %v7654
  %7715 = vst [vmem:[%s7673] ss:$2 sm:$0xff] %v7567
  %7716 = vst [vmem:[%s7675] ss:$2 sm:$0xff] %v7568
  %7717 = vst [vmem:[%s7677] ss:$2 sm:$0xff] %v7655
  %7718 = vst [vmem:[%s7679] ss:$2 sm:$0xff] %v7569
  %7719 = vst [vmem:[%s7681] ss:$2 sm:$0xff] %v7570
  %7720 = vst [vmem:[%s7683] ss:$2 sm:$0xff] %v7656
  %v7721 = vld.sshfl [vmem:[#allocation1] sm:$0xff pattern:$0x75316420]
  %v7722 = vld.sshfl [vmem:[#allocation1 + $0x10] sm:$0xff pattern:$0x75316420]
  %v7723 = vld.sshfl [vmem:[#allocation1 + $0x20] sm:$0xff pattern:$0x75316420]
  %v7724 = vld.sshfl [vmem:[#allocation1 + $0x30] sm:$0xff pattern:$0x75316420]
  %7725 = vst [vmem:[#allocation1] ss:$2 sm:$0xff] %v7571
  %7726 = vst [vmem:[%s7671] ss:$2 sm:$0xff] %v7572
  %7727 = vst [vmem:[%s7673] ss:$2 sm:$0xff] %v7657
  %7728 = vst [vmem:[%s7675] ss:$2 sm:$0xff] %v7573
  %7729 = vst [vmem:[%s7677] ss:$2 sm:$0xff] %v7574
  %7730 = vst [vmem:[%s7679] ss:$2 sm:$0xff] %v7658
  %7731 = vst [vmem:[%s7681] ss:$2 sm:$0xff] %v7575
  %7732 = vst [vmem:[%s7683] ss:$2 sm:$0xff] %v7576
  %v7733 = vld.sshfl [vmem:[#allocation1] sm:$0xff pattern:$0x75316420]
  %v7734 = vld.sshfl [vmem:[#allocation1 + $0x10] sm:$0xff pattern:$0x75316420]
  %v7735 = vld.sshfl [vmem:[#allocation1 + $0x20] sm:$0xff pattern:$0x75316420]
  %v7736 = vld.sshfl [vmem:[#allocation1 + $0x30] sm:$0xff pattern:$0x75316420]
  %7737 = vst [vmem:[#allocation1] ss:$2 sm:$0xff] %v7659
  %7738 = vst [vmem:[%s7671] ss:$2 sm:$0xff] %v7577
  %7739 = vst [vmem:[%s7673] ss:$2 sm:$0xff] %v7578
  %7740 = vst [vmem:[%s7675] ss:$2 sm:$0xff] %v7660
  %7741 = vst [vmem:[%s7677] ss:$2 sm:$0xff] %v7579
  %7742 = vst [vmem:[%s7679] ss:$2 sm:$0xff] %v7580
  %7743 = vst [vmem:[%s7681] ss:$2 sm:$0xff] %v7661
  %7744 = vst [vmem:[%s7683] ss:$2 sm:$0xff] %v7581
  %v7745 = vld.sshfl [vmem:[#allocation1] sm:$0xff pattern:$0x75316420]
  %v7746 = vld.sshfl [vmem:[#allocation1 + $0x10] sm:$0xff pattern:$0x75316420]
  %v7747 = vld.sshfl [vmem:[#allocation1 + $0x20] sm:$0xff pattern:$0x75316420]
  %v7748 = vld.sshfl [vmem:[#allocation1 + $0x30] sm:$0xff pattern:$0x75316420]
  %7749 = vst [vmem:[#allocation1] ss:$2 sm:$0xff] %v7582
  %7750 = vst [vmem:[%s7671] ss:$2 sm:$0xff] %v7662
  %7751 = vst [vmem:[%s7673] ss:$2 sm:$0xff] %v7583
  %7752 = vst [vmem:[%s7675] ss:$2 sm:$0xff] %v7584
  %7753 = vst [vmem:[%s7677] ss:$2 sm:$0xff] %v7663
  %7754 = vst [vmem:[%s7679] ss:$2 sm:$0xff] %v7585
  %7755 = vst [vmem:[%s7681] ss:$2 sm:$0xff] %v7586
  %7756 = vst [vmem:[%s7683] ss:$2 sm:$0xff] %v7664
  %v7757 = vld.sshfl [vmem:[#allocation1] sm:$0xff pattern:$0x75316420]
  %v7758 = vld.sshfl [vmem:[#allocation1 + $0x10] sm:$0xff pattern:$0x75316420]
  %v7759 = vld.sshfl [vmem:[#allocation1 + $0x20] sm:$0xff pattern:$0x75316420]
  %v7760 = vld.sshfl [vmem:[#allocation1 + $0x30] sm:$0xff pattern:$0x75316420]
  %7761 = vst [vmem:[#allocation1] ss:$2 sm:$0xff] %v7587
  %7762 = vst [vmem:[%s7671] ss:$2 sm:$0xff] %v7588
  %7763 = vst [vmem:[%s7673] ss:$2 sm:$0xff] %v7665
  %7764 = vst [vmem:[%s7675] ss:$2 sm:$0xff] %v7589
  %7765 = vst [vmem:[%s7677] ss:$2 sm:$0xff] %v7590
  %7766 = vst [vmem:[%s7679] ss:$2 sm:$0xff] %v7666
  %7767 = vst [vmem:[%s7681] ss:$2 sm:$0xff] %v7591
  %7768 = vst [vmem:[%s7683] ss:$2 sm:$0xff] %v7592
  %v7769 = vld.sshfl [vmem:[#allocation1] sm:$0xff pattern:$0x75316420]
  %v7770 = vld.sshfl [vmem:[#allocation1 + $0x10] sm:$0xff pattern:$0x75316420]
  %v7771 = vld.sshfl [vmem:[#allocation1 + $0x20] sm:$0xff pattern:$0x75316420]
  %v7772 = vld.sshfl [vmem:[#allocation1 + $0x30] sm:$0xff pattern:$0x75316420]
  %7773 = vst [vmem:[#allocation1] ss:$2 sm:$0xff] %v7667
  %7774 = vst [vmem:[%s7671] ss:$2 sm:$0xff] %v7593
  %7775 = vst [vmem:[%s7673] ss:$2 sm:$0xff] %v7594
  %7776 = vst [vmem:[%s7675] ss:$2 sm:$0xff] %v7668
  %7777 = vst [vmem:[%s7677] ss:$2 sm:$0xff] %v7595
  %7778 = vst [vmem:[%s7679] ss:$2 sm:$0xff] %v7596
  %7779 = vst [vmem:[%s7681] ss:$2 sm:$0xff] %v7669
  %7780 = vst [vmem:[%s7683] ss:$2 sm:$0xff] %v7597
  %v7781 = vld.sshfl [vmem:[#allocation1] sm:$0xff pattern:$0x75316420]
  %v7782 = vld.sshfl [vmem:[#allocation1 + $0x10] sm:$0xff pattern:$0x75316420]
  %v7783 = vld.sshfl [vmem:[#allocation1 + $0x20] sm:$0xff pattern:$0x75316420]
  %v7784 = vld.sshfl [vmem:[#allocation1 + $0x30] sm:$0xff pattern:$0x75316420]
  %7785 = vrot.lane.b32.xlu0 %v7685, 60
  %v7786 = vpop.permute.xlu0 %7785
  %7787 = vrot.lane.b32.xlu0 %v7686, 60
  %v7788 = vpop.permute.xlu0 %7787
  %7789 = vrot.lane.b32.xlu0 %v7687, 60
  %v7790 = vpop.permute.xlu0 %7789
  %7791 = vrot.lane.b32.xlu0 %v7688, 60
  %v7792 = vpop.permute.xlu0 %7791
  %7793 = vrot.lane.b32.xlu0 %v7697, 60
  %v7794 = vpop.permute.xlu0 %7793
  %7795 = vrot.lane.b32.xlu0 %v7698, 60
  %v7796 = vpop.permute.xlu0 %7795
  %7797 = vrot.lane.b32.xlu0 %v7699, 60
  %v7798 = vpop.permute.xlu0 %7797
  %7799 = vrot.lane.b32.xlu0 %v7700, 60
  %v7800 = vpop.permute.xlu0 %7799
  %7801 = vrot.lane.b32.xlu0 %v7709, 60
  %v7802 = vpop.permute.xlu0 %7801
  %7803 = vrot.lane.b32.xlu0 %v7710, 60
  %v7804 = vpop.permute.xlu0 %7803
  %7805 = vrot.lane.b32.xlu0 %v7711, 60
  %v7806 = vpop.permute.xlu0 %7805
  %7807 = vrot.lane.b32.xlu0 %v7712, 60
  %v7808 = vpop.permute.xlu0 %7807
  %7809 = vrot.lane.b32.xlu0 %v7721, 60
  %v7810 = vpop.permute.xlu0 %7809
  %7811 = vrot.lane.b32.xlu0 %v7722, 60
  %v7812 = vpop.permute.xlu0 %7811
  %7813 = vrot.lane.b32.xlu0 %v7723, 60
  %v7814 = vpop.permute.xlu0 %7813
  %7815 = vrot.lane.b32.xlu0 %v7724, 60
  %v7816 = vpop.permute.xlu0 %7815
  %7817 = vrot.lane.b32.xlu0 %v7733, 60
  %v7818 = vpop.permute.xlu0 %7817
  %7819 = vrot.lane.b32.xlu0 %v7734, 60
  %v7820 = vpop.permute.xlu0 %7819
  %7821 = vrot.lane.b32.xlu0 %v7735, 60
  %v7822 = vpop.permute.xlu0 %7821
  %7823 = vrot.lane.b32.xlu0 %v7736, 60
  %v7824 = vpop.permute.xlu0 %7823
  %7825 = vrot.lane.b32.xlu0 %v7745, 60
  %v7826 = vpop.permute.xlu0 %7825
  %7827 = vrot.lane.b32.xlu0 %v7746, 60
  %v7828 = vpop.permute.xlu0 %7827
  %7829 = vrot.lane.b32.xlu0 %v7747, 60
  %v7830 = vpop.permute.xlu0 %7829
  %7831 = vrot.lane.b32.xlu0 %v7748, 60
  %v7832 = vpop.permute.xlu0 %7831
  %7833 = vrot.lane.b32.xlu0 %v7757, 60
  %v7834 = vpop.permute.xlu0 %7833
  %7835 = vrot.lane.b32.xlu0 %v7758, 60
  %v7836 = vpop.permute.xlu0 %7835
  %7837 = vrot.lane.b32.xlu0 %v7759, 60
  %v7838 = vpop.permute.xlu0 %7837
  %7839 = vrot.lane.b32.xlu0 %v7760, 60
  %v7840 = vpop.permute.xlu0 %7839
  %7841 = vrot.lane.b32.xlu0 %v7769, 60
  %v7842 = vpop.permute.xlu0 %7841
  %7843 = vrot.lane.b32.xlu0 %v7770, 60
  %v7844 = vpop.permute.xlu0 %7843
  %7845 = vrot.lane.b32.xlu0 %v7771, 60
  %v7846 = vpop.permute.xlu0 %7845
  %7847 = vrot.lane.b32.xlu0 %v7772, 60
  %v7848 = vpop.permute.xlu0 %7847
  %7849 = vrot.lane.b32.xlu0 %v7781, 60
  %v7850 = vpop.permute.xlu0 %7849
  %7851 = vrot.lane.b32.xlu0 %v7782, 60
  %v7852 = vpop.permute.xlu0 %7851
  %7853 = vrot.lane.b32.xlu0 %v7783, 60
  %v7854 = vpop.permute.xlu0 %7853
  %7855 = vrot.lane.b32.xlu0 %v7784, 60
  %v7856 = vpop.permute.xlu0 %7855
  %vm7893 = vcmask 515552
  %7894 = vst.msk [vmem:[#allocation2] sm:$0xff] %vm7893, %v7786
  %7895 = vst.msk [vmem:[#allocation2 + $0x8] sm:$0xff] %vm7893, %v7788
  %7896 = vst.msk [vmem:[#allocation2 + $0x10] sm:$0xff] %vm7893, %v7790
  %7897 = vst.msk [vmem:[#allocation2 + $0x18] sm:$0xff] %vm7893, %v7792
  %7898 = vst.msk [vmem:[#allocation2 + $0x20] sm:$0xff] %vm7893, %v7794
  %7899 = vst.msk [vmem:[#allocation2 + $0x28] sm:$0xff] %vm7893, %v7796
  %7900 = vst.msk [vmem:[#allocation2 + $0x30] sm:$0xff] %vm7893, %v7798
  %7901 = vst.msk [vmem:[#allocation2 + $0x38] sm:$0xff] %vm7893, %v7800
  %7902 = vst.msk [vmem:[#allocation2 + $0x40] sm:$0xff] %vm7893, %v7802
  %7903 = vst.msk [vmem:[#allocation2 + $0x48] sm:$0xff] %vm7893, %v7804
  %7904 = vst.msk [vmem:[#allocation2 + $0x50] sm:$0xff] %vm7893, %v7806
  %7905 = vst.msk [vmem:[#allocation2 + $0x58] sm:$0xff] %vm7893, %v7808
  %7906 = vst.msk [vmem:[#allocation2 + $0x60] sm:$0xff] %vm7893, %v7810
  %7907 = vst.msk [vmem:[#allocation2 + $0x68] sm:$0xff] %vm7893, %v7812
  %7908 = vst.msk [vmem:[#allocation2 + $0x70] sm:$0xff] %vm7893, %v7814
  %7909 = vst.msk [vmem:[#allocation2 + $0x78] sm:$0xff] %vm7893, %v7816
  %7910 = vst.msk [vmem:[#allocation2 + $0x80] sm:$0xff] %vm7893, %v7818
  %7911 = vst.msk [vmem:[#allocation2 + $0x88] sm:$0xff] %vm7893, %v7820
  %7912 = vst.msk [vmem:[#allocation2 + $0x90] sm:$0xff] %vm7893, %v7822
  %7913 = vst.msk [vmem:[#allocation2 + $0x98] sm:$0xff] %vm7893, %v7824
  %7914 = vst.msk [vmem:[#allocation2 + $0xa0] sm:$0xff] %vm7893, %v7826
  %7915 = vst.msk [vmem:[#allocation2 + $0xa8] sm:$0xff] %vm7893, %v7828
  %7916 = vst.msk [vmem:[#allocation2 + $0xb0] sm:$0xff] %vm7893, %v7830
  %7917 = vst.msk [vmem:[#allocation2 + $0xb8] sm:$0xff] %vm7893, %v7832
  %7918 = vst.msk [vmem:[#allocation2 + $0xc0] sm:$0xff] %vm7893, %v7834
  %7919 = vst.msk [vmem:[#allocation2 + $0xc8] sm:$0xff] %vm7893, %v7836
  %7920 = vst.msk [vmem:[#allocation2 + $0xd0] sm:$0xff] %vm7893, %v7838
  %7921 = vst.msk [vmem:[#allocation2 + $0xd8] sm:$0xff] %vm7893, %v7840
  %7922 = vst.msk [vmem:[#allocation2 + $0xe0] sm:$0xff] %vm7893, %v7842
  %7923 = vst.msk [vmem:[#allocation2 + $0xe8] sm:$0xff] %vm7893, %v7844
  %7924 = vst.msk [vmem:[#allocation2 + $0xf0] sm:$0xff] %vm7893, %v7846
  %7925 = vst.msk [vmem:[#allocation2 + $0xf8] sm:$0xff] %vm7893, %v7848
  %7926 = vst.msk [vmem:[#allocation2 + $0x100] sm:$0xff] %vm7893, %v7850
  %7927 = vst.msk [vmem:[#allocation2 + $0x108] sm:$0xff] %vm7893, %v7852
  %7928 = vst.msk [vmem:[#allocation2 + $0x110] sm:$0xff] %vm7893, %v7854
  %7929 = vst.msk [vmem:[#allocation2 + $0x118] sm:$0xff] %vm7893, %v7856
  %v7930 = vld [vmem:[%s7549 + $0x1] sm:$0xff]
  %v7931 = vld [vmem:[%s7549 + $0x9] sm:$0xf]
  %v7932 = vld [vmem:[%s7549 + $0x11] sm:$0xff]
  %v7933 = vld [vmem:[%s7549 + $0x19] sm:$0xf]
  %v7934 = vld [vmem:[%s7549 + $0x21] sm:$0xff]
  %v7935 = vld [vmem:[%s7549 + $0x29] sm:$0xf]
  %v7936 = vld [vmem:[%s7549 + $0x31] sm:$0xff]
  %v7937 = vld [vmem:[%s7549 + $0x39] sm:$0xf]
  %v7938 = vld [vmem:[%s7549 + $0x41] sm:$0xff]
  %v7939 = vld [vmem:[%s7549 + $0x49] sm:$0xf]
  %v7940 = vld [vmem:[%s7549 + $0x51] sm:$0xff]
  %v7941 = vld [vmem:[%s7549 + $0x59] sm:$0xf]
  %v7942 = vld [vmem:[%s7549 + $0x61] sm:$0xff]
  %v7943 = vld [vmem:[%s7549 + $0x69] sm:$0xf]
  %v7944 = vld [vmem:[%s7549 + $0x71] sm:$0xff]
  %v7945 = vld [vmem:[%s7549 + $0x79] sm:$0xf]
  %v7946 = vld [vmem:[%s7549 + $0x81] sm:$0xff]
  %v7947 = vld [vmem:[%s7549 + $0x89] sm:$0xf]
  %v7948 = vld [vmem:[%s7549 + $0x91] sm:$0xff]
  %v7949 = vld [vmem:[%s7549 + $0x99] sm:$0xf]
  %v7950 = vld [vmem:[%s7549 + $0xa1] sm:$0xff]
  %v7951 = vld [vmem:[%s7549 + $0xa9] sm:$0xf]
  %v7952 = vld [vmem:[%s7549 + $0xb1] sm:$0xff]
  %v7953 = vld [vmem:[%s7549 + $0xb9] sm:$0xf]
  %v7954 = vld [vmem:[%s7549 + $0x101] sm:$0xff]
  %v7955 = vld [vmem:[%s7549 + $0x109] sm:$0xf]
  %v7956 = vld [vmem:[%s7549 + $0x111] sm:$0xff]
  %v7957 = vld [vmem:[%s7549 + $0x119] sm:$0xf]
  %v7958 = vld [vmem:[%s7549 + $0x121] sm:$0xff]
  %v7959 = vld [vmem:[%s7549 + $0x129] sm:$0xf]
  %v7960 = vld [vmem:[%s7549 + $0x131] sm:$0xff]
  %v7961 = vld [vmem:[%s7549 + $0x139] sm:$0xf]
  %v7962 = vld [vmem:[%s7549 + $0x141] sm:$0xff]
  %v7963 = vld [vmem:[%s7549 + $0x149] sm:$0xf]
  %v7964 = vld [vmem:[%s7549 + $0x151] sm:$0xff]
  %v7965 = vld [vmem:[%s7549 + $0x159] sm:$0xf]
  %v7966 = vld [vmem:[%s7549 + $0x161] sm:$0xff]
  %v7967 = vld [vmem:[%s7549 + $0x169] sm:$0xf]
  %v7968 = vld [vmem:[%s7549 + $0x171] sm:$0xff]
  %v7969 = vld [vmem:[%s7549 + $0x179] sm:$0xf]
  %v7970 = vld [vmem:[%s7549 + $0x181] sm:$0xff]
  %v7971 = vld [vmem:[%s7549 + $0x189] sm:$0xf]
  %v7972 = vld [vmem:[%s7549 + $0x191] sm:$0xff]
  %v7973 = vld [vmem:[%s7549 + $0x199] sm:$0xf]
  %v7974 = vld [vmem:[%s7549 + $0x1a1] sm:$0xff]
  %v7975 = vld [vmem:[%s7549 + $0x1a9] sm:$0xf]
  %v7976 = vld [vmem:[%s7549 + $0x1b1] sm:$0xff]
  %v7977 = vld [vmem:[%s7549 + $0x1b9] sm:$0xf]
  %v8026 = vrot.slane %v7930, 4
  %v8027 = vrot.slane %v7932, 4
  %v8028 = vrot.slane %v7934, 4
  %v8029 = vrot.slane %v7936, 4
  %v8030 = vrot.slane %v7938, 4
  %v8031 = vrot.slane %v7940, 4
  %v8032 = vrot.slane %v7942, 4
  %v8033 = vrot.slane %v7944, 4
  %v8034 = vrot.slane %v7946, 4
  %v8035 = vrot.slane %v7948, 4
  %v8036 = vrot.slane %v7950, 4
  %v8037 = vrot.slane %v7952, 4
  %v8038 = vrot.slane %v7954, 4
  %v8039 = vrot.slane %v7956, 4
  %v8040 = vrot.slane %v7958, 4
  %v8041 = vrot.slane %v7960, 4
  %v8042 = vrot.slane %v7962, 4
  %v8043 = vrot.slane %v7964, 4
  %v8044 = vrot.slane %v7966, 4
  %v8045 = vrot.slane %v7968, 4
  %v8046 = vrot.slane %v7970, 4
  %v8047 = vrot.slane %v7972, 4
  %v8048 = vrot.slane %v7974, 4
  %v8049 = vrot.slane %v7976, 4
  %8050 = vst [vmem:[#allocation1] ss:$2 sm:$0xff] %v7930
  %s8051 = scalar_lea.vmem [#allocation1], 1
  %8052 = vst [vmem:[%s8051] ss:$2 sm:$0xff] %v8026
  %s8053 = scalar_lea.vmem [#allocation1], 16
  %8054 = vst [vmem:[%s8053] ss:$2 sm:$0xff] %v7931
  %s8055 = scalar_lea.vmem [#allocation1], 17
  %8056 = vst [vmem:[%s8055] ss:$2 sm:$0xff] %v7932
  %s8057 = scalar_lea.vmem [#allocation1], 32
  %8058 = vst [vmem:[%s8057] ss:$2 sm:$0xff] %v8027
  %s8059 = scalar_lea.vmem [#allocation1], 33
  %8060 = vst [vmem:[%s8059] ss:$2 sm:$0xff] %v7933
  %s8061 = scalar_lea.vmem [#allocation1], 48
  %8062 = vst [vmem:[%s8061] ss:$2 sm:$0xff] %v7934
  %s8063 = scalar_lea.vmem [#allocation1], 49
  %8064 = vst [vmem:[%s8063] ss:$2 sm:$0xff] %v8028
  %v8065 = vld.sshfl [vmem:[#allocation1] sm:$0xff pattern:$0x75316420]
  %v8066 = vld.sshfl [vmem:[#allocation1 + $0x10] sm:$0xff pattern:$0x75316420]
  %v8067 = vld.sshfl [vmem:[#allocation1 + $0x20] sm:$0xff pattern:$0x75316420]
  %v8068 = vld.sshfl [vmem:[#allocation1 + $0x30] sm:$0xff pattern:$0x75316420]
  %8069 = vst [vmem:[#allocation1] ss:$2 sm:$0xff] %v7935
  %8070 = vst [vmem:[%s8051] ss:$2 sm:$0xff] %v7936
  %8071 = vst [vmem:[%s8053] ss:$2 sm:$0xff] %v8029
  %8072 = vst [vmem:[%s8055] ss:$2 sm:$0xff] %v7937
  %8073 = vst [vmem:[%s8057] ss:$2 sm:$0xff] %v7938
  %8074 = vst [vmem:[%s8059] ss:$2 sm:$0xff] %v8030
  %8075 = vst [vmem:[%s8061] ss:$2 sm:$0xff] %v7939
  %8076 = vst [vmem:[%s8063] ss:$2 sm:$0xff] %v7940
  %v8077 = vld.sshfl [vmem:[#allocation1] sm:$0xff pattern:$0x75316420]
  %v8078 = vld.sshfl [vmem:[#allocation1 + $0x10] sm:$0xff pattern:$0x75316420]
  %v8079 = vld.sshfl [vmem:[#allocation1 + $0x20] sm:$0xff pattern:$0x75316420]
  %v8080 = vld.sshfl [vmem:[#allocation1 + $0x30] sm:$0xff pattern:$0x75316420]
  %8081 = vst [vmem:[#allocation1] ss:$2 sm:$0xff] %v8031
  %8082 = vst [vmem:[%s8051] ss:$2 sm:$0xff] %v7941
  %8083 = vst [vmem:[%s8053] ss:$2 sm:$0xff] %v7942
  %8084 = vst [vmem:[%s8055] ss:$2 sm:$0xff] %v8032
  %8085 = vst [vmem:[%s8057] ss:$2 sm:$0xff] %v7943
  %8086 = vst [vmem:[%s8059] ss:$2 sm:$0xff] %v7944
  %8087 = vst [vmem:[%s8061] ss:$2 sm:$0xff] %v8033
  %8088 = vst [vmem:[%s8063] ss:$2 sm:$0xff] %v7945
  %v8089 = vld.sshfl [vmem:[#allocation1] sm:$0xff pattern:$0x75316420]
  %v8090 = vld.sshfl [vmem:[#allocation1 + $0x10] sm:$0xff pattern:$0x75316420]
  %v8091 = vld.sshfl [vmem:[#allocation1 + $0x20] sm:$0xff pattern:$0x75316420]
  %v8092 = vld.sshfl [vmem:[#allocation1 + $0x30] sm:$0xff pattern:$0x75316420]
  %8093 = vst [vmem:[#allocation1] ss:$2 sm:$0xff] %v7946
  %8094 = vst [vmem:[%s8051] ss:$2 sm:$0xff] %v8034
  %8095 = vst [vmem:[%s8053] ss:$2 sm:$0xff] %v7947
  %8096 = vst [vmem:[%s8055] ss:$2 sm:$0xff] %v7948
  %8097 = vst [vmem:[%s8057] ss:$2 sm:$0xff] %v8035
  %8098 = vst [vmem:[%s8059] ss:$2 sm:$0xff] %v7949
  %8099 = vst [vmem:[%s8061] ss:$2 sm:$0xff] %v7950
  %8100 = vst [vmem:[%s8063] ss:$2 sm:$0xff] %v8036
  %v8101 = vld.sshfl [vmem:[#allocation1] sm:$0xff pattern:$0x75316420]
  %v8102 = vld.sshfl [vmem:[#allocation1 + $0x10] sm:$0xff pattern:$0x75316420]
  %v8103 = vld.sshfl [vmem:[#allocation1 + $0x20] sm:$0xff pattern:$0x75316420]
  %v8104 = vld.sshfl [vmem:[#allocation1 + $0x30] sm:$0xff pattern:$0x75316420]
  %8105 = vst [vmem:[#allocation1] ss:$2 sm:$0xff] %v7951
  %8106 = vst [vmem:[%s8051] ss:$2 sm:$0xff] %v7952
  %8107 = vst [vmem:[%s8053] ss:$2 sm:$0xff] %v8037
  %8108 = vst [vmem:[%s8055] ss:$2 sm:$0xff] %v7953
  %8109 = vst [vmem:[%s8057] ss:$2 sm:$0xff] %v7954
  %8110 = vst [vmem:[%s8059] ss:$2 sm:$0xff] %v8038
  %8111 = vst [vmem:[%s8061] ss:$2 sm:$0xff] %v7955
  %8112 = vst [vmem:[%s8063] ss:$2 sm:$0xff] %v7956
  %v8113 = vld.sshfl [vmem:[#allocation1] sm:$0xff pattern:$0x75316420]
  %v8114 = vld.sshfl [vmem:[#allocation1 + $0x10] sm:$0xff pattern:$0x75316420]
  %v8115 = vld.sshfl [vmem:[#allocation1 + $0x20] sm:$0xff pattern:$0x75316420]
  %v8116 = vld.sshfl [vmem:[#allocation1 + $0x30] sm:$0xff pattern:$0x75316420]
  %8117 = vst [vmem:[#allocation1] ss:$2 sm:$0xff] %v8039
  %8118 = vst [vmem:[%s8051] ss:$2 sm:$0xff] %v7957
  %8119 = vst [vmem:[%s8053] ss:$2 sm:$0xff] %v7958
  %8120 = vst [vmem:[%s8055] ss:$2 sm:$0xff] %v8040
  %8121 = vst [vmem:[%s8057] ss:$2 sm:$0xff] %v7959
  %8122 = vst [vmem:[%s8059] ss:$2 sm:$0xff] %v7960
  %8123 = vst [vmem:[%s8061] ss:$2 sm:$0xff] %v8041
  %8124 = vst [vmem:[%s8063] ss:$2 sm:$0xff] %v7961
  %v8125 = vld.sshfl [vmem:[#allocation1] sm:$0xff pattern:$0x75316420]
  %v8126 = vld.sshfl [vmem:[#allocation1 + $0x10] sm:$0xff pattern:$0x75316420]
  %v8127 = vld.sshfl [vmem:[#allocation1 + $0x20] sm:$0xff pattern:$0x75316420]
  %v8128 = vld.sshfl [vmem:[#allocation1 + $0x30] sm:$0xff pattern:$0x75316420]
  %8129 = vst [vmem:[#allocation1] ss:$2 sm:$0xff] %v7962
  %8130 = vst [vmem:[%s8051] ss:$2 sm:$0xff] %v8042
  %8131 = vst [vmem:[%s8053] ss:$2 sm:$0xff] %v7963
  %8132 = vst [vmem:[%s8055] ss:$2 sm:$0xff] %v7964
  %8133 = vst [vmem:[%s8057] ss:$2 sm:$0xff] %v8043
  %8134 = vst [vmem:[%s8059] ss:$2 sm:$0xff] %v7965
  %8135 = vst [vmem:[%s8061] ss:$2 sm:$0xff] %v7966
  %8136 = vst [vmem:[%s8063] ss:$2 sm:$0xff] %v8044
  %v8137 = vld.sshfl [vmem:[#allocation1] sm:$0xff pattern:$0x75316420]
  %v8138 = vld.sshfl [vmem:[#allocation1 + $0x10] sm:$0xff pattern:$0x75316420]
  %v8139 = vld.sshfl [vmem:[#allocation1 + $0x20] sm:$0xff pattern:$0x75316420]
  %v8140 = vld.sshfl [vmem:[#allocation1 + $0x30] sm:$0xff pattern:$0x75316420]
  %8141 = vst [vmem:[#allocation1] ss:$2 sm:$0xff] %v7967
  %8142 = vst [vmem:[%s8051] ss:$2 sm:$0xff] %v7968
  %8143 = vst [vmem:[%s8053] ss:$2 sm:$0xff] %v8045
  %8144 = vst [vmem:[%s8055] ss:$2 sm:$0xff] %v7969
  %8145 = vst [vmem:[%s8057] ss:$2 sm:$0xff] %v7970
  %8146 = vst [vmem:[%s8059] ss:$2 sm:$0xff] %v8046
  %8147 = vst [vmem:[%s8061] ss:$2 sm:$0xff] %v7971
  %8148 = vst [vmem:[%s8063] ss:$2 sm:$0xff] %v7972
  %v8149 = vld.sshfl [vmem:[#allocation1] sm:$0xff pattern:$0x75316420]
  %v8150 = vld.sshfl [vmem:[#allocation1 + $0x10] sm:$0xff pattern:$0x75316420]
  %v8151 = vld.sshfl [vmem:[#allocation1 + $0x20] sm:$0xff pattern:$0x75316420]
  %v8152 = vld.sshfl [vmem:[#allocation1 + $0x30] sm:$0xff pattern:$0x75316420]
  %8153 = vst [vmem:[#allocation1] ss:$2 sm:$0xff] %v8047
  %8154 = vst [vmem:[%s8051] ss:$2 sm:$0xff] %v7973
  %8155 = vst [vmem:[%s8053] ss:$2 sm:$0xff] %v7974
  %8156 = vst [vmem:[%s8055] ss:$2 sm:$0xff] %v8048
  %8157 = vst [vmem:[%s8057] ss:$2 sm:$0xff] %v7975
  %8158 = vst [vmem:[%s8059] ss:$2 sm:$0xff] %v7976
  %8159 = vst [vmem:[%s8061] ss:$2 sm:$0xff] %v8049
  %8160 = vst [vmem:[%s8063] ss:$2 sm:$0xff] %v7977
  %v8161 = vld.sshfl [vmem:[#allocation1] sm:$0xff pattern:$0x75316420]
  %v8162 = vld.sshfl [vmem:[#allocation1 + $0x10] sm:$0xff pattern:$0x75316420]
  %v8163 = vld.sshfl [vmem:[#allocation1 + $0x20] sm:$0xff pattern:$0x75316420]
  %v8164 = vld.sshfl [vmem:[#allocation1 + $0x30] sm:$0xff pattern:$0x75316420]
  %8165 = vrot.lane.b32.xlu0 %v8065, 63
  %v8166 = vpop.permute.xlu0 %8165
  %8167 = vrot.lane.b32.xlu0 %v8066, 63
  %v8168 = vpop.permute.xlu0 %8167
  %8169 = vrot.lane.b32.xlu0 %v8067, 63
  %v8170 = vpop.permute.xlu0 %8169
  %8171 = vrot.lane.b32.xlu0 %v8068, 63
  %v8172 = vpop.permute.xlu0 %8171
  %8173 = vrot.lane.b32.xlu0 %v8077, 63
  %v8174 = vpop.permute.xlu0 %8173
  %8175 = vrot.lane.b32.xlu0 %v8078, 63
  %v8176 = vpop.permute.xlu0 %8175
  %8177 = vrot.lane.b32.xlu0 %v8079, 63
  %v8178 = vpop.permute.xlu0 %8177
  %8179 = vrot.lane.b32.xlu0 %v8080, 63
  %v8180 = vpop.permute.xlu0 %8179
  %8181 = vrot.lane.b32.xlu0 %v8089, 63
  %v8182 = vpop.permute.xlu0 %8181
  %8183 = vrot.lane.b32.xlu0 %v8090, 63
  %v8184 = vpop.permute.xlu0 %8183
  %8185 = vrot.lane.b32.xlu0 %v8091, 63
  %v8186 = vpop.permute.xlu0 %8185
  %8187 = vrot.lane.b32.xlu0 %v8092, 63
  %v8188 = vpop.permute.xlu0 %8187
  %8189 = vrot.lane.b32.xlu0 %v8101, 63
  %v8190 = vpop.permute.xlu0 %8189
  %8191 = vrot.lane.b32.xlu0 %v8102, 63
  %v8192 = vpop.permute.xlu0 %8191
  %8193 = vrot.lane.b32.xlu0 %v8103, 63
  %v8194 = vpop.permute.xlu0 %8193
  %8195 = vrot.lane.b32.xlu0 %v8104, 63
  %v8196 = vpop.permute.xlu0 %8195
  %8197 = vrot.lane.b32.xlu0 %v8113, 63
  %v8198 = vpop.permute.xlu0 %8197
  %8199 = vrot.lane.b32.xlu0 %v8114, 63
  %v8200 = vpop.permute.xlu0 %8199
  %8201 = vrot.lane.b32.xlu0 %v8115, 63
  %v8202 = vpop.permute.xlu0 %8201
  %8203 = vrot.lane.b32.xlu0 %v8116, 63
  %v8204 = vpop.permute.xlu0 %8203
  %8205 = vrot.lane.b32.xlu0 %v8125, 63
  %v8206 = vpop.permute.xlu0 %8205
  %8207 = vrot.lane.b32.xlu0 %v8126, 63
  %v8208 = vpop.permute.xlu0 %8207
  %8209 = vrot.lane.b32.xlu0 %v8127, 63
  %v8210 = vpop.permute.xlu0 %8209
  %8211 = vrot.lane.b32.xlu0 %v8128, 63
  %v8212 = vpop.permute.xlu0 %8211
  %8213 = vrot.lane.b32.xlu0 %v8137, 63
  %v8214 = vpop.permute.xlu0 %8213
  %8215 = vrot.lane.b32.xlu0 %v8138, 63
  %v8216 = vpop.permute.xlu0 %8215
  %8217 = vrot.lane.b32.xlu0 %v8139, 63
  %v8218 = vpop.permute.xlu0 %8217
  %8219 = vrot.lane.b32.xlu0 %v8140, 63
  %v8220 = vpop.permute.xlu0 %8219
  %8221 = vrot.lane.b32.xlu0 %v8149, 63
  %v8222 = vpop.permute.xlu0 %8221
  %8223 = vrot.lane.b32.xlu0 %v8150, 63
  %v8224 = vpop.permute.xlu0 %8223
  %8225 = vrot.lane.b32.xlu0 %v8151, 63
  %v8226 = vpop.permute.xlu0 %8225
  %8227 = vrot.lane.b32.xlu0 %v8152, 63
  %v8228 = vpop.permute.xlu0 %8227
  %8229 = vrot.lane.b32.xlu0 %v8161, 63
  %v8230 = vpop.permute.xlu0 %8229
  %8231 = vrot.lane.b32.xlu0 %v8162, 63
  %v8232 = vpop.permute.xlu0 %8231
  %8233 = vrot.lane.b32.xlu0 %v8163, 63
  %v8234 = vpop.permute.xlu0 %8233
  %8235 = vrot.lane.b32.xlu0 %v8164, 63
  %v8236 = vpop.permute.xlu0 %8235
  %vm8273 = vcmask 540152
  %8274 = vst.msk [vmem:[#allocation2] sm:$0xff] %vm8273, %v8166
  %8275 = vst.msk [vmem:[#allocation2 + $0x8] sm:$0xff] %vm8273, %v8168
  %8276 = vst.msk [vmem:[#allocation2 + $0x10] sm:$0xff] %vm8273, %v8170
  %8277 = vst.msk [vmem:[#allocation2 + $0x18] sm:$0xff] %vm8273, %v8172
  %8278 = vst.msk [vmem:[#allocation2 + $0x20] sm:$0xff] %vm8273, %v8174
  %8279 = vst.msk [vmem:[#allocation2 + $0x28] sm:$0xff] %vm8273, %v8176
  %8280 = vst.msk [vmem:[#allocation2 + $0x30] sm:$0xff] %vm8273, %v8178
  %8281 = vst.msk [vmem:[#allocation2 + $0x38] sm:$0xff] %vm8273, %v8180
  %8282 = vst.msk [vmem:[#allocation2 + $0x40] sm:$0xff] %vm8273, %v8182
  %8283 = vst.msk [vmem:[#allocation2 + $0x48] sm:$0xff] %vm8273, %v8184
  %8284 = vst.msk [vmem:[#allocation2 + $0x50] sm:$0xff] %vm8273, %v8186
  %8285 = vst.msk [vmem:[#allocation2 + $0x58] sm:$0xff] %vm8273, %v8188
  %8286 = vst.msk [vmem:[#allocation2 + $0x60] sm:$0xff] %vm8273, %v8190
  %8287 = vst.msk [vmem:[#allocation2 + $0x68] sm:$0xff] %vm8273, %v8192
  %8288 = vst.msk [vmem:[#allocation2 + $0x70] sm:$0xff] %vm8273, %v8194
  %8289 = vst.msk [vmem:[#allocation2 + $0x78] sm:$0xff] %vm8273, %v8196
  %8290 = vst.msk [vmem:[#allocation2 + $0x80] sm:$0xff] %vm8273, %v8198
  %8291 = vst.msk [vmem:[#allocation2 + $0x88] sm:$0xff] %vm8273, %v8200
  %8292 = vst.msk [vmem:[#allocation2 + $0x90] sm:$0xff] %vm8273, %v8202
  %8293 = vst.msk [vmem:[#allocation2 + $0x98] sm:$0xff] %vm8273, %v8204
  %8294 = vst.msk [vmem:[#allocation2 + $0xa0] sm:$0xff] %vm8273, %v8206
  %8295 = vst.msk [vmem:[#allocation2 + $0xa8] sm:$0xff] %vm8273, %v8208
  %8296 = vst.msk [vmem:[#allocation2 + $0xb0] sm:$0xff] %vm8273, %v8210
  %8297 = vst.msk [vmem:[#allocation2 + $0xb8] sm:$0xff] %vm8273, %v8212
  %8298 = vst.msk [vmem:[#allocation2 + $0xc0] sm:$0xff] %vm8273, %v8214
  %8299 = vst.msk [vmem:[#allocation2 + $0xc8] sm:$0xff] %vm8273, %v8216
  %8300 = vst.msk [vmem:[#allocation2 + $0xd0] sm:$0xff] %vm8273, %v8218
  %8301 = vst.msk [vmem:[#allocation2 + $0xd8] sm:$0xff] %vm8273, %v8220
  %8302 = vst.msk [vmem:[#allocation2 + $0xe0] sm:$0xff] %vm8273, %v8222
  %8303 = vst.msk [vmem:[#allocation2 + $0xe8] sm:$0xff] %vm8273, %v8224
  %8304 = vst.msk [vmem:[#allocation2 + $0xf0] sm:$0xff] %vm8273, %v8226
  %8305 = vst.msk [vmem:[#allocation2 + $0xf8] sm:$0xff] %vm8273, %v8228
  %8306 = vst.msk [vmem:[#allocation2 + $0x100] sm:$0xff] %vm8273, %v8230
  %8307 = vst.msk [vmem:[#allocation2 + $0x108] sm:$0xff] %vm8273, %v8232
  %8308 = vst.msk [vmem:[#allocation2 + $0x110] sm:$0xff] %vm8273, %v8234
  %8309 = vst.msk [vmem:[#allocation2 + $0x118] sm:$0xff] %vm8273, %v8236
  %v8310 = vld [vmem:[%s7549 + $0x2] sm:$0xff]
  %v8311 = vld [vmem:[%s7549 + $0xa] sm:$0xf]
  %v8312 = vld [vmem:[%s7549 + $0x12] sm:$0xff]
  %v8313 = vld [vmem:[%s7549 + $0x1a] sm:$0xf]
  %v8314 = vld [vmem:[%s7549 + $0x22] sm:$0xff]
  %v8315 = vld [vmem:[%s7549 + $0x2a] sm:$0xf]
  %v8316 = vld [vmem:[%s7549 + $0x32] sm:$0xff]
  %v8317 = vld [vmem:[%s7549 + $0x3a] sm:$0xf]
  %v8318 = vld [vmem:[%s7549 + $0x42] sm:$0xff]
  %v8319 = vld [vmem:[%s7549 + $0x4a] sm:$0xf]
  %v8320 = vld [vmem:[%s7549 + $0x52] sm:$0xff]
  %v8321 = vld [vmem:[%s7549 + $0x5a] sm:$0xf]
  %v8322 = vld [vmem:[%s7549 + $0x62] sm:$0xff]
  %v8323 = vld [vmem:[%s7549 + $0x6a] sm:$0xf]
  %v8324 = vld [vmem:[%s7549 + $0x72] sm:$0xff]
  %v8325 = vld [vmem:[%s7549 + $0x7a] sm:$0xf]
  %v8326 = vld [vmem:[%s7549 + $0x82] sm:$0xff]
  %v8327 = vld [vmem:[%s7549 + $0x8a] sm:$0xf]
  %v8328 = vld [vmem:[%s7549 + $0x92] sm:$0xff]
  %v8329 = vld [vmem:[%s7549 + $0x9a] sm:$0xf]
  %v8330 = vld [vmem:[%s7549 + $0xa2] sm:$0xff]
  %v8331 = vld [vmem:[%s7549 + $0xaa] sm:$0xf]
  %v8332 = vld [vmem:[%s7549 + $0xb2] sm:$0xff]
  %v8333 = vld [vmem:[%s7549 + $0xba] sm:$0xf]
  %v8334 = vld [vmem:[%s7549 + $0x102] sm:$0xff]
  %v8335 = vld [vmem:[%s7549 + $0x10a] sm:$0xf]
  %v8336 = vld [vmem:[%s7549 + $0x112] sm:$0xff]
  %v8337 = vld [vmem:[%s7549 + $0x11a] sm:$0xf]
  %v8338 = vld [vmem:[%s7549 + $0x122] sm:$0xff]
  %v8339 = vld [vmem:[%s7549 + $0x12a] sm:$0xf]
  %v8340 = vld [vmem:[%s7549 + $0x132] sm:$0xff]
  %v8341 = vld [vmem:[%s7549 + $0x13a] sm:$0xf]
  %v8342 = vld [vmem:[%s7549 + $0x142] sm:$0xff]
  %v8343 = vld [vmem:[%s7549 + $0x14a] sm:$0xf]
  %v8344 = vld [vmem:[%s7549 + $0x152] sm:$0xff]
  %v8345 = vld [vmem:[%s7549 + $0x15a] sm:$0xf]
  %v8346 = vld [vmem:[%s7549 + $0x162] sm:$0xff]
  %v8347 = vld [vmem:[%s7549 + $0x16a] sm:$0xf]
  %v8348 = vld [vmem:[%s7549 + $0x172] sm:$0xff]
  %v8349 = vld [vmem:[%s7549 + $0x17a] sm:$0xf]
  %v8350 = vld [vmem:[%s7549 + $0x182] sm:$0xff]
  %v8351 = vld [vmem:[%s7549 + $0x18a] sm:$0xf]
  %v8352 = vld [vmem:[%s7549 + $0x192] sm:$0xff]
  %v8353 = vld [vmem:[%s7549 + $0x19a] sm:$0xf]
  %v8354 = vld [vmem:[%s7549 + $0x1a2] sm:$0xff]
  %v8355 = vld [vmem:[%s7549 + $0x1aa] sm:$0xf]
  %v8356 = vld [vmem:[%s7549 + $0x1b2] sm:$0xff]
  %v8357 = vld [vmem:[%s7549 + $0x1ba] sm:$0xf]
  %v8406 = vrot.slane %v8310, 4
  %v8407 = vrot.slane %v8312, 4
  %v8408 = vrot.slane %v8314, 4
  %v8409 = vrot.slane %v8316, 4
  %v8410 = vrot.slane %v8318, 4
  %v8411 = vrot.slane %v8320, 4
  %v8412 = vrot.slane %v8322, 4
  %v8413 = vrot.slane %v8324, 4
  %v8414 = vrot.slane %v8326, 4
  %v8415 = vrot.slane %v8328, 4
  %v8416 = vrot.slane %v8330, 4
  %v8417 = vrot.slane %v8332, 4
  %v8418 = vrot.slane %v8334, 4
  %v8419 = vrot.slane %v8336, 4
  %v8420 = vrot.slane %v8338, 4
  %v8421 = vrot.slane %v8340, 4
  %v8422 = vrot.slane %v8342, 4
  %v8423 = vrot.slane %v8344, 4
  %v8424 = vrot.slane %v8346, 4
  %v8425 = vrot.slane %v8348, 4
  %v8426 = vrot.slane %v8350, 4
  %v8427 = vrot.slane %v8352, 4
  %v8428 = vrot.slane %v8354, 4
  %v8429 = vrot.slane %v8356, 4
  %8430 = vst [vmem:[#allocation1] ss:$2 sm:$0xff] %v8310
  %s8431 = scalar_lea.vmem [#allocation1], 1
  %8432 = vst [vmem:[%s8431] ss:$2 sm:$0xff] %v8406
  %s8433 = scalar_lea.vmem [#allocation1], 16
  %8434 = vst [vmem:[%s8433] ss:$2 sm:$0xff] %v8311
  %s8435 = scalar_lea.vmem [#allocation1], 17
  %8436 = vst [vmem:[%s8435] ss:$2 sm:$0xff] %v8312
  %s8437 = scalar_lea.vmem [#allocation1], 32
  %8438 = vst [vmem:[%s8437] ss:$2 sm:$0xff] %v8407
  %s8439 = scalar_lea.vmem [#allocation1], 33
  %8440 = vst [vmem:[%s8439] ss:$2 sm:$0xff] %v8313
  %s8441 = scalar_lea.vmem [#allocation1], 48
  %8442 = vst [vmem:[%s8441] ss:$2 sm:$0xff] %v8314
  %s8443 = scalar_lea.vmem [#allocation1], 49
  %8444 = vst [vmem:[%s8443] ss:$2 sm:$0xff] %v8408
  %v8445 = vld.sshfl [vmem:[#allocation1] sm:$0xff pattern:$0x75316420]
  %v8446 = vld.sshfl [vmem:[#allocation1 + $0x10] sm:$0xff pattern:$0x75316420]
  %v8447 = vld.sshfl [vmem:[#allocation1 + $0x20] sm:$0xff pattern:$0x75316420]
  %v8448 = vld.sshfl [vmem:[#allocation1 + $0x30] sm:$0xff pattern:$0x75316420]
  %8449 = vst [vmem:[#allocation1] ss:$2 sm:$0xff] %v8315
  %8450 = vst [vmem:[%s8431] ss:$2 sm:$0xff] %v8316
  %8451 = vst [vmem:[%s8433] ss:$2 sm:$0xff] %v8409
  %8452 = vst [vmem:[%s8435] ss:$2 sm:$0xff] %v8317
  %8453 = vst [vmem:[%s8437] ss:$2 sm:$0xff] %v8318
  %8454 = vst [vmem:[%s8439] ss:$2 sm:$0xff] %v8410
  %8455 = vst [vmem:[%s8441] ss:$2 sm:$0xff] %v8319
  %8456 = vst [vmem:[%s8443] ss:$2 sm:$0xff] %v8320
  %v8457 = vld.sshfl [vmem:[#allocation1] sm:$0xff pattern:$0x75316420]
  %v8458 = vld.sshfl [vmem:[#allocation1 + $0x10] sm:$0xff pattern:$0x75316420]
  %v8459 = vld.sshfl [vmem:[#allocation1 + $0x20] sm:$0xff pattern:$0x75316420]
  %v8460 = vld.sshfl [vmem:[#allocation1 + $0x30] sm:$0xff pattern:$0x75316420]
  %8461 = vst [vmem:[#allocation1] ss:$2 sm:$0xff] %v8411
  %8462 = vst [vmem:[%s8431] ss:$2 sm:$0xff] %v8321
  %8463 = vst [vmem:[%s8433] ss:$2 sm:$0xff] %v8322
  %8464 = vst [vmem:[%s8435] ss:$2 sm:$0xff] %v8412
  %8465 = vst [vmem:[%s8437] ss:$2 sm:$0xff] %v8323
  %8466 = vst [vmem:[%s8439] ss:$2 sm:$0xff] %v8324
  %8467 = vst [vmem:[%s8441] ss:$2 sm:$0xff] %v8413
  %8468 = vst [vmem:[%s8443] ss:$2 sm:$0xff] %v8325
  %v8469 = vld.sshfl [vmem:[#allocation1] sm:$0xff pattern:$0x75316420]
  %v8470 = vld.sshfl [vmem:[#allocation1 + $0x10] sm:$0xff pattern:$0x75316420]
  %v8471 = vld.sshfl [vmem:[#allocation1 + $0x20] sm:$0xff pattern:$0x75316420]
  %v8472 = vld.sshfl [vmem:[#allocation1 + $0x30] sm:$0xff pattern:$0x75316420]
  %8473 = vst [vmem:[#allocation1] ss:$2 sm:$0xff] %v8326
  %8474 = vst [vmem:[%s8431] ss:$2 sm:$0xff] %v8414
  %8475 = vst [vmem:[%s8433] ss:$2 sm:$0xff] %v8327
  %8476 = vst [vmem:[%s8435] ss:$2 sm:$0xff] %v8328
  %8477 = vst [vmem:[%s8437] ss:$2 sm:$0xff] %v8415
  %8478 = vst [vmem:[%s8439] ss:$2 sm:$0xff] %v8329
  %8479 = vst [vmem:[%s8441] ss:$2 sm:$0xff] %v8330
  %8480 = vst [vmem:[%s8443] ss:$2 sm:$0xff] %v8416
  %v8481 = vld.sshfl [vmem:[#allocation1] sm:$0xff pattern:$0x75316420]
  %v8482 = vld.sshfl [vmem:[#allocation1 + $0x10] sm:$0xff pattern:$0x75316420]
  %v8483 = vld.sshfl [vmem:[#allocation1 + $0x20] sm:$0xff pattern:$0x75316420]
  %v8484 = vld.sshfl [vmem:[#allocation1 + $0x30] sm:$0xff pattern:$0x75316420]
  %8485 = vst [vmem:[#allocation1] ss:$2 sm:$0xff] %v8331
  %8486 = vst [vmem:[%s8431] ss:$2 sm:$0xff] %v8332
  %8487 = vst [vmem:[%s8433] ss:$2 sm:$0xff] %v8417
  %8488 = vst [vmem:[%s8435] ss:$2 sm:$0xff] %v8333
  %8489 = vst [vmem:[%s8437] ss:$2 sm:$0xff] %v8334
  %8490 = vst [vmem:[%s8439] ss:$2 sm:$0xff] %v8418
  %8491 = vst [vmem:[%s8441] ss:$2 sm:$0xff] %v8335
  %8492 = vst [vmem:[%s8443] ss:$2 sm:$0xff] %v8336
  %v8493 = vld.sshfl [vmem:[#allocation1] sm:$0xff pattern:$0x75316420]
  %v8494 = vld.sshfl [vmem:[#allocation1 + $0x10] sm:$0xff pattern:$0x75316420]
  %v8495 = vld.sshfl [vmem:[#allocation1 + $0x20] sm:$0xff pattern:$0x75316420]
  %v8496 = vld.sshfl [vmem:[#allocation1 + $0x30] sm:$0xff pattern:$0x75316420]
  %8497 = vst [vmem:[#allocation1] ss:$2 sm:$0xff] %v8419
  %8498 = vst [vmem:[%s8431] ss:$2 sm:$0xff] %v8337
  %8499 = vst [vmem:[%s8433] ss:$2 sm:$0xff] %v8338
  %8500 = vst [vmem:[%s8435] ss:$2 sm:$0xff] %v8420
  %8501 = vst [vmem:[%s8437] ss:$2 sm:$0xff] %v8339
  %8502 = vst [vmem:[%s8439] ss:$2 sm:$0xff] %v8340
  %8503 = vst [vmem:[%s8441] ss:$2 sm:$0xff] %v8421
  %8504 = vst [vmem:[%s8443] ss:$2 sm:$0xff] %v8341
  %v8505 = vld.sshfl [vmem:[#allocation1] sm:$0xff pattern:$0x75316420]
  %v8506 = vld.sshfl [vmem:[#allocation1 + $0x10] sm:$0xff pattern:$0x75316420]
  %v8507 = vld.sshfl [vmem:[#allocation1 + $0x20] sm:$0xff pattern:$0x75316420]
  %v8508 = vld.sshfl [vmem:[#allocation1 + $0x30] sm:$0xff pattern:$0x75316420]
  %8509 = vst [vmem:[#allocation1] ss:$2 sm:$0xff] %v8342
  %8510 = vst [vmem:[%s8431] ss:$2 sm:$0xff] %v8422
  %8511 = vst [vmem:[%s8433] ss:$2 sm:$0xff] %v8343
  %8512 = vst [vmem:[%s8435] ss:$2 sm:$0xff] %v8344
  %8513 = vst [vmem:[%s8437] ss:$2 sm:$0xff] %v8423
  %8514 = vst [vmem:[%s8439] ss:$2 sm:$0xff] %v8345
  %8515 = vst [vmem:[%s8441] ss:$2 sm:$0xff] %v8346
  %8516 = vst [vmem:[%s8443] ss:$2 sm:$0xff] %v8424
  %v8517 = vld.sshfl [vmem:[#allocation1] sm:$0xff pattern:$0x75316420]
  %v8518 = vld.sshfl [vmem:[#allocation1 + $0x10] sm:$0xff pattern:$0x75316420]
  %v8519 = vld.sshfl [vmem:[#allocation1 + $0x20] sm:$0xff pattern:$0x75316420]
  %v8520 = vld.sshfl [vmem:[#allocation1 + $0x30] sm:$0xff pattern:$0x75316420]
  %8521 = vst [vmem:[#allocation1] ss:$2 sm:$0xff] %v8347
  %8522 = vst [vmem:[%s8431] ss:$2 sm:$0xff] %v8348
  %8523 = vst [vmem:[%s8433] ss:$2 sm:$0xff] %v8425
  %8524 = vst [vmem:[%s8435] ss:$2 sm:$0xff] %v8349
  %8525 = vst [vmem:[%s8437] ss:$2 sm:$0xff] %v8350
  %8526 = vst [vmem:[%s8439] ss:$2 sm:$0xff] %v8426
  %8527 = vst [vmem:[%s8441] ss:$2 sm:$0xff] %v8351
  %8528 = vst [vmem:[%s8443] ss:$2 sm:$0xff] %v8352
  %v8529 = vld.sshfl [vmem:[#allocation1] sm:$0xff pattern:$0x75316420]
  %v8530 = vld.sshfl [vmem:[#allocation1 + $0x10] sm:$0xff pattern:$0x75316420]
  %v8531 = vld.sshfl [vmem:[#allocation1 + $0x20] sm:$0xff pattern:$0x75316420]
  %v8532 = vld.sshfl [vmem:[#allocation1 + $0x30] sm:$0xff pattern:$0x75316420]
  %8533 = vst [vmem:[#allocation1] ss:$2 sm:$0xff] %v8427
  %8534 = vst [vmem:[%s8431] ss:$2 sm:$0xff] %v8353
  %8535 = vst [vmem:[%s8433] ss:$2 sm:$0xff] %v8354
  %8536 = vst [vmem:[%s8435] ss:$2 sm:$0xff] %v8428
  %8537 = vst [vmem:[%s8437] ss:$2 sm:$0xff] %v8355
  %8538 = vst [vmem:[%s8439] ss:$2 sm:$0xff] %v8356
  %8539 = vst [vmem:[%s8441] ss:$2 sm:$0xff] %v8429
  %8540 = vst [vmem:[%s8443] ss:$2 sm:$0xff] %v8357
  %v8541 = vld.sshfl [vmem:[#allocation1] sm:$0xff pattern:$0x75316420]
  %v8542 = vld.sshfl [vmem:[#allocation1 + $0x10] sm:$0xff pattern:$0x75316420]
  %v8543 = vld.sshfl [vmem:[#allocation1 + $0x20] sm:$0xff pattern:$0x75316420]
  %v8544 = vld.sshfl [vmem:[#allocation1 + $0x30] sm:$0xff pattern:$0x75316420]
  %8545 = vrot.lane.b32.xlu0 %v8445, 66
  %v8546 = vpop.permute.xlu0 %8545
  %8547 = vrot.lane.b32.xlu0 %v8446, 66
  %v8548 = vpop.permute.xlu0 %8547
  %8549 = vrot.lane.b32.xlu0 %v8447, 66
  %v8550 = vpop.permute.xlu0 %8549
  %8551 = vrot.lane.b32.xlu0 %v8448, 66
  %v8552 = vpop.permute.xlu0 %8551
  %8553 = vrot.lane.b32.xlu0 %v8457, 66
  %v8554 = vpop.permute.xlu0 %8553
  %8555 = vrot.lane.b32.xlu0 %v8458, 66
  %v8556 = vpop.permute.xlu0 %8555
  %8557 = vrot.lane.b32.xlu0 %v8459, 66
  %v8558 = vpop.permute.xlu0 %8557
  %8559 = vrot.lane.b32.xlu0 %v8460, 66
  %v8560 = vpop.permute.xlu0 %8559
  %8561 = vrot.lane.b32.xlu0 %v8469, 66
  %v8562 = vpop.permute.xlu0 %8561
  %8563 = vrot.lane.b32.xlu0 %v8470, 66
  %v8564 = vpop.permute.xlu0 %8563
  %8565 = vrot.lane.b32.xlu0 %v8471, 66
  %v8566 = vpop.permute.xlu0 %8565
  %8567 = vrot.lane.b32.xlu0 %v8472, 66
  %v8568 = vpop.permute.xlu0 %8567
  %8569 = vrot.lane.b32.xlu0 %v8481, 66
  %v8570 = vpop.permute.xlu0 %8569
  %8571 = vrot.lane.b32.xlu0 %v8482, 66
  %v8572 = vpop.permute.xlu0 %8571
  %8573 = vrot.lane.b32.xlu0 %v8483, 66
  %v8574 = vpop.permute.xlu0 %8573
  %8575 = vrot.lane.b32.xlu0 %v8484, 66
  %v8576 = vpop.permute.xlu0 %8575
  %8577 = vrot.lane.b32.xlu0 %v8493, 66
  %v8578 = vpop.permute.xlu0 %8577
  %8579 = vrot.lane.b32.xlu0 %v8494, 66
  %v8580 = vpop.permute.xlu0 %8579
  %8581 = vrot.lane.b32.xlu0 %v8495, 66
  %v8582 = vpop.permute.xlu0 %8581
  %8583 = vrot.lane.b32.xlu0 %v8496, 66
  %v8584 = vpop.permute.xlu0 %8583
  %8585 = vrot.lane.b32.xlu0 %v8505, 66
  %v8586 = vpop.permute.xlu0 %8585
  %8587 = vrot.lane.b32.xlu0 %v8506, 66
  %v8588 = vpop.permute.xlu0 %8587
  %8589 = vrot.lane.b32.xlu0 %v8507, 66
  %v8590 = vpop.permute.xlu0 %8589
  %8591 = vrot.lane.b32.xlu0 %v8508, 66
  %v8592 = vpop.permute.xlu0 %8591
  %8593 = vrot.lane.b32.xlu0 %v8517, 66
  %v8594 = vpop.permute.xlu0 %8593
  %8595 = vrot.lane.b32.xlu0 %v8518, 66
  %v8596 = vpop.permute.xlu0 %8595
  %8597 = vrot.lane.b32.xlu0 %v8519, 66
  %v8598 = vpop.permute.xlu0 %8597
  %8599 = vrot.lane.b32.xlu0 %v8520, 66
  %v8600 = vpop.permute.xlu0 %8599
  %8601 = vrot.lane.b32.xlu0 %v8529, 66
  %v8602 = vpop.permute.xlu0 %8601
  %8603 = vrot.lane.b32.xlu0 %v8530, 66
  %v8604 = vpop.permute.xlu0 %8603
  %8605 = vrot.lane.b32.xlu0 %v8531, 66
  %v8606 = vpop.permute.xlu0 %8605
  %8607 = vrot.lane.b32.xlu0 %v8532, 66
  %v8608 = vpop.permute.xlu0 %8607
  %8609 = vrot.lane.b32.xlu0 %v8541, 66
  %v8610 = vpop.permute.xlu0 %8609
  %8611 = vrot.lane.b32.xlu0 %v8542, 66
  %v8612 = vpop.permute.xlu0 %8611
  %8613 = vrot.lane.b32.xlu0 %v8543, 66
  %v8614 = vpop.permute.xlu0 %8613
  %8615 = vrot.lane.b32.xlu0 %v8544, 66
  %v8616 = vpop.permute.xlu0 %8615
  %vm8653 = vcmask 564752
  %8654 = vst.msk [vmem:[#allocation2] sm:$0xff] %vm8653, %v8546
  %8655 = vst.msk [vmem:[#allocation2 + $0x8] sm:$0xff] %vm8653, %v8548
  %8656 = vst.msk [vmem:[#allocation2 + $0x10] sm:$0xff] %vm8653, %v8550
  %8657 = vst.msk [vmem:[#allocation2 + $0x18] sm:$0xff] %vm8653, %v8552
  %8658 = vst.msk [vmem:[#allocation2 + $0x20] sm:$0xff] %vm8653, %v8554
  %8659 = vst.msk [vmem:[#allocation2 + $0x28] sm:$0xff] %vm8653, %v8556
  %8660 = vst.msk [vmem:[#allocation2 + $0x30] sm:$0xff] %vm8653, %v8558
  %8661 = vst.msk [vmem:[#allocation2 + $0x38] sm:$0xff] %vm8653, %v8560
  %8662 = vst.msk [vmem:[#allocation2 + $0x40] sm:$0xff] %vm8653, %v8562
  %8663 = vst.msk [vmem:[#allocation2 + $0x48] sm:$0xff] %vm8653, %v8564
  %8664 = vst.msk [vmem:[#allocation2 + $0x50] sm:$0xff] %vm8653, %v8566
  %8665 = vst.msk [vmem:[#allocation2 + $0x58] sm:$0xff] %vm8653, %v8568
  %8666 = vst.msk [vmem:[#allocation2 + $0x60] sm:$0xff] %vm8653, %v8570
  %8667 = vst.msk [vmem:[#allocation2 + $0x68] sm:$0xff] %vm8653, %v8572
  %8668 = vst.msk [vmem:[#allocation2 + $0x70] sm:$0xff] %vm8653, %v8574
  %8669 = vst.msk [vmem:[#allocation2 + $0x78] sm:$0xff] %vm8653, %v8576
  %8670 = vst.msk [vmem:[#allocation2 + $0x80] sm:$0xff] %vm8653, %v8578
  %8671 = vst.msk [vmem:[#allocation2 + $0x88] sm:$0xff] %vm8653, %v8580
  %8672 = vst.msk [vmem:[#allocation2 + $0x90] sm:$0xff] %vm8653, %v8582
  %8673 = vst.msk [vmem:[#allocation2 + $0x98] sm:$0xff] %vm8653, %v8584
  %8674 = vst.msk [vmem:[#allocation2 + $0xa0] sm:$0xff] %vm8653, %v8586
  %8675 = vst.msk [vmem:[#allocation2 + $0xa8] sm:$0xff] %vm8653, %v8588
  %8676 = vst.msk [vmem:[#allocation2 + $0xb0] sm:$0xff] %vm8653, %v8590
  %8677 = vst.msk [vmem:[#allocation2 + $0xb8] sm:$0xff] %vm8653, %v8592
  %8678 = vst.msk [vmem:[#allocation2 + $0xc0] sm:$0xff] %vm8653, %v8594
  %8679 = vst.msk [vmem:[#allocation2 + $0xc8] sm:$0xff] %vm8653, %v8596
  %8680 = vst.msk [vmem:[#allocation2 + $0xd0] sm:$0xff] %vm8653, %v8598
  %8681 = vst.msk [vmem:[#allocation2 + $0xd8] sm:$0xff] %vm8653, %v8600
  %8682 = vst.msk [vmem:[#allocation2 + $0xe0] sm:$0xff] %vm8653, %v8602
  %8683 = vst.msk [vmem:[#allocation2 + $0xe8] sm:$0xff] %vm8653, %v8604
  %8684 = vst.msk [vmem:[#allocation2 + $0xf0] sm:$0xff] %vm8653, %v8606
  %8685 = vst.msk [vmem:[#allocation2 + $0xf8] sm:$0xff] %vm8653, %v8608
  %8686 = vst.msk [vmem:[#allocation2 + $0x100] sm:$0xff] %vm8653, %v8610
  %8687 = vst.msk [vmem:[#allocation2 + $0x108] sm:$0xff] %vm8653, %v8612
  %8688 = vst.msk [vmem:[#allocation2 + $0x110] sm:$0xff] %vm8653, %v8614
  %8689 = vst.msk [vmem:[#allocation2 + $0x118] sm:$0xff] %vm8653, %v8616
  %v8690 = vld [vmem:[%s7549 + $0x3] sm:$0xff]
  %v8691 = vld [vmem:[%s7549 + $0xb] sm:$0xf]
  %v8692 = vld [vmem:[%s7549 + $0x13] sm:$0xff]
  %v8693 = vld [vmem:[%s7549 + $0x1b] sm:$0xf]
  %v8694 = vld [vmem:[%s7549 + $0x23] sm:$0xff]
  %v8695 = vld [vmem:[%s7549 + $0x2b] sm:$0xf]
  %v8696 = vld [vmem:[%s7549 + $0x33] sm:$0xff]
  %v8697 = vld [vmem:[%s7549 + $0x3b] sm:$0xf]
  %v8698 = vld [vmem:[%s7549 + $0x43] sm:$0xff]
  %v8699 = vld [vmem:[%s7549 + $0x4b] sm:$0xf]
  %v8700 = vld [vmem:[%s7549 + $0x53] sm:$0xff]
  %v8701 = vld [vmem:[%s7549 + $0x5b] sm:$0xf]
  %v8702 = vld [vmem:[%s7549 + $0x63] sm:$0xff]
  %v8703 = vld [vmem:[%s7549 + $0x6b] sm:$0xf]
  %v8704 = vld [vmem:[%s7549 + $0x73] sm:$0xff]
  %v8705 = vld [vmem:[%s7549 + $0x7b] sm:$0xf]
  %v8706 = vld [vmem:[%s7549 + $0x83] sm:$0xff]
  %v8707 = vld [vmem:[%s7549 + $0x8b] sm:$0xf]
  %v8708 = vld [vmem:[%s7549 + $0x93] sm:$0xff]
  %v8709 = vld [vmem:[%s7549 + $0x9b] sm:$0xf]
  %v8710 = vld [vmem:[%s7549 + $0xa3] sm:$0xff]
  %v8711 = vld [vmem:[%s7549 + $0xab] sm:$0xf]
  %v8712 = vld [vmem:[%s7549 + $0xb3] sm:$0xff]
  %v8713 = vld [vmem:[%s7549 + $0xbb] sm:$0xf]
  %v8714 = vld [vmem:[%s7549 + $0x103] sm:$0xff]
  %v8715 = vld [vmem:[%s7549 + $0x10b] sm:$0xf]
  %v8716 = vld [vmem:[%s7549 + $0x113] sm:$0xff]
  %v8717 = vld [vmem:[%s7549 + $0x11b] sm:$0xf]
  %v8718 = vld [vmem:[%s7549 + $0x123] sm:$0xff]
  %v8719 = vld [vmem:[%s7549 + $0x12b] sm:$0xf]
  %v8720 = vld [vmem:[%s7549 + $0x133] sm:$0xff]
  %v8721 = vld [vmem:[%s7549 + $0x13b] sm:$0xf]
  %v8722 = vld [vmem:[%s7549 + $0x143] sm:$0xff]
  %v8723 = vld [vmem:[%s7549 + $0x14b] sm:$0xf]
  %v8724 = vld [vmem:[%s7549 + $0x153] sm:$0xff]
  %v8725 = vld [vmem:[%s7549 + $0x15b] sm:$0xf]
  %v8726 = vld [vmem:[%s7549 + $0x163] sm:$0xff]
  %v8727 = vld [vmem:[%s7549 + $0x16b] sm:$0xf]
  %v8728 = vld [vmem:[%s7549 + $0x173] sm:$0xff]
  %v8729 = vld [vmem:[%s7549 + $0x17b] sm:$0xf]
  %v8730 = vld [vmem:[%s7549 + $0x183] sm:$0xff]
  %v8731 = vld [vmem:[%s7549 + $0x18b] sm:$0xf]
  %v8732 = vld [vmem:[%s7549 + $0x193] sm:$0xff]
  %v8733 = vld [vmem:[%s7549 + $0x19b] sm:$0xf]
  %v8734 = vld [vmem:[%s7549 + $0x1a3] sm:$0xff]
  %v8735 = vld [vmem:[%s7549 + $0x1ab] sm:$0xf]
  %v8736 = vld [vmem:[%s7549 + $0x1b3] sm:$0xff]
  %v8737 = vld [vmem:[%s7549 + $0x1bb] sm:$0xf]
  %v8786 = vrot.slane %v8690, 4
  %v8787 = vrot.slane %v8692, 4
  %v8788 = vrot.slane %v8694, 4
  %v8789 = vrot.slane %v8696, 4
  %v8790 = vrot.slane %v8698, 4
  %v8791 = vrot.slane %v8700, 4
  %v8792 = vrot.slane %v8702, 4
  %v8793 = vrot.slane %v8704, 4
  %v8794 = vrot.slane %v8706, 4
  %v8795 = vrot.slane %v8708, 4
  %v8796 = vrot.slane %v8710, 4
  %v8797 = vrot.slane %v8712, 4
  %v8798 = vrot.slane %v8714, 4
  %v8799 = vrot.slane %v8716, 4
  %v8800 = vrot.slane %v8718, 4
  %v8801 = vrot.slane %v8720, 4
  %v8802 = vrot.slane %v8722, 4
  %v8803 = vrot.slane %v8724, 4
  %v8804 = vrot.slane %v8726, 4
  %v8805 = vrot.slane %v8728, 4
  %v8806 = vrot.slane %v8730, 4
  %v8807 = vrot.slane %v8732, 4
  %v8808 = vrot.slane %v8734, 4
  %v8809 = vrot.slane %v8736, 4
  %8810 = vst [vmem:[#allocation1] ss:$2 sm:$0xff] %v8690
  %s8811 = scalar_lea.vmem [#allocation1], 1
  %8812 = vst [vmem:[%s8811] ss:$2 sm:$0xff] %v8786
  %s8813 = scalar_lea.vmem [#allocation1], 16
  %8814 = vst [vmem:[%s8813] ss:$2 sm:$0xff] %v8691
  %s8815 = scalar_lea.vmem [#allocation1], 17
  %8816 = vst [vmem:[%s8815] ss:$2 sm:$0xff] %v8692
  %s8817 = scalar_lea.vmem [#allocation1], 32
  %8818 = vst [vmem:[%s8817] ss:$2 sm:$0xff] %v8787
  %s8819 = scalar_lea.vmem [#allocation1], 33
  %8820 = vst [vmem:[%s8819] ss:$2 sm:$0xff] %v8693
  %s8821 = scalar_lea.vmem [#allocation1], 48
  %8822 = vst [vmem:[%s8821] ss:$2 sm:$0xff] %v8694
  %s8823 = scalar_lea.vmem [#allocation1], 49
  %8824 = vst [vmem:[%s8823] ss:$2 sm:$0xff] %v8788
  %v8825 = vld.sshfl [vmem:[#allocation1] sm:$0xff pattern:$0x75316420]
  %v8826 = vld.sshfl [vmem:[#allocation1 + $0x10] sm:$0xff pattern:$0x75316420]
  %v8827 = vld.sshfl [vmem:[#allocation1 + $0x20] sm:$0xff pattern:$0x75316420]
  %v8828 = vld.sshfl [vmem:[#allocation1 + $0x30] sm:$0xff pattern:$0x75316420]
  %8829 = vst [vmem:[#allocation1] ss:$2 sm:$0xff] %v8695
  %8830 = vst [vmem:[%s8811] ss:$2 sm:$0xff] %v8696
  %8831 = vst [vmem:[%s8813] ss:$2 sm:$0xff] %v8789
  %8832 = vst [vmem:[%s8815] ss:$2 sm:$0xff] %v8697
  %8833 = vst [vmem:[%s8817] ss:$2 sm:$0xff] %v8698
  %8834 = vst [vmem:[%s8819] ss:$2 sm:$0xff] %v8790
  %8835 = vst [vmem:[%s8821] ss:$2 sm:$0xff] %v8699
  %8836 = vst [vmem:[%s8823] ss:$2 sm:$0xff] %v8700
  %v8837 = vld.sshfl [vmem:[#allocation1] sm:$0xff pattern:$0x75316420]
  %v8838 = vld.sshfl [vmem:[#allocation1 + $0x10] sm:$0xff pattern:$0x75316420]
  %v8839 = vld.sshfl [vmem:[#allocation1 + $0x20] sm:$0xff pattern:$0x75316420]
  %v8840 = vld.sshfl [vmem:[#allocation1 + $0x30] sm:$0xff pattern:$0x75316420]
  %8841 = vst [vmem:[#allocation1] ss:$2 sm:$0xff] %v8791
  %8842 = vst [vmem:[%s8811] ss:$2 sm:$0xff] %v8701
  %8843 = vst [vmem:[%s8813] ss:$2 sm:$0xff] %v8702
  %8844 = vst [vmem:[%s8815] ss:$2 sm:$0xff] %v8792
  %8845 = vst [vmem:[%s8817] ss:$2 sm:$0xff] %v8703
  %8846 = vst [vmem:[%s8819] ss:$2 sm:$0xff] %v8704
  %8847 = vst [vmem:[%s8821] ss:$2 sm:$0xff] %v8793
  %8848 = vst [vmem:[%s8823] ss:$2 sm:$0xff] %v8705
  %v8849 = vld.sshfl [vmem:[#allocation1] sm:$0xff pattern:$0x75316420]
  %v8850 = vld.sshfl [vmem:[#allocation1 + $0x10] sm:$0xff pattern:$0x75316420]
  %v8851 = vld.sshfl [vmem:[#allocation1 + $0x20] sm:$0xff pattern:$0x75316420]
  %v8852 = vld.sshfl [vmem:[#allocation1 + $0x30] sm:$0xff pattern:$0x75316420]
  %8853 = vst [vmem:[#allocation1] ss:$2 sm:$0xff] %v8706
  %8854 = vst [vmem:[%s8811] ss:$2 sm:$0xff] %v8794
  %8855 = vst [vmem:[%s8813] ss:$2 sm:$0xff] %v8707
  %8856 = vst [vmem:[%s8815] ss:$2 sm:$0xff] %v8708
  %8857 = vst [vmem:[%s8817] ss:$2 sm:$0xff] %v8795
  %8858 = vst [vmem:[%s8819] ss:$2 sm:$0xff] %v8709
  %8859 = vst [vmem:[%s8821] ss:$2 sm:$0xff] %v8710
  %8860 = vst [vmem:[%s8823] ss:$2 sm:$0xff] %v8796
  %v8861 = vld.sshfl [vmem:[#allocation1] sm:$0xff pattern:$0x75316420]
  %v8862 = vld.sshfl [vmem:[#allocation1 + $0x10] sm:$0xff pattern:$0x75316420]
  %v8863 = vld.sshfl [vmem:[#allocation1 + $0x20] sm:$0xff pattern:$0x75316420]
  %v8864 = vld.sshfl [vmem:[#allocation1 + $0x30] sm:$0xff pattern:$0x75316420]
  %8865 = vst [vmem:[#allocation1] ss:$2 sm:$0xff] %v8711
  %8866 = vst [vmem:[%s8811] ss:$2 sm:$0xff] %v8712
  %8867 = vst [vmem:[%s8813] ss:$2 sm:$0xff] %v8797
  %8868 = vst [vmem:[%s8815] ss:$2 sm:$0xff] %v8713
  %8869 = vst [vmem:[%s8817] ss:$2 sm:$0xff] %v8714
  %8870 = vst [vmem:[%s8819] ss:$2 sm:$0xff] %v8798
  %8871 = vst [vmem:[%s8821] ss:$2 sm:$0xff] %v8715
  %8872 = vst [vmem:[%s8823] ss:$2 sm:$0xff] %v8716
  %v8873 = vld.sshfl [vmem:[#allocation1] sm:$0xff pattern:$0x75316420]
  %v8874 = vld.sshfl [vmem:[#allocation1 + $0x10] sm:$0xff pattern:$0x75316420]
  %v8875 = vld.sshfl [vmem:[#allocation1 + $0x20] sm:$0xff pattern:$0x75316420]
  %v8876 = vld.sshfl [vmem:[#allocation1 + $0x30] sm:$0xff pattern:$0x75316420]
  %8877 = vst [vmem:[#allocation1] ss:$2 sm:$0xff] %v8799
  %8878 = vst [vmem:[%s8811] ss:$2 sm:$0xff] %v8717
  %8879 = vst [vmem:[%s8813] ss:$2 sm:$0xff] %v8718
  %8880 = vst [vmem:[%s8815] ss:$2 sm:$0xff] %v8800
  %8881 = vst [vmem:[%s8817] ss:$2 sm:$0xff] %v8719
  %8882 = vst [vmem:[%s8819] ss:$2 sm:$0xff] %v8720
  %8883 = vst [vmem:[%s8821] ss:$2 sm:$0xff] %v8801
  %8884 = vst [vmem:[%s8823] ss:$2 sm:$0xff] %v8721
  %v8885 = vld.sshfl [vmem:[#allocation1] sm:$0xff pattern:$0x75316420]
  %v8886 = vld.sshfl [vmem:[#allocation1 + $0x10] sm:$0xff pattern:$0x75316420]
  %v8887 = vld.sshfl [vmem:[#allocation1 + $0x20] sm:$0xff pattern:$0x75316420]
  %v8888 = vld.sshfl [vmem:[#allocation1 + $0x30] sm:$0xff pattern:$0x75316420]
  %8889 = vst [vmem:[#allocation1] ss:$2 sm:$0xff] %v8722
  %8890 = vst [vmem:[%s8811] ss:$2 sm:$0xff] %v8802
  %8891 = vst [vmem:[%s8813] ss:$2 sm:$0xff] %v8723
  %8892 = vst [vmem:[%s8815] ss:$2 sm:$0xff] %v8724
  %8893 = vst [vmem:[%s8817] ss:$2 sm:$0xff] %v8803
  %8894 = vst [vmem:[%s8819] ss:$2 sm:$0xff] %v8725
  %8895 = vst [vmem:[%s8821] ss:$2 sm:$0xff] %v8726
  %8896 = vst [vmem:[%s8823] ss:$2 sm:$0xff] %v8804
  %v8897 = vld.sshfl [vmem:[#allocation1] sm:$0xff pattern:$0x75316420]
  %v8898 = vld.sshfl [vmem:[#allocation1 + $0x10] sm:$0xff pattern:$0x75316420]
  %v8899 = vld.sshfl [vmem:[#allocation1 + $0x20] sm:$0xff pattern:$0x75316420]
  %v8900 = vld.sshfl [vmem:[#allocation1 + $0x30] sm:$0xff pattern:$0x75316420]
  %8901 = vst [vmem:[#allocation1] ss:$2 sm:$0xff] %v8727
  %8902 = vst [vmem:[%s8811] ss:$2 sm:$0xff] %v8728
  %8903 = vst [vmem:[%s8813] ss:$2 sm:$0xff] %v8805
  %8904 = vst [vmem:[%s8815] ss:$2 sm:$0xff] %v8729
  %8905 = vst [vmem:[%s8817] ss:$2 sm:$0xff] %v8730
  %8906 = vst [vmem:[%s8819] ss:$2 sm:$0xff] %v8806
  %8907 = vst [vmem:[%s8821] ss:$2 sm:$0xff] %v8731
  %8908 = vst [vmem:[%s8823] ss:$2 sm:$0xff] %v8732
  %v8909 = vld.sshfl [vmem:[#allocation1] sm:$0xff pattern:$0x75316420]
  %v8910 = vld.sshfl [vmem:[#allocation1 + $0x10] sm:$0xff pattern:$0x75316420]
  %v8911 = vld.sshfl [vmem:[#allocation1 + $0x20] sm:$0xff pattern:$0x75316420]
  %v8912 = vld.sshfl [vmem:[#allocation1 + $0x30] sm:$0xff pattern:$0x75316420]
  %8913 = vst [vmem:[#allocation1] ss:$2 sm:$0xff] %v8807
  %8914 = vst [vmem:[%s8811] ss:$2 sm:$0xff] %v8733
  %8915 = vst [vmem:[%s8813] ss:$2 sm:$0xff] %v8734
  %8916 = vst [vmem:[%s8815] ss:$2 sm:$0xff] %v8808
  %8917 = vst [vmem:[%s8817] ss:$2 sm:$0xff] %v8735
  %8918 = vst [vmem:[%s8819] ss:$2 sm:$0xff] %v8736
  %8919 = vst [vmem:[%s8821] ss:$2 sm:$0xff] %v8809
  %8920 = vst [vmem:[%s8823] ss:$2 sm:$0xff] %v8737
  %v8921 = vld.sshfl [vmem:[#allocation1] sm:$0xff pattern:$0x75316420]
  %v8922 = vld.sshfl [vmem:[#allocation1 + $0x10] sm:$0xff pattern:$0x75316420]
  %v8923 = vld.sshfl [vmem:[#allocation1 + $0x20] sm:$0xff pattern:$0x75316420]
  %v8924 = vld.sshfl [vmem:[#allocation1 + $0x30] sm:$0xff pattern:$0x75316420]
  %8925 = vrot.lane.b32.xlu0 %v8825, 69
  %v8926 = vpop.permute.xlu0 %8925
  %8927 = vrot.lane.b32.xlu0 %v8826, 69
  %v8928 = vpop.permute.xlu0 %8927
  %8929 = vrot.lane.b32.xlu0 %v8827, 69
  %v8930 = vpop.permute.xlu0 %8929
  %8931 = vrot.lane.b32.xlu0 %v8828, 69
  %v8932 = vpop.permute.xlu0 %8931
  %8933 = vrot.lane.b32.xlu0 %v8837, 69
  %v8934 = vpop.permute.xlu0 %8933
  %8935 = vrot.lane.b32.xlu0 %v8838, 69
  %v8936 = vpop.permute.xlu0 %8935
  %8937 = vrot.lane.b32.xlu0 %v8839, 69
  %v8938 = vpop.permute.xlu0 %8937
  %8939 = vrot.lane.b32.xlu0 %v8840, 69
  %v8940 = vpop.permute.xlu0 %8939
  %8941 = vrot.lane.b32.xlu0 %v8849, 69
  %v8942 = vpop.permute.xlu0 %8941
  %8943 = vrot.lane.b32.xlu0 %v8850, 69
  %v8944 = vpop.permute.xlu0 %8943
  %8945 = vrot.lane.b32.xlu0 %v8851, 69
  %v8946 = vpop.permute.xlu0 %8945
  %8947 = vrot.lane.b32.xlu0 %v8852, 69
  %v8948 = vpop.permute.xlu0 %8947
  %8949 = vrot.lane.b32.xlu0 %v8861, 69
  %v8950 = vpop.permute.xlu0 %8949
  %8951 = vrot.lane.b32.xlu0 %v8862, 69
  %v8952 = vpop.permute.xlu0 %8951
  %8953 = vrot.lane.b32.xlu0 %v8863, 69
  %v8954 = vpop.permute.xlu0 %8953
  %8955 = vrot.lane.b32.xlu0 %v8864, 69
  %v8956 = vpop.permute.xlu0 %8955
  %8957 = vrot.lane.b32.xlu0 %v8873, 69
  %v8958 = vpop.permute.xlu0 %8957
  %8959 = vrot.lane.b32.xlu0 %v8874, 69
  %v8960 = vpop.permute.xlu0 %8959
  %8961 = vrot.lane.b32.xlu0 %v8875, 69
  %v8962 = vpop.permute.xlu0 %8961
  %8963 = vrot.lane.b32.xlu0 %v8876, 69
  %v8964 = vpop.permute.xlu0 %8963
  %8965 = vrot.lane.b32.xlu0 %v8885, 69
  %v8966 = vpop.permute.xlu0 %8965
  %8967 = vrot.lane.b32.xlu0 %v8886, 69
  %v8968 = vpop.permute.xlu0 %8967
  %8969 = vrot.lane.b32.xlu0 %v8887, 69
  %v8970 = vpop.permute.xlu0 %8969
  %8971 = vrot.lane.b32.xlu0 %v8888, 69
  %v8972 = vpop.permute.xlu0 %8971
  %8973 = vrot.lane.b32.xlu0 %v8897, 69
  %v8974 = vpop.permute.xlu0 %8973
  %8975 = vrot.lane.b32.xlu0 %v8898, 69
  %v8976 = vpop.permute.xlu0 %8975
  %8977 = vrot.lane.b32.xlu0 %v8899, 69
  %v8978 = vpop.permute.xlu0 %8977
  %8979 = vrot.lane.b32.xlu0 %v8900, 69
  %v8980 = vpop.permute.xlu0 %8979
  %8981 = vrot.lane.b32.xlu0 %v8909, 69
  %v8982 = vpop.permute.xlu0 %8981
  %8983 = vrot.lane.b32.xlu0 %v8910, 69
  %v8984 = vpop.permute.xlu0 %8983
  %8985 = vrot.lane.b32.xlu0 %v8911, 69
  %v8986 = vpop.permute.xlu0 %8985
  %8987 = vrot.lane.b32.xlu0 %v8912, 69
  %v8988 = vpop.permute.xlu0 %8987
  %8989 = vrot.lane.b32.xlu0 %v8921, 69
  %v8990 = vpop.permute.xlu0 %8989
  %8991 = vrot.lane.b32.xlu0 %v8922, 69
  %v8992 = vpop.permute.xlu0 %8991
  %8993 = vrot.lane.b32.xlu0 %v8923, 69
  %v8994 = vpop.permute.xlu0 %8993
  %8995 = vrot.lane.b32.xlu0 %v8924, 69
  %v8996 = vpop.permute.xlu0 %8995
  %vm9033 = vcmask 589352
  %9034 = vst.msk [vmem:[#allocation2] sm:$0xff] %vm9033, %v8926
  %9035 = vst.msk [vmem:[#allocation2 + $0x8] sm:$0xff] %vm9033, %v8928
  %9036 = vst.msk [vmem:[#allocation2 + $0x10] sm:$0xff] %vm9033, %v8930
  %9037 = vst.msk [vmem:[#allocation2 + $0x18] sm:$0xff] %vm9033, %v8932
  %9038 = vst.msk [vmem:[#allocation2 + $0x20] sm:$0xff] %vm9033, %v8934
  %9039 = vst.msk [vmem:[#allocation2 + $0x28] sm:$0xff] %vm9033, %v8936
  %9040 = vst.msk [vmem:[#allocation2 + $0x30] sm:$0xff] %vm9033, %v8938
  %9041 = vst.msk [vmem:[#allocation2 + $0x38] sm:$0xff] %vm9033, %v8940
  %9042 = vst.msk [vmem:[#allocation2 + $0x40] sm:$0xff] %vm9033, %v8942
  %9043 = vst.msk [vmem:[#allocation2 + $0x48] sm:$0xff] %vm9033, %v8944
  %9044 = vst.msk [vmem:[#allocation2 + $0x50] sm:$0xff] %vm9033, %v8946
  %9045 = vst.msk [vmem:[#allocation2 + $0x58] sm:$0xff] %vm9033, %v8948
  %9046 = vst.msk [vmem:[#allocation2 + $0x60] sm:$0xff] %vm9033, %v8950
  %9047 = vst.msk [vmem:[#allocation2 + $0x68] sm:$0xff] %vm9033, %v8952
  %9048 = vst.msk [vmem:[#allocation2 + $0x70] sm:$0xff] %vm9033, %v8954
  %9049 = vst.msk [vmem:[#allocation2 + $0x78] sm:$0xff] %vm9033, %v8956
  %9050 = vst.msk [vmem:[#allocation2 + $0x80] sm:$0xff] %vm9033, %v8958
  %9051 = vst.msk [vmem:[#allocation2 + $0x88] sm:$0xff] %vm9033, %v8960
  %9052 = vst.msk [vmem:[#allocation2 + $0x90] sm:$0xff] %vm9033, %v8962
  %9053 = vst.msk [vmem:[#allocation2 + $0x98] sm:$0xff] %vm9033, %v8964
  %9054 = vst.msk [vmem:[#allocation2 + $0xa0] sm:$0xff] %vm9033, %v8966
  %9055 = vst.msk [vmem:[#allocation2 + $0xa8] sm:$0xff] %vm9033, %v8968
  %9056 = vst.msk [vmem:[#allocation2 + $0xb0] sm:$0xff] %vm9033, %v8970
  %9057 = vst.msk [vmem:[#allocation2 + $0xb8] sm:$0xff] %vm9033, %v8972
  %9058 = vst.msk [vmem:[#allocation2 + $0xc0] sm:$0xff] %vm9033, %v8974
  %9059 = vst.msk [vmem:[#allocation2 + $0xc8] sm:$0xff] %vm9033, %v8976
  %9060 = vst.msk [vmem:[#allocation2 + $0xd0] sm:$0xff] %vm9033, %v8978
  %9061 = vst.msk [vmem:[#allocation2 + $0xd8] sm:$0xff] %vm9033, %v8980
  %9062 = vst.msk [vmem:[#allocation2 + $0xe0] sm:$0xff] %vm9033, %v8982
  %9063 = vst.msk [vmem:[#allocation2 + $0xe8] sm:$0xff] %vm9033, %v8984
  %9064 = vst.msk [vmem:[#allocation2 + $0xf0] sm:$0xff] %vm9033, %v8986
  %9065 = vst.msk [vmem:[#allocation2 + $0xf8] sm:$0xff] %vm9033, %v8988
  %9066 = vst.msk [vmem:[#allocation2 + $0x100] sm:$0xff] %vm9033, %v8990
  %9067 = vst.msk [vmem:[#allocation2 + $0x108] sm:$0xff] %vm9033, %v8992
  %9068 = vst.msk [vmem:[#allocation2 + $0x110] sm:$0xff] %vm9033, %v8994
  %9069 = vst.msk [vmem:[#allocation2 + $0x118] sm:$0xff] %vm9033, %v8996
  %v9070 = vld [vmem:[%s7549 + $0x4] sm:$0xff]
  %v9071 = vld [vmem:[%s7549 + $0xc] sm:$0xf]
  %v9072 = vld [vmem:[%s7549 + $0x14] sm:$0xff]
  %v9073 = vld [vmem:[%s7549 + $0x1c] sm:$0xf]
  %v9074 = vld [vmem:[%s7549 + $0x24] sm:$0xff]
  %v9075 = vld [vmem:[%s7549 + $0x2c] sm:$0xf]
  %v9076 = vld [vmem:[%s7549 + $0x34] sm:$0xff]
  %v9077 = vld [vmem:[%s7549 + $0x3c] sm:$0xf]
  %v9078 = vld [vmem:[%s7549 + $0x44] sm:$0xff]
  %v9079 = vld [vmem:[%s7549 + $0x4c] sm:$0xf]
  %v9080 = vld [vmem:[%s7549 + $0x54] sm:$0xff]
  %v9081 = vld [vmem:[%s7549 + $0x5c] sm:$0xf]
  %v9082 = vld [vmem:[%s7549 + $0x64] sm:$0xff]
  %v9083 = vld [vmem:[%s7549 + $0x6c] sm:$0xf]
  %v9084 = vld [vmem:[%s7549 + $0x74] sm:$0xff]
  %v9085 = vld [vmem:[%s7549 + $0x7c] sm:$0xf]
  %v9086 = vld [vmem:[%s7549 + $0x84] sm:$0xff]
  %v9087 = vld [vmem:[%s7549 + $0x8c] sm:$0xf]
  %v9088 = vld [vmem:[%s7549 + $0x94] sm:$0xff]
  %v9089 = vld [vmem:[%s7549 + $0x9c] sm:$0xf]
  %v9090 = vld [vmem:[%s7549 + $0xa4] sm:$0xff]
  %v9091 = vld [vmem:[%s7549 + $0xac] sm:$0xf]
  %v9092 = vld [vmem:[%s7549 + $0xb4] sm:$0xff]
  %v9093 = vld [vmem:[%s7549 + $0xbc] sm:$0xf]
  %v9094 = vld [vmem:[%s7549 + $0x104] sm:$0xff]
  %v9095 = vld [vmem:[%s7549 + $0x10c] sm:$0xf]
  %v9096 = vld [vmem:[%s7549 + $0x114] sm:$0xff]
  %v9097 = vld [vmem:[%s7549 + $0x11c] sm:$0xf]
  %v9098 = vld [vmem:[%s7549 + $0x124] sm:$0xff]
  %v9099 = vld [vmem:[%s7549 + $0x12c] sm:$0xf]
  %v9100 = vld [vmem:[%s7549 + $0x134] sm:$0xff]
  %v9101 = vld [vmem:[%s7549 + $0x13c] sm:$0xf]
  %v9102 = vld [vmem:[%s7549 + $0x144] sm:$0xff]
  %v9103 = vld [vmem:[%s7549 + $0x14c] sm:$0xf]
  %v9104 = vld [vmem:[%s7549 + $0x154] sm:$0xff]
  %v9105 = vld [vmem:[%s7549 + $0x15c] sm:$0xf]
  %v9106 = vld [vmem:[%s7549 + $0x164] sm:$0xff]
  %v9107 = vld [vmem:[%s7549 + $0x16c] sm:$0xf]
  %v9108 = vld [vmem:[%s7549 + $0x174] sm:$0xff]
  %v9109 = vld [vmem:[%s7549 + $0x17c] sm:$0xf]
  %v9110 = vld [vmem:[%s7549 + $0x184] sm:$0xff]
  %v9111 = vld [vmem:[%s7549 + $0x18c] sm:$0xf]
  %v9112 = vld [vmem:[%s7549 + $0x194] sm:$0xff]
  %v9113 = vld [vmem:[%s7549 + $0x19c] sm:$0xf]
  %v9114 = vld [vmem:[%s7549 + $0x1a4] sm:$0xff]
  %v9115 = vld [vmem:[%s7549 + $0x1ac] sm:$0xf]
  %v9116 = vld [vmem:[%s7549 + $0x1b4] sm:$0xff]
  %v9117 = vld [vmem:[%s7549 + $0x1bc] sm:$0xf]
  %v9166 = vrot.slane %v9070, 4
  %v9167 = vrot.slane %v9072, 4
  %v9168 = vrot.slane %v9074, 4
  %v9169 = vrot.slane %v9076, 4
  %v9170 = vrot.slane %v9078, 4
  %v9171 = vrot.slane %v9080, 4
  %v9172 = vrot.slane %v9082, 4
  %v9173 = vrot.slane %v9084, 4
  %v9174 = vrot.slane %v9086, 4
  %v9175 = vrot.slane %v9088, 4
  %v9176 = vrot.slane %v9090, 4
  %v9177 = vrot.slane %v9092, 4
  %v9178 = vrot.slane %v9094, 4
  %v9179 = vrot.slane %v9096, 4
  %v9180 = vrot.slane %v9098, 4
  %v9181 = vrot.slane %v9100, 4
  %v9182 = vrot.slane %v9102, 4
  %v9183 = vrot.slane %v9104, 4
  %v9184 = vrot.slane %v9106, 4
  %v9185 = vrot.slane %v9108, 4
  %v9186 = vrot.slane %v9110, 4
  %v9187 = vrot.slane %v9112, 4
  %v9188 = vrot.slane %v9114, 4
  %v9189 = vrot.slane %v9116, 4
  %9190 = vst [vmem:[#allocation1] ss:$2 sm:$0xff] %v9070
  %s9191 = scalar_lea.vmem [#allocation1], 1
  %9192 = vst [vmem:[%s9191] ss:$2 sm:$0xff] %v9166
  %s9193 = scalar_lea.vmem [#allocation1], 16
  %9194 = vst [vmem:[%s9193] ss:$2 sm:$0xff] %v9071
  %s9195 = scalar_lea.vmem [#allocation1], 17
  %9196 = vst [vmem:[%s9195] ss:$2 sm:$0xff] %v9072
  %s9197 = scalar_lea.vmem [#allocation1], 32
  %9198 = vst [vmem:[%s9197] ss:$2 sm:$0xff] %v9167
  %s9199 = scalar_lea.vmem [#allocation1], 33
  %9200 = vst [vmem:[%s9199] ss:$2 sm:$0xff] %v9073
  %s9201 = scalar_lea.vmem [#allocation1], 48
  %9202 = vst [vmem:[%s9201] ss:$2 sm:$0xff] %v9074
  %s9203 = scalar_lea.vmem [#allocation1], 49
  %9204 = vst [vmem:[%s9203] ss:$2 sm:$0xff] %v9168
  %v9205 = vld.sshfl [vmem:[#allocation1] sm:$0xff pattern:$0x75316420]
  %v9206 = vld.sshfl [vmem:[#allocation1 + $0x10] sm:$0xff pattern:$0x75316420]
  %v9207 = vld.sshfl [vmem:[#allocation1 + $0x20] sm:$0xff pattern:$0x75316420]
  %v9208 = vld.sshfl [vmem:[#allocation1 + $0x30] sm:$0xff pattern:$0x75316420]
  %9209 = vst [vmem:[#allocation1] ss:$2 sm:$0xff] %v9075
  %9210 = vst [vmem:[%s9191] ss:$2 sm:$0xff] %v9076
  %9211 = vst [vmem:[%s9193] ss:$2 sm:$0xff] %v9169
  %9212 = vst [vmem:[%s9195] ss:$2 sm:$0xff] %v9077
  %9213 = vst [vmem:[%s9197] ss:$2 sm:$0xff] %v9078
  %9214 = vst [vmem:[%s9199] ss:$2 sm:$0xff] %v9170
  %9215 = vst [vmem:[%s9201] ss:$2 sm:$0xff] %v9079
  %9216 = vst [vmem:[%s9203] ss:$2 sm:$0xff] %v9080
  %v9217 = vld.sshfl [vmem:[#allocation1] sm:$0xff pattern:$0x75316420]
  %v9218 = vld.sshfl [vmem:[#allocation1 + $0x10] sm:$0xff pattern:$0x75316420]
  %v9219 = vld.sshfl [vmem:[#allocation1 + $0x20] sm:$0xff pattern:$0x75316420]
  %v9220 = vld.sshfl [vmem:[#allocation1 + $0x30] sm:$0xff pattern:$0x75316420]
  %9221 = vst [vmem:[#allocation1] ss:$2 sm:$0xff] %v9171
  %9222 = vst [vmem:[%s9191] ss:$2 sm:$0xff] %v9081
  %9223 = vst [vmem:[%s9193] ss:$2 sm:$0xff] %v9082
  %9224 = vst [vmem:[%s9195] ss:$2 sm:$0xff] %v9172
  %9225 = vst [vmem:[%s9197] ss:$2 sm:$0xff] %v9083
  %9226 = vst [vmem:[%s9199] ss:$2 sm:$0xff] %v9084
  %9227 = vst [vmem:[%s9201] ss:$2 sm:$0xff] %v9173
  %9228 = vst [vmem:[%s9203] ss:$2 sm:$0xff] %v9085
  %v9229 = vld.sshfl [vmem:[#allocation1] sm:$0xff pattern:$0x75316420]
  %v9230 = vld.sshfl [vmem:[#allocation1 + $0x10] sm:$0xff pattern:$0x75316420]
  %v9231 = vld.sshfl [vmem:[#allocation1 + $0x20] sm:$0xff pattern:$0x75316420]
  %v9232 = vld.sshfl [vmem:[#allocation1 + $0x30] sm:$0xff pattern:$0x75316420]
  %9233 = vst [vmem:[#allocation1] ss:$2 sm:$0xff] %v9086
  %9234 = vst [vmem:[%s9191] ss:$2 sm:$0xff] %v9174
  %9235 = vst [vmem:[%s9193] ss:$2 sm:$0xff] %v9087
  %9236 = vst [vmem:[%s9195] ss:$2 sm:$0xff] %v9088
  %9237 = vst [vmem:[%s9197] ss:$2 sm:$0xff] %v9175
  %9238 = vst [vmem:[%s9199] ss:$2 sm:$0xff] %v9089
  %9239 = vst [vmem:[%s9201] ss:$2 sm:$0xff] %v9090
  %9240 = vst [vmem:[%s9203] ss:$2 sm:$0xff] %v9176
  %v9241 = vld.sshfl [vmem:[#allocation1] sm:$0xff pattern:$0x75316420]
  %v9242 = vld.sshfl [vmem:[#allocation1 + $0x10] sm:$0xff pattern:$0x75316420]
  %v9243 = vld.sshfl [vmem:[#allocation1 + $0x20] sm:$0xff pattern:$0x75316420]
  %v9244 = vld.sshfl [vmem:[#allocation1 + $0x30] sm:$0xff pattern:$0x75316420]
  %9245 = vst [vmem:[#allocation1] ss:$2 sm:$0xff] %v9091
  %9246 = vst [vmem:[%s9191] ss:$2 sm:$0xff] %v9092
  %9247 = vst [vmem:[%s9193] ss:$2 sm:$0xff] %v9177
  %9248 = vst [vmem:[%s9195] ss:$2 sm:$0xff] %v9093
  %9249 = vst [vmem:[%s9197] ss:$2 sm:$0xff] %v9094
  %9250 = vst [vmem:[%s9199] ss:$2 sm:$0xff] %v9178
  %9251 = vst [vmem:[%s9201] ss:$2 sm:$0xff] %v9095
  %9252 = vst [vmem:[%s9203] ss:$2 sm:$0xff] %v9096
  %v9253 = vld.sshfl [vmem:[#allocation1] sm:$0xff pattern:$0x75316420]
  %v9254 = vld.sshfl [vmem:[#allocation1 + $0x10] sm:$0xff pattern:$0x75316420]
  %v9255 = vld.sshfl [vmem:[#allocation1 + $0x20] sm:$0xff pattern:$0x75316420]
  %v9256 = vld.sshfl [vmem:[#allocation1 + $0x30] sm:$0xff pattern:$0x75316420]
  %9257 = vst [vmem:[#allocation1] ss:$2 sm:$0xff] %v9179
  %9258 = vst [vmem:[%s9191] ss:$2 sm:$0xff] %v9097
  %9259 = vst [vmem:[%s9193] ss:$2 sm:$0xff] %v9098
  %9260 = vst [vmem:[%s9195] ss:$2 sm:$0xff] %v9180
  %9261 = vst [vmem:[%s9197] ss:$2 sm:$0xff] %v9099
  %9262 = vst [vmem:[%s9199] ss:$2 sm:$0xff] %v9100
  %9263 = vst [vmem:[%s9201] ss:$2 sm:$0xff] %v9181
  %9264 = vst [vmem:[%s9203] ss:$2 sm:$0xff] %v9101
  %v9265 = vld.sshfl [vmem:[#allocation1] sm:$0xff pattern:$0x75316420]
  %v9266 = vld.sshfl [vmem:[#allocation1 + $0x10] sm:$0xff pattern:$0x75316420]
  %v9267 = vld.sshfl [vmem:[#allocation1 + $0x20] sm:$0xff pattern:$0x75316420]
  %v9268 = vld.sshfl [vmem:[#allocation1 + $0x30] sm:$0xff pattern:$0x75316420]
  %9269 = vst [vmem:[#allocation1] ss:$2 sm:$0xff] %v9102
  %9270 = vst [vmem:[%s9191] ss:$2 sm:$0xff] %v9182
  %9271 = vst [vmem:[%s9193] ss:$2 sm:$0xff] %v9103
  %9272 = vst [vmem:[%s9195] ss:$2 sm:$0xff] %v9104
  %9273 = vst [vmem:[%s9197] ss:$2 sm:$0xff] %v9183
  %9274 = vst [vmem:[%s9199] ss:$2 sm:$0xff] %v9105
  %9275 = vst [vmem:[%s9201] ss:$2 sm:$0xff] %v9106
  %9276 = vst [vmem:[%s9203] ss:$2 sm:$0xff] %v9184
  %v9277 = vld.sshfl [vmem:[#allocation1] sm:$0xff pattern:$0x75316420]
  %v9278 = vld.sshfl [vmem:[#allocation1 + $0x10] sm:$0xff pattern:$0x75316420]
  %v9279 = vld.sshfl [vmem:[#allocation1 + $0x20] sm:$0xff pattern:$0x75316420]
  %v9280 = vld.sshfl [vmem:[#allocation1 + $0x30] sm:$0xff pattern:$0x75316420]
  %9281 = vst [vmem:[#allocation1] ss:$2 sm:$0xff] %v9107
  %9282 = vst [vmem:[%s9191] ss:$2 sm:$0xff] %v9108
  %9283 = vst [vmem:[%s9193] ss:$2 sm:$0xff] %v9185
  %9284 = vst [vmem:[%s9195] ss:$2 sm:$0xff] %v9109
  %9285 = vst [vmem:[%s9197] ss:$2 sm:$0xff] %v9110
  %9286 = vst [vmem:[%s9199] ss:$2 sm:$0xff] %v9186
  %9287 = vst [vmem:[%s9201] ss:$2 sm:$0xff] %v9111
  %9288 = vst [vmem:[%s9203] ss:$2 sm:$0xff] %v9112
  %v9289 = vld.sshfl [vmem:[#allocation1] sm:$0xff pattern:$0x75316420]
  %v9290 = vld.sshfl [vmem:[#allocation1 + $0x10] sm:$0xff pattern:$0x75316420]
  %v9291 = vld.sshfl [vmem:[#allocation1 + $0x20] sm:$0xff pattern:$0x75316420]
  %v9292 = vld.sshfl [vmem:[#allocation1 + $0x30] sm:$0xff pattern:$0x75316420]
  %9293 = vst [vmem:[#allocation1] ss:$2 sm:$0xff] %v9187
  %9294 = vst [vmem:[%s9191] ss:$2 sm:$0xff] %v9113
  %9295 = vst [vmem:[%s9193] ss:$2 sm:$0xff] %v9114
  %9296 = vst [vmem:[%s9195] ss:$2 sm:$0xff] %v9188
  %9297 = vst [vmem:[%s9197] ss:$2 sm:$0xff] %v9115
  %9298 = vst [vmem:[%s9199] ss:$2 sm:$0xff] %v9116
  %9299 = vst [vmem:[%s9201] ss:$2 sm:$0xff] %v9189
  %9300 = vst [vmem:[%s9203] ss:$2 sm:$0xff] %v9117
  %v9301 = vld.sshfl [vmem:[#allocation1] sm:$0xff pattern:$0x75316420]
  %v9302 = vld.sshfl [vmem:[#allocation1 + $0x10] sm:$0xff pattern:$0x75316420]
  %v9303 = vld.sshfl [vmem:[#allocation1 + $0x20] sm:$0xff pattern:$0x75316420]
  %v9304 = vld.sshfl [vmem:[#allocation1 + $0x30] sm:$0xff pattern:$0x75316420]
  %9305 = vrot.lane.b32.xlu0 %v9205, 72
  %v9306 = vpop.permute.xlu0 %9305
  %9307 = vrot.lane.b32.xlu0 %v9206, 72
  %v9308 = vpop.permute.xlu0 %9307
  %9309 = vrot.lane.b32.xlu0 %v9207, 72
  %v9310 = vpop.permute.xlu0 %9309
  %9311 = vrot.lane.b32.xlu0 %v9208, 72
  %v9312 = vpop.permute.xlu0 %9311
  %9313 = vrot.lane.b32.xlu0 %v9217, 72
  %v9314 = vpop.permute.xlu0 %9313
  %9315 = vrot.lane.b32.xlu0 %v9218, 72
  %v9316 = vpop.permute.xlu0 %9315
  %9317 = vrot.lane.b32.xlu0 %v9219, 72
  %v9318 = vpop.permute.xlu0 %9317
  %9319 = vrot.lane.b32.xlu0 %v9220, 72
  %v9320 = vpop.permute.xlu0 %9319
  %9321 = vrot.lane.b32.xlu0 %v9229, 72
  %v9322 = vpop.permute.xlu0 %9321
  %9323 = vrot.lane.b32.xlu0 %v9230, 72
  %v9324 = vpop.permute.xlu0 %9323
  %9325 = vrot.lane.b32.xlu0 %v9231, 72
  %v9326 = vpop.permute.xlu0 %9325
  %9327 = vrot.lane.b32.xlu0 %v9232, 72
  %v9328 = vpop.permute.xlu0 %9327
  %9329 = vrot.lane.b32.xlu0 %v9241, 72
  %v9330 = vpop.permute.xlu0 %9329
  %9331 = vrot.lane.b32.xlu0 %v9242, 72
  %v9332 = vpop.permute.xlu0 %9331
  %9333 = vrot.lane.b32.xlu0 %v9243, 72
  %v9334 = vpop.permute.xlu0 %9333
  %9335 = vrot.lane.b32.xlu0 %v9244, 72
  %v9336 = vpop.permute.xlu0 %9335
  %9337 = vrot.lane.b32.xlu0 %v9253, 72
  %v9338 = vpop.permute.xlu0 %9337
  %9339 = vrot.lane.b32.xlu0 %v9254, 72
  %v9340 = vpop.permute.xlu0 %9339
  %9341 = vrot.lane.b32.xlu0 %v9255, 72
  %v9342 = vpop.permute.xlu0 %9341
  %9343 = vrot.lane.b32.xlu0 %v9256, 72
  %v9344 = vpop.permute.xlu0 %9343
  %9345 = vrot.lane.b32.xlu0 %v9265, 72
  %v9346 = vpop.permute.xlu0 %9345
  %9347 = vrot.lane.b32.xlu0 %v9266, 72
  %v9348 = vpop.permute.xlu0 %9347
  %9349 = vrot.lane.b32.xlu0 %v9267, 72
  %v9350 = vpop.permute.xlu0 %9349
  %9351 = vrot.lane.b32.xlu0 %v9268, 72
  %v9352 = vpop.permute.xlu0 %9351
  %9353 = vrot.lane.b32.xlu0 %v9277, 72
  %v9354 = vpop.permute.xlu0 %9353
  %9355 = vrot.lane.b32.xlu0 %v9278, 72
  %v9356 = vpop.permute.xlu0 %9355
  %9357 = vrot.lane.b32.xlu0 %v9279, 72
  %v9358 = vpop.permute.xlu0 %9357
  %9359 = vrot.lane.b32.xlu0 %v9280, 72
  %v9360 = vpop.permute.xlu0 %9359
  %9361 = vrot.lane.b32.xlu0 %v9289, 72
  %v9362 = vpop.permute.xlu0 %9361
  %9363 = vrot.lane.b32.xlu0 %v9290, 72
  %v9364 = vpop.permute.xlu0 %9363
  %9365 = vrot.lane.b32.xlu0 %v9291, 72
  %v9366 = vpop.permute.xlu0 %9365
  %9367 = vrot.lane.b32.xlu0 %v9292, 72
  %v9368 = vpop.permute.xlu0 %9367
  %9369 = vrot.lane.b32.xlu0 %v9301, 72
  %v9370 = vpop.permute.xlu0 %9369
  %9371 = vrot.lane.b32.xlu0 %v9302, 72
  %v9372 = vpop.permute.xlu0 %9371
  %9373 = vrot.lane.b32.xlu0 %v9303, 72
  %v9374 = vpop.permute.xlu0 %9373
  %9375 = vrot.lane.b32.xlu0 %v9304, 72
  %v9376 = vpop.permute.xlu0 %9375
  %vm9413 = vcmask 613952
  %9414 = vst.msk [vmem:[#allocation2] sm:$0xff] %vm9413, %v9306
  %9415 = vst.msk [vmem:[#allocation2 + $0x8] sm:$0xff] %vm9413, %v9308
  %9416 = vst.msk [vmem:[#allocation2 + $0x10] sm:$0xff] %vm9413, %v9310
  %9417 = vst.msk [vmem:[#allocation2 + $0x18] sm:$0xff] %vm9413, %v9312
  %9418 = vst.msk [vmem:[#allocation2 + $0x20] sm:$0xff] %vm9413, %v9314
  %9419 = vst.msk [vmem:[#allocation2 + $0x28] sm:$0xff] %vm9413, %v9316
  %9420 = vst.msk [vmem:[#allocation2 + $0x30] sm:$0xff] %vm9413, %v9318
  %9421 = vst.msk [vmem:[#allocation2 + $0x38] sm:$0xff] %vm9413, %v9320
  %9422 = vst.msk [vmem:[#allocation2 + $0x40] sm:$0xff] %vm9413, %v9322
  %9423 = vst.msk [vmem:[#allocation2 + $0x48] sm:$0xff] %vm9413, %v9324
  %9424 = vst.msk [vmem:[#allocation2 + $0x50] sm:$0xff] %vm9413, %v9326
  %9425 = vst.msk [vmem:[#allocation2 + $0x58] sm:$0xff] %vm9413, %v9328
  %9426 = vst.msk [vmem:[#allocation2 + $0x60] sm:$0xff] %vm9413, %v9330
  %9427 = vst.msk [vmem:[#allocation2 + $0x68] sm:$0xff] %vm9413, %v9332
  %9428 = vst.msk [vmem:[#allocation2 + $0x70] sm:$0xff] %vm9413, %v9334
  %9429 = vst.msk [vmem:[#allocation2 + $0x78] sm:$0xff] %vm9413, %v9336
  %9430 = vst.msk [vmem:[#allocation2 + $0x80] sm:$0xff] %vm9413, %v9338
  %9431 = vst.msk [vmem:[#allocation2 + $0x88] sm:$0xff] %vm9413, %v9340
  %9432 = vst.msk [vmem:[#allocation2 + $0x90] sm:$0xff] %vm9413, %v9342
  %9433 = vst.msk [vmem:[#allocation2 + $0x98] sm:$0xff] %vm9413, %v9344
  %9434 = vst.msk [vmem:[#allocation2 + $0xa0] sm:$0xff] %vm9413, %v9346
  %9435 = vst.msk [vmem:[#allocation2 + $0xa8] sm:$0xff] %vm9413, %v9348
  %9436 = vst.msk [vmem:[#allocation2 + $0xb0] sm:$0xff] %vm9413, %v9350
  %9437 = vst.msk [vmem:[#allocation2 + $0xb8] sm:$0xff] %vm9413, %v9352
  %9438 = vst.msk [vmem:[#allocation2 + $0xc0] sm:$0xff] %vm9413, %v9354
  %9439 = vst.msk [vmem:[#allocation2 + $0xc8] sm:$0xff] %vm9413, %v9356
  %9440 = vst.msk [vmem:[#allocation2 + $0xd0] sm:$0xff] %vm9413, %v9358
  %9441 = vst.msk [vmem:[#allocation2 + $0xd8] sm:$0xff] %vm9413, %v9360
  %9442 = vst.msk [vmem:[#allocation2 + $0xe0] sm:$0xff] %vm9413, %v9362
  %9443 = vst.msk [vmem:[#allocation2 + $0xe8] sm:$0xff] %vm9413, %v9364
  %9444 = vst.msk [vmem:[#allocation2 + $0xf0] sm:$0xff] %vm9413, %v9366
  %9445 = vst.msk [vmem:[#allocation2 + $0xf8] sm:$0xff] %vm9413, %v9368
  %9446 = vst.msk [vmem:[#allocation2 + $0x100] sm:$0xff] %vm9413, %v9370
  %9447 = vst.msk [vmem:[#allocation2 + $0x108] sm:$0xff] %vm9413, %v9372
  %9448 = vst.msk [vmem:[#allocation2 + $0x110] sm:$0xff] %vm9413, %v9374
  %9449 = vst.msk [vmem:[#allocation2 + $0x118] sm:$0xff] %vm9413, %v9376
  %v9450 = vld [vmem:[#allocation2] sm:$0xff]
  %v9451 = vld [vmem:[#allocation2 + $0x8] sm:$0xff]
  %v9452 = vld [vmem:[#allocation2 + $0x10] sm:$0xff]
  %v9453 = vld [vmem:[#allocation2 + $0x18] sm:$0xff]
  %v9454 = vld [vmem:[#allocation2 + $0x20] sm:$0xff]
  %v9455 = vld [vmem:[#allocation2 + $0x28] sm:$0xff]
  %v9456 = vld [vmem:[#allocation2 + $0x30] sm:$0xff]
  %v9457 = vld [vmem:[#allocation2 + $0x38] sm:$0xff]
  %v9458 = vld [vmem:[#allocation2 + $0x40] sm:$0xff]
  %v9459 = vld [vmem:[#allocation2 + $0x48] sm:$0xff]
  %v9460 = vld [vmem:[#allocation2 + $0x50] sm:$0xff]
  %v9461 = vld [vmem:[#allocation2 + $0x58] sm:$0xff]
  %v9462 = vld [vmem:[#allocation2 + $0x60] sm:$0xff]
  %v9463 = vld [vmem:[#allocation2 + $0x68] sm:$0xff]
  %v9464 = vld [vmem:[#allocation2 + $0x70] sm:$0xff]
  %v9465 = vld [vmem:[#allocation2 + $0x78] sm:$0xff]
  %v9466 = vld [vmem:[#allocation2 + $0x80] sm:$0xff]
  %v9467 = vld [vmem:[#allocation2 + $0x88] sm:$0xff]
  %v9468 = vld [vmem:[#allocation2 + $0x90] sm:$0xff]
  %v9469 = vld [vmem:[#allocation2 + $0x98] sm:$0xff]
  %v9470 = vld [vmem:[#allocation2 + $0xa0] sm:$0xff]
  %v9471 = vld [vmem:[#allocation2 + $0xa8] sm:$0xff]
  %v9472 = vld [vmem:[#allocation2 + $0xb0] sm:$0xff]
  %v9473 = vld [vmem:[#allocation2 + $0xb8] sm:$0xff]
  %v9474 = vld [vmem:[#allocation2 + $0xc0] sm:$0xff]
  %v9475 = vld [vmem:[#allocation2 + $0xc8] sm:$0xff]
  %v9476 = vld [vmem:[#allocation2 + $0xd0] sm:$0xff]
  %v9477 = vld [vmem:[#allocation2 + $0xd8] sm:$0xff]
  %v9478 = vld [vmem:[#allocation2 + $0xe0] sm:$0xff]
  %v9479 = vld [vmem:[#allocation2 + $0xe8] sm:$0xff]
  %v9480 = vld [vmem:[#allocation2 + $0xf0] sm:$0xff]
  %v9481 = vld [vmem:[#allocation2 + $0xf8] sm:$0xff]
  %v9482 = vld [vmem:[#allocation2 + $0x100] sm:$0xff]
  %v9483 = vld [vmem:[#allocation2 + $0x108] sm:$0xff]
  %v9484 = vld [vmem:[#allocation2 + $0x110] sm:$0xff]
  %v9485 = vld [vmem:[#allocation2 + $0x118] sm:$0xff]
  %v9486 = vld [vmem:[%s2] sm:$0xff]
  %v9487 = vld [vmem:[%s2 + $0x8] sm:$0xff]
  %v9488 = vld [vmem:[%s2 + $0x10] sm:$0xff]
  %v9489 = vld [vmem:[%s2 + $0x18] sm:$0xff]
  %v9490 = vld [vmem:[%s2 + $0x20] sm:$0xff]
  %v9491 = vld [vmem:[%s2 + $0x28] sm:$0xff]
  %v9492 = vld [vmem:[%s2 + $0x30] sm:$0xff]
  %v9493 = vld [vmem:[%s2 + $0x38] sm:$0xff]
  %v9494 = vld [vmem:[%s2 + $0x40] sm:$0xff]
  %v9495 = vld [vmem:[%s2 + $0x48] sm:$0x7]
  %vm9496 = vcmask 613376
  %v9498 = vsel %vm9496, %v9450, 0
  %v9501 = vsel %vm9496, %v9451, 0
  %v9504 = vsel %vm9496, %v9452, 0
  %v9507 = vsel %vm9496, %v9453, 0
  %v9510 = vsel %vm9496, %v9454, 0
  %v9513 = vsel %vm9496, %v9455, 0
  %v9516 = vsel %vm9496, %v9456, 0
  %v9519 = vsel %vm9496, %v9457, 0
  %v9522 = vsel %vm9496, %v9458, 0
  %v9525 = vsel %vm9496, %v9459, 0
  %v9528 = vsel %vm9496, %v9460, 0
  %v9531 = vsel %vm9496, %v9461, 0
  %v9534 = vsel %vm9496, %v9462, 0
  %v9537 = vsel %vm9496, %v9463, 0
  %v9540 = vsel %vm9496, %v9464, 0
  %v9543 = vsel %vm9496, %v9465, 0
  %v9546 = vsel %vm9496, %v9466, 0
  %v9549 = vsel %vm9496, %v9467, 0
  %v9552 = vsel %vm9496, %v9468, 0
  %v9555 = vsel %vm9496, %v9469, 0
  %v9558 = vsel %vm9496, %v9470, 0
  %v9561 = vsel %vm9496, %v9471, 0
  %v9564 = vsel %vm9496, %v9472, 0
  %v9567 = vsel %vm9496, %v9473, 0
  %v9570 = vsel %vm9496, %v9474, 0
  %v9573 = vsel %vm9496, %v9475, 0
  %v9576 = vsel %vm9496, %v9476, 0
  %v9579 = vsel %vm9496, %v9477, 0
  %v9582 = vsel %vm9496, %v9478, 0
  %v9585 = vsel %vm9496, %v9479, 0
  %v9588 = vsel %vm9496, %v9480, 0
  %v9591 = vsel %vm9496, %v9481, 0
  %v9594 = vsel %vm9496, %v9482, 0
  %v9597 = vsel %vm9496, %v9483, 0
  %v9600 = vsel %vm9496, %v9484, 0
  %v9603 = vsel %vm9496, %v9485, 0
  %vm9605 = vcmask 1042432
  %v9607 = vsel %vm9605, %v9495, 0
  %9609 = vmatpush.msra.mxu0 0.0
  %9610 = vmatpush.msra.mxu0 0.0
  %9611 = vmatpush.msra.mxu0 0.0
  %9612 = vmatpush.msra.mxu0 0.0
  %9613 = vmatpush.msra.mxu0 0.0
  %9614 = vmatpush.msra.mxu0 0.0
  %9615 = vmatpush.msra.mxu0 %v9607
  %9616 = vmatpush.msra.mxu0 %v9494
  %9617 = vmatpush.msra.mxu0 %v9493
  %9618 = vmatpush.msra.mxu0 %v9492
  %9619 = vmatpush.msra.mxu0 %v9491
  %9620 = vmatpush.msra.mxu0 %v9490
  %9621 = vmatpush.msra.mxu0 %v9489
  %9622 = vmatpush.msra.mxu0 %v9488
  %9623 = vmatpush.msra.mxu0 %v9487
  %9624 = vmatpush.msra.mxu0 %v9486
  %9625 = vmatmul.f32.gmra.mxu0 %v9498
  %v9626 = vpop.f32.mrf.mxu0
  %v9627 = vadd.f32 0.0, %v9626
  %9628 = vmatmul.f32.gmra.mxu0 %v9501
  %v9629 = vpop.f32.mrf.mxu0
  %v9630 = vadd.f32 0.0, %v9629
  %9631 = vmatmul.f32.gmra.mxu0 %v9504
  %v9632 = vpop.f32.mrf.mxu0
  %v9633 = vadd.f32 0.0, %v9632
  %9634 = vmatmul.f32.gmra.mxu0 %v9507
  %v9635 = vpop.f32.mrf.mxu0
  %v9636 = vadd.f32 0.0, %v9635
  %9637 = vmatmul.f32.gmra.mxu0 %v9510
  %v9638 = vpop.f32.mrf.mxu0
  %v9639 = vadd.f32 0.0, %v9638
  %9640 = vmatmul.f32.gmra.mxu0 %v9513
  %v9641 = vpop.f32.mrf.mxu0
  %v9642 = vadd.f32 0.0, %v9641
  %9643 = vmatmul.f32.gmra.mxu0 %v9516
  %v9644 = vpop.f32.mrf.mxu0
  %v9645 = vadd.f32 0.0, %v9644
  %9646 = vmatmul.f32.gmra.mxu0 %v9519
  %v9647 = vpop.f32.mrf.mxu0
  %v9648 = vadd.f32 0.0, %v9647
  %9649 = vmatmul.f32.gmra.mxu0 %v9522
  %v9650 = vpop.f32.mrf.mxu0
  %v9651 = vadd.f32 0.0, %v9650
  %9652 = vmatmul.f32.gmra.mxu0 %v9525
  %v9653 = vpop.f32.mrf.mxu0
  %v9654 = vadd.f32 0.0, %v9653
  %9655 = vmatmul.f32.gmra.mxu0 %v9528
  %v9656 = vpop.f32.mrf.mxu0
  %v9657 = vadd.f32 0.0, %v9656
  %9658 = vmatmul.f32.gmra.mxu0 %v9531
  %v9659 = vpop.f32.mrf.mxu0
  %v9660 = vadd.f32 0.0, %v9659
  %9661 = vmatmul.f32.gmra.mxu0 %v9534
  %v9662 = vpop.f32.mrf.mxu0
  %v9663 = vadd.f32 0.0, %v9662
  %9664 = vmatmul.f32.gmra.mxu0 %v9537
  %v9665 = vpop.f32.mrf.mxu0
  %v9666 = vadd.f32 0.0, %v9665
  %9667 = vmatmul.f32.gmra.mxu0 %v9540
  %v9668 = vpop.f32.mrf.mxu0
  %v9669 = vadd.f32 0.0, %v9668
  %9670 = vmatmul.f32.gmra.mxu0 %v9543
  %v9671 = vpop.f32.mrf.mxu0
  %v9672 = vadd.f32 0.0, %v9671
  %9673 = vmatmul.f32.gmra.mxu0 %v9546
  %v9674 = vpop.f32.mrf.mxu0
  %v9675 = vadd.f32 0.0, %v9674
  %9676 = vmatmul.f32.gmra.mxu0 %v9549
  %v9677 = vpop.f32.mrf.mxu0
  %v9678 = vadd.f32 0.0, %v9677
  %9679 = vmatmul.f32.gmra.mxu0 %v9552
  %v9680 = vpop.f32.mrf.mxu0
  %v9681 = vadd.f32 0.0, %v9680
  %9682 = vmatmul.f32.gmra.mxu0 %v9555
  %v9683 = vpop.f32.mrf.mxu0
  %v9684 = vadd.f32 0.0, %v9683
  %9685 = vmatmul.f32.gmra.mxu0 %v9558
  %v9686 = vpop.f32.mrf.mxu0
  %v9687 = vadd.f32 0.0, %v9686
  %9688 = vmatmul.f32.gmra.mxu0 %v9561
  %v9689 = vpop.f32.mrf.mxu0
  %v9690 = vadd.f32 0.0, %v9689
  %9691 = vmatmul.f32.gmra.mxu0 %v9564
  %v9692 = vpop.f32.mrf.mxu0
  %v9693 = vadd.f32 0.0, %v9692
  %9694 = vmatmul.f32.gmra.mxu0 %v9567
  %v9695 = vpop.f32.mrf.mxu0
  %v9696 = vadd.f32 0.0, %v9695
  %9697 = vmatmul.f32.gmra.mxu0 %v9570
  %v9698 = vpop.f32.mrf.mxu0
  %v9699 = vadd.f32 0.0, %v9698
  %9700 = vmatmul.f32.gmra.mxu0 %v9573
  %v9701 = vpop.f32.mrf.mxu0
  %v9702 = vadd.f32 0.0, %v9701
  %9703 = vmatmul.f32.gmra.mxu0 %v9576
  %v9704 = vpop.f32.mrf.mxu0
  %v9705 = vadd.f32 0.0, %v9704
  %9706 = vmatmul.f32.gmra.mxu0 %v9579
  %v9707 = vpop.f32.mrf.mxu0
  %v9708 = vadd.f32 0.0, %v9707
  %9709 = vmatmul.f32.gmra.mxu0 %v9582
  %v9710 = vpop.f32.mrf.mxu0
  %v9711 = vadd.f32 0.0, %v9710
  %9712 = vmatmul.f32.gmra.mxu0 %v9585
  %v9713 = vpop.f32.mrf.mxu0
  %v9714 = vadd.f32 0.0, %v9713
  %9715 = vmatmul.f32.gmra.mxu0 %v9588
  %v9716 = vpop.f32.mrf.mxu0
  %v9717 = vadd.f32 0.0, %v9716
  %9718 = vmatmul.f32.gmra.mxu0 %v9591
  %v9719 = vpop.f32.mrf.mxu0
  %v9720 = vadd.f32 0.0, %v9719
  %9721 = vmatmul.f32.gmra.mxu0 %v9594
  %v9722 = vpop.f32.mrf.mxu0
  %v9723 = vadd.f32 0.0, %v9722
  %9724 = vmatmul.f32.gmra.mxu0 %v9597
  %v9725 = vpop.f32.mrf.mxu0
  %v9726 = vadd.f32 0.0, %v9725
  %9727 = vmatmul.f32.gmra.mxu0 %v9600
  %v9728 = vpop.f32.mrf.mxu0
  %v9729 = vadd.f32 0.0, %v9728
  %9730 = vmatmul.f32.gmra.mxu0 %v9603
  %v9731 = vpop.f32.mrf.mxu0
  %v9732 = vadd.f32 0.0, %v9731
  %9733 = vdwg.mxu0
  %9734 = vxpose.xlu0.b32.start [1/16] %v9627, 128
  %9735 = vxpose.xlu0.b32.cont [2/16] %v9630, 128
  %9736 = vxpose.xlu0.b32.cont [3/16] %v9633, 128
  %9737 = vxpose.xlu0.b32.cont [4/16] %v9636, 128
  %9738 = vxpose.xlu0.b32.cont [5/16] %v9639, 128
  %9739 = vxpose.xlu0.b32.cont [6/16] %v9642, 128
  %9740 = vxpose.xlu0.b32.cont [7/16] %v9645, 128
  %9741 = vxpose.xlu0.b32.cont [8/16] %v9648, 128
  %9742 = vxpose.xlu0.b32.cont [9/16] %v9651, 128
  %9743 = vxpose.xlu0.b32.cont [10/16] %v9654, 128
  %9744 = vxpose.xlu0.b32.cont [11/16] %v9657, 128
  %9745 = vxpose.xlu0.b32.cont [12/16] %v9660, 128
  %9746 = vxpose.xlu0.b32.cont [13/16] %v9663, 128
  %9747 = vxpose.xlu0.b32.cont [14/16] %v9666, 128
  %9748 = vxpose.xlu0.b32.cont [15/16] %v9669, 128
  %9749 = vxpose.xlu0.b32.end [16/16] %v9672, 128
  %v9750 = vpop.trf.xlu0
  %v9751 = vpop.trf.xlu0
  %v9752 = vpop.trf.xlu0
  %v9753 = vpop.trf.xlu0
  %v9754 = vpop.trf.xlu0
  %v9755 = vpop.trf.xlu0
  %v9756 = vpop.trf.xlu0
  %v9757 = vpop.trf.xlu0
  %v9758 = vpop.trf.xlu0
  %v9759 = vpop.trf.xlu0
  %v9760 = vpop.trf.xlu0
  %v9761 = vpop.trf.xlu0
  %v9762 = vpop.trf.xlu0
  %v9763 = vpop.trf.xlu0
  %v9764 = vpop.trf.xlu0
  %v9765 = vpop.trf.xlu0
  %9766 = vxpose.xlu0.b32.start [1/16] %v9675, 128
  %9767 = vxpose.xlu0.b32.cont [2/16] %v9678, 128
  %9768 = vxpose.xlu0.b32.cont [3/16] %v9681, 128
  %9769 = vxpose.xlu0.b32.cont [4/16] %v9684, 128
  %9770 = vxpose.xlu0.b32.cont [5/16] %v9687, 128
  %9771 = vxpose.xlu0.b32.cont [6/16] %v9690, 128
  %9772 = vxpose.xlu0.b32.cont [7/16] %v9693, 128
  %9773 = vxpose.xlu0.b32.cont [8/16] %v9696, 128
  %9774 = vxpose.xlu0.b32.cont [9/16] %v9699, 128
  %9775 = vxpose.xlu0.b32.cont [10/16] %v9702, 128
  %9776 = vxpose.xlu0.b32.cont [11/16] %v9705, 128
  %9777 = vxpose.xlu0.b32.cont [12/16] %v9708, 128
  %9778 = vxpose.xlu0.b32.cont [13/16] %v9711, 128
  %9779 = vxpose.xlu0.b32.cont [14/16] %v9714, 128
  %9780 = vxpose.xlu0.b32.cont [15/16] %v9717, 128
  %9781 = vxpose.xlu0.b32.end [16/16] %v9720, 128
  %v9782 = vpop.trf.xlu0
  %v9783 = vpop.trf.xlu0
  %v9784 = vpop.trf.xlu0
  %v9785 = vpop.trf.xlu0
  %v9786 = vpop.trf.xlu0
  %v9787 = vpop.trf.xlu0
  %v9788 = vpop.trf.xlu0
  %v9789 = vpop.trf.xlu0
  %v9790 = vpop.trf.xlu0
  %v9791 = vpop.trf.xlu0
  %v9792 = vpop.trf.xlu0
  %v9793 = vpop.trf.xlu0
  %v9794 = vpop.trf.xlu0
  %v9795 = vpop.trf.xlu0
  %v9796 = vpop.trf.xlu0
  %v9797 = vpop.trf.xlu0
  %9798 = vxpose.xlu0.b32.start [1/16] %v9723, 128
  %9799 = vxpose.xlu0.b32.cont [2/16] %v9726, 128
  %9800 = vxpose.xlu0.b32.cont [3/16] %v9729, 128
  %9801 = vxpose.xlu0.b32.cont [4/16] %v9732, 128
  %9802 = vxpose.xlu0.b32.cont [5/16] 0.0, 128
  %9803 = vxpose.xlu0.b32.cont [6/16] 0.0, 128
  %9804 = vxpose.xlu0.b32.cont [7/16] 0.0, 128
  %9805 = vxpose.xlu0.b32.cont [8/16] 0.0, 128
  %9806 = vxpose.xlu0.b32.cont [9/16] 0.0, 128
  %9807 = vxpose.xlu0.b32.cont [10/16] 0.0, 128
  %9808 = vxpose.xlu0.b32.cont [11/16] 0.0, 128
  %9809 = vxpose.xlu0.b32.cont [12/16] 0.0, 128
  %9810 = vxpose.xlu0.b32.cont [13/16] 0.0, 128
  %9811 = vxpose.xlu0.b32.cont [14/16] 0.0, 128
  %9812 = vxpose.xlu0.b32.cont [15/16] 0.0, 128
  %9813 = vxpose.xlu0.b32.end [16/16] 0.0, 128
  %v9814 = vpop.trf.xlu0
  %v9815 = vpop.trf.xlu0
  %v9816 = vpop.trf.xlu0
  %v9817 = vpop.trf.xlu0
  %v9818 = vpop.trf.xlu0
  %v9819 = vpop.trf.xlu0
  %v9820 = vpop.trf.xlu0
  %v9821 = vpop.trf.xlu0
  %v9822 = vpop.trf.xlu0
  %v9823 = vpop.trf.xlu0
  %v9824 = vpop.trf.xlu0
  %v9825 = vpop.trf.xlu0
  %v9826 = vpop.trf.xlu0
  %v9827 = vpop.trf.xlu0
  %v9828 = vpop.trf.xlu0
  %v9829 = vpop.trf.xlu0
  %v9830 = vld [vmem:[%s3] sm:$0xff]
  %v9831 = vld [vmem:[%s3 + $0x8] sm:$0xff]
  %v9832 = vld [vmem:[%s3 + $0x10] sm:$0xff]
  %v9833 = vld [vmem:[%s3 + $0x18] sm:$0xff]
  %9835 = vset.pattern.permute.xlu0 0
  %9836 = vperm.xlu0 %9835, %v9830
  %v9837 = vpop.permute.xlu0 %9836
  %9840 = vset.pattern.permute.xlu0 0
  %9841 = vperm.xlu0 %9840, %v9831
  %v9842 = vpop.permute.xlu0 %9841
  %9845 = vset.pattern.permute.xlu0 0
  %9846 = vperm.xlu0 %9845, %v9832
  %v9847 = vpop.permute.xlu0 %9846
  %9850 = vset.pattern.permute.xlu0 0
  %9851 = vperm.xlu0 %9850, %v9833
  %v9852 = vpop.permute.xlu0 %9851
  %v9854 = vadd.f32 %v9750, %v9837
  %v9855 = vadd.f32 %v9782, %v9837
  %v9856 = vadd.f32 %v9814, %v9837
  %v9857 = vadd.f32 %v9751, %v9842
  %v9858 = vadd.f32 %v9783, %v9842
  %v9859 = vadd.f32 %v9815, %v9842
  %v9860 = vadd.f32 %v9752, %v9847
  %v9861 = vadd.f32 %v9784, %v9847
  %v9862 = vadd.f32 %v9816, %v9847
  %v9863 = vadd.f32 %v9753, %v9852
  %v9864 = vadd.f32 %v9785, %v9852
  %v9865 = vadd.f32 %v9817, %v9852
  %v9866 = vlaneseq
  %v9867 = vshrl.u32 %v9866, 7
  %v9868 = vadd.s32 %v9867, 8
  %v9869 = vadd.s32 %v9867, 16
  %v9870 = vadd.s32 %v9867, 24
  %v9871 = vlaneseq
  %v9872 = vand.u32 %v9871, 127
  %v9873 = vadd.s32 %v9872, 128
  %v9874 = vadd.s32 %v9872, 256
  %v9875 = vmul.u32 %v9867, 288
  %v9876 = vmul.u32 %v9868, 288
  %v9877 = vmul.u32 %v9869, 288
  %v9878 = vmul.u32 %v9870, 288
  %v9879 = vadd.s32 %v9875, %v9872
  %v9880 = vadd.s32 %v9875, %v9873
  %v9881 = vadd.s32 %v9875, %v9874
  %v9882 = vadd.s32 %v9876, %v9872
  %v9883 = vadd.s32 %v9876, %v9873
  %v9884 = vadd.s32 %v9876, %v9874
  %v9885 = vadd.s32 %v9877, %v9872
  %v9886 = vadd.s32 %v9877, %v9873
  %v9887 = vadd.s32 %v9877, %v9874
  %v9888 = vadd.s32 %v9878, %v9872
  %v9889 = vadd.s32 %v9878, %v9873
  %v9890 = vadd.s32 %v9878, %v9874
  %s9891 = sld [smem:[#allocation3]]
  %s9892 = smul.u32 %s9891, 2654435761
  %v9893 = vstv %s9892
  %v9894 = vxor.u32 %v9879, %v9893
  %v9895 = vxor.u32 %v9880, %v9893
  %v9896 = vxor.u32 %v9881, %v9893
  %v9897 = vxor.u32 %v9882, %v9893
  %v9898 = vxor.u32 %v9883, %v9893
  %v9899 = vxor.u32 %v9884, %v9893
  %v9900 = vxor.u32 %v9885, %v9893
  %v9901 = vxor.u32 %v9886, %v9893
  %v9902 = vxor.u32 %v9887, %v9893
  %v9903 = vxor.u32 %v9888, %v9893
  %v9904 = vxor.u32 %v9889, %v9893
  %v9905 = vxor.u32 %v9890, %v9893
  %v9906 = vshrl.u32 %v9894, 16
  %v9907 = vshrl.u32 %v9895, 16
  %v9908 = vshrl.u32 %v9896, 16
  %v9909 = vshrl.u32 %v9897, 16
  %v9910 = vshrl.u32 %v9898, 16
  %v9911 = vshrl.u32 %v9899, 16
  %v9912 = vshrl.u32 %v9900, 16
  %v9913 = vshrl.u32 %v9901, 16
  %v9914 = vshrl.u32 %v9902, 16
  %v9915 = vshrl.u32 %v9903, 16
  %v9916 = vshrl.u32 %v9904, 16
  %v9917 = vshrl.u32 %v9905, 16
  %v9918 = vxor.u32 %v9894, %v9906
  %v9919 = vxor.u32 %v9895, %v9907
  %v9920 = vxor.u32 %v9896, %v9908
  %v9921 = vxor.u32 %v9897, %v9909
  %v9922 = vxor.u32 %v9898, %v9910
  %v9923 = vxor.u32 %v9899, %v9911
  %v9924 = vxor.u32 %v9900, %v9912
  %v9925 = vxor.u32 %v9901, %v9913
  %v9926 = vxor.u32 %v9902, %v9914
  %v9927 = vxor.u32 %v9903, %v9915
  %v9928 = vxor.u32 %v9904, %v9916
  %v9929 = vxor.u32 %v9905, %v9917
  %v9930 = vmul.u32 %v9918, 2146121005
  %v9931 = vmul.u32 %v9919, 2146121005
  %v9932 = vmul.u32 %v9920, 2146121005
  %v9933 = vmul.u32 %v9921, 2146121005
  %v9934 = vmul.u32 %v9922, 2146121005
  %v9935 = vmul.u32 %v9923, 2146121005
  %v9936 = vmul.u32 %v9924, 2146121005
  %v9937 = vmul.u32 %v9925, 2146121005
  %v9938 = vmul.u32 %v9926, 2146121005
  %v9939 = vmul.u32 %v9927, 2146121005
  %v9940 = vmul.u32 %v9928, 2146121005
  %v9941 = vmul.u32 %v9929, 2146121005
  %v9942 = vshrl.u32 %v9930, 15
  %v9943 = vshrl.u32 %v9931, 15
  %v9944 = vshrl.u32 %v9932, 15
  %v9945 = vshrl.u32 %v9933, 15
  %v9946 = vshrl.u32 %v9934, 15
  %v9947 = vshrl.u32 %v9935, 15
  %v9948 = vshrl.u32 %v9936, 15
  %v9949 = vshrl.u32 %v9937, 15
  %v9950 = vshrl.u32 %v9938, 15
  %v9951 = vshrl.u32 %v9939, 15
  %v9952 = vshrl.u32 %v9940, 15
  %v9953 = vshrl.u32 %v9941, 15
  %v9954 = vxor.u32 %v9930, %v9942
  %v9955 = vxor.u32 %v9931, %v9943
  %v9956 = vxor.u32 %v9932, %v9944
  %v9957 = vxor.u32 %v9933, %v9945
  %v9958 = vxor.u32 %v9934, %v9946
  %v9959 = vxor.u32 %v9935, %v9947
  %v9960 = vxor.u32 %v9936, %v9948
  %v9961 = vxor.u32 %v9937, %v9949
  %v9962 = vxor.u32 %v9938, %v9950
  %v9963 = vxor.u32 %v9939, %v9951
  %v9964 = vxor.u32 %v9940, %v9952
  %v9965 = vxor.u32 %v9941, %v9953
  %v9966 = vmul.u32 %v9954, 2221713035
  %v9967 = vmul.u32 %v9955, 2221713035
  %v9968 = vmul.u32 %v9956, 2221713035
  %v9969 = vmul.u32 %v9957, 2221713035
  %v9970 = vmul.u32 %v9958, 2221713035
  %v9971 = vmul.u32 %v9959, 2221713035
  %v9972 = vmul.u32 %v9960, 2221713035
  %v9973 = vmul.u32 %v9961, 2221713035
  %v9974 = vmul.u32 %v9962, 2221713035
  %v9975 = vmul.u32 %v9963, 2221713035
  %v9976 = vmul.u32 %v9964, 2221713035
  %v9977 = vmul.u32 %v9965, 2221713035
  %v9978 = vshrl.u32 %v9966, 16
  %v9979 = vshrl.u32 %v9967, 16
  %v9980 = vshrl.u32 %v9968, 16
  %v9981 = vshrl.u32 %v9969, 16
  %v9982 = vshrl.u32 %v9970, 16
  %v9983 = vshrl.u32 %v9971, 16
  %v9984 = vshrl.u32 %v9972, 16
  %v9985 = vshrl.u32 %v9973, 16
  %v9986 = vshrl.u32 %v9974, 16
  %v9987 = vshrl.u32 %v9975, 16
  %v9988 = vshrl.u32 %v9976, 16
  %v9989 = vshrl.u32 %v9977, 16
  %v9990 = vxor.u32 %v9966, %v9978
  %v9991 = vxor.u32 %v9967, %v9979
  %v9992 = vxor.u32 %v9968, %v9980
  %v9993 = vxor.u32 %v9969, %v9981
  %v9994 = vxor.u32 %v9970, %v9982
  %v9995 = vxor.u32 %v9971, %v9983
  %v9996 = vxor.u32 %v9972, %v9984
  %v9997 = vxor.u32 %v9973, %v9985
  %v9998 = vxor.u32 %v9974, %v9986
  %v9999 = vxor.u32 %v9975, %v9987
  %v10000 = vxor.u32 %v9976, %v9988
  %v10001 = vxor.u32 %v9977, %v9989
  %v10002 = vshrl.u32 %v9990, 31
  %v10003 = vshrl.u32 %v9991, 31
  %v10004 = vshrl.u32 %v9992, 31
  %v10005 = vshrl.u32 %v9993, 31
  %v10006 = vshrl.u32 %v9994, 31
  %v10007 = vshrl.u32 %v9995, 31
  %v10008 = vshrl.u32 %v9996, 31
  %v10009 = vshrl.u32 %v9997, 31
  %v10010 = vshrl.u32 %v9998, 31
  %v10011 = vshrl.u32 %v9999, 31
  %v10012 = vshrl.u32 %v10000, 31
  %v10013 = vshrl.u32 %v10001, 31
  %vm10014 = vcmp.eq.s32.totalorder %v10002, 0
  %vm10015 = vcmp.eq.s32.totalorder %v10003, 0
  %vm10016 = vcmp.eq.s32.totalorder %v10004, 0
  %vm10017 = vcmp.eq.s32.totalorder %v10005, 0
  %vm10018 = vcmp.eq.s32.totalorder %v10006, 0
  %vm10019 = vcmp.eq.s32.totalorder %v10007, 0
  %vm10020 = vcmp.eq.s32.totalorder %v10008, 0
  %vm10021 = vcmp.eq.s32.totalorder %v10009, 0
  %vm10022 = vcmp.eq.s32.totalorder %v10010, 0
  %vm10023 = vcmp.eq.s32.totalorder %v10011, 0
  %vm10024 = vcmp.eq.s32.totalorder %v10012, 0
  %vm10025 = vcmp.eq.s32.totalorder %v10013, 0
  %v10026 = vmul.f32 %v9854, 2.0
  %v10027 = vmul.f32 %v9855, 2.0
  %v10028 = vmul.f32 %v9856, 2.0
  %v10029 = vmul.f32 %v9857, 2.0
  %v10030 = vmul.f32 %v9858, 2.0
  %v10031 = vmul.f32 %v9859, 2.0
  %v10032 = vmul.f32 %v9860, 2.0
  %v10033 = vmul.f32 %v9861, 2.0
  %v10034 = vmul.f32 %v9862, 2.0
  %v10035 = vmul.f32 %v9863, 2.0
  %v10036 = vmul.f32 %v9864, 2.0
  %v10037 = vmul.f32 %v9865, 2.0
  %v10038 = vsel %vm10014, %v10026, 0.0
  %v10039 = vsel %vm10015, %v10027, 0.0
  %v10040 = vsel %vm10016, %v10028, 0.0
  %v10041 = vsel %vm10017, %v10029, 0.0
  %v10042 = vsel %vm10018, %v10030, 0.0
  %v10043 = vsel %vm10019, %v10031, 0.0
  %v10044 = vsel %vm10020, %v10032, 0.0
  %v10045 = vsel %vm10021, %v10033, 0.0
  %v10046 = vsel %vm10022, %v10034, 0.0
  %v10047 = vsel %vm10023, %v10035, 0.0
  %v10048 = vsel %vm10024, %v10036, 0.0
  %v10049 = vsel %vm10025, %v10037, 0.0
  %10050 = vst [vmem:[%s4] sm:$0xff] %v10038
  %vm10051 = vcmask 130048
  %10052 = vst.msk [vmem:[%s4 + $0x8] sm:$0xff] %vm10051, %v10039
  %10053 = vst [vmem:[%s4 + $0x10] sm:$0xff] %v10041
  %10054 = vst.msk [vmem:[%s4 + $0x18] sm:$0xff] %vm10051, %v10042
  %10055 = vst [vmem:[%s4 + $0x20] sm:$0xff] %v10044
  %10056 = vst.msk [vmem:[%s4 + $0x28] sm:$0xff] %vm10051, %v10045
  %10057 = vst [vmem:[%s4 + $0x30] sm:$0xff] %v10047
  %10058 = vst.msk [vmem:[%s4 + $0x38] sm:$0xff] %vm10051, %v10048
  %10067 = vrot.lane.b32.xlu0 %v10039, 112
  %v10068 = vpop.permute.xlu0 %10067
  %10069 = vrot.lane.b32.xlu0 %v10040, 112
  %v10070 = vpop.permute.xlu0 %10069
  %10071 = vrot.lane.b32.xlu0 %v10042, 112
  %v10072 = vpop.permute.xlu0 %10071
  %10073 = vrot.lane.b32.xlu0 %v10043, 112
  %v10074 = vpop.permute.xlu0 %10073
  %10075 = vrot.lane.b32.xlu0 %v10045, 112
  %v10076 = vpop.permute.xlu0 %10075
  %10077 = vrot.lane.b32.xlu0 %v10046, 112
  %v10078 = vpop.permute.xlu0 %10077
  %10079 = vrot.lane.b32.xlu0 %v10048, 112
  %v10080 = vpop.permute.xlu0 %10079
  %10081 = vrot.lane.b32.xlu0 %v10049, 112
  %v10082 = vpop.permute.xlu0 %10081
  %vm10083 = vcmask 916480
  %v10084 = vsel %vm10083, %v10068, %v10070
  %v10085 = vsel %vm10083, %v10072, %v10074
  %v10086 = vsel %vm10083, %v10076, %v10078
  %v10087 = vsel %vm10083, %v10080, %v10082
  %s10096 = scalar_lea.vmem %s4, 64
  %10097 = vst [vmem:[%s10096] sm:$0xff] %v10084
  %10098 = vst.msk [vmem:[%s10096 + $0x8] sm:$0xff] %vm10051, %v10070
  %10099 = vst [vmem:[%s10096 + $0x10] sm:$0xff] %v10085
  %10100 = vst.msk [vmem:[%s10096 + $0x18] sm:$0xff] %vm10051, %v10074
  %10101 = vst [vmem:[%s10096 + $0x20] sm:$0xff] %v10086
  %10102 = vst.msk [vmem:[%s10096 + $0x28] sm:$0xff] %vm10051, %v10078
  %10103 = vst [vmem:[%s10096 + $0x30] sm:$0xff] %v10087
  %10104 = vst.msk [vmem:[%s10096 + $0x38] sm:$0xff] %vm10051, %v10082
  // Predicated region
  $region18: #{conv2d_dropout.1} parent=0 // pred_check
    _
  $region19: #{conv2d_dropout.1} parent=0 // pred_check_branch
    %10106 = sbr.rel (0) target = $region21
  $region20: #{conv2d_dropout.1} parent=0 // pred_region
    _
  $region21: #{conv2d_dropout.1} parent=0 // pred_fallthru
    _
  // Predicated region
  $region22: #{conv2d_dropout.1} parent=0 // pred_check
    _
  $region23: #{conv2d_dropout.1} parent=0 // pred_check_branch
    %10108 = sbr.rel (0) target = $region25
  $region24: #{conv2d_dropout.1} parent=0 // pred_region
    _
  $region25: #{conv2d_dropout.1} parent=0 // pred_fallthru
    _

</llo_original>
